<compile_context>
chip_gen: v7x
topology: tpu7x:2x2x1
jax: 0.10.0
libtpu: 0.0.40
codegen_flags: <defaults>
</compile_context>

<pallas_src>
import functools

import jax
import jax.numpy as jnp
from jax.experimental import pallas as pl
from jax.experimental.pallas import tpu as pltpu

CHAR_EMBED_SIZE = 50
C_PAD = 64                               # 50 padded to a bf16-friendly 64
MAX_WORD_LEN = 21
KERNEL_SIZE = 5
L_OUT = MAX_WORD_LEN - KERNEL_SIZE + 1   # 17
SUB_ROWS = 256                           # in-kernel sub-tile (keeps accumulator small)


def _round_up(x, m):
    return ((x + m - 1) // m) * m


def _cdiv(a, b):
    return (a + b - 1) // b


def _model_embeddings_kernel(
    x_ref,       # (W=21, block_n, C_PAD)   bf16, compact time-major char embeddings
    wconv_ref,   # (K=5, C_PAD, E_pad)      bf16, conv weight per tap offset
    bconv_ref,   # (1, E_pad)               f32
    whw_ref,     # (E_pad, 2*E_pad)         bf16, fused [proj | gate] weights
    bhw_ref,     # (1, 2*E_pad)             f32,  fused [proj | gate] biases
    out_ref,     # (block_n, E_pad)
):
    block_n, e_pad = out_ref.shape
    sub = SUB_ROWS if block_n % SUB_ROWS == 0 else 128   # block_n is a multiple of 128
    n_sub = block_n // sub

    # Weights / biases are tiny: load once, reuse across all sub-tiles.
    w_k = [wconv_ref[k] for k in range(KERNEL_SIZE)]
    w_hw = whw_ref[...]
    b_conv = bconv_ref[...]
    b_hw = bhw_ref[...]

    def sub_tile(s, carry):
        off = pl.multiple_of(s * sub, sub)
        rows = pl.ds(off, sub)

        # ---- Conv1d as 5 accumulated dots per tap + running max over time ----
        # relu(max_t(acc) + b) == max_t(relu(acc + b)): b is time-constant and
        # ReLU is monotone, so this matches the reference ReLU-then-maxpool.
        def tap(t):
            acc = jnp.dot(x_ref[t, rows, :], w_k[0],
                          preferred_element_type=jnp.float32)
            for k in range(1, KERNEL_SIZE):
                acc = acc + jnp.dot(x_ref[t + k, rows, :], w_k[k],
                                    preferred_element_type=jnp.float32)
            return acc

        m = tap(0)
        for t in range(1, L_OUT):
            m = jnp.maximum(m, tap(t))
        x_conv = jnp.maximum(m + b_conv, 0.0)                 # (sub, E_pad) f32

        # ---- Highway: single fused GEMM for proj & gate ----
        hw = jnp.dot(x_conv.astype(w_hw.dtype), w_hw,
                     preferred_element_type=jnp.float32) + b_hw
        x_proj = jnp.maximum(hw[:, :e_pad], 0.0)
        x_gate = jax.nn.sigmoid(hw[:, e_pad:])
        x_highway = x_gate * x_proj + (1.0 - x_gate) * x_conv

        out_ref[rows, :] = x_highway.astype(out_ref.dtype)
        return carry

    jax.lax.fori_loop(0, n_sub, sub_tile, 0)


@functools.partial(jax.jit, static_argnames=("embed_size", "block_n", "out_dtype"))
def model_embeddings_forward(input_ids, params, *, embed_size, block_n=1024,
                             out_dtype=jnp.float32):
    """input_ids: (S, B, W=21) int32 char indices -> (S, B, embed_size)."""
    S, B, W = input_ids.shape
    assert W == MAX_WORD_LEN
    N = S * B
    E = embed_size
    E_pad = _round_up(E, 128)

    # ---- Tile selection: 128-aligned blocks; >= 2 grid steps when N allows so
    # the v7x megacore can shard the "parallel" axis across its 2 TensorCores.
    n_ceil = _round_up(N, 128)
    block_n = max(128, min(_round_up(int(block_n), 128), n_ceil))
    steps = _cdiv(n_ceil, block_n)
    if n_ceil > 128:
        steps = max(steps, 2)
    block_n = _round_up(_cdiv(n_ceil, steps), 128)
    N_pad = block_n * steps

    # ---- Glue (tiny): pad ids, gather the bf16 column-padded table directly
    # into the kernel's compact time-major (W, N_pad, C_PAD) layout. ----
    ids = jnp.pad(input_ids.reshape(N, W), ((0, N_pad - N), (0, 0)))
    table = jnp.pad(params["char_emb"],
                    ((0, 0), (0, C_PAD - CHAR_EMBED_SIZE))).astype(jnp.bfloat16)
    x_tm = jnp.take(table, ids.T, axis=0)                     # (W, N_pad, C_PAD) bf16

    # ---- Weight prep (padded, fused, bf16) ----
    # torch Conv1d weight (E, C, K) -> (K, C, E), pad C->C_PAD and E->E_pad.
    w_conv = jnp.transpose(params["w_conv"], (2, 1, 0))
    w_conv = jnp.pad(w_conv, ((0, 0), (0, C_PAD - CHAR_EMBED_SIZE),
                              (0, E_pad - E))).astype(jnp.bfloat16)
    b_conv = jnp.pad(params["b_conv"].reshape(1, E), ((0, 0), (0, E_pad - E)))
    # torch Linear weight (out, in) -> (in, out); fuse proj & gate along out.
    w_proj = jnp.pad(params["w_proj"].T, ((0, E_pad - E), (0, E_pad - E)))
    w_gate = jnp.pad(params["w_gate"].T, ((0, E_pad - E), (0, E_pad - E)))
    w_hw = jnp.concatenate([w_proj, w_gate], axis=1).astype(jnp.bfloat16)
    b_proj = jnp.pad(params["b_proj"].reshape(1, E), ((0, 0), (0, E_pad - E)))
    b_gate = jnp.pad(params["b_gate"].reshape(1, E), ((0, 0), (0, E_pad - E)))
    b_hw = jnp.concatenate([b_proj, b_gate], axis=1)          # (1, 2*E_pad) f32

    # ---- VMEM budget from the actual double-buffered tiles (bf16 tiles with a
    # 64-wide minor dim are lane-padded to 128 in VMEM) + headroom, capped well
    # under v7x's 64 MiB. ----
    out_bytes = jnp.dtype(out_dtype).itemsize
    x_tile = MAX_WORD_LEN * block_n * 128 * 2
    o_tile = block_n * E_pad * out_bytes
    w_bytes = (KERNEL_SIZE * 128 * E_pad + E_pad * 2 * E_pad) * 2 + 3 * E_pad * 4
    vmem_limit = int(min(2 * (x_tile + o_tile + w_bytes) + (16 << 20), 56 << 20))

    cost = pl.CostEstimate(
        flops=2 * N_pad * (L_OUT * KERNEL_SIZE * C_PAD * E_pad + 2 * E_pad * E_pad),
        transcendentals=N_pad * E_pad,
        bytes_accessed=x_tm.size * 2 + N_pad * E_pad * out_bytes + w_bytes,
    )

    out = pl.pallas_call(
        _model_embeddings_kernel,
        out_shape=jax.ShapeDtypeStruct((N_pad, E_pad), out_dtype),
        grid_spec=pltpu.PrefetchScalarGridSpec(
            num_scalar_prefetch=0,
            grid=(N_pad // block_n,),
            in_specs=[
                pl.BlockSpec((MAX_WORD_LEN, block_n, C_PAD), lambda i: (0, i, 0)),
                pl.BlockSpec((KERNEL_SIZE, C_PAD, E_pad), lambda i: (0, 0, 0)),
                pl.BlockSpec((1, E_pad), lambda i: (0, 0)),
                pl.BlockSpec((E_pad, 2 * E_pad), lambda i: (0, 0)),
                pl.BlockSpec((1, 2 * E_pad), lambda i: (0, 0)),
            ],
            out_specs=pl.BlockSpec((block_n, E_pad), lambda i: (i, 0)),
        ),
        compiler_params=pltpu.CompilerParams(
            dimension_semantics=("parallel",),
            vmem_limit_bytes=vmem_limit,
        ),
        cost_estimate=cost,
    )(x_tm, w_conv, b_conv, w_hw, b_hw)

    return out[:N, :E].reshape(S, B, E)


def init_params(key, *, n_chars, embed_size, pad_idx=0):
    """Deterministic synthetic parameters with PyTorch-native shapes."""
    ks = jax.random.split(key, 6)
    C, K, E = CHAR_EMBED_SIZE, KERNEL_SIZE, embed_size

    char_emb = 0.1 * jax.random.normal(ks[0], (n_chars, C), jnp.float32)
    char_emb = char_emb.at[pad_idx].set(0.0)  # nn.Embedding padding_idx behavior

    w_conv = 0.1 * jax.random.normal(ks[1], (E, C, K), jnp.float32)  # Conv1d (out,in,k)
    b_conv = 0.1 * jax.random.normal(ks[2], (E,), jnp.float32)

    w_proj = 0.1 * jax.random.normal(ks[3], (E, E), jnp.float32)     # Linear (out,in)
    b_proj = 0.1 * jax.random.normal(ks[4], (E,), jnp.float32)
    w_gate = 0.1 * jax.random.normal(ks[5], (E, E), jnp.float32)
    b_gate = jnp.zeros((E,), jnp.float32)

    return {
        "char_emb": char_emb,
        "w_conv": w_conv, "b_conv": b_conv,
        "w_proj": w_proj, "b_proj": b_proj,
        "w_gate": w_gate, "b_gate": b_gate,
    }


def _reference_forward(input_ids, params, embed_size, *, cast_bf16):
    """Pure-JAX reference of the PyTorch forward (eval mode).

    cast_bf16=True mirrors the kernel's bf16-input / f32-accumulate numerics;
    cast_bf16=False is the exact f32 module semantics (looser tolerance).
    """
    S, B, W = input_ids.shape
    N = S * B
    C, K, E = CHAR_EMBED_SIZE, KERNEL_SIZE, embed_size

    x = jnp.take(params["char_emb"], input_ids, axis=0).reshape(N, W, C)
    w_conv = jnp.transpose(params["w_conv"], (2, 1, 0))  # (K, C, E)
    wp, wg = params["w_proj"].T, params["w_gate"].T
    if cast_bf16:
        x = x.astype(jnp.bfloat16)
        w_conv = w_conv.astype(jnp.bfloat16)
        wp, wg = wp.astype(jnp.bfloat16), wg.astype(jnp.bfloat16)

    acc = jnp.zeros((N, L_OUT, E), jnp.float32)
    for k in range(K):
        acc = acc + jnp.einsum("nwc,cf->nwf", x[:, k:k + L_OUT, :], w_conv[k],
                               preferred_element_type=jnp.float32)
    conv = jnp.max(jnp.maximum(acc + params["b_conv"][None, None, :], 0.0), axis=1)

    conv_in = conv.astype(jnp.bfloat16) if cast_bf16 else conv
    proj = jnp.maximum(
        jnp.dot(conv_in, wp, preferred_element_type=jnp.float32)
        + params["b_proj"][None, :], 0.0)
    gate = jax.nn.sigmoid(
        jnp.dot(conv_in, wg, preferred_element_type=jnp.float32)
        + params["b_gate"][None, :])
    hw = gate * proj + (1.0 - gate) * conv
    return hw.reshape(S, B, E)


if __name__ == "__main__":
    SENT_LEN, BATCH, EMBED_SIZE, N_CHARS = 8, 2, 64, 30

    key = jax.random.PRNGKey(0)
    k_in, k_par = jax.random.split(key)

    input_ids = jax.random.randint(
        k_in, (SENT_LEN, BATCH, MAX_WORD_LEN), 0, N_CHARS, dtype=jnp.int32)
    params = init_params(k_par, n_chars=N_CHARS, embed_size=EMBED_SIZE)

    out = model_embeddings_forward(input_ids, params, embed_size=EMBED_SIZE)
    out = jax.block_until_ready(out)
    assert out.shape == (SENT_LEN, BATCH, EMBED_SIZE)
    assert bool(jnp.all(jnp.isfinite(out)))

    # Tight check vs a reference that mirrors the kernel's bf16/f32 numerics.
    ref_bf16 = _reference_forward(input_ids, params, EMBED_SIZE, cast_bf16=True)
    assert jnp.allclose(out, ref_bf16, atol=2e-3, rtol=2e-3), "mismatch vs bf16 reference"

    # Loose check vs the exact f32 module semantics (bf16 quantization error only).
    ref_f32 = _reference_forward(input_ids, params, EMBED_SIZE, cast_bf16=False)
    assert jnp.allclose(out, ref_f32, atol=2e-2, rtol=2e-2), "mismatch vs f32 reference"

    print("KERNEL_OK")
</pallas_src>

<mosaic_0001>
module attributes {stable_mosaic.version = 11 : i64} {
  func.func @_model_embeddings_kernel(%arg0: i32, %arg1: memref<21x128x64xbf16, #tpu.memory_space<vmem>>, %arg2: memref<5x64x128xbf16, #tpu.memory_space<vmem>>, %arg3: memref<1x128xf32, #tpu.memory_space<vmem>>, %arg4: memref<128x256xbf16, #tpu.memory_space<vmem>>, %arg5: memref<1x256xf32, #tpu.memory_space<vmem>>, %arg6: memref<128x128xf32, #tpu.memory_space<vmem>>) attributes {dimension_semantics = [#tpu.dimension_semantics<parallel>], iteration_bounds = array<i64: 1>, scalar_prefetch = 0 : i64, scratch_operands = 0 : i64, tpu.core_type = #tpu.core_type<tc>, window_params = [{transform_indices = @transform_0, window_bounds = array<i64: 21, 128, 64>}, {pipeline_mode = #tpu.pipeline_mode<synchronous>, transform_indices = @transform_1, window_bounds = array<i64: 5, 64, 128>}, {pipeline_mode = #tpu.pipeline_mode<synchronous>, transform_indices = @transform_2, window_bounds = array<i64: 1, 128>}, {pipeline_mode = #tpu.pipeline_mode<synchronous>, transform_indices = @transform_3, window_bounds = array<i64: 128, 256>}, {pipeline_mode = #tpu.pipeline_mode<synchronous>, transform_indices = @transform_4, window_bounds = array<i64: 1, 256>}, {transform_indices = @transform_5, window_bounds = array<i64: 128, 128>}]} {
    %c0 = arith.constant 0 : index
    %c0_0 = arith.constant 0 : index
    %c0_1 = arith.constant 0 : index
    %0 = vector.load %arg2[%c0, %c0_0, %c0_1] : memref<5x64x128xbf16, #tpu.memory_space<vmem>>, vector<1x64x128xbf16>
    %1 = vector.shape_cast %0 : vector<1x64x128xbf16> to vector<64x128xbf16>
    %c1 = arith.constant 1 : index
    %c0_2 = arith.constant 0 : index
    %c0_3 = arith.constant 0 : index
    %2 = vector.load %arg2[%c1, %c0_2, %c0_3] : memref<5x64x128xbf16, #tpu.memory_space<vmem>>, vector<1x64x128xbf16>
    %3 = vector.shape_cast %2 : vector<1x64x128xbf16> to vector<64x128xbf16>
    %c2 = arith.constant 2 : index
    %c0_4 = arith.constant 0 : index
    %c0_5 = arith.constant 0 : index
    %4 = vector.load %arg2[%c2, %c0_4, %c0_5] : memref<5x64x128xbf16, #tpu.memory_space<vmem>>, vector<1x64x128xbf16>
    %5 = vector.shape_cast %4 : vector<1x64x128xbf16> to vector<64x128xbf16>
    %c3 = arith.constant 3 : index
    %c0_6 = arith.constant 0 : index
    %c0_7 = arith.constant 0 : index
    %6 = vector.load %arg2[%c3, %c0_6, %c0_7] : memref<5x64x128xbf16, #tpu.memory_space<vmem>>, vector<1x64x128xbf16>
    %7 = vector.shape_cast %6 : vector<1x64x128xbf16> to vector<64x128xbf16>
    %c4 = arith.constant 4 : index
    %c0_8 = arith.constant 0 : index
    %c0_9 = arith.constant 0 : index
    %8 = vector.load %arg2[%c4, %c0_8, %c0_9] : memref<5x64x128xbf16, #tpu.memory_space<vmem>>, vector<1x64x128xbf16>
    %9 = vector.shape_cast %8 : vector<1x64x128xbf16> to vector<64x128xbf16>
    %c0_10 = arith.constant 0 : index
    %c0_11 = arith.constant 0 : index
    %10 = vector.load %arg4[%c0_10, %c0_11] : memref<128x256xbf16, #tpu.memory_space<vmem>>, vector<128x256xbf16>
    %c0_12 = arith.constant 0 : index
    %c0_13 = arith.constant 0 : index
    %11 = vector.load %arg3[%c0_12, %c0_13] : memref<1x128xf32, #tpu.memory_space<vmem>>, vector<1x128xf32>
    %c0_14 = arith.constant 0 : index
    %c0_15 = arith.constant 0 : index
    %12 = vector.load %arg5[%c0_14, %c0_15] : memref<1x256xf32, #tpu.memory_space<vmem>>, vector<1x256xf32>
    %c0_i32 = arith.constant 0 : i32
    %c128_i32 = arith.constant 128 : i32
    %13 = arith.muli %c0_i32, %c128_i32 : i32
    %14 = tpu.assume_multiple %13, 128 : i32
    %c0_16 = arith.constant 0 : index
    %15 = arith.index_cast %14 : i32 to index
    %c0_17 = arith.constant 0 : index
    %16 = vector.load %arg1[%c0_16, %15, %c0_17] : memref<21x128x64xbf16, #tpu.memory_space<vmem>>, vector<1x128x64xbf16>
    %17 = vector.shape_cast %16 : vector<1x128x64xbf16> to vector<128x64xbf16>
    %cst = arith.constant dense<0.000000e+00> : vector<128x128xf32>
    %18 = tpu.matmul %17, %1, %cst {dimension_numbers = #tpu.dot_dimension_numbers<[1], [0], [0], [1], [0, 0, 1, 1], [], []>} : vector<128x64xbf16>, vector<64x128xbf16>, vector<128x128xf32> -> vector<128x128xf32>
    %c1_18 = arith.constant 1 : index
    %19 = arith.index_cast %14 : i32 to index
    %c0_19 = arith.constant 0 : index
    %20 = vector.load %arg1[%c1_18, %19, %c0_19] : memref<21x128x64xbf16, #tpu.memory_space<vmem>>, vector<1x128x64xbf16>
    %21 = vector.shape_cast %20 : vector<1x128x64xbf16> to vector<128x64xbf16>
    %cst_20 = arith.constant dense<0.000000e+00> : vector<128x128xf32>
    %22 = tpu.matmul %21, %3, %cst_20 {dimension_numbers = #tpu.dot_dimension_numbers<[1], [0], [0], [1], [0, 0, 1, 1], [], []>} : vector<128x64xbf16>, vector<64x128xbf16>, vector<128x128xf32> -> vector<128x128xf32>
    %23 = arith.addf %18, %22 : vector<128x128xf32>
    %c2_21 = arith.constant 2 : index
    %24 = arith.index_cast %14 : i32 to index
    %c0_22 = arith.constant 0 : index
    %25 = vector.load %arg1[%c2_21, %24, %c0_22] : memref<21x128x64xbf16, #tpu.memory_space<vmem>>, vector<1x128x64xbf16>
    %26 = vector.shape_cast %25 : vector<1x128x64xbf16> to vector<128x64xbf16>
    %cst_23 = arith.constant dense<0.000000e+00> : vector<128x128xf32>
    %27 = tpu.matmul %26, %5, %cst_23 {dimension_numbers = #tpu.dot_dimension_numbers<[1], [0], [0], [1], [0, 0, 1, 1], [], []>} : vector<128x64xbf16>, vector<64x128xbf16>, vector<128x128xf32> -> vector<128x128xf32>
    %28 = arith.addf %23, %27 : vector<128x128xf32>
    %c3_24 = arith.constant 3 : index
    %29 = arith.index_cast %14 : i32 to index
    %c0_25 = arith.constant 0 : index
    %30 = vector.load %arg1[%c3_24, %29, %c0_25] : memref<21x128x64xbf16, #tpu.memory_space<vmem>>, vector<1x128x64xbf16>
    %31 = vector.shape_cast %30 : vector<1x128x64xbf16> to vector<128x64xbf16>
    %cst_26 = arith.constant dense<0.000000e+00> : vector<128x128xf32>
    %32 = tpu.matmul %31, %7, %cst_26 {dimension_numbers = #tpu.dot_dimension_numbers<[1], [0], [0], [1], [0, 0, 1, 1], [], []>} : vector<128x64xbf16>, vector<64x128xbf16>, vector<128x128xf32> -> vector<128x128xf32>
    %33 = arith.addf %28, %32 : vector<128x128xf32>
    %c4_27 = arith.constant 4 : index
    %34 = arith.index_cast %14 : i32 to index
    %c0_28 = arith.constant 0 : index
    %35 = vector.load %arg1[%c4_27, %34, %c0_28] : memref<21x128x64xbf16, #tpu.memory_space<vmem>>, vector<1x128x64xbf16>
    %36 = vector.shape_cast %35 : vector<1x128x64xbf16> to vector<128x64xbf16>
    %cst_29 = arith.constant dense<0.000000e+00> : vector<128x128xf32>
    %37 = tpu.matmul %36, %9, %cst_29 {dimension_numbers = #tpu.dot_dimension_numbers<[1], [0], [0], [1], [0, 0, 1, 1], [], []>} : vector<128x64xbf16>, vector<64x128xbf16>, vector<128x128xf32> -> vector<128x128xf32>
    %38 = arith.addf %33, %37 : vector<128x128xf32>
    %c1_30 = arith.constant 1 : index
    %39 = arith.index_cast %14 : i32 to index
    %c0_31 = arith.constant 0 : index
    %40 = vector.load %arg1[%c1_30, %39, %c0_31] : memref<21x128x64xbf16, #tpu.memory_space<vmem>>, vector<1x128x64xbf16>
    %41 = vector.shape_cast %40 : vector<1x128x64xbf16> to vector<128x64xbf16>
    %cst_32 = arith.constant dense<0.000000e+00> : vector<128x128xf32>
    %42 = tpu.matmul %41, %1, %cst_32 {dimension_numbers = #tpu.dot_dimension_numbers<[1], [0], [0], [1], [0, 0, 1, 1], [], []>} : vector<128x64xbf16>, vector<64x128xbf16>, vector<128x128xf32> -> vector<128x128xf32>
    %c2_33 = arith.constant 2 : index
    %43 = arith.index_cast %14 : i32 to index
    %c0_34 = arith.constant 0 : index
    %44 = vector.load %arg1[%c2_33, %43, %c0_34] : memref<21x128x64xbf16, #tpu.memory_space<vmem>>, vector<1x128x64xbf16>
    %45 = vector.shape_cast %44 : vector<1x128x64xbf16> to vector<128x64xbf16>
    %cst_35 = arith.constant dense<0.000000e+00> : vector<128x128xf32>
    %46 = tpu.matmul %45, %3, %cst_35 {dimension_numbers = #tpu.dot_dimension_numbers<[1], [0], [0], [1], [0, 0, 1, 1], [], []>} : vector<128x64xbf16>, vector<64x128xbf16>, vector<128x128xf32> -> vector<128x128xf32>
    %47 = arith.addf %42, %46 : vector<128x128xf32>
    %c3_36 = arith.constant 3 : index
    %48 = arith.index_cast %14 : i32 to index
    %c0_37 = arith.constant 0 : index
    %49 = vector.load %arg1[%c3_36, %48, %c0_37] : memref<21x128x64xbf16, #tpu.memory_space<vmem>>, vector<1x128x64xbf16>
    %50 = vector.shape_cast %49 : vector<1x128x64xbf16> to vector<128x64xbf16>
    %cst_38 = arith.constant dense<0.000000e+00> : vector<128x128xf32>
    %51 = tpu.matmul %50, %5, %cst_38 {dimension_numbers = #tpu.dot_dimension_numbers<[1], [0], [0], [1], [0, 0, 1, 1], [], []>} : vector<128x64xbf16>, vector<64x128xbf16>, vector<128x128xf32> -> vector<128x128xf32>
    %52 = arith.addf %47, %51 : vector<128x128xf32>
    %c4_39 = arith.constant 4 : index
    %53 = arith.index_cast %14 : i32 to index
    %c0_40 = arith.constant 0 : index
    %54 = vector.load %arg1[%c4_39, %53, %c0_40] : memref<21x128x64xbf16, #tpu.memory_space<vmem>>, vector<1x128x64xbf16>
    %55 = vector.shape_cast %54 : vector<1x128x64xbf16> to vector<128x64xbf16>
    %cst_41 = arith.constant dense<0.000000e+00> : vector<128x128xf32>
    %56 = tpu.matmul %55, %7, %cst_41 {dimension_numbers = #tpu.dot_dimension_numbers<[1], [0], [0], [1], [0, 0, 1, 1], [], []>} : vector<128x64xbf16>, vector<64x128xbf16>, vector<128x128xf32> -> vector<128x128xf32>
    %57 = arith.addf %52, %56 : vector<128x128xf32>
    %c5 = arith.constant 5 : index
    %58 = arith.index_cast %14 : i32 to index
    %c0_42 = arith.constant 0 : index
    %59 = vector.load %arg1[%c5, %58, %c0_42] : memref<21x128x64xbf16, #tpu.memory_space<vmem>>, vector<1x128x64xbf16>
    %60 = vector.shape_cast %59 : vector<1x128x64xbf16> to vector<128x64xbf16>
    %cst_43 = arith.constant dense<0.000000e+00> : vector<128x128xf32>
    %61 = tpu.matmul %60, %9, %cst_43 {dimension_numbers = #tpu.dot_dimension_numbers<[1], [0], [0], [1], [0, 0, 1, 1], [], []>} : vector<128x64xbf16>, vector<64x128xbf16>, vector<128x128xf32> -> vector<128x128xf32>
    %62 = arith.addf %57, %61 : vector<128x128xf32>
    %63 = arith.maximumf %38, %62 : vector<128x128xf32>
    %c2_44 = arith.constant 2 : index
    %64 = arith.index_cast %14 : i32 to index
    %c0_45 = arith.constant 0 : index
    %65 = vector.load %arg1[%c2_44, %64, %c0_45] : memref<21x128x64xbf16, #tpu.memory_space<vmem>>, vector<1x128x64xbf16>
    %66 = vector.shape_cast %65 : vector<1x128x64xbf16> to vector<128x64xbf16>
    %cst_46 = arith.constant dense<0.000000e+00> : vector<128x128xf32>
    %67 = tpu.matmul %66, %1, %cst_46 {dimension_numbers = #tpu.dot_dimension_numbers<[1], [0], [0], [1], [0, 0, 1, 1], [], []>} : vector<128x64xbf16>, vector<64x128xbf16>, vector<128x128xf32> -> vector<128x128xf32>
    %c3_47 = arith.constant 3 : index
    %68 = arith.index_cast %14 : i32 to index
    %c0_48 = arith.constant 0 : index
    %69 = vector.load %arg1[%c3_47, %68, %c0_48] : memref<21x128x64xbf16, #tpu.memory_space<vmem>>, vector<1x128x64xbf16>
    %70 = vector.shape_cast %69 : vector<1x128x64xbf16> to vector<128x64xbf16>
    %cst_49 = arith.constant dense<0.000000e+00> : vector<128x128xf32>
    %71 = tpu.matmul %70, %3, %cst_49 {dimension_numbers = #tpu.dot_dimension_numbers<[1], [0], [0], [1], [0, 0, 1, 1], [], []>} : vector<128x64xbf16>, vector<64x128xbf16>, vector<128x128xf32> -> vector<128x128xf32>
    %72 = arith.addf %67, %71 : vector<128x128xf32>
    %c4_50 = arith.constant 4 : index
    %73 = arith.index_cast %14 : i32 to index
    %c0_51 = arith.constant 0 : index
    %74 = vector.load %arg1[%c4_50, %73, %c0_51] : memref<21x128x64xbf16, #tpu.memory_space<vmem>>, vector<1x128x64xbf16>
    %75 = vector.shape_cast %74 : vector<1x128x64xbf16> to vector<128x64xbf16>
    %cst_52 = arith.constant dense<0.000000e+00> : vector<128x128xf32>
    %76 = tpu.matmul %75, %5, %cst_52 {dimension_numbers = #tpu.dot_dimension_numbers<[1], [0], [0], [1], [0, 0, 1, 1], [], []>} : vector<128x64xbf16>, vector<64x128xbf16>, vector<128x128xf32> -> vector<128x128xf32>
    %77 = arith.addf %72, %76 : vector<128x128xf32>
    %c5_53 = arith.constant 5 : index
    %78 = arith.index_cast %14 : i32 to index
    %c0_54 = arith.constant 0 : index
    %79 = vector.load %arg1[%c5_53, %78, %c0_54] : memref<21x128x64xbf16, #tpu.memory_space<vmem>>, vector<1x128x64xbf16>
    %80 = vector.shape_cast %79 : vector<1x128x64xbf16> to vector<128x64xbf16>
    %cst_55 = arith.constant dense<0.000000e+00> : vector<128x128xf32>
    %81 = tpu.matmul %80, %7, %cst_55 {dimension_numbers = #tpu.dot_dimension_numbers<[1], [0], [0], [1], [0, 0, 1, 1], [], []>} : vector<128x64xbf16>, vector<64x128xbf16>, vector<128x128xf32> -> vector<128x128xf32>
    %82 = arith.addf %77, %81 : vector<128x128xf32>
    %c6 = arith.constant 6 : index
    %83 = arith.index_cast %14 : i32 to index
    %c0_56 = arith.constant 0 : index
    %84 = vector.load %arg1[%c6, %83, %c0_56] : memref<21x128x64xbf16, #tpu.memory_space<vmem>>, vector<1x128x64xbf16>
    %85 = vector.shape_cast %84 : vector<1x128x64xbf16> to vector<128x64xbf16>
    %cst_57 = arith.constant dense<0.000000e+00> : vector<128x128xf32>
    %86 = tpu.matmul %85, %9, %cst_57 {dimension_numbers = #tpu.dot_dimension_numbers<[1], [0], [0], [1], [0, 0, 1, 1], [], []>} : vector<128x64xbf16>, vector<64x128xbf16>, vector<128x128xf32> -> vector<128x128xf32>
    %87 = arith.addf %82, %86 : vector<128x128xf32>
    %88 = arith.maximumf %63, %87 : vector<128x128xf32>
    %c3_58 = arith.constant 3 : index
    %89 = arith.index_cast %14 : i32 to index
    %c0_59 = arith.constant 0 : index
    %90 = vector.load %arg1[%c3_58, %89, %c0_59] : memref<21x128x64xbf16, #tpu.memory_space<vmem>>, vector<1x128x64xbf16>
    %91 = vector.shape_cast %90 : vector<1x128x64xbf16> to vector<128x64xbf16>
    %cst_60 = arith.constant dense<0.000000e+00> : vector<128x128xf32>
    %92 = tpu.matmul %91, %1, %cst_60 {dimension_numbers = #tpu.dot_dimension_numbers<[1], [0], [0], [1], [0, 0, 1, 1], [], []>} : vector<128x64xbf16>, vector<64x128xbf16>, vector<128x128xf32> -> vector<128x128xf32>
    %c4_61 = arith.constant 4 : index
    %93 = arith.index_cast %14 : i32 to index
    %c0_62 = arith.constant 0 : index
    %94 = vector.load %arg1[%c4_61, %93, %c0_62] : memref<21x128x64xbf16, #tpu.memory_space<vmem>>, vector<1x128x64xbf16>
    %95 = vector.shape_cast %94 : vector<1x128x64xbf16> to vector<128x64xbf16>
    %cst_63 = arith.constant dense<0.000000e+00> : vector<128x128xf32>
    %96 = tpu.matmul %95, %3, %cst_63 {dimension_numbers = #tpu.dot_dimension_numbers<[1], [0], [0], [1], [0, 0, 1, 1], [], []>} : vector<128x64xbf16>, vector<64x128xbf16>, vector<128x128xf32> -> vector<128x128xf32>
    %97 = arith.addf %92, %96 : vector<128x128xf32>
    %c5_64 = arith.constant 5 : index
    %98 = arith.index_cast %14 : i32 to index
    %c0_65 = arith.constant 0 : index
    %99 = vector.load %arg1[%c5_64, %98, %c0_65] : memref<21x128x64xbf16, #tpu.memory_space<vmem>>, vector<1x128x64xbf16>
    %100 = vector.shape_cast %99 : vector<1x128x64xbf16> to vector<128x64xbf16>
    %cst_66 = arith.constant dense<0.000000e+00> : vector<128x128xf32>
    %101 = tpu.matmul %100, %5, %cst_66 {dimension_numbers = #tpu.dot_dimension_numbers<[1], [0], [0], [1], [0, 0, 1, 1], [], []>} : vector<128x64xbf16>, vector<64x128xbf16>, vector<128x128xf32> -> vector<128x128xf32>
    %102 = arith.addf %97, %101 : vector<128x128xf32>
    %c6_67 = arith.constant 6 : index
    %103 = arith.index_cast %14 : i32 to index
    %c0_68 = arith.constant 0 : index
    %104 = vector.load %arg1[%c6_67, %103, %c0_68] : memref<21x128x64xbf16, #tpu.memory_space<vmem>>, vector<1x128x64xbf16>
    %105 = vector.shape_cast %104 : vector<1x128x64xbf16> to vector<128x64xbf16>
    %cst_69 = arith.constant dense<0.000000e+00> : vector<128x128xf32>
    %106 = tpu.matmul %105, %7, %cst_69 {dimension_numbers = #tpu.dot_dimension_numbers<[1], [0], [0], [1], [0, 0, 1, 1], [], []>} : vector<128x64xbf16>, vector<64x128xbf16>, vector<128x128xf32> -> vector<128x128xf32>
    %107 = arith.addf %102, %106 : vector<128x128xf32>
    %c7 = arith.constant 7 : index
    %108 = arith.index_cast %14 : i32 to index
    %c0_70 = arith.constant 0 : index
    %109 = vector.load %arg1[%c7, %108, %c0_70] : memref<21x128x64xbf16, #tpu.memory_space<vmem>>, vector<1x128x64xbf16>
    %110 = vector.shape_cast %109 : vector<1x128x64xbf16> to vector<128x64xbf16>
    %cst_71 = arith.constant dense<0.000000e+00> : vector<128x128xf32>
    %111 = tpu.matmul %110, %9, %cst_71 {dimension_numbers = #tpu.dot_dimension_numbers<[1], [0], [0], [1], [0, 0, 1, 1], [], []>} : vector<128x64xbf16>, vector<64x128xbf16>, vector<128x128xf32> -> vector<128x128xf32>
    %112 = arith.addf %107, %111 : vector<128x128xf32>
    %113 = arith.maximumf %88, %112 : vector<128x128xf32>
    %c4_72 = arith.constant 4 : index
    %114 = arith.index_cast %14 : i32 to index
    %c0_73 = arith.constant 0 : index
    %115 = vector.load %arg1[%c4_72, %114, %c0_73] : memref<21x128x64xbf16, #tpu.memory_space<vmem>>, vector<1x128x64xbf16>
    %116 = vector.shape_cast %115 : vector<1x128x64xbf16> to vector<128x64xbf16>
    %cst_74 = arith.constant dense<0.000000e+00> : vector<128x128xf32>
    %117 = tpu.matmul %116, %1, %cst_74 {dimension_numbers = #tpu.dot_dimension_numbers<[1], [0], [0], [1], [0, 0, 1, 1], [], []>} : vector<128x64xbf16>, vector<64x128xbf16>, vector<128x128xf32> -> vector<128x128xf32>
    %c5_75 = arith.constant 5 : index
    %118 = arith.index_cast %14 : i32 to index
    %c0_76 = arith.constant 0 : index
    %119 = vector.load %arg1[%c5_75, %118, %c0_76] : memref<21x128x64xbf16, #tpu.memory_space<vmem>>, vector<1x128x64xbf16>
    %120 = vector.shape_cast %119 : vector<1x128x64xbf16> to vector<128x64xbf16>
    %cst_77 = arith.constant dense<0.000000e+00> : vector<128x128xf32>
    %121 = tpu.matmul %120, %3, %cst_77 {dimension_numbers = #tpu.dot_dimension_numbers<[1], [0], [0], [1], [0, 0, 1, 1], [], []>} : vector<128x64xbf16>, vector<64x128xbf16>, vector<128x128xf32> -> vector<128x128xf32>
    %122 = arith.addf %117, %121 : vector<128x128xf32>
    %c6_78 = arith.constant 6 : index
    %123 = arith.index_cast %14 : i32 to index
    %c0_79 = arith.constant 0 : index
    %124 = vector.load %arg1[%c6_78, %123, %c0_79] : memref<21x128x64xbf16, #tpu.memory_space<vmem>>, vector<1x128x64xbf16>
    %125 = vector.shape_cast %124 : vector<1x128x64xbf16> to vector<128x64xbf16>
    %cst_80 = arith.constant dense<0.000000e+00> : vector<128x128xf32>
    %126 = tpu.matmul %125, %5, %cst_80 {dimension_numbers = #tpu.dot_dimension_numbers<[1], [0], [0], [1], [0, 0, 1, 1], [], []>} : vector<128x64xbf16>, vector<64x128xbf16>, vector<128x128xf32> -> vector<128x128xf32>
    %127 = arith.addf %122, %126 : vector<128x128xf32>
    %c7_81 = arith.constant 7 : index
    %128 = arith.index_cast %14 : i32 to index
    %c0_82 = arith.constant 0 : index
    %129 = vector.load %arg1[%c7_81, %128, %c0_82] : memref<21x128x64xbf16, #tpu.memory_space<vmem>>, vector<1x128x64xbf16>
    %130 = vector.shape_cast %129 : vector<1x128x64xbf16> to vector<128x64xbf16>
    %cst_83 = arith.constant dense<0.000000e+00> : vector<128x128xf32>
    %131 = tpu.matmul %130, %7, %cst_83 {dimension_numbers = #tpu.dot_dimension_numbers<[1], [0], [0], [1], [0, 0, 1, 1], [], []>} : vector<128x64xbf16>, vector<64x128xbf16>, vector<128x128xf32> -> vector<128x128xf32>
    %132 = arith.addf %127, %131 : vector<128x128xf32>
    %c8 = arith.constant 8 : index
    %133 = arith.index_cast %14 : i32 to index
    %c0_84 = arith.constant 0 : index
    %134 = vector.load %arg1[%c8, %133, %c0_84] : memref<21x128x64xbf16, #tpu.memory_space<vmem>>, vector<1x128x64xbf16>
    %135 = vector.shape_cast %134 : vector<1x128x64xbf16> to vector<128x64xbf16>
    %cst_85 = arith.constant dense<0.000000e+00> : vector<128x128xf32>
    %136 = tpu.matmul %135, %9, %cst_85 {dimension_numbers = #tpu.dot_dimension_numbers<[1], [0], [0], [1], [0, 0, 1, 1], [], []>} : vector<128x64xbf16>, vector<64x128xbf16>, vector<128x128xf32> -> vector<128x128xf32>
    %137 = arith.addf %132, %136 : vector<128x128xf32>
    %138 = arith.maximumf %113, %137 : vector<128x128xf32>
    %c5_86 = arith.constant 5 : index
    %139 = arith.index_cast %14 : i32 to index
    %c0_87 = arith.constant 0 : index
    %140 = vector.load %arg1[%c5_86, %139, %c0_87] : memref<21x128x64xbf16, #tpu.memory_space<vmem>>, vector<1x128x64xbf16>
    %141 = vector.shape_cast %140 : vector<1x128x64xbf16> to vector<128x64xbf16>
    %cst_88 = arith.constant dense<0.000000e+00> : vector<128x128xf32>
    %142 = tpu.matmul %141, %1, %cst_88 {dimension_numbers = #tpu.dot_dimension_numbers<[1], [0], [0], [1], [0, 0, 1, 1], [], []>} : vector<128x64xbf16>, vector<64x128xbf16>, vector<128x128xf32> -> vector<128x128xf32>
    %c6_89 = arith.constant 6 : index
    %143 = arith.index_cast %14 : i32 to index
    %c0_90 = arith.constant 0 : index
    %144 = vector.load %arg1[%c6_89, %143, %c0_90] : memref<21x128x64xbf16, #tpu.memory_space<vmem>>, vector<1x128x64xbf16>
    %145 = vector.shape_cast %144 : vector<1x128x64xbf16> to vector<128x64xbf16>
    %cst_91 = arith.constant dense<0.000000e+00> : vector<128x128xf32>
    %146 = tpu.matmul %145, %3, %cst_91 {dimension_numbers = #tpu.dot_dimension_numbers<[1], [0], [0], [1], [0, 0, 1, 1], [], []>} : vector<128x64xbf16>, vector<64x128xbf16>, vector<128x128xf32> -> vector<128x128xf32>
    %147 = arith.addf %142, %146 : vector<128x128xf32>
    %c7_92 = arith.constant 7 : index
    %148 = arith.index_cast %14 : i32 to index
    %c0_93 = arith.constant 0 : index
    %149 = vector.load %arg1[%c7_92, %148, %c0_93] : memref<21x128x64xbf16, #tpu.memory_space<vmem>>, vector<1x128x64xbf16>
    %150 = vector.shape_cast %149 : vector<1x128x64xbf16> to vector<128x64xbf16>
    %cst_94 = arith.constant dense<0.000000e+00> : vector<128x128xf32>
    %151 = tpu.matmul %150, %5, %cst_94 {dimension_numbers = #tpu.dot_dimension_numbers<[1], [0], [0], [1], [0, 0, 1, 1], [], []>} : vector<128x64xbf16>, vector<64x128xbf16>, vector<128x128xf32> -> vector<128x128xf32>
    %152 = arith.addf %147, %151 : vector<128x128xf32>
    %c8_95 = arith.constant 8 : index
    %153 = arith.index_cast %14 : i32 to index
    %c0_96 = arith.constant 0 : index
    %154 = vector.load %arg1[%c8_95, %153, %c0_96] : memref<21x128x64xbf16, #tpu.memory_space<vmem>>, vector<1x128x64xbf16>
    %155 = vector.shape_cast %154 : vector<1x128x64xbf16> to vector<128x64xbf16>
    %cst_97 = arith.constant dense<0.000000e+00> : vector<128x128xf32>
    %156 = tpu.matmul %155, %7, %cst_97 {dimension_numbers = #tpu.dot_dimension_numbers<[1], [0], [0], [1], [0, 0, 1, 1], [], []>} : vector<128x64xbf16>, vector<64x128xbf16>, vector<128x128xf32> -> vector<128x128xf32>
    %157 = arith.addf %152, %156 : vector<128x128xf32>
    %c9 = arith.constant 9 : index
    %158 = arith.index_cast %14 : i32 to index
    %c0_98 = arith.constant 0 : index
    %159 = vector.load %arg1[%c9, %158, %c0_98] : memref<21x128x64xbf16, #tpu.memory_space<vmem>>, vector<1x128x64xbf16>
    %160 = vector.shape_cast %159 : vector<1x128x64xbf16> to vector<128x64xbf16>
    %cst_99 = arith.constant dense<0.000000e+00> : vector<128x128xf32>
    %161 = tpu.matmul %160, %9, %cst_99 {dimension_numbers = #tpu.dot_dimension_numbers<[1], [0], [0], [1], [0, 0, 1, 1], [], []>} : vector<128x64xbf16>, vector<64x128xbf16>, vector<128x128xf32> -> vector<128x128xf32>
    %162 = arith.addf %157, %161 : vector<128x128xf32>
    %163 = arith.maximumf %138, %162 : vector<128x128xf32>
    %c6_100 = arith.constant 6 : index
    %164 = arith.index_cast %14 : i32 to index
    %c0_101 = arith.constant 0 : index
    %165 = vector.load %arg1[%c6_100, %164, %c0_101] : memref<21x128x64xbf16, #tpu.memory_space<vmem>>, vector<1x128x64xbf16>
    %166 = vector.shape_cast %165 : vector<1x128x64xbf16> to vector<128x64xbf16>
    %cst_102 = arith.constant dense<0.000000e+00> : vector<128x128xf32>
    %167 = tpu.matmul %166, %1, %cst_102 {dimension_numbers = #tpu.dot_dimension_numbers<[1], [0], [0], [1], [0, 0, 1, 1], [], []>} : vector<128x64xbf16>, vector<64x128xbf16>, vector<128x128xf32> -> vector<128x128xf32>
    %c7_103 = arith.constant 7 : index
    %168 = arith.index_cast %14 : i32 to index
    %c0_104 = arith.constant 0 : index
    %169 = vector.load %arg1[%c7_103, %168, %c0_104] : memref<21x128x64xbf16, #tpu.memory_space<vmem>>, vector<1x128x64xbf16>
    %170 = vector.shape_cast %169 : vector<1x128x64xbf16> to vector<128x64xbf16>
    %cst_105 = arith.constant dense<0.000000e+00> : vector<128x128xf32>
    %171 = tpu.matmul %170, %3, %cst_105 {dimension_numbers = #tpu.dot_dimension_numbers<[1], [0], [0], [1], [0, 0, 1, 1], [], []>} : vector<128x64xbf16>, vector<64x128xbf16>, vector<128x128xf32> -> vector<128x128xf32>
    %172 = arith.addf %167, %171 : vector<128x128xf32>
    %c8_106 = arith.constant 8 : index
    %173 = arith.index_cast %14 : i32 to index
    %c0_107 = arith.constant 0 : index
    %174 = vector.load %arg1[%c8_106, %173, %c0_107] : memref<21x128x64xbf16, #tpu.memory_space<vmem>>, vector<1x128x64xbf16>
    %175 = vector.shape_cast %174 : vector<1x128x64xbf16> to vector<128x64xbf16>
    %cst_108 = arith.constant dense<0.000000e+00> : vector<128x128xf32>
    %176 = tpu.matmul %175, %5, %cst_108 {dimension_numbers = #tpu.dot_dimension_numbers<[1], [0], [0], [1], [0, 0, 1, 1], [], []>} : vector<128x64xbf16>, vector<64x128xbf16>, vector<128x128xf32> -> vector<128x128xf32>
    %177 = arith.addf %172, %176 : vector<128x128xf32>
    %c9_109 = arith.constant 9 : index
    %178 = arith.index_cast %14 : i32 to index
    %c0_110 = arith.constant 0 : index
    %179 = vector.load %arg1[%c9_109, %178, %c0_110] : memref<21x128x64xbf16, #tpu.memory_space<vmem>>, vector<1x128x64xbf16>
    %180 = vector.shape_cast %179 : vector<1x128x64xbf16> to vector<128x64xbf16>
    %cst_111 = arith.constant dense<0.000000e+00> : vector<128x128xf32>
    %181 = tpu.matmul %180, %7, %cst_111 {dimension_numbers = #tpu.dot_dimension_numbers<[1], [0], [0], [1], [0, 0, 1, 1], [], []>} : vector<128x64xbf16>, vector<64x128xbf16>, vector<128x128xf32> -> vector<128x128xf32>
    %182 = arith.addf %177, %181 : vector<128x128xf32>
    %c10 = arith.constant 10 : index
    %183 = arith.index_cast %14 : i32 to index
    %c0_112 = arith.constant 0 : index
    %184 = vector.load %arg1[%c10, %183, %c0_112] : memref<21x128x64xbf16, #tpu.memory_space<vmem>>, vector<1x128x64xbf16>
    %185 = vector.shape_cast %184 : vector<1x128x64xbf16> to vector<128x64xbf16>
    %cst_113 = arith.constant dense<0.000000e+00> : vector<128x128xf32>
    %186 = tpu.matmul %185, %9, %cst_113 {dimension_numbers = #tpu.dot_dimension_numbers<[1], [0], [0], [1], [0, 0, 1, 1], [], []>} : vector<128x64xbf16>, vector<64x128xbf16>, vector<128x128xf32> -> vector<128x128xf32>
    %187 = arith.addf %182, %186 : vector<128x128xf32>
    %188 = arith.maximumf %163, %187 : vector<128x128xf32>
    %c7_114 = arith.constant 7 : index
    %189 = arith.index_cast %14 : i32 to index
    %c0_115 = arith.constant 0 : index
    %190 = vector.load %arg1[%c7_114, %189, %c0_115] : memref<21x128x64xbf16, #tpu.memory_space<vmem>>, vector<1x128x64xbf16>
    %191 = vector.shape_cast %190 : vector<1x128x64xbf16> to vector<128x64xbf16>
    %cst_116 = arith.constant dense<0.000000e+00> : vector<128x128xf32>
    %192 = tpu.matmul %191, %1, %cst_116 {dimension_numbers = #tpu.dot_dimension_numbers<[1], [0], [0], [1], [0, 0, 1, 1], [], []>} : vector<128x64xbf16>, vector<64x128xbf16>, vector<128x128xf32> -> vector<128x128xf32>
    %c8_117 = arith.constant 8 : index
    %193 = arith.index_cast %14 : i32 to index
    %c0_118 = arith.constant 0 : index
    %194 = vector.load %arg1[%c8_117, %193, %c0_118] : memref<21x128x64xbf16, #tpu.memory_space<vmem>>, vector<1x128x64xbf16>
    %195 = vector.shape_cast %194 : vector<1x128x64xbf16> to vector<128x64xbf16>
    %cst_119 = arith.constant dense<0.000000e+00> : vector<128x128xf32>
    %196 = tpu.matmul %195, %3, %cst_119 {dimension_numbers = #tpu.dot_dimension_numbers<[1], [0], [0], [1], [0, 0, 1, 1], [], []>} : vector<128x64xbf16>, vector<64x128xbf16>, vector<128x128xf32> -> vector<128x128xf32>
    %197 = arith.addf %192, %196 : vector<128x128xf32>
    %c9_120 = arith.constant 9 : index
    %198 = arith.index_cast %14 : i32 to index
    %c0_121 = arith.constant 0 : index
    %199 = vector.load %arg1[%c9_120, %198, %c0_121] : memref<21x128x64xbf16, #tpu.memory_space<vmem>>, vector<1x128x64xbf16>
    %200 = vector.shape_cast %199 : vector<1x128x64xbf16> to vector<128x64xbf16>
    %cst_122 = arith.constant dense<0.000000e+00> : vector<128x128xf32>
    %201 = tpu.matmul %200, %5, %cst_122 {dimension_numbers = #tpu.dot_dimension_numbers<[1], [0], [0], [1], [0, 0, 1, 1], [], []>} : vector<128x64xbf16>, vector<64x128xbf16>, vector<128x128xf32> -> vector<128x128xf32>
    %202 = arith.addf %197, %201 : vector<128x128xf32>
    %c10_123 = arith.constant 10 : index
    %203 = arith.index_cast %14 : i32 to index
    %c0_124 = arith.constant 0 : index
    %204 = vector.load %arg1[%c10_123, %203, %c0_124] : memref<21x128x64xbf16, #tpu.memory_space<vmem>>, vector<1x128x64xbf16>
    %205 = vector.shape_cast %204 : vector<1x128x64xbf16> to vector<128x64xbf16>
    %cst_125 = arith.constant dense<0.000000e+00> : vector<128x128xf32>
    %206 = tpu.matmul %205, %7, %cst_125 {dimension_numbers = #tpu.dot_dimension_numbers<[1], [0], [0], [1], [0, 0, 1, 1], [], []>} : vector<128x64xbf16>, vector<64x128xbf16>, vector<128x128xf32> -> vector<128x128xf32>
    %207 = arith.addf %202, %206 : vector<128x128xf32>
    %c11 = arith.constant 11 : index
    %208 = arith.index_cast %14 : i32 to index
    %c0_126 = arith.constant 0 : index
    %209 = vector.load %arg1[%c11, %208, %c0_126] : memref<21x128x64xbf16, #tpu.memory_space<vmem>>, vector<1x128x64xbf16>
    %210 = vector.shape_cast %209 : vector<1x128x64xbf16> to vector<128x64xbf16>
    %cst_127 = arith.constant dense<0.000000e+00> : vector<128x128xf32>
    %211 = tpu.matmul %210, %9, %cst_127 {dimension_numbers = #tpu.dot_dimension_numbers<[1], [0], [0], [1], [0, 0, 1, 1], [], []>} : vector<128x64xbf16>, vector<64x128xbf16>, vector<128x128xf32> -> vector<128x128xf32>
    %212 = arith.addf %207, %211 : vector<128x128xf32>
    %213 = arith.maximumf %188, %212 : vector<128x128xf32>
    %c8_128 = arith.constant 8 : index
    %214 = arith.index_cast %14 : i32 to index
    %c0_129 = arith.constant 0 : index
    %215 = vector.load %arg1[%c8_128, %214, %c0_129] : memref<21x128x64xbf16, #tpu.memory_space<vmem>>, vector<1x128x64xbf16>
    %216 = vector.shape_cast %215 : vector<1x128x64xbf16> to vector<128x64xbf16>
    %cst_130 = arith.constant dense<0.000000e+00> : vector<128x128xf32>
    %217 = tpu.matmul %216, %1, %cst_130 {dimension_numbers = #tpu.dot_dimension_numbers<[1], [0], [0], [1], [0, 0, 1, 1], [], []>} : vector<128x64xbf16>, vector<64x128xbf16>, vector<128x128xf32> -> vector<128x128xf32>
    %c9_131 = arith.constant 9 : index
    %218 = arith.index_cast %14 : i32 to index
    %c0_132 = arith.constant 0 : index
    %219 = vector.load %arg1[%c9_131, %218, %c0_132] : memref<21x128x64xbf16, #tpu.memory_space<vmem>>, vector<1x128x64xbf16>
    %220 = vector.shape_cast %219 : vector<1x128x64xbf16> to vector<128x64xbf16>
    %cst_133 = arith.constant dense<0.000000e+00> : vector<128x128xf32>
    %221 = tpu.matmul %220, %3, %cst_133 {dimension_numbers = #tpu.dot_dimension_numbers<[1], [0], [0], [1], [0, 0, 1, 1], [], []>} : vector<128x64xbf16>, vector<64x128xbf16>, vector<128x128xf32> -> vector<128x128xf32>
    %222 = arith.addf %217, %221 : vector<128x128xf32>
    %c10_134 = arith.constant 10 : index
    %223 = arith.index_cast %14 : i32 to index
    %c0_135 = arith.constant 0 : index
    %224 = vector.load %arg1[%c10_134, %223, %c0_135] : memref<21x128x64xbf16, #tpu.memory_space<vmem>>, vector<1x128x64xbf16>
    %225 = vector.shape_cast %224 : vector<1x128x64xbf16> to vector<128x64xbf16>
    %cst_136 = arith.constant dense<0.000000e+00> : vector<128x128xf32>
    %226 = tpu.matmul %225, %5, %cst_136 {dimension_numbers = #tpu.dot_dimension_numbers<[1], [0], [0], [1], [0, 0, 1, 1], [], []>} : vector<128x64xbf16>, vector<64x128xbf16>, vector<128x128xf32> -> vector<128x128xf32>
    %227 = arith.addf %222, %226 : vector<128x128xf32>
    %c11_137 = arith.constant 11 : index
    %228 = arith.index_cast %14 : i32 to index
    %c0_138 = arith.constant 0 : index
    %229 = vector.load %arg1[%c11_137, %228, %c0_138] : memref<21x128x64xbf16, #tpu.memory_space<vmem>>, vector<1x128x64xbf16>
    %230 = vector.shape_cast %229 : vector<1x128x64xbf16> to vector<128x64xbf16>
    %cst_139 = arith.constant dense<0.000000e+00> : vector<128x128xf32>
    %231 = tpu.matmul %230, %7, %cst_139 {dimension_numbers = #tpu.dot_dimension_numbers<[1], [0], [0], [1], [0, 0, 1, 1], [], []>} : vector<128x64xbf16>, vector<64x128xbf16>, vector<128x128xf32> -> vector<128x128xf32>
    %232 = arith.addf %227, %231 : vector<128x128xf32>
    %c12 = arith.constant 12 : index
    %233 = arith.index_cast %14 : i32 to index
    %c0_140 = arith.constant 0 : index
    %234 = vector.load %arg1[%c12, %233, %c0_140] : memref<21x128x64xbf16, #tpu.memory_space<vmem>>, vector<1x128x64xbf16>
    %235 = vector.shape_cast %234 : vector<1x128x64xbf16> to vector<128x64xbf16>
    %cst_141 = arith.constant dense<0.000000e+00> : vector<128x128xf32>
    %236 = tpu.matmul %235, %9, %cst_141 {dimension_numbers = #tpu.dot_dimension_numbers<[1], [0], [0], [1], [0, 0, 1, 1], [], []>} : vector<128x64xbf16>, vector<64x128xbf16>, vector<128x128xf32> -> vector<128x128xf32>
    %237 = arith.addf %232, %236 : vector<128x128xf32>
    %238 = arith.maximumf %213, %237 : vector<128x128xf32>
    %c9_142 = arith.constant 9 : index
    %239 = arith.index_cast %14 : i32 to index
    %c0_143 = arith.constant 0 : index
    %240 = vector.load %arg1[%c9_142, %239, %c0_143] : memref<21x128x64xbf16, #tpu.memory_space<vmem>>, vector<1x128x64xbf16>
    %241 = vector.shape_cast %240 : vector<1x128x64xbf16> to vector<128x64xbf16>
    %cst_144 = arith.constant dense<0.000000e+00> : vector<128x128xf32>
    %242 = tpu.matmul %241, %1, %cst_144 {dimension_numbers = #tpu.dot_dimension_numbers<[1], [0], [0], [1], [0, 0, 1, 1], [], []>} : vector<128x64xbf16>, vector<64x128xbf16>, vector<128x128xf32> -> vector<128x128xf32>
    %c10_145 = arith.constant 10 : index
    %243 = arith.index_cast %14 : i32 to index
    %c0_146 = arith.constant 0 : index
    %244 = vector.load %arg1[%c10_145, %243, %c0_146] : memref<21x128x64xbf16, #tpu.memory_space<vmem>>, vector<1x128x64xbf16>
    %245 = vector.shape_cast %244 : vector<1x128x64xbf16> to vector<128x64xbf16>
    %cst_147 = arith.constant dense<0.000000e+00> : vector<128x128xf32>
    %246 = tpu.matmul %245, %3, %cst_147 {dimension_numbers = #tpu.dot_dimension_numbers<[1], [0], [0], [1], [0, 0, 1, 1], [], []>} : vector<128x64xbf16>, vector<64x128xbf16>, vector<128x128xf32> -> vector<128x128xf32>
    %247 = arith.addf %242, %246 : vector<128x128xf32>
    %c11_148 = arith.constant 11 : index
    %248 = arith.index_cast %14 : i32 to index
    %c0_149 = arith.constant 0 : index
    %249 = vector.load %arg1[%c11_148, %248, %c0_149] : memref<21x128x64xbf16, #tpu.memory_space<vmem>>, vector<1x128x64xbf16>
    %250 = vector.shape_cast %249 : vector<1x128x64xbf16> to vector<128x64xbf16>
    %cst_150 = arith.constant dense<0.000000e+00> : vector<128x128xf32>
    %251 = tpu.matmul %250, %5, %cst_150 {dimension_numbers = #tpu.dot_dimension_numbers<[1], [0], [0], [1], [0, 0, 1, 1], [], []>} : vector<128x64xbf16>, vector<64x128xbf16>, vector<128x128xf32> -> vector<128x128xf32>
    %252 = arith.addf %247, %251 : vector<128x128xf32>
    %c12_151 = arith.constant 12 : index
    %253 = arith.index_cast %14 : i32 to index
    %c0_152 = arith.constant 0 : index
    %254 = vector.load %arg1[%c12_151, %253, %c0_152] : memref<21x128x64xbf16, #tpu.memory_space<vmem>>, vector<1x128x64xbf16>
    %255 = vector.shape_cast %254 : vector<1x128x64xbf16> to vector<128x64xbf16>
    %cst_153 = arith.constant dense<0.000000e+00> : vector<128x128xf32>
    %256 = tpu.matmul %255, %7, %cst_153 {dimension_numbers = #tpu.dot_dimension_numbers<[1], [0], [0], [1], [0, 0, 1, 1], [], []>} : vector<128x64xbf16>, vector<64x128xbf16>, vector<128x128xf32> -> vector<128x128xf32>
    %257 = arith.addf %252, %256 : vector<128x128xf32>
    %c13 = arith.constant 13 : index
    %258 = arith.index_cast %14 : i32 to index
    %c0_154 = arith.constant 0 : index
    %259 = vector.load %arg1[%c13, %258, %c0_154] : memref<21x128x64xbf16, #tpu.memory_space<vmem>>, vector<1x128x64xbf16>
    %260 = vector.shape_cast %259 : vector<1x128x64xbf16> to vector<128x64xbf16>
    %cst_155 = arith.constant dense<0.000000e+00> : vector<128x128xf32>
    %261 = tpu.matmul %260, %9, %cst_155 {dimension_numbers = #tpu.dot_dimension_numbers<[1], [0], [0], [1], [0, 0, 1, 1], [], []>} : vector<128x64xbf16>, vector<64x128xbf16>, vector<128x128xf32> -> vector<128x128xf32>
    %262 = arith.addf %257, %261 : vector<128x128xf32>
    %263 = arith.maximumf %238, %262 : vector<128x128xf32>
    %c10_156 = arith.constant 10 : index
    %264 = arith.index_cast %14 : i32 to index
    %c0_157 = arith.constant 0 : index
    %265 = vector.load %arg1[%c10_156, %264, %c0_157] : memref<21x128x64xbf16, #tpu.memory_space<vmem>>, vector<1x128x64xbf16>
    %266 = vector.shape_cast %265 : vector<1x128x64xbf16> to vector<128x64xbf16>
    %cst_158 = arith.constant dense<0.000000e+00> : vector<128x128xf32>
    %267 = tpu.matmul %266, %1, %cst_158 {dimension_numbers = #tpu.dot_dimension_numbers<[1], [0], [0], [1], [0, 0, 1, 1], [], []>} : vector<128x64xbf16>, vector<64x128xbf16>, vector<128x128xf32> -> vector<128x128xf32>
    %c11_159 = arith.constant 11 : index
    %268 = arith.index_cast %14 : i32 to index
    %c0_160 = arith.constant 0 : index
    %269 = vector.load %arg1[%c11_159, %268, %c0_160] : memref<21x128x64xbf16, #tpu.memory_space<vmem>>, vector<1x128x64xbf16>
    %270 = vector.shape_cast %269 : vector<1x128x64xbf16> to vector<128x64xbf16>
    %cst_161 = arith.constant dense<0.000000e+00> : vector<128x128xf32>
    %271 = tpu.matmul %270, %3, %cst_161 {dimension_numbers = #tpu.dot_dimension_numbers<[1], [0], [0], [1], [0, 0, 1, 1], [], []>} : vector<128x64xbf16>, vector<64x128xbf16>, vector<128x128xf32> -> vector<128x128xf32>
    %272 = arith.addf %267, %271 : vector<128x128xf32>
    %c12_162 = arith.constant 12 : index
    %273 = arith.index_cast %14 : i32 to index
    %c0_163 = arith.constant 0 : index
    %274 = vector.load %arg1[%c12_162, %273, %c0_163] : memref<21x128x64xbf16, #tpu.memory_space<vmem>>, vector<1x128x64xbf16>
    %275 = vector.shape_cast %274 : vector<1x128x64xbf16> to vector<128x64xbf16>
    %cst_164 = arith.constant dense<0.000000e+00> : vector<128x128xf32>
    %276 = tpu.matmul %275, %5, %cst_164 {dimension_numbers = #tpu.dot_dimension_numbers<[1], [0], [0], [1], [0, 0, 1, 1], [], []>} : vector<128x64xbf16>, vector<64x128xbf16>, vector<128x128xf32> -> vector<128x128xf32>
    %277 = arith.addf %272, %276 : vector<128x128xf32>
    %c13_165 = arith.constant 13 : index
    %278 = arith.index_cast %14 : i32 to index
    %c0_166 = arith.constant 0 : index
    %279 = vector.load %arg1[%c13_165, %278, %c0_166] : memref<21x128x64xbf16, #tpu.memory_space<vmem>>, vector<1x128x64xbf16>
    %280 = vector.shape_cast %279 : vector<1x128x64xbf16> to vector<128x64xbf16>
    %cst_167 = arith.constant dense<0.000000e+00> : vector<128x128xf32>
    %281 = tpu.matmul %280, %7, %cst_167 {dimension_numbers = #tpu.dot_dimension_numbers<[1], [0], [0], [1], [0, 0, 1, 1], [], []>} : vector<128x64xbf16>, vector<64x128xbf16>, vector<128x128xf32> -> vector<128x128xf32>
    %282 = arith.addf %277, %281 : vector<128x128xf32>
    %c14 = arith.constant 14 : index
    %283 = arith.index_cast %14 : i32 to index
    %c0_168 = arith.constant 0 : index
    %284 = vector.load %arg1[%c14, %283, %c0_168] : memref<21x128x64xbf16, #tpu.memory_space<vmem>>, vector<1x128x64xbf16>
    %285 = vector.shape_cast %284 : vector<1x128x64xbf16> to vector<128x64xbf16>
    %cst_169 = arith.constant dense<0.000000e+00> : vector<128x128xf32>
    %286 = tpu.matmul %285, %9, %cst_169 {dimension_numbers = #tpu.dot_dimension_numbers<[1], [0], [0], [1], [0, 0, 1, 1], [], []>} : vector<128x64xbf16>, vector<64x128xbf16>, vector<128x128xf32> -> vector<128x128xf32>
    %287 = arith.addf %282, %286 : vector<128x128xf32>
    %288 = arith.maximumf %263, %287 : vector<128x128xf32>
    %c11_170 = arith.constant 11 : index
    %289 = arith.index_cast %14 : i32 to index
    %c0_171 = arith.constant 0 : index
    %290 = vector.load %arg1[%c11_170, %289, %c0_171] : memref<21x128x64xbf16, #tpu.memory_space<vmem>>, vector<1x128x64xbf16>
    %291 = vector.shape_cast %290 : vector<1x128x64xbf16> to vector<128x64xbf16>
    %cst_172 = arith.constant dense<0.000000e+00> : vector<128x128xf32>
    %292 = tpu.matmul %291, %1, %cst_172 {dimension_numbers = #tpu.dot_dimension_numbers<[1], [0], [0], [1], [0, 0, 1, 1], [], []>} : vector<128x64xbf16>, vector<64x128xbf16>, vector<128x128xf32> -> vector<128x128xf32>
    %c12_173 = arith.constant 12 : index
    %293 = arith.index_cast %14 : i32 to index
    %c0_174 = arith.constant 0 : index
    %294 = vector.load %arg1[%c12_173, %293, %c0_174] : memref<21x128x64xbf16, #tpu.memory_space<vmem>>, vector<1x128x64xbf16>
    %295 = vector.shape_cast %294 : vector<1x128x64xbf16> to vector<128x64xbf16>
    %cst_175 = arith.constant dense<0.000000e+00> : vector<128x128xf32>
    %296 = tpu.matmul %295, %3, %cst_175 {dimension_numbers = #tpu.dot_dimension_numbers<[1], [0], [0], [1], [0, 0, 1, 1], [], []>} : vector<128x64xbf16>, vector<64x128xbf16>, vector<128x128xf32> -> vector<128x128xf32>
    %297 = arith.addf %292, %296 : vector<128x128xf32>
    %c13_176 = arith.constant 13 : index
    %298 = arith.index_cast %14 : i32 to index
    %c0_177 = arith.constant 0 : index
    %299 = vector.load %arg1[%c13_176, %298, %c0_177] : memref<21x128x64xbf16, #tpu.memory_space<vmem>>, vector<1x128x64xbf16>
    %300 = vector.shape_cast %299 : vector<1x128x64xbf16> to vector<128x64xbf16>
    %cst_178 = arith.constant dense<0.000000e+00> : vector<128x128xf32>
    %301 = tpu.matmul %300, %5, %cst_178 {dimension_numbers = #tpu.dot_dimension_numbers<[1], [0], [0], [1], [0, 0, 1, 1], [], []>} : vector<128x64xbf16>, vector<64x128xbf16>, vector<128x128xf32> -> vector<128x128xf32>
    %302 = arith.addf %297, %301 : vector<128x128xf32>
    %c14_179 = arith.constant 14 : index
    %303 = arith.index_cast %14 : i32 to index
    %c0_180 = arith.constant 0 : index
    %304 = vector.load %arg1[%c14_179, %303, %c0_180] : memref<21x128x64xbf16, #tpu.memory_space<vmem>>, vector<1x128x64xbf16>
    %305 = vector.shape_cast %304 : vector<1x128x64xbf16> to vector<128x64xbf16>
    %cst_181 = arith.constant dense<0.000000e+00> : vector<128x128xf32>
    %306 = tpu.matmul %305, %7, %cst_181 {dimension_numbers = #tpu.dot_dimension_numbers<[1], [0], [0], [1], [0, 0, 1, 1], [], []>} : vector<128x64xbf16>, vector<64x128xbf16>, vector<128x128xf32> -> vector<128x128xf32>
    %307 = arith.addf %302, %306 : vector<128x128xf32>
    %c15 = arith.constant 15 : index
    %308 = arith.index_cast %14 : i32 to index
    %c0_182 = arith.constant 0 : index
    %309 = vector.load %arg1[%c15, %308, %c0_182] : memref<21x128x64xbf16, #tpu.memory_space<vmem>>, vector<1x128x64xbf16>
    %310 = vector.shape_cast %309 : vector<1x128x64xbf16> to vector<128x64xbf16>
    %cst_183 = arith.constant dense<0.000000e+00> : vector<128x128xf32>
    %311 = tpu.matmul %310, %9, %cst_183 {dimension_numbers = #tpu.dot_dimension_numbers<[1], [0], [0], [1], [0, 0, 1, 1], [], []>} : vector<128x64xbf16>, vector<64x128xbf16>, vector<128x128xf32> -> vector<128x128xf32>
    %312 = arith.addf %307, %311 : vector<128x128xf32>
    %313 = arith.maximumf %288, %312 : vector<128x128xf32>
    %c12_184 = arith.constant 12 : index
    %314 = arith.index_cast %14 : i32 to index
    %c0_185 = arith.constant 0 : index
    %315 = vector.load %arg1[%c12_184, %314, %c0_185] : memref<21x128x64xbf16, #tpu.memory_space<vmem>>, vector<1x128x64xbf16>
    %316 = vector.shape_cast %315 : vector<1x128x64xbf16> to vector<128x64xbf16>
    %cst_186 = arith.constant dense<0.000000e+00> : vector<128x128xf32>
    %317 = tpu.matmul %316, %1, %cst_186 {dimension_numbers = #tpu.dot_dimension_numbers<[1], [0], [0], [1], [0, 0, 1, 1], [], []>} : vector<128x64xbf16>, vector<64x128xbf16>, vector<128x128xf32> -> vector<128x128xf32>
    %c13_187 = arith.constant 13 : index
    %318 = arith.index_cast %14 : i32 to index
    %c0_188 = arith.constant 0 : index
    %319 = vector.load %arg1[%c13_187, %318, %c0_188] : memref<21x128x64xbf16, #tpu.memory_space<vmem>>, vector<1x128x64xbf16>
    %320 = vector.shape_cast %319 : vector<1x128x64xbf16> to vector<128x64xbf16>
    %cst_189 = arith.constant dense<0.000000e+00> : vector<128x128xf32>
    %321 = tpu.matmul %320, %3, %cst_189 {dimension_numbers = #tpu.dot_dimension_numbers<[1], [0], [0], [1], [0, 0, 1, 1], [], []>} : vector<128x64xbf16>, vector<64x128xbf16>, vector<128x128xf32> -> vector<128x128xf32>
    %322 = arith.addf %317, %321 : vector<128x128xf32>
    %c14_190 = arith.constant 14 : index
    %323 = arith.index_cast %14 : i32 to index
    %c0_191 = arith.constant 0 : index
    %324 = vector.load %arg1[%c14_190, %323, %c0_191] : memref<21x128x64xbf16, #tpu.memory_space<vmem>>, vector<1x128x64xbf16>
    %325 = vector.shape_cast %324 : vector<1x128x64xbf16> to vector<128x64xbf16>
    %cst_192 = arith.constant dense<0.000000e+00> : vector<128x128xf32>
    %326 = tpu.matmul %325, %5, %cst_192 {dimension_numbers = #tpu.dot_dimension_numbers<[1], [0], [0], [1], [0, 0, 1, 1], [], []>} : vector<128x64xbf16>, vector<64x128xbf16>, vector<128x128xf32> -> vector<128x128xf32>
    %327 = arith.addf %322, %326 : vector<128x128xf32>
    %c15_193 = arith.constant 15 : index
    %328 = arith.index_cast %14 : i32 to index
    %c0_194 = arith.constant 0 : index
    %329 = vector.load %arg1[%c15_193, %328, %c0_194] : memref<21x128x64xbf16, #tpu.memory_space<vmem>>, vector<1x128x64xbf16>
    %330 = vector.shape_cast %329 : vector<1x128x64xbf16> to vector<128x64xbf16>
    %cst_195 = arith.constant dense<0.000000e+00> : vector<128x128xf32>
    %331 = tpu.matmul %330, %7, %cst_195 {dimension_numbers = #tpu.dot_dimension_numbers<[1], [0], [0], [1], [0, 0, 1, 1], [], []>} : vector<128x64xbf16>, vector<64x128xbf16>, vector<128x128xf32> -> vector<128x128xf32>
    %332 = arith.addf %327, %331 : vector<128x128xf32>
    %c16 = arith.constant 16 : index
    %333 = arith.index_cast %14 : i32 to index
    %c0_196 = arith.constant 0 : index
    %334 = vector.load %arg1[%c16, %333, %c0_196] : memref<21x128x64xbf16, #tpu.memory_space<vmem>>, vector<1x128x64xbf16>
    %335 = vector.shape_cast %334 : vector<1x128x64xbf16> to vector<128x64xbf16>
    %cst_197 = arith.constant dense<0.000000e+00> : vector<128x128xf32>
    %336 = tpu.matmul %335, %9, %cst_197 {dimension_numbers = #tpu.dot_dimension_numbers<[1], [0], [0], [1], [0, 0, 1, 1], [], []>} : vector<128x64xbf16>, vector<64x128xbf16>, vector<128x128xf32> -> vector<128x128xf32>
    %337 = arith.addf %332, %336 : vector<128x128xf32>
    %338 = arith.maximumf %313, %337 : vector<128x128xf32>
    %c13_198 = arith.constant 13 : index
    %339 = arith.index_cast %14 : i32 to index
    %c0_199 = arith.constant 0 : index
    %340 = vector.load %arg1[%c13_198, %339, %c0_199] : memref<21x128x64xbf16, #tpu.memory_space<vmem>>, vector<1x128x64xbf16>
    %341 = vector.shape_cast %340 : vector<1x128x64xbf16> to vector<128x64xbf16>
    %cst_200 = arith.constant dense<0.000000e+00> : vector<128x128xf32>
    %342 = tpu.matmul %341, %1, %cst_200 {dimension_numbers = #tpu.dot_dimension_numbers<[1], [0], [0], [1], [0, 0, 1, 1], [], []>} : vector<128x64xbf16>, vector<64x128xbf16>, vector<128x128xf32> -> vector<128x128xf32>
    %c14_201 = arith.constant 14 : index
    %343 = arith.index_cast %14 : i32 to index
    %c0_202 = arith.constant 0 : index
    %344 = vector.load %arg1[%c14_201, %343, %c0_202] : memref<21x128x64xbf16, #tpu.memory_space<vmem>>, vector<1x128x64xbf16>
    %345 = vector.shape_cast %344 : vector<1x128x64xbf16> to vector<128x64xbf16>
    %cst_203 = arith.constant dense<0.000000e+00> : vector<128x128xf32>
    %346 = tpu.matmul %345, %3, %cst_203 {dimension_numbers = #tpu.dot_dimension_numbers<[1], [0], [0], [1], [0, 0, 1, 1], [], []>} : vector<128x64xbf16>, vector<64x128xbf16>, vector<128x128xf32> -> vector<128x128xf32>
    %347 = arith.addf %342, %346 : vector<128x128xf32>
    %c15_204 = arith.constant 15 : index
    %348 = arith.index_cast %14 : i32 to index
    %c0_205 = arith.constant 0 : index
    %349 = vector.load %arg1[%c15_204, %348, %c0_205] : memref<21x128x64xbf16, #tpu.memory_space<vmem>>, vector<1x128x64xbf16>
    %350 = vector.shape_cast %349 : vector<1x128x64xbf16> to vector<128x64xbf16>
    %cst_206 = arith.constant dense<0.000000e+00> : vector<128x128xf32>
    %351 = tpu.matmul %350, %5, %cst_206 {dimension_numbers = #tpu.dot_dimension_numbers<[1], [0], [0], [1], [0, 0, 1, 1], [], []>} : vector<128x64xbf16>, vector<64x128xbf16>, vector<128x128xf32> -> vector<128x128xf32>
    %352 = arith.addf %347, %351 : vector<128x128xf32>
    %c16_207 = arith.constant 16 : index
    %353 = arith.index_cast %14 : i32 to index
    %c0_208 = arith.constant 0 : index
    %354 = vector.load %arg1[%c16_207, %353, %c0_208] : memref<21x128x64xbf16, #tpu.memory_space<vmem>>, vector<1x128x64xbf16>
    %355 = vector.shape_cast %354 : vector<1x128x64xbf16> to vector<128x64xbf16>
    %cst_209 = arith.constant dense<0.000000e+00> : vector<128x128xf32>
    %356 = tpu.matmul %355, %7, %cst_209 {dimension_numbers = #tpu.dot_dimension_numbers<[1], [0], [0], [1], [0, 0, 1, 1], [], []>} : vector<128x64xbf16>, vector<64x128xbf16>, vector<128x128xf32> -> vector<128x128xf32>
    %357 = arith.addf %352, %356 : vector<128x128xf32>
    %c17 = arith.constant 17 : index
    %358 = arith.index_cast %14 : i32 to index
    %c0_210 = arith.constant 0 : index
    %359 = vector.load %arg1[%c17, %358, %c0_210] : memref<21x128x64xbf16, #tpu.memory_space<vmem>>, vector<1x128x64xbf16>
    %360 = vector.shape_cast %359 : vector<1x128x64xbf16> to vector<128x64xbf16>
    %cst_211 = arith.constant dense<0.000000e+00> : vector<128x128xf32>
    %361 = tpu.matmul %360, %9, %cst_211 {dimension_numbers = #tpu.dot_dimension_numbers<[1], [0], [0], [1], [0, 0, 1, 1], [], []>} : vector<128x64xbf16>, vector<64x128xbf16>, vector<128x128xf32> -> vector<128x128xf32>
    %362 = arith.addf %357, %361 : vector<128x128xf32>
    %363 = arith.maximumf %338, %362 : vector<128x128xf32>
    %c14_212 = arith.constant 14 : index
    %364 = arith.index_cast %14 : i32 to index
    %c0_213 = arith.constant 0 : index
    %365 = vector.load %arg1[%c14_212, %364, %c0_213] : memref<21x128x64xbf16, #tpu.memory_space<vmem>>, vector<1x128x64xbf16>
    %366 = vector.shape_cast %365 : vector<1x128x64xbf16> to vector<128x64xbf16>
    %cst_214 = arith.constant dense<0.000000e+00> : vector<128x128xf32>
    %367 = tpu.matmul %366, %1, %cst_214 {dimension_numbers = #tpu.dot_dimension_numbers<[1], [0], [0], [1], [0, 0, 1, 1], [], []>} : vector<128x64xbf16>, vector<64x128xbf16>, vector<128x128xf32> -> vector<128x128xf32>
    %c15_215 = arith.constant 15 : index
    %368 = arith.index_cast %14 : i32 to index
    %c0_216 = arith.constant 0 : index
    %369 = vector.load %arg1[%c15_215, %368, %c0_216] : memref<21x128x64xbf16, #tpu.memory_space<vmem>>, vector<1x128x64xbf16>
    %370 = vector.shape_cast %369 : vector<1x128x64xbf16> to vector<128x64xbf16>
    %cst_217 = arith.constant dense<0.000000e+00> : vector<128x128xf32>
    %371 = tpu.matmul %370, %3, %cst_217 {dimension_numbers = #tpu.dot_dimension_numbers<[1], [0], [0], [1], [0, 0, 1, 1], [], []>} : vector<128x64xbf16>, vector<64x128xbf16>, vector<128x128xf32> -> vector<128x128xf32>
    %372 = arith.addf %367, %371 : vector<128x128xf32>
    %c16_218 = arith.constant 16 : index
    %373 = arith.index_cast %14 : i32 to index
    %c0_219 = arith.constant 0 : index
    %374 = vector.load %arg1[%c16_218, %373, %c0_219] : memref<21x128x64xbf16, #tpu.memory_space<vmem>>, vector<1x128x64xbf16>
    %375 = vector.shape_cast %374 : vector<1x128x64xbf16> to vector<128x64xbf16>
    %cst_220 = arith.constant dense<0.000000e+00> : vector<128x128xf32>
    %376 = tpu.matmul %375, %5, %cst_220 {dimension_numbers = #tpu.dot_dimension_numbers<[1], [0], [0], [1], [0, 0, 1, 1], [], []>} : vector<128x64xbf16>, vector<64x128xbf16>, vector<128x128xf32> -> vector<128x128xf32>
    %377 = arith.addf %372, %376 : vector<128x128xf32>
    %c17_221 = arith.constant 17 : index
    %378 = arith.index_cast %14 : i32 to index
    %c0_222 = arith.constant 0 : index
    %379 = vector.load %arg1[%c17_221, %378, %c0_222] : memref<21x128x64xbf16, #tpu.memory_space<vmem>>, vector<1x128x64xbf16>
    %380 = vector.shape_cast %379 : vector<1x128x64xbf16> to vector<128x64xbf16>
    %cst_223 = arith.constant dense<0.000000e+00> : vector<128x128xf32>
    %381 = tpu.matmul %380, %7, %cst_223 {dimension_numbers = #tpu.dot_dimension_numbers<[1], [0], [0], [1], [0, 0, 1, 1], [], []>} : vector<128x64xbf16>, vector<64x128xbf16>, vector<128x128xf32> -> vector<128x128xf32>
    %382 = arith.addf %377, %381 : vector<128x128xf32>
    %c18 = arith.constant 18 : index
    %383 = arith.index_cast %14 : i32 to index
    %c0_224 = arith.constant 0 : index
    %384 = vector.load %arg1[%c18, %383, %c0_224] : memref<21x128x64xbf16, #tpu.memory_space<vmem>>, vector<1x128x64xbf16>
    %385 = vector.shape_cast %384 : vector<1x128x64xbf16> to vector<128x64xbf16>
    %cst_225 = arith.constant dense<0.000000e+00> : vector<128x128xf32>
    %386 = tpu.matmul %385, %9, %cst_225 {dimension_numbers = #tpu.dot_dimension_numbers<[1], [0], [0], [1], [0, 0, 1, 1], [], []>} : vector<128x64xbf16>, vector<64x128xbf16>, vector<128x128xf32> -> vector<128x128xf32>
    %387 = arith.addf %382, %386 : vector<128x128xf32>
    %388 = arith.maximumf %363, %387 : vector<128x128xf32>
    %c15_226 = arith.constant 15 : index
    %389 = arith.index_cast %14 : i32 to index
    %c0_227 = arith.constant 0 : index
    %390 = vector.load %arg1[%c15_226, %389, %c0_227] : memref<21x128x64xbf16, #tpu.memory_space<vmem>>, vector<1x128x64xbf16>
    %391 = vector.shape_cast %390 : vector<1x128x64xbf16> to vector<128x64xbf16>
    %cst_228 = arith.constant dense<0.000000e+00> : vector<128x128xf32>
    %392 = tpu.matmul %391, %1, %cst_228 {dimension_numbers = #tpu.dot_dimension_numbers<[1], [0], [0], [1], [0, 0, 1, 1], [], []>} : vector<128x64xbf16>, vector<64x128xbf16>, vector<128x128xf32> -> vector<128x128xf32>
    %c16_229 = arith.constant 16 : index
    %393 = arith.index_cast %14 : i32 to index
    %c0_230 = arith.constant 0 : index
    %394 = vector.load %arg1[%c16_229, %393, %c0_230] : memref<21x128x64xbf16, #tpu.memory_space<vmem>>, vector<1x128x64xbf16>
    %395 = vector.shape_cast %394 : vector<1x128x64xbf16> to vector<128x64xbf16>
    %cst_231 = arith.constant dense<0.000000e+00> : vector<128x128xf32>
    %396 = tpu.matmul %395, %3, %cst_231 {dimension_numbers = #tpu.dot_dimension_numbers<[1], [0], [0], [1], [0, 0, 1, 1], [], []>} : vector<128x64xbf16>, vector<64x128xbf16>, vector<128x128xf32> -> vector<128x128xf32>
    %397 = arith.addf %392, %396 : vector<128x128xf32>
    %c17_232 = arith.constant 17 : index
    %398 = arith.index_cast %14 : i32 to index
    %c0_233 = arith.constant 0 : index
    %399 = vector.load %arg1[%c17_232, %398, %c0_233] : memref<21x128x64xbf16, #tpu.memory_space<vmem>>, vector<1x128x64xbf16>
    %400 = vector.shape_cast %399 : vector<1x128x64xbf16> to vector<128x64xbf16>
    %cst_234 = arith.constant dense<0.000000e+00> : vector<128x128xf32>
    %401 = tpu.matmul %400, %5, %cst_234 {dimension_numbers = #tpu.dot_dimension_numbers<[1], [0], [0], [1], [0, 0, 1, 1], [], []>} : vector<128x64xbf16>, vector<64x128xbf16>, vector<128x128xf32> -> vector<128x128xf32>
    %402 = arith.addf %397, %401 : vector<128x128xf32>
    %c18_235 = arith.constant 18 : index
    %403 = arith.index_cast %14 : i32 to index
    %c0_236 = arith.constant 0 : index
    %404 = vector.load %arg1[%c18_235, %403, %c0_236] : memref<21x128x64xbf16, #tpu.memory_space<vmem>>, vector<1x128x64xbf16>
    %405 = vector.shape_cast %404 : vector<1x128x64xbf16> to vector<128x64xbf16>
    %cst_237 = arith.constant dense<0.000000e+00> : vector<128x128xf32>
    %406 = tpu.matmul %405, %7, %cst_237 {dimension_numbers = #tpu.dot_dimension_numbers<[1], [0], [0], [1], [0, 0, 1, 1], [], []>} : vector<128x64xbf16>, vector<64x128xbf16>, vector<128x128xf32> -> vector<128x128xf32>
    %407 = arith.addf %402, %406 : vector<128x128xf32>
    %c19 = arith.constant 19 : index
    %408 = arith.index_cast %14 : i32 to index
    %c0_238 = arith.constant 0 : index
    %409 = vector.load %arg1[%c19, %408, %c0_238] : memref<21x128x64xbf16, #tpu.memory_space<vmem>>, vector<1x128x64xbf16>
    %410 = vector.shape_cast %409 : vector<1x128x64xbf16> to vector<128x64xbf16>
    %cst_239 = arith.constant dense<0.000000e+00> : vector<128x128xf32>
    %411 = tpu.matmul %410, %9, %cst_239 {dimension_numbers = #tpu.dot_dimension_numbers<[1], [0], [0], [1], [0, 0, 1, 1], [], []>} : vector<128x64xbf16>, vector<64x128xbf16>, vector<128x128xf32> -> vector<128x128xf32>
    %412 = arith.addf %407, %411 : vector<128x128xf32>
    %413 = arith.maximumf %388, %412 : vector<128x128xf32>
    %c16_240 = arith.constant 16 : index
    %414 = arith.index_cast %14 : i32 to index
    %c0_241 = arith.constant 0 : index
    %415 = vector.load %arg1[%c16_240, %414, %c0_241] : memref<21x128x64xbf16, #tpu.memory_space<vmem>>, vector<1x128x64xbf16>
    %416 = vector.shape_cast %415 : vector<1x128x64xbf16> to vector<128x64xbf16>
    %cst_242 = arith.constant dense<0.000000e+00> : vector<128x128xf32>
    %417 = tpu.matmul %416, %1, %cst_242 {dimension_numbers = #tpu.dot_dimension_numbers<[1], [0], [0], [1], [0, 0, 1, 1], [], []>} : vector<128x64xbf16>, vector<64x128xbf16>, vector<128x128xf32> -> vector<128x128xf32>
    %c17_243 = arith.constant 17 : index
    %418 = arith.index_cast %14 : i32 to index
    %c0_244 = arith.constant 0 : index
    %419 = vector.load %arg1[%c17_243, %418, %c0_244] : memref<21x128x64xbf16, #tpu.memory_space<vmem>>, vector<1x128x64xbf16>
    %420 = vector.shape_cast %419 : vector<1x128x64xbf16> to vector<128x64xbf16>
    %cst_245 = arith.constant dense<0.000000e+00> : vector<128x128xf32>
    %421 = tpu.matmul %420, %3, %cst_245 {dimension_numbers = #tpu.dot_dimension_numbers<[1], [0], [0], [1], [0, 0, 1, 1], [], []>} : vector<128x64xbf16>, vector<64x128xbf16>, vector<128x128xf32> -> vector<128x128xf32>
    %422 = arith.addf %417, %421 : vector<128x128xf32>
    %c18_246 = arith.constant 18 : index
    %423 = arith.index_cast %14 : i32 to index
    %c0_247 = arith.constant 0 : index
    %424 = vector.load %arg1[%c18_246, %423, %c0_247] : memref<21x128x64xbf16, #tpu.memory_space<vmem>>, vector<1x128x64xbf16>
    %425 = vector.shape_cast %424 : vector<1x128x64xbf16> to vector<128x64xbf16>
    %cst_248 = arith.constant dense<0.000000e+00> : vector<128x128xf32>
    %426 = tpu.matmul %425, %5, %cst_248 {dimension_numbers = #tpu.dot_dimension_numbers<[1], [0], [0], [1], [0, 0, 1, 1], [], []>} : vector<128x64xbf16>, vector<64x128xbf16>, vector<128x128xf32> -> vector<128x128xf32>
    %427 = arith.addf %422, %426 : vector<128x128xf32>
    %c19_249 = arith.constant 19 : index
    %428 = arith.index_cast %14 : i32 to index
    %c0_250 = arith.constant 0 : index
    %429 = vector.load %arg1[%c19_249, %428, %c0_250] : memref<21x128x64xbf16, #tpu.memory_space<vmem>>, vector<1x128x64xbf16>
    %430 = vector.shape_cast %429 : vector<1x128x64xbf16> to vector<128x64xbf16>
    %cst_251 = arith.constant dense<0.000000e+00> : vector<128x128xf32>
    %431 = tpu.matmul %430, %7, %cst_251 {dimension_numbers = #tpu.dot_dimension_numbers<[1], [0], [0], [1], [0, 0, 1, 1], [], []>} : vector<128x64xbf16>, vector<64x128xbf16>, vector<128x128xf32> -> vector<128x128xf32>
    %432 = arith.addf %427, %431 : vector<128x128xf32>
    %c20 = arith.constant 20 : index
    %433 = arith.index_cast %14 : i32 to index
    %c0_252 = arith.constant 0 : index
    %434 = vector.load %arg1[%c20, %433, %c0_252] : memref<21x128x64xbf16, #tpu.memory_space<vmem>>, vector<1x128x64xbf16>
    %435 = vector.shape_cast %434 : vector<1x128x64xbf16> to vector<128x64xbf16>
    %cst_253 = arith.constant dense<0.000000e+00> : vector<128x128xf32>
    %436 = tpu.matmul %435, %9, %cst_253 {dimension_numbers = #tpu.dot_dimension_numbers<[1], [0], [0], [1], [0, 0, 1, 1], [], []>} : vector<128x64xbf16>, vector<64x128xbf16>, vector<128x128xf32> -> vector<128x128xf32>
    %437 = arith.addf %432, %436 : vector<128x128xf32>
    %438 = arith.maximumf %413, %437 : vector<128x128xf32>
    %439 = vector.broadcast %11 : vector<1x128xf32> to vector<128x128xf32>
    %440 = arith.addf %438, %439 : vector<128x128xf32>
    %cst_254 = arith.constant 0.000000e+00 : f32
    %441 = vector.broadcast %cst_254 : f32 to vector<128x128xf32>
    %442 = arith.maximumf %440, %441 : vector<128x128xf32>
    %443 = arith.truncf %442 : vector<128x128xf32> to vector<128x128xbf16>
    %cst_255 = arith.constant dense<0.000000e+00> : vector<128x256xf32>
    %444 = tpu.matmul %443, %10, %cst_255 {dimension_numbers = #tpu.dot_dimension_numbers<[1], [0], [0], [1], [0, 0, 1, 1], [], []>} : vector<128x128xbf16>, vector<128x256xbf16>, vector<128x256xf32> -> vector<128x256xf32>
    %445 = vector.broadcast %12 : vector<1x256xf32> to vector<128x256xf32>
    %446 = arith.addf %444, %445 : vector<128x256xf32>
    %447 = vector.extract_strided_slice %446 {offsets = [0, 0], sizes = [128, 128], strides = [1, 1]} : vector<128x256xf32> to vector<128x128xf32>
    %cst_256 = arith.constant 0.000000e+00 : f32
    %448 = vector.broadcast %cst_256 : f32 to vector<128x128xf32>
    %449 = arith.maximumf %447, %448 : vector<128x128xf32>
    %450 = vector.extract_strided_slice %446 {offsets = [0, 128], sizes = [128, 128], strides = [1, 1]} : vector<128x256xf32> to vector<128x128xf32>
    %451 = arith.negf %450 : vector<128x128xf32>
    %452 = math.exp %451 : vector<128x128xf32>
    %cst_257 = arith.constant 1.000000e+00 : f32
    %453 = vector.broadcast %cst_257 : f32 to vector<128x128xf32>
    %454 = arith.addf %453, %452 : vector<128x128xf32>
    %455 = arith.divf %453, %454 : vector<128x128xf32>
    %456 = arith.mulf %455, %449 : vector<128x128xf32>
    %cst_258 = arith.constant 1.000000e+00 : f32
    %457 = vector.broadcast %cst_258 : f32 to vector<128x128xf32>
    %458 = arith.subf %457, %455 : vector<128x128xf32>
    %459 = arith.mulf %458, %442 : vector<128x128xf32>
    %460 = arith.addf %456, %459 : vector<128x128xf32>
    %461 = arith.index_cast %14 : i32 to index
    %c0_259 = arith.constant 0 : index
    %462 = vector.load %arg6[%461, %c0_259] : memref<128x128xf32, #tpu.memory_space<vmem>>, vector<128x128xf32>
    tpu.vector_store %arg6[%461, %c0_259], %460 {strides = array<i32>} : memref<128x128xf32, #tpu.memory_space<vmem>>, vector<128x128xf32>,
    %c1_i32 = arith.constant 1 : i32
    return
  }
  func.func @transform_0(%arg0: i32) -> (i32, i32, i32) {
    %c0_i32 = arith.constant 0 : i32
    %c0_i32_0 = arith.constant 0 : i32
    %c0_i32_1 = arith.constant 0 : i32
    return %c0_i32, %arg0, %c0_i32_0 : i32, i32, i32
  }
  func.func @transform_1(%arg0: i32) -> (i32, i32, i32) {
    %c0_i32 = arith.constant 0 : i32
    %c0_i32_0 = arith.constant 0 : i32
    %c0_i32_1 = arith.constant 0 : i32
    %c0_i32_2 = arith.constant 0 : i32
    return %c0_i32, %c0_i32_0, %c0_i32_1 : i32, i32, i32
  }
  func.func @transform_2(%arg0: i32) -> (i32, i32) {
    %c0_i32 = arith.constant 0 : i32
    %c0_i32_0 = arith.constant 0 : i32
    %c0_i32_1 = arith.constant 0 : i32
    return %c0_i32, %c0_i32_0 : i32, i32
  }
  func.func @transform_3(%arg0: i32) -> (i32, i32) {
    %c0_i32 = arith.constant 0 : i32
    %c0_i32_0 = arith.constant 0 : i32
    %c0_i32_1 = arith.constant 0 : i32
    return %c0_i32, %c0_i32_0 : i32, i32
  }
  func.func @transform_4(%arg0: i32) -> (i32, i32) {
    %c0_i32 = arith.constant 0 : i32
    %c0_i32_0 = arith.constant 0 : i32
    %c0_i32_1 = arith.constant 0 : i32
    return %c0_i32, %c0_i32_0 : i32, i32
  }
  func.func @transform_5(%arg0: i32) -> (i32, i32) {
    %c0_i32 = arith.constant 0 : i32
    %c0_i32_0 = arith.constant 0 : i32
    return %arg0, %c0_i32 : i32, i32
  }
}

</mosaic_0001>

<llo_original>
// kernel: model_embeddings_forward.1
$region0: #{model_embeddings_forward.1}
  #allocation0 [shape = 'u32[]', space=smem, size = 0x4, offset = 0x4, fixed_abs, tag = 'smem constant byte address 0x4 - core index']
  #allocation1 [shape = 'u32[144,128]{1,0:T(1,128)}', space=vmem, size = 0x12000, scoped, tag = 'internal scratch']
  %s0 = inlined_call_operand.vmem [shape: bf16[21,128,64], index: 0, kind: input, shape index: {}]
  %s1 = inlined_call_operand.vmem [shape: bf16[5,64,128], index: 1, kind: input, shape index: {}]
  %s2 = inlined_call_operand.vmem [shape: f32[1,128], index: 2, kind: input, shape index: {}]
  %s3 = inlined_call_operand.vmem [shape: bf16[128,256], index: 3, kind: input, shape index: {}]
  %s4 = inlined_call_operand.vmem [shape: f32[1,256], index: 4, kind: input, shape index: {}]
  %s5 = inlined_call_operand.vmem [shape: f32[128,128], index: 5, kind: output, shape index: {}]
  %s6 = sld [smem:[#allocation0]]
  $region30: #{model_embeddings_forward.1} parent=0
    _
  %s8 = ssub.s32 1, %s6
  %s9 = scalar_select 0, %s8, %s6
  // Predicated region
  $region2: #{model_embeddings_forward.1} parent=0 // pred_check
    _
  $region3: #{model_embeddings_forward.1} parent=0 // pred_check_branch
    %11 = sbr.rel (0) target = $region5
  $region4: #{model_embeddings_forward.1} parent=0 // pred_region
    _
  $region5: #{model_embeddings_forward.1} parent=0 // pred_fallthru
    _
  // Predicated region
  $region6: #{model_embeddings_forward.1} parent=0 // pred_check
    _
  $region7: #{model_embeddings_forward.1} parent=0 // pred_check_branch
    %13 = sbr.rel (0) target = $region9
  $region8: #{model_embeddings_forward.1} parent=0 // pred_region
    _
  $region9: #{model_embeddings_forward.1} parent=0 // pred_fallthru
    _
  // Predicated region
  $region10: #{model_embeddings_forward.1} parent=0 // pred_check
    _
  $region11: #{model_embeddings_forward.1} parent=0 // pred_check_branch
    %15 = sbr.rel (0) target = $region13
  $region12: #{model_embeddings_forward.1} parent=0 // pred_region
    _
  $region13: #{model_embeddings_forward.1} parent=0 // pred_fallthru
    _
  // Predicated region
  $region14: #{model_embeddings_forward.1} parent=0 // pred_check
    _
  $region15: #{model_embeddings_forward.1} parent=0 // pred_check_branch
    %17 = sbr.rel (0) target = $region17
  $region16: #{model_embeddings_forward.1} parent=0 // pred_region
    _
  $region17: #{model_embeddings_forward.1} parent=0 // pred_fallthru
    _
  // Predicated region
  $region18: #{model_embeddings_forward.1} parent=0 // pred_check
    _
  $region19: #{model_embeddings_forward.1} parent=0 // pred_check_branch
    %19 = sbr.rel (0) target = $region21
  $region20: #{model_embeddings_forward.1} parent=0 // pred_region
    _
  $region21: #{model_embeddings_forward.1} parent=0 // pred_fallthru
    _
  %v21 = vld [vmem:[%s1] sm:$0xf]
  %v22 = vld [vmem:[%s1 + $0x4] sm:$0xf]
  %v23 = vld [vmem:[%s1 + $0x8] sm:$0xf]
  %v24 = vld [vmem:[%s1 + $0xc] sm:$0xf]
  %v25 = vld [vmem:[%s1 + $0x10] sm:$0xf]
  %v26 = vld [vmem:[%s1 + $0x14] sm:$0xf]
  %v27 = vld [vmem:[%s1 + $0x18] sm:$0xf]
  %v28 = vld [vmem:[%s1 + $0x1c] sm:$0xf]
  %s29 = scalar_lea.vmem %s1, 32
  %v30 = vld [vmem:[%s29] sm:$0xf]
  %v31 = vld [vmem:[%s29 + $0x4] sm:$0xf]
  %v32 = vld [vmem:[%s29 + $0x8] sm:$0xf]
  %v33 = vld [vmem:[%s29 + $0xc] sm:$0xf]
  %v34 = vld [vmem:[%s29 + $0x10] sm:$0xf]
  %v35 = vld [vmem:[%s29 + $0x14] sm:$0xf]
  %v36 = vld [vmem:[%s29 + $0x18] sm:$0xf]
  %v37 = vld [vmem:[%s29 + $0x1c] sm:$0xf]
  %s38 = scalar_lea.vmem %s1, 64
  %v39 = vld [vmem:[%s38] sm:$0xf]
  %v40 = vld [vmem:[%s38 + $0x4] sm:$0xf]
  %v41 = vld [vmem:[%s38 + $0x8] sm:$0xf]
  %v42 = vld [vmem:[%s38 + $0xc] sm:$0xf]
  %v43 = vld [vmem:[%s38 + $0x10] sm:$0xf]
  %v44 = vld [vmem:[%s38 + $0x14] sm:$0xf]
  %v45 = vld [vmem:[%s38 + $0x18] sm:$0xf]
  %v46 = vld [vmem:[%s38 + $0x1c] sm:$0xf]
  %s47 = scalar_lea.vmem %s1, 96
  %v48 = vld [vmem:[%s47] sm:$0xf]
  %v49 = vld [vmem:[%s47 + $0x4] sm:$0xf]
  %v50 = vld [vmem:[%s47 + $0x8] sm:$0xf]
  %v51 = vld [vmem:[%s47 + $0xc] sm:$0xf]
  %v52 = vld [vmem:[%s47 + $0x10] sm:$0xf]
  %v53 = vld [vmem:[%s47 + $0x14] sm:$0xf]
  %v54 = vld [vmem:[%s47 + $0x18] sm:$0xf]
  %v55 = vld [vmem:[%s47 + $0x1c] sm:$0xf]
  %s56 = scalar_lea.vmem %s1, 128
  %v57 = vld [vmem:[%s56] sm:$0xf]
  %v58 = vld [vmem:[%s56 + $0x4] sm:$0xf]
  %v59 = vld [vmem:[%s56 + $0x8] sm:$0xf]
  %v60 = vld [vmem:[%s56 + $0xc] sm:$0xf]
  %v61 = vld [vmem:[%s56 + $0x10] sm:$0xf]
  %v62 = vld [vmem:[%s56 + $0x14] sm:$0xf]
  %v63 = vld [vmem:[%s56 + $0x18] sm:$0xf]
  %v64 = vld [vmem:[%s56 + $0x1c] sm:$0xf]
  %v65 = vld [vmem:[%s3] sm:$0xff]
  %v66 = vld [vmem:[%s3 + $0x8] sm:$0xff]
  %v67 = vld [vmem:[%s3 + $0x10] sm:$0xff]
  %v68 = vld [vmem:[%s3 + $0x18] sm:$0xff]
  %v69 = vld [vmem:[%s3 + $0x20] sm:$0xff]
  %v70 = vld [vmem:[%s3 + $0x28] sm:$0xff]
  %v71 = vld [vmem:[%s3 + $0x30] sm:$0xff]
  %v72 = vld [vmem:[%s3 + $0x38] sm:$0xff]
  %v73 = vld [vmem:[%s3 + $0x40] sm:$0xff]
  %v74 = vld [vmem:[%s3 + $0x48] sm:$0xff]
  %v75 = vld [vmem:[%s3 + $0x50] sm:$0xff]
  %v76 = vld [vmem:[%s3 + $0x58] sm:$0xff]
  %v77 = vld [vmem:[%s3 + $0x60] sm:$0xff]
  %v78 = vld [vmem:[%s3 + $0x68] sm:$0xff]
  %v79 = vld [vmem:[%s3 + $0x70] sm:$0xff]
  %v80 = vld [vmem:[%s3 + $0x78] sm:$0xff]
  %v81 = vld [vmem:[%s2] sm:$0x1]
  %v82 = vld [vmem:[%s4] sm:$0x3]
  %v83 = vld [vmem:[%s0] sm:$0xf]
  %v84 = vld [vmem:[%s0 + $0x4] sm:$0xf]
  %v85 = vld [vmem:[%s0 + $0x8] sm:$0xf]
  %v86 = vld [vmem:[%s0 + $0xc] sm:$0xf]
  %v87 = vld [vmem:[%s0 + $0x10] sm:$0xf]
  %v88 = vld [vmem:[%s0 + $0x14] sm:$0xf]
  %v89 = vld [vmem:[%s0 + $0x18] sm:$0xf]
  %v90 = vld [vmem:[%s0 + $0x1c] sm:$0xf]
  %v91 = vld [vmem:[%s0 + $0x20] sm:$0xf]
  %v92 = vld [vmem:[%s0 + $0x24] sm:$0xf]
  %v93 = vld [vmem:[%s0 + $0x28] sm:$0xf]
  %v94 = vld [vmem:[%s0 + $0x2c] sm:$0xf]
  %v95 = vld [vmem:[%s0 + $0x30] sm:$0xf]
  %v96 = vld [vmem:[%s0 + $0x34] sm:$0xf]
  %v97 = vld [vmem:[%s0 + $0x38] sm:$0xf]
  %v98 = vld [vmem:[%s0 + $0x3c] sm:$0xf]
  %s99 = sadd.s32 0, 16
  %s100 = smul.addr %s99, 4
  %s101 = scalar_lea.vmem %s0, %s100
  %v102 = vld [vmem:[%s101] sm:$0xf]
  %v103 = vld [vmem:[%s101 + $0x4] sm:$0xf]
  %v104 = vld [vmem:[%s101 + $0x8] sm:$0xf]
  %v105 = vld [vmem:[%s101 + $0xc] sm:$0xf]
  %v106 = vld [vmem:[%s101 + $0x10] sm:$0xf]
  %v107 = vld [vmem:[%s101 + $0x14] sm:$0xf]
  %v108 = vld [vmem:[%s101 + $0x18] sm:$0xf]
  %v109 = vld [vmem:[%s101 + $0x1c] sm:$0xf]
  %v110 = vld [vmem:[%s101 + $0x20] sm:$0xf]
  %v111 = vld [vmem:[%s101 + $0x24] sm:$0xf]
  %v112 = vld [vmem:[%s101 + $0x28] sm:$0xf]
  %v113 = vld [vmem:[%s101 + $0x2c] sm:$0xf]
  %v114 = vld [vmem:[%s101 + $0x30] sm:$0xf]
  %v115 = vld [vmem:[%s101 + $0x34] sm:$0xf]
  %v116 = vld [vmem:[%s101 + $0x38] sm:$0xf]
  %v117 = vld [vmem:[%s101 + $0x3c] sm:$0xf]
  %v134 = vunpack.c.l.b16 %v102
  %v135 = vunpack.c.l.b16 %v103
  %v136 = vunpack.c.l.b16 %v104
  %v137 = vunpack.c.l.b16 %v105
  %v138 = vunpack.c.l.b16 %v106
  %v139 = vunpack.c.l.b16 %v107
  %v140 = vunpack.c.l.b16 %v108
  %v141 = vunpack.c.l.b16 %v109
  %v142 = vunpack.c.l.b16 %v110
  %v143 = vunpack.c.l.b16 %v111
  %v144 = vunpack.c.l.b16 %v112
  %v145 = vunpack.c.l.b16 %v113
  %v146 = vunpack.c.l.b16 %v114
  %v147 = vunpack.c.l.b16 %v115
  %v148 = vunpack.c.l.b16 %v116
  %v149 = vunpack.c.l.b16 %v117
  %v150 = vpack.c.b16 %v135, %v134
  %v151 = vpack.c.b16 %v137, %v136
  %v152 = vpack.c.b16 %v139, %v138
  %v153 = vpack.c.b16 %v141, %v140
  %v154 = vpack.c.b16 %v143, %v142
  %v155 = vpack.c.b16 %v145, %v144
  %v156 = vpack.c.b16 %v147, %v146
  %v157 = vpack.c.b16 %v149, %v148
  %v166 = vunpack.c.l.b16 %v30
  %v167 = vunpack.c.l.b16 %v31
  %v168 = vunpack.c.l.b16 %v32
  %v169 = vunpack.c.l.b16 %v33
  %v170 = vunpack.c.l.b16 %v34
  %v171 = vunpack.c.l.b16 %v35
  %v172 = vunpack.c.l.b16 %v36
  %v173 = vunpack.c.l.b16 %v37
  %v174 = vpack.c.b16 %v167, %v166
  %v175 = vpack.c.b16 %v169, %v168
  %v176 = vpack.c.b16 %v171, %v170
  %v177 = vpack.c.b16 %v173, %v172
  %vm182 = vcmask 523264
  %v184 = vsel %vm182, %v150, 0
  %v187 = vsel %vm182, %v151, 0
  %v190 = vsel %vm182, %v152, 0
  %v193 = vsel %vm182, %v153, 0
  %v196 = vsel %vm182, %v154, 0
  %v199 = vsel %vm182, %v155, 0
  %v202 = vsel %vm182, %v156, 0
  %v205 = vsel %vm182, %v157, 0
  %207 = vmatprep.subr.bf16.mxu0 0
  %208 = vmatpush1.bf16.msra.mxu0 %v174
  %209 = vmatprep.subr.bf16.mxu0 0
  %210 = vmatpush1.bf16.msra.mxu0 %v175
  %211 = vmatprep.subr.bf16.mxu0 0
  %212 = vmatpush1.bf16.msra.mxu0 %v176
  %213 = vmatprep.subr.bf16.mxu0 0
  %214 = vmatpush1.bf16.msra.mxu0 %v177
  %215 = vmatprep.subr.bf16.mxu0 0
  %216 = vmatpush1.bf16.msra.mxu0 0
  %217 = vmatprep.subr.bf16.mxu0 0
  %218 = vmatpush1.bf16.msra.mxu0 0
  %219 = vmatprep.subr.bf16.mxu0 0
  %220 = vmatpush1.bf16.msra.mxu0 0
  %221 = vmatprep.subr.bf16.mxu0 0
  %222 = vmatpush1.bf16.msra.mxu0 0
  %223 = vmatprep.subr.bf16.mxu0 0
  %224 = vmatpush1.bf16.msra.mxu0 0
  %225 = vmatprep.subr.bf16.mxu0 0
  %226 = vmatpush1.bf16.msra.mxu0 0
  %227 = vmatprep.subr.bf16.mxu0 0
  %228 = vmatpush1.bf16.msra.mxu0 0
  %229 = vmatprep.subr.bf16.mxu0 0
  %230 = vmatpush1.bf16.msra.mxu0 0
  %231 = vmatprep.subr.bf16.mxu0 0
  %232 = vmatpush1.bf16.msra.mxu0 0
  %233 = vmatprep.subr.bf16.mxu0 0
  %234 = vmatpush1.bf16.msra.mxu0 0
  %235 = vmatprep.subr.bf16.mxu0 0
  %236 = vmatpush1.bf16.msra.mxu0 0
  %237 = vmatprep.subr.bf16.mxu0 0
  %238 = vmatpush1.bf16.msra.mxu0 0
  %239 = vmatprep.mubr.bf16.mxu0 0
  %240 = vmatmul.mubr.bf16.gmra.mrb[0].mxu0 %v184
  %v241 = vpop.f32.mrb[0].mxu0
  %v242 = vadd.f32 0.0, %v241
  %v243 = vpop.f32.mrb[0].mxu0
  %v244 = vpop.f32.mrb[0].mxu0
  %v245 = vadd.f32 0.0, %v244
  %v246 = vpop.f32.mrb[0].mxu0
  %247 = vmatprep.mubr.bf16.mxu0 0
  %248 = vmatmul.mubr.bf16.gmra.mrb[0].mxu0 %v187
  %v249 = vpop.f32.mrb[0].mxu0
  %v250 = vadd.f32 0.0, %v249
  %v251 = vpop.f32.mrb[0].mxu0
  %v252 = vpop.f32.mrb[0].mxu0
  %v253 = vadd.f32 0.0, %v252
  %v254 = vpop.f32.mrb[0].mxu0
  %255 = vmatprep.mubr.bf16.mxu0 0
  %256 = vmatmul.mubr.bf16.gmra.mrb[0].mxu0 %v190
  %v257 = vpop.f32.mrb[0].mxu0
  %v258 = vadd.f32 0.0, %v257
  %v259 = vpop.f32.mrb[0].mxu0
  %v260 = vpop.f32.mrb[0].mxu0
  %v261 = vadd.f32 0.0, %v260
  %v262 = vpop.f32.mrb[0].mxu0
  %263 = vmatprep.mubr.bf16.mxu0 0
  %264 = vmatmul.mubr.bf16.gmra.mrb[0].mxu0 %v193
  %v265 = vpop.f32.mrb[0].mxu0
  %v266 = vadd.f32 0.0, %v265
  %v267 = vpop.f32.mrb[0].mxu0
  %v268 = vpop.f32.mrb[0].mxu0
  %v269 = vadd.f32 0.0, %v268
  %v270 = vpop.f32.mrb[0].mxu0
  %271 = vmatprep.mubr.bf16.mxu0 0
  %272 = vmatmul.mubr.bf16.gmra.mrb[0].mxu0 %v196
  %v273 = vpop.f32.mrb[0].mxu0
  %v274 = vadd.f32 0.0, %v273
  %v275 = vpop.f32.mrb[0].mxu0
  %v276 = vpop.f32.mrb[0].mxu0
  %v277 = vadd.f32 0.0, %v276
  %v278 = vpop.f32.mrb[0].mxu0
  %279 = vmatprep.mubr.bf16.mxu0 0
  %280 = vmatmul.mubr.bf16.gmra.mrb[0].mxu0 %v199
  %v281 = vpop.f32.mrb[0].mxu0
  %v282 = vadd.f32 0.0, %v281
  %v283 = vpop.f32.mrb[0].mxu0
  %v284 = vpop.f32.mrb[0].mxu0
  %v285 = vadd.f32 0.0, %v284
  %v286 = vpop.f32.mrb[0].mxu0
  %287 = vmatprep.mubr.bf16.mxu0 0
  %288 = vmatmul.mubr.bf16.gmra.mrb[0].mxu0 %v202
  %v289 = vpop.f32.mrb[0].mxu0
  %v290 = vadd.f32 0.0, %v289
  %v291 = vpop.f32.mrb[0].mxu0
  %v292 = vpop.f32.mrb[0].mxu0
  %v293 = vadd.f32 0.0, %v292
  %v294 = vpop.f32.mrb[0].mxu0
  %295 = vmatprep.mubr.bf16.mxu0 0
  %296 = vmatmul.mubr.bf16.gmra.mrb[0].mxu0 %v205
  %v297 = vpop.f32.mrb[0].mxu0
  %v298 = vadd.f32 0.0, %v297
  %v299 = vpop.f32.mrb[0].mxu0
  %v300 = vpop.f32.mrb[0].mxu0
  %v301 = vadd.f32 0.0, %v300
  %v302 = vpop.f32.mrb[0].mxu0
  %303 = vdwg.mxu0
  %v320 = vunpack.c.l.b16 %v83
  %v321 = vunpack.c.l.b16 %v84
  %v322 = vunpack.c.l.b16 %v85
  %v323 = vunpack.c.l.b16 %v86
  %v324 = vunpack.c.l.b16 %v87
  %v325 = vunpack.c.l.b16 %v88
  %v326 = vunpack.c.l.b16 %v89
  %v327 = vunpack.c.l.b16 %v90
  %v328 = vunpack.c.l.b16 %v91
  %v329 = vunpack.c.l.b16 %v92
  %v330 = vunpack.c.l.b16 %v93
  %v331 = vunpack.c.l.b16 %v94
  %v332 = vunpack.c.l.b16 %v95
  %v333 = vunpack.c.l.b16 %v96
  %v334 = vunpack.c.l.b16 %v97
  %v335 = vunpack.c.l.b16 %v98
  %v336 = vpack.c.b16 %v321, %v320
  %v337 = vpack.c.b16 %v323, %v322
  %v338 = vpack.c.b16 %v325, %v324
  %v339 = vpack.c.b16 %v327, %v326
  %v340 = vpack.c.b16 %v329, %v328
  %v341 = vpack.c.b16 %v331, %v330
  %v342 = vpack.c.b16 %v333, %v332
  %v343 = vpack.c.b16 %v335, %v334
  %v352 = vunpack.c.l.b16 %v21
  %v353 = vunpack.c.l.b16 %v22
  %v354 = vunpack.c.l.b16 %v23
  %v355 = vunpack.c.l.b16 %v24
  %v356 = vunpack.c.l.b16 %v25
  %v357 = vunpack.c.l.b16 %v26
  %v358 = vunpack.c.l.b16 %v27
  %v359 = vunpack.c.l.b16 %v28
  %v360 = vpack.c.b16 %v353, %v352
  %v361 = vpack.c.b16 %v355, %v354
  %v362 = vpack.c.b16 %v357, %v356
  %v363 = vpack.c.b16 %v359, %v358
  %v369 = vsel %vm182, %v336, 0
  %v372 = vsel %vm182, %v337, 0
  %v375 = vsel %vm182, %v338, 0
  %v378 = vsel %vm182, %v339, 0
  %v381 = vsel %vm182, %v340, 0
  %v384 = vsel %vm182, %v341, 0
  %v387 = vsel %vm182, %v342, 0
  %v390 = vsel %vm182, %v343, 0
  %392 = vmatprep.subr.bf16.mxu0 0
  %393 = vmatpush1.bf16.msra.mxu0 %v360
  %394 = vmatprep.subr.bf16.mxu0 0
  %395 = vmatpush1.bf16.msra.mxu0 %v361
  %396 = vmatprep.subr.bf16.mxu0 0
  %397 = vmatpush1.bf16.msra.mxu0 %v362
  %398 = vmatprep.subr.bf16.mxu0 0
  %399 = vmatpush1.bf16.msra.mxu0 %v363
  %400 = vmatprep.subr.bf16.mxu0 0
  %401 = vmatpush1.bf16.msra.mxu0 0
  %402 = vmatprep.subr.bf16.mxu0 0
  %403 = vmatpush1.bf16.msra.mxu0 0
  %404 = vmatprep.subr.bf16.mxu0 0
  %405 = vmatpush1.bf16.msra.mxu0 0
  %406 = vmatprep.subr.bf16.mxu0 0
  %407 = vmatpush1.bf16.msra.mxu0 0
  %408 = vmatprep.subr.bf16.mxu0 0
  %409 = vmatpush1.bf16.msra.mxu0 0
  %410 = vmatprep.subr.bf16.mxu0 0
  %411 = vmatpush1.bf16.msra.mxu0 0
  %412 = vmatprep.subr.bf16.mxu0 0
  %413 = vmatpush1.bf16.msra.mxu0 0
  %414 = vmatprep.subr.bf16.mxu0 0
  %415 = vmatpush1.bf16.msra.mxu0 0
  %416 = vmatprep.subr.bf16.mxu0 0
  %417 = vmatpush1.bf16.msra.mxu0 0
  %418 = vmatprep.subr.bf16.mxu0 0
  %419 = vmatpush1.bf16.msra.mxu0 0
  %420 = vmatprep.subr.bf16.mxu0 0
  %421 = vmatpush1.bf16.msra.mxu0 0
  %422 = vmatprep.subr.bf16.mxu0 0
  %423 = vmatpush1.bf16.msra.mxu0 0
  %424 = vmatprep.mubr.bf16.mxu0 0
  %425 = vmatmul.mubr.bf16.gmra.mrb[0].mxu0 %v369
  %v426 = vpop.f32.mrb[0].mxu0
  %v427 = vadd.f32 %v242, %v426
  %v428 = vpop.f32.mrb[0].mxu0
  %v429 = vpop.f32.mrb[0].mxu0
  %v430 = vadd.f32 %v245, %v429
  %v431 = vpop.f32.mrb[0].mxu0
  %432 = vmatprep.mubr.bf16.mxu0 0
  %433 = vmatmul.mubr.bf16.gmra.mrb[0].mxu0 %v372
  %v434 = vpop.f32.mrb[0].mxu0
  %v435 = vadd.f32 %v250, %v434
  %v436 = vpop.f32.mrb[0].mxu0
  %v437 = vpop.f32.mrb[0].mxu0
  %v438 = vadd.f32 %v253, %v437
  %v439 = vpop.f32.mrb[0].mxu0
  %440 = vmatprep.mubr.bf16.mxu0 0
  %441 = vmatmul.mubr.bf16.gmra.mrb[0].mxu0 %v375
  %v442 = vpop.f32.mrb[0].mxu0
  %v443 = vadd.f32 %v258, %v442
  %v444 = vpop.f32.mrb[0].mxu0
  %v445 = vpop.f32.mrb[0].mxu0
  %v446 = vadd.f32 %v261, %v445
  %v447 = vpop.f32.mrb[0].mxu0
  %448 = vmatprep.mubr.bf16.mxu0 0
  %449 = vmatmul.mubr.bf16.gmra.mrb[0].mxu0 %v378
  %v450 = vpop.f32.mrb[0].mxu0
  %v451 = vadd.f32 %v266, %v450
  %v452 = vpop.f32.mrb[0].mxu0
  %v453 = vpop.f32.mrb[0].mxu0
  %v454 = vadd.f32 %v269, %v453
  %v455 = vpop.f32.mrb[0].mxu0
  %456 = vmatprep.mubr.bf16.mxu0 0
  %457 = vmatmul.mubr.bf16.gmra.mrb[0].mxu0 %v381
  %v458 = vpop.f32.mrb[0].mxu0
  %v459 = vadd.f32 %v274, %v458
  %v460 = vpop.f32.mrb[0].mxu0
  %v461 = vpop.f32.mrb[0].mxu0
  %v462 = vadd.f32 %v277, %v461
  %v463 = vpop.f32.mrb[0].mxu0
  %464 = vmatprep.mubr.bf16.mxu0 0
  %465 = vmatmul.mubr.bf16.gmra.mrb[0].mxu0 %v384
  %v466 = vpop.f32.mrb[0].mxu0
  %v467 = vadd.f32 %v282, %v466
  %v468 = vpop.f32.mrb[0].mxu0
  %v469 = vpop.f32.mrb[0].mxu0
  %v470 = vadd.f32 %v285, %v469
  %v471 = vpop.f32.mrb[0].mxu0
  %472 = vmatprep.mubr.bf16.mxu0 0
  %473 = vmatmul.mubr.bf16.gmra.mrb[0].mxu0 %v387
  %v474 = vpop.f32.mrb[0].mxu0
  %v475 = vadd.f32 %v290, %v474
  %v476 = vpop.f32.mrb[0].mxu0
  %v477 = vpop.f32.mrb[0].mxu0
  %v478 = vadd.f32 %v293, %v477
  %v479 = vpop.f32.mrb[0].mxu0
  %480 = vmatprep.mubr.bf16.mxu0 0
  %481 = vmatmul.mubr.bf16.gmra.mrb[0].mxu0 %v390
  %v482 = vpop.f32.mrb[0].mxu0
  %v483 = vadd.f32 %v298, %v482
  %v484 = vpop.f32.mrb[0].mxu0
  %v485 = vpop.f32.mrb[0].mxu0
  %v486 = vadd.f32 %v301, %v485
  %v487 = vpop.f32.mrb[0].mxu0
  %488 = vdwg.mxu0
  %s489 = sadd.s32 0, 32
  %s490 = smul.addr %s489, 4
  %s491 = scalar_lea.vmem %s0, %s490
  %v492 = vld [vmem:[%s491] sm:$0xf]
  %v493 = vld [vmem:[%s491 + $0x4] sm:$0xf]
  %v494 = vld [vmem:[%s491 + $0x8] sm:$0xf]
  %v495 = vld [vmem:[%s491 + $0xc] sm:$0xf]
  %v496 = vld [vmem:[%s491 + $0x10] sm:$0xf]
  %v497 = vld [vmem:[%s491 + $0x14] sm:$0xf]
  %v498 = vld [vmem:[%s491 + $0x18] sm:$0xf]
  %v499 = vld [vmem:[%s491 + $0x1c] sm:$0xf]
  %v500 = vld [vmem:[%s491 + $0x20] sm:$0xf]
  %v501 = vld [vmem:[%s491 + $0x24] sm:$0xf]
  %v502 = vld [vmem:[%s491 + $0x28] sm:$0xf]
  %v503 = vld [vmem:[%s491 + $0x2c] sm:$0xf]
  %v504 = vld [vmem:[%s491 + $0x30] sm:$0xf]
  %v505 = vld [vmem:[%s491 + $0x34] sm:$0xf]
  %v506 = vld [vmem:[%s491 + $0x38] sm:$0xf]
  %v507 = vld [vmem:[%s491 + $0x3c] sm:$0xf]
  %v524 = vunpack.c.l.b16 %v492
  %v525 = vunpack.c.l.b16 %v493
  %v526 = vunpack.c.l.b16 %v494
  %v527 = vunpack.c.l.b16 %v495
  %v528 = vunpack.c.l.b16 %v496
  %v529 = vunpack.c.l.b16 %v497
  %v530 = vunpack.c.l.b16 %v498
  %v531 = vunpack.c.l.b16 %v499
  %v532 = vunpack.c.l.b16 %v500
  %v533 = vunpack.c.l.b16 %v501
  %v534 = vunpack.c.l.b16 %v502
  %v535 = vunpack.c.l.b16 %v503
  %v536 = vunpack.c.l.b16 %v504
  %v537 = vunpack.c.l.b16 %v505
  %v538 = vunpack.c.l.b16 %v506
  %v539 = vunpack.c.l.b16 %v507
  %v540 = vpack.c.b16 %v525, %v524
  %v541 = vpack.c.b16 %v527, %v526
  %v542 = vpack.c.b16 %v529, %v528
  %v543 = vpack.c.b16 %v531, %v530
  %v544 = vpack.c.b16 %v533, %v532
  %v545 = vpack.c.b16 %v535, %v534
  %v546 = vpack.c.b16 %v537, %v536
  %v547 = vpack.c.b16 %v539, %v538
  %v556 = vunpack.c.l.b16 %v39
  %v557 = vunpack.c.l.b16 %v40
  %v558 = vunpack.c.l.b16 %v41
  %v559 = vunpack.c.l.b16 %v42
  %v560 = vunpack.c.l.b16 %v43
  %v561 = vunpack.c.l.b16 %v44
  %v562 = vunpack.c.l.b16 %v45
  %v563 = vunpack.c.l.b16 %v46
  %v564 = vpack.c.b16 %v557, %v556
  %v565 = vpack.c.b16 %v559, %v558
  %v566 = vpack.c.b16 %v561, %v560
  %v567 = vpack.c.b16 %v563, %v562
  %v573 = vsel %vm182, %v540, 0
  %v576 = vsel %vm182, %v541, 0
  %v579 = vsel %vm182, %v542, 0
  %v582 = vsel %vm182, %v543, 0
  %v585 = vsel %vm182, %v544, 0
  %v588 = vsel %vm182, %v545, 0
  %v591 = vsel %vm182, %v546, 0
  %v594 = vsel %vm182, %v547, 0
  %596 = vmatprep.subr.bf16.mxu0 0
  %597 = vmatpush1.bf16.msra.mxu0 %v564
  %598 = vmatprep.subr.bf16.mxu0 0
  %599 = vmatpush1.bf16.msra.mxu0 %v565
  %600 = vmatprep.subr.bf16.mxu0 0
  %601 = vmatpush1.bf16.msra.mxu0 %v566
  %602 = vmatprep.subr.bf16.mxu0 0
  %603 = vmatpush1.bf16.msra.mxu0 %v567
  %604 = vmatprep.subr.bf16.mxu0 0
  %605 = vmatpush1.bf16.msra.mxu0 0
  %606 = vmatprep.subr.bf16.mxu0 0
  %607 = vmatpush1.bf16.msra.mxu0 0
  %608 = vmatprep.subr.bf16.mxu0 0
  %609 = vmatpush1.bf16.msra.mxu0 0
  %610 = vmatprep.subr.bf16.mxu0 0
  %611 = vmatpush1.bf16.msra.mxu0 0
  %612 = vmatprep.subr.bf16.mxu0 0
  %613 = vmatpush1.bf16.msra.mxu0 0
  %614 = vmatprep.subr.bf16.mxu0 0
  %615 = vmatpush1.bf16.msra.mxu0 0
  %616 = vmatprep.subr.bf16.mxu0 0
  %617 = vmatpush1.bf16.msra.mxu0 0
  %618 = vmatprep.subr.bf16.mxu0 0
  %619 = vmatpush1.bf16.msra.mxu0 0
  %620 = vmatprep.subr.bf16.mxu0 0
  %621 = vmatpush1.bf16.msra.mxu0 0
  %622 = vmatprep.subr.bf16.mxu0 0
  %623 = vmatpush1.bf16.msra.mxu0 0
  %624 = vmatprep.subr.bf16.mxu0 0
  %625 = vmatpush1.bf16.msra.mxu0 0
  %626 = vmatprep.subr.bf16.mxu0 0
  %627 = vmatpush1.bf16.msra.mxu0 0
  %628 = vmatprep.mubr.bf16.mxu0 0
  %629 = vmatmul.mubr.bf16.gmra.mrb[0].mxu0 %v573
  %v630 = vpop.f32.mrb[0].mxu0
  %v631 = vadd.f32 0.0, %v630
  %v632 = vpop.f32.mrb[0].mxu0
  %v633 = vpop.f32.mrb[0].mxu0
  %v634 = vadd.f32 0.0, %v633
  %v635 = vpop.f32.mrb[0].mxu0
  %636 = vmatprep.mubr.bf16.mxu0 0
  %637 = vmatmul.mubr.bf16.gmra.mrb[0].mxu0 %v576
  %v638 = vpop.f32.mrb[0].mxu0
  %v639 = vadd.f32 0.0, %v638
  %v640 = vpop.f32.mrb[0].mxu0
  %v641 = vpop.f32.mrb[0].mxu0
  %v642 = vadd.f32 0.0, %v641
  %v643 = vpop.f32.mrb[0].mxu0
  %644 = vmatprep.mubr.bf16.mxu0 0
  %645 = vmatmul.mubr.bf16.gmra.mrb[0].mxu0 %v579
  %v646 = vpop.f32.mrb[0].mxu0
  %v647 = vadd.f32 0.0, %v646
  %v648 = vpop.f32.mrb[0].mxu0
  %v649 = vpop.f32.mrb[0].mxu0
  %v650 = vadd.f32 0.0, %v649
  %v651 = vpop.f32.mrb[0].mxu0
  %652 = vmatprep.mubr.bf16.mxu0 0
  %653 = vmatmul.mubr.bf16.gmra.mrb[0].mxu0 %v582
  %v654 = vpop.f32.mrb[0].mxu0
  %v655 = vadd.f32 0.0, %v654
  %v656 = vpop.f32.mrb[0].mxu0
  %v657 = vpop.f32.mrb[0].mxu0
  %v658 = vadd.f32 0.0, %v657
  %v659 = vpop.f32.mrb[0].mxu0
  %660 = vmatprep.mubr.bf16.mxu0 0
  %661 = vmatmul.mubr.bf16.gmra.mrb[0].mxu0 %v585
  %v662 = vpop.f32.mrb[0].mxu0
  %v663 = vadd.f32 0.0, %v662
  %v664 = vpop.f32.mrb[0].mxu0
  %v665 = vpop.f32.mrb[0].mxu0
  %v666 = vadd.f32 0.0, %v665
  %v667 = vpop.f32.mrb[0].mxu0
  %668 = vmatprep.mubr.bf16.mxu0 0
  %669 = vmatmul.mubr.bf16.gmra.mrb[0].mxu0 %v588
  %v670 = vpop.f32.mrb[0].mxu0
  %v671 = vadd.f32 0.0, %v670
  %v672 = vpop.f32.mrb[0].mxu0
  %v673 = vpop.f32.mrb[0].mxu0
  %v674 = vadd.f32 0.0, %v673
  %v675 = vpop.f32.mrb[0].mxu0
  %676 = vmatprep.mubr.bf16.mxu0 0
  %677 = vmatmul.mubr.bf16.gmra.mrb[0].mxu0 %v591
  %v678 = vpop.f32.mrb[0].mxu0
  %v679 = vadd.f32 0.0, %v678
  %v680 = vpop.f32.mrb[0].mxu0
  %v681 = vpop.f32.mrb[0].mxu0
  %v682 = vadd.f32 0.0, %v681
  %v683 = vpop.f32.mrb[0].mxu0
  %684 = vmatprep.mubr.bf16.mxu0 0
  %685 = vmatmul.mubr.bf16.gmra.mrb[0].mxu0 %v594
  %v686 = vpop.f32.mrb[0].mxu0
  %v687 = vadd.f32 0.0, %v686
  %v688 = vpop.f32.mrb[0].mxu0
  %v689 = vpop.f32.mrb[0].mxu0
  %v690 = vadd.f32 0.0, %v689
  %v691 = vpop.f32.mrb[0].mxu0
  %692 = vdwg.mxu0
  %v693 = vadd.f32 %v427, %v631
  %v694 = vadd.f32 %v430, %v634
  %v695 = vadd.f32 %v435, %v639
  %v696 = vadd.f32 %v438, %v642
  %v697 = vadd.f32 %v443, %v647
  %v698 = vadd.f32 %v446, %v650
  %v699 = vadd.f32 %v451, %v655
  %v700 = vadd.f32 %v454, %v658
  %v701 = vadd.f32 %v459, %v663
  %v702 = vadd.f32 %v462, %v666
  %v703 = vadd.f32 %v467, %v671
  %v704 = vadd.f32 %v470, %v674
  %v705 = vadd.f32 %v475, %v679
  %v706 = vadd.f32 %v478, %v682
  %v707 = vadd.f32 %v483, %v687
  %v708 = vadd.f32 %v486, %v690
  %s709 = sadd.s32 0, 48
  %s710 = smul.addr %s709, 4
  %s711 = scalar_lea.vmem %s0, %s710
  %v712 = vld [vmem:[%s711] sm:$0xf]
  %v713 = vld [vmem:[%s711 + $0x4] sm:$0xf]
  %v714 = vld [vmem:[%s711 + $0x8] sm:$0xf]
  %v715 = vld [vmem:[%s711 + $0xc] sm:$0xf]
  %v716 = vld [vmem:[%s711 + $0x10] sm:$0xf]
  %v717 = vld [vmem:[%s711 + $0x14] sm:$0xf]
  %v718 = vld [vmem:[%s711 + $0x18] sm:$0xf]
  %v719 = vld [vmem:[%s711 + $0x1c] sm:$0xf]
  %v720 = vld [vmem:[%s711 + $0x20] sm:$0xf]
  %v721 = vld [vmem:[%s711 + $0x24] sm:$0xf]
  %v722 = vld [vmem:[%s711 + $0x28] sm:$0xf]
  %v723 = vld [vmem:[%s711 + $0x2c] sm:$0xf]
  %v724 = vld [vmem:[%s711 + $0x30] sm:$0xf]
  %v725 = vld [vmem:[%s711 + $0x34] sm:$0xf]
  %v726 = vld [vmem:[%s711 + $0x38] sm:$0xf]
  %v727 = vld [vmem:[%s711 + $0x3c] sm:$0xf]
  %v744 = vunpack.c.l.b16 %v712
  %v745 = vunpack.c.l.b16 %v713
  %v746 = vunpack.c.l.b16 %v714
  %v747 = vunpack.c.l.b16 %v715
  %v748 = vunpack.c.l.b16 %v716
  %v749 = vunpack.c.l.b16 %v717
  %v750 = vunpack.c.l.b16 %v718
  %v751 = vunpack.c.l.b16 %v719
  %v752 = vunpack.c.l.b16 %v720
  %v753 = vunpack.c.l.b16 %v721
  %v754 = vunpack.c.l.b16 %v722
  %v755 = vunpack.c.l.b16 %v723
  %v756 = vunpack.c.l.b16 %v724
  %v757 = vunpack.c.l.b16 %v725
  %v758 = vunpack.c.l.b16 %v726
  %v759 = vunpack.c.l.b16 %v727
  %v760 = vpack.c.b16 %v745, %v744
  %v761 = vpack.c.b16 %v747, %v746
  %v762 = vpack.c.b16 %v749, %v748
  %v763 = vpack.c.b16 %v751, %v750
  %v764 = vpack.c.b16 %v753, %v752
  %v765 = vpack.c.b16 %v755, %v754
  %v766 = vpack.c.b16 %v757, %v756
  %v767 = vpack.c.b16 %v759, %v758
  %v776 = vunpack.c.l.b16 %v48
  %v777 = vunpack.c.l.b16 %v49
  %v778 = vunpack.c.l.b16 %v50
  %v779 = vunpack.c.l.b16 %v51
  %v780 = vunpack.c.l.b16 %v52
  %v781 = vunpack.c.l.b16 %v53
  %v782 = vunpack.c.l.b16 %v54
  %v783 = vunpack.c.l.b16 %v55
  %v784 = vpack.c.b16 %v777, %v776
  %v785 = vpack.c.b16 %v779, %v778
  %v786 = vpack.c.b16 %v781, %v780
  %v787 = vpack.c.b16 %v783, %v782
  %v793 = vsel %vm182, %v760, 0
  %v796 = vsel %vm182, %v761, 0
  %v799 = vsel %vm182, %v762, 0
  %v802 = vsel %vm182, %v763, 0
  %v805 = vsel %vm182, %v764, 0
  %v808 = vsel %vm182, %v765, 0
  %v811 = vsel %vm182, %v766, 0
  %v814 = vsel %vm182, %v767, 0
  %816 = vmatprep.subr.bf16.mxu0 0
  %817 = vmatpush1.bf16.msra.mxu0 %v784
  %818 = vmatprep.subr.bf16.mxu0 0
  %819 = vmatpush1.bf16.msra.mxu0 %v785
  %820 = vmatprep.subr.bf16.mxu0 0
  %821 = vmatpush1.bf16.msra.mxu0 %v786
  %822 = vmatprep.subr.bf16.mxu0 0
  %823 = vmatpush1.bf16.msra.mxu0 %v787
  %824 = vmatprep.subr.bf16.mxu0 0
  %825 = vmatpush1.bf16.msra.mxu0 0
  %826 = vmatprep.subr.bf16.mxu0 0
  %827 = vmatpush1.bf16.msra.mxu0 0
  %828 = vmatprep.subr.bf16.mxu0 0
  %829 = vmatpush1.bf16.msra.mxu0 0
  %830 = vmatprep.subr.bf16.mxu0 0
  %831 = vmatpush1.bf16.msra.mxu0 0
  %832 = vmatprep.subr.bf16.mxu0 0
  %833 = vmatpush1.bf16.msra.mxu0 0
  %834 = vmatprep.subr.bf16.mxu0 0
  %835 = vmatpush1.bf16.msra.mxu0 0
  %836 = vmatprep.subr.bf16.mxu0 0
  %837 = vmatpush1.bf16.msra.mxu0 0
  %838 = vmatprep.subr.bf16.mxu0 0
  %839 = vmatpush1.bf16.msra.mxu0 0
  %840 = vmatprep.subr.bf16.mxu0 0
  %841 = vmatpush1.bf16.msra.mxu0 0
  %842 = vmatprep.subr.bf16.mxu0 0
  %843 = vmatpush1.bf16.msra.mxu0 0
  %844 = vmatprep.subr.bf16.mxu0 0
  %845 = vmatpush1.bf16.msra.mxu0 0
  %846 = vmatprep.subr.bf16.mxu0 0
  %847 = vmatpush1.bf16.msra.mxu0 0
  %848 = vmatprep.mubr.bf16.mxu0 0
  %849 = vmatmul.mubr.bf16.gmra.mrb[0].mxu0 %v793
  %v850 = vpop.f32.mrb[0].mxu0
  %v851 = vadd.f32 0.0, %v850
  %v852 = vpop.f32.mrb[0].mxu0
  %v853 = vpop.f32.mrb[0].mxu0
  %v854 = vadd.f32 0.0, %v853
  %v855 = vpop.f32.mrb[0].mxu0
  %856 = vmatprep.mubr.bf16.mxu0 0
  %857 = vmatmul.mubr.bf16.gmra.mrb[0].mxu0 %v796
  %v858 = vpop.f32.mrb[0].mxu0
  %v859 = vadd.f32 0.0, %v858
  %v860 = vpop.f32.mrb[0].mxu0
  %v861 = vpop.f32.mrb[0].mxu0
  %v862 = vadd.f32 0.0, %v861
  %v863 = vpop.f32.mrb[0].mxu0
  %864 = vmatprep.mubr.bf16.mxu0 0
  %865 = vmatmul.mubr.bf16.gmra.mrb[0].mxu0 %v799
  %v866 = vpop.f32.mrb[0].mxu0
  %v867 = vadd.f32 0.0, %v866
  %v868 = vpop.f32.mrb[0].mxu0
  %v869 = vpop.f32.mrb[0].mxu0
  %v870 = vadd.f32 0.0, %v869
  %v871 = vpop.f32.mrb[0].mxu0
  %872 = vmatprep.mubr.bf16.mxu0 0
  %873 = vmatmul.mubr.bf16.gmra.mrb[0].mxu0 %v802
  %v874 = vpop.f32.mrb[0].mxu0
  %v875 = vadd.f32 0.0, %v874
  %v876 = vpop.f32.mrb[0].mxu0
  %v877 = vpop.f32.mrb[0].mxu0
  %v878 = vadd.f32 0.0, %v877
  %v879 = vpop.f32.mrb[0].mxu0
  %880 = vmatprep.mubr.bf16.mxu0 0
  %881 = vmatmul.mubr.bf16.gmra.mrb[0].mxu0 %v805
  %v882 = vpop.f32.mrb[0].mxu0
  %v883 = vadd.f32 0.0, %v882
  %v884 = vpop.f32.mrb[0].mxu0
  %v885 = vpop.f32.mrb[0].mxu0
  %v886 = vadd.f32 0.0, %v885
  %v887 = vpop.f32.mrb[0].mxu0
  %888 = vmatprep.mubr.bf16.mxu0 0
  %889 = vmatmul.mubr.bf16.gmra.mrb[0].mxu0 %v808
  %v890 = vpop.f32.mrb[0].mxu0
  %v891 = vadd.f32 0.0, %v890
  %v892 = vpop.f32.mrb[0].mxu0
  %v893 = vpop.f32.mrb[0].mxu0
  %v894 = vadd.f32 0.0, %v893
  %v895 = vpop.f32.mrb[0].mxu0
  %896 = vmatprep.mubr.bf16.mxu0 0
  %897 = vmatmul.mubr.bf16.gmra.mrb[0].mxu0 %v811
  %v898 = vpop.f32.mrb[0].mxu0
  %v899 = vadd.f32 0.0, %v898
  %v900 = vpop.f32.mrb[0].mxu0
  %v901 = vpop.f32.mrb[0].mxu0
  %v902 = vadd.f32 0.0, %v901
  %v903 = vpop.f32.mrb[0].mxu0
  %904 = vmatprep.mubr.bf16.mxu0 0
  %905 = vmatmul.mubr.bf16.gmra.mrb[0].mxu0 %v814
  %v906 = vpop.f32.mrb[0].mxu0
  %v907 = vadd.f32 0.0, %v906
  %v908 = vpop.f32.mrb[0].mxu0
  %v909 = vpop.f32.mrb[0].mxu0
  %v910 = vadd.f32 0.0, %v909
  %v911 = vpop.f32.mrb[0].mxu0
  %912 = vdwg.mxu0
  %v913 = vadd.f32 %v693, %v851
  %v914 = vadd.f32 %v694, %v854
  %v915 = vadd.f32 %v695, %v859
  %v916 = vadd.f32 %v696, %v862
  %v917 = vadd.f32 %v697, %v867
  %v918 = vadd.f32 %v698, %v870
  %v919 = vadd.f32 %v699, %v875
  %v920 = vadd.f32 %v700, %v878
  %v921 = vadd.f32 %v701, %v883
  %v922 = vadd.f32 %v702, %v886
  %v923 = vadd.f32 %v703, %v891
  %v924 = vadd.f32 %v704, %v894
  %v925 = vadd.f32 %v705, %v899
  %v926 = vadd.f32 %v706, %v902
  %v927 = vadd.f32 %v707, %v907
  %v928 = vadd.f32 %v708, %v910
  %s929 = sadd.s32 0, 64
  %s930 = smul.addr %s929, 4
  %s931 = scalar_lea.vmem %s0, %s930
  %v932 = vld [vmem:[%s931] sm:$0xf]
  %v933 = vld [vmem:[%s931 + $0x4] sm:$0xf]
  %v934 = vld [vmem:[%s931 + $0x8] sm:$0xf]
  %v935 = vld [vmem:[%s931 + $0xc] sm:$0xf]
  %v936 = vld [vmem:[%s931 + $0x10] sm:$0xf]
  %v937 = vld [vmem:[%s931 + $0x14] sm:$0xf]
  %v938 = vld [vmem:[%s931 + $0x18] sm:$0xf]
  %v939 = vld [vmem:[%s931 + $0x1c] sm:$0xf]
  %v940 = vld [vmem:[%s931 + $0x20] sm:$0xf]
  %v941 = vld [vmem:[%s931 + $0x24] sm:$0xf]
  %v942 = vld [vmem:[%s931 + $0x28] sm:$0xf]
  %v943 = vld [vmem:[%s931 + $0x2c] sm:$0xf]
  %v944 = vld [vmem:[%s931 + $0x30] sm:$0xf]
  %v945 = vld [vmem:[%s931 + $0x34] sm:$0xf]
  %v946 = vld [vmem:[%s931 + $0x38] sm:$0xf]
  %v947 = vld [vmem:[%s931 + $0x3c] sm:$0xf]
  %v964 = vunpack.c.l.b16 %v932
  %v965 = vunpack.c.l.b16 %v933
  %v966 = vunpack.c.l.b16 %v934
  %v967 = vunpack.c.l.b16 %v935
  %v968 = vunpack.c.l.b16 %v936
  %v969 = vunpack.c.l.b16 %v937
  %v970 = vunpack.c.l.b16 %v938
  %v971 = vunpack.c.l.b16 %v939
  %v972 = vunpack.c.l.b16 %v940
  %v973 = vunpack.c.l.b16 %v941
  %v974 = vunpack.c.l.b16 %v942
  %v975 = vunpack.c.l.b16 %v943
  %v976 = vunpack.c.l.b16 %v944
  %v977 = vunpack.c.l.b16 %v945
  %v978 = vunpack.c.l.b16 %v946
  %v979 = vunpack.c.l.b16 %v947
  %v980 = vpack.c.b16 %v965, %v964
  %v981 = vpack.c.b16 %v967, %v966
  %v982 = vpack.c.b16 %v969, %v968
  %v983 = vpack.c.b16 %v971, %v970
  %v984 = vpack.c.b16 %v973, %v972
  %v985 = vpack.c.b16 %v975, %v974
  %v986 = vpack.c.b16 %v977, %v976
  %v987 = vpack.c.b16 %v979, %v978
  %v996 = vunpack.c.l.b16 %v57
  %v997 = vunpack.c.l.b16 %v58
  %v998 = vunpack.c.l.b16 %v59
  %v999 = vunpack.c.l.b16 %v60
  %v1000 = vunpack.c.l.b16 %v61
  %v1001 = vunpack.c.l.b16 %v62
  %v1002 = vunpack.c.l.b16 %v63
  %v1003 = vunpack.c.l.b16 %v64
  %v1004 = vpack.c.b16 %v997, %v996
  %v1005 = vpack.c.b16 %v999, %v998
  %v1006 = vpack.c.b16 %v1001, %v1000
  %v1007 = vpack.c.b16 %v1003, %v1002
  %v1013 = vsel %vm182, %v980, 0
  %v1016 = vsel %vm182, %v981, 0
  %v1019 = vsel %vm182, %v982, 0
  %v1022 = vsel %vm182, %v983, 0
  %v1025 = vsel %vm182, %v984, 0
  %v1028 = vsel %vm182, %v985, 0
  %v1031 = vsel %vm182, %v986, 0
  %v1034 = vsel %vm182, %v987, 0
  %1036 = vmatprep.subr.bf16.mxu0 0
  %1037 = vmatpush1.bf16.msra.mxu0 %v1004
  %1038 = vmatprep.subr.bf16.mxu0 0
  %1039 = vmatpush1.bf16.msra.mxu0 %v1005
  %1040 = vmatprep.subr.bf16.mxu0 0
  %1041 = vmatpush1.bf16.msra.mxu0 %v1006
  %1042 = vmatprep.subr.bf16.mxu0 0
  %1043 = vmatpush1.bf16.msra.mxu0 %v1007
  %1044 = vmatprep.subr.bf16.mxu0 0
  %1045 = vmatpush1.bf16.msra.mxu0 0
  %1046 = vmatprep.subr.bf16.mxu0 0
  %1047 = vmatpush1.bf16.msra.mxu0 0
  %1048 = vmatprep.subr.bf16.mxu0 0
  %1049 = vmatpush1.bf16.msra.mxu0 0
  %1050 = vmatprep.subr.bf16.mxu0 0
  %1051 = vmatpush1.bf16.msra.mxu0 0
  %1052 = vmatprep.subr.bf16.mxu0 0
  %1053 = vmatpush1.bf16.msra.mxu0 0
  %1054 = vmatprep.subr.bf16.mxu0 0
  %1055 = vmatpush1.bf16.msra.mxu0 0
  %1056 = vmatprep.subr.bf16.mxu0 0
  %1057 = vmatpush1.bf16.msra.mxu0 0
  %1058 = vmatprep.subr.bf16.mxu0 0
  %1059 = vmatpush1.bf16.msra.mxu0 0
  %1060 = vmatprep.subr.bf16.mxu0 0
  %1061 = vmatpush1.bf16.msra.mxu0 0
  %1062 = vmatprep.subr.bf16.mxu0 0
  %1063 = vmatpush1.bf16.msra.mxu0 0
  %1064 = vmatprep.subr.bf16.mxu0 0
  %1065 = vmatpush1.bf16.msra.mxu0 0
  %1066 = vmatprep.subr.bf16.mxu0 0
  %1067 = vmatpush1.bf16.msra.mxu0 0
  %1068 = vmatprep.mubr.bf16.mxu0 0
  %1069 = vmatmul.mubr.bf16.gmra.mrb[0].mxu0 %v1013
  %v1070 = vpop.f32.mrb[0].mxu0
  %v1071 = vadd.f32 0.0, %v1070
  %v1072 = vpop.f32.mrb[0].mxu0
  %v1073 = vpop.f32.mrb[0].mxu0
  %v1074 = vadd.f32 0.0, %v1073
  %v1075 = vpop.f32.mrb[0].mxu0
  %1076 = vmatprep.mubr.bf16.mxu0 0
  %1077 = vmatmul.mubr.bf16.gmra.mrb[0].mxu0 %v1016
  %v1078 = vpop.f32.mrb[0].mxu0
  %v1079 = vadd.f32 0.0, %v1078
  %v1080 = vpop.f32.mrb[0].mxu0
  %v1081 = vpop.f32.mrb[0].mxu0
  %v1082 = vadd.f32 0.0, %v1081
  %v1083 = vpop.f32.mrb[0].mxu0
  %1084 = vmatprep.mubr.bf16.mxu0 0
  %1085 = vmatmul.mubr.bf16.gmra.mrb[0].mxu0 %v1019
  %v1086 = vpop.f32.mrb[0].mxu0
  %v1087 = vadd.f32 0.0, %v1086
  %v1088 = vpop.f32.mrb[0].mxu0
  %v1089 = vpop.f32.mrb[0].mxu0
  %v1090 = vadd.f32 0.0, %v1089
  %v1091 = vpop.f32.mrb[0].mxu0
  %1092 = vmatprep.mubr.bf16.mxu0 0
  %1093 = vmatmul.mubr.bf16.gmra.mrb[0].mxu0 %v1022
  %v1094 = vpop.f32.mrb[0].mxu0
  %v1095 = vadd.f32 0.0, %v1094
  %v1096 = vpop.f32.mrb[0].mxu0
  %v1097 = vpop.f32.mrb[0].mxu0
  %v1098 = vadd.f32 0.0, %v1097
  %v1099 = vpop.f32.mrb[0].mxu0
  %1100 = vmatprep.mubr.bf16.mxu0 0
  %1101 = vmatmul.mubr.bf16.gmra.mrb[0].mxu0 %v1025
  %v1102 = vpop.f32.mrb[0].mxu0
  %v1103 = vadd.f32 0.0, %v1102
  %v1104 = vpop.f32.mrb[0].mxu0
  %v1105 = vpop.f32.mrb[0].mxu0
  %v1106 = vadd.f32 0.0, %v1105
  %v1107 = vpop.f32.mrb[0].mxu0
  %1108 = vmatprep.mubr.bf16.mxu0 0
  %1109 = vmatmul.mubr.bf16.gmra.mrb[0].mxu0 %v1028
  %v1110 = vpop.f32.mrb[0].mxu0
  %v1111 = vadd.f32 0.0, %v1110
  %v1112 = vpop.f32.mrb[0].mxu0
  %v1113 = vpop.f32.mrb[0].mxu0
  %v1114 = vadd.f32 0.0, %v1113
  %v1115 = vpop.f32.mrb[0].mxu0
  %1116 = vmatprep.mubr.bf16.mxu0 0
  %1117 = vmatmul.mubr.bf16.gmra.mrb[0].mxu0 %v1031
  %v1118 = vpop.f32.mrb[0].mxu0
  %v1119 = vadd.f32 0.0, %v1118
  %v1120 = vpop.f32.mrb[0].mxu0
  %v1121 = vpop.f32.mrb[0].mxu0
  %v1122 = vadd.f32 0.0, %v1121
  %v1123 = vpop.f32.mrb[0].mxu0
  %1124 = vmatprep.mubr.bf16.mxu0 0
  %1125 = vmatmul.mubr.bf16.gmra.mrb[0].mxu0 %v1034
  %v1126 = vpop.f32.mrb[0].mxu0
  %v1127 = vadd.f32 0.0, %v1126
  %v1128 = vpop.f32.mrb[0].mxu0
  %v1129 = vpop.f32.mrb[0].mxu0
  %v1130 = vadd.f32 0.0, %v1129
  %v1131 = vpop.f32.mrb[0].mxu0
  %1132 = vdwg.mxu0
  %v1133 = vadd.f32 %v913, %v1071
  %v1134 = vadd.f32 %v914, %v1074
  %v1135 = vadd.f32 %v915, %v1079
  %v1136 = vadd.f32 %v916, %v1082
  %v1137 = vadd.f32 %v917, %v1087
  %v1138 = vadd.f32 %v918, %v1090
  %v1139 = vadd.f32 %v919, %v1095
  %v1140 = vadd.f32 %v920, %v1098
  %v1141 = vadd.f32 %v921, %v1103
  %v1142 = vadd.f32 %v922, %v1106
  %v1143 = vadd.f32 %v923, %v1111
  %v1144 = vadd.f32 %v924, %v1114
  %v1145 = vadd.f32 %v925, %v1119
  %v1146 = vadd.f32 %v926, %v1122
  %v1147 = vadd.f32 %v927, %v1127
  %v1148 = vadd.f32 %v928, %v1130
  %1149 = vmatprep.subr.bf16.mxu0 0
  %1150 = vmatpush1.bf16.msra.mxu0 %v174
  %1151 = vmatprep.subr.bf16.mxu0 0
  %1152 = vmatpush1.bf16.msra.mxu0 %v175
  %1153 = vmatprep.subr.bf16.mxu0 0
  %1154 = vmatpush1.bf16.msra.mxu0 %v176
  %1155 = vmatprep.subr.bf16.mxu0 0
  %1156 = vmatpush1.bf16.msra.mxu0 %v177
  %1157 = vmatprep.subr.bf16.mxu0 0
  %1158 = vmatpush1.bf16.msra.mxu0 0
  %1159 = vmatprep.subr.bf16.mxu0 0
  %1160 = vmatpush1.bf16.msra.mxu0 0
  %1161 = vmatprep.subr.bf16.mxu0 0
  %1162 = vmatpush1.bf16.msra.mxu0 0
  %1163 = vmatprep.subr.bf16.mxu0 0
  %1164 = vmatpush1.bf16.msra.mxu0 0
  %1165 = vmatprep.subr.bf16.mxu0 0
  %1166 = vmatpush1.bf16.msra.mxu0 0
  %1167 = vmatprep.subr.bf16.mxu0 0
  %1168 = vmatpush1.bf16.msra.mxu0 0
  %1169 = vmatprep.subr.bf16.mxu0 0
  %1170 = vmatpush1.bf16.msra.mxu0 0
  %1171 = vmatprep.subr.bf16.mxu0 0
  %1172 = vmatpush1.bf16.msra.mxu0 0
  %1173 = vmatprep.subr.bf16.mxu0 0
  %1174 = vmatpush1.bf16.msra.mxu0 0
  %1175 = vmatprep.subr.bf16.mxu0 0
  %1176 = vmatpush1.bf16.msra.mxu0 0
  %1177 = vmatprep.subr.bf16.mxu0 0
  %1178 = vmatpush1.bf16.msra.mxu0 0
  %1179 = vmatprep.subr.bf16.mxu0 0
  %1180 = vmatpush1.bf16.msra.mxu0 0
  %1181 = vmatprep.mubr.bf16.mxu0 0
  %1182 = vmatmul.mubr.bf16.gmra.mrb[0].mxu0 %v573
  %v1183 = vpop.f32.mrb[0].mxu0
  %v1184 = vadd.f32 0.0, %v1183
  %v1185 = vpop.f32.mrb[0].mxu0
  %v1186 = vpop.f32.mrb[0].mxu0
  %v1187 = vadd.f32 0.0, %v1186
  %v1188 = vpop.f32.mrb[0].mxu0
  %1189 = vmatprep.mubr.bf16.mxu0 0
  %1190 = vmatmul.mubr.bf16.gmra.mrb[0].mxu0 %v576
  %v1191 = vpop.f32.mrb[0].mxu0
  %v1192 = vadd.f32 0.0, %v1191
  %v1193 = vpop.f32.mrb[0].mxu0
  %v1194 = vpop.f32.mrb[0].mxu0
  %v1195 = vadd.f32 0.0, %v1194
  %v1196 = vpop.f32.mrb[0].mxu0
  %1197 = vmatprep.mubr.bf16.mxu0 0
  %1198 = vmatmul.mubr.bf16.gmra.mrb[0].mxu0 %v579
  %v1199 = vpop.f32.mrb[0].mxu0
  %v1200 = vadd.f32 0.0, %v1199
  %v1201 = vpop.f32.mrb[0].mxu0
  %v1202 = vpop.f32.mrb[0].mxu0
  %v1203 = vadd.f32 0.0, %v1202
  %v1204 = vpop.f32.mrb[0].mxu0
  %1205 = vmatprep.mubr.bf16.mxu0 0
  %1206 = vmatmul.mubr.bf16.gmra.mrb[0].mxu0 %v582
  %v1207 = vpop.f32.mrb[0].mxu0
  %v1208 = vadd.f32 0.0, %v1207
  %v1209 = vpop.f32.mrb[0].mxu0
  %v1210 = vpop.f32.mrb[0].mxu0
  %v1211 = vadd.f32 0.0, %v1210
  %v1212 = vpop.f32.mrb[0].mxu0
  %1213 = vmatprep.mubr.bf16.mxu0 0
  %1214 = vmatmul.mubr.bf16.gmra.mrb[0].mxu0 %v585
  %v1215 = vpop.f32.mrb[0].mxu0
  %v1216 = vadd.f32 0.0, %v1215
  %v1217 = vpop.f32.mrb[0].mxu0
  %v1218 = vpop.f32.mrb[0].mxu0
  %v1219 = vadd.f32 0.0, %v1218
  %v1220 = vpop.f32.mrb[0].mxu0
  %1221 = vmatprep.mubr.bf16.mxu0 0
  %1222 = vmatmul.mubr.bf16.gmra.mrb[0].mxu0 %v588
  %v1223 = vpop.f32.mrb[0].mxu0
  %v1224 = vadd.f32 0.0, %v1223
  %v1225 = vpop.f32.mrb[0].mxu0
  %v1226 = vpop.f32.mrb[0].mxu0
  %v1227 = vadd.f32 0.0, %v1226
  %v1228 = vpop.f32.mrb[0].mxu0
  %1229 = vmatprep.mubr.bf16.mxu0 0
  %1230 = vmatmul.mubr.bf16.gmra.mrb[0].mxu0 %v591
  %v1231 = vpop.f32.mrb[0].mxu0
  %v1232 = vadd.f32 0.0, %v1231
  %v1233 = vpop.f32.mrb[0].mxu0
  %v1234 = vpop.f32.mrb[0].mxu0
  %v1235 = vadd.f32 0.0, %v1234
  %v1236 = vpop.f32.mrb[0].mxu0
  %1237 = vmatprep.mubr.bf16.mxu0 0
  %1238 = vmatmul.mubr.bf16.gmra.mrb[0].mxu0 %v594
  %v1239 = vpop.f32.mrb[0].mxu0
  %v1240 = vadd.f32 0.0, %v1239
  %v1241 = vpop.f32.mrb[0].mxu0
  %v1242 = vpop.f32.mrb[0].mxu0
  %v1243 = vadd.f32 0.0, %v1242
  %v1244 = vpop.f32.mrb[0].mxu0
  %1245 = vdwg.mxu0
  %1246 = vmatprep.subr.bf16.mxu0 0
  %1247 = vmatpush1.bf16.msra.mxu0 %v360
  %1248 = vmatprep.subr.bf16.mxu0 0
  %1249 = vmatpush1.bf16.msra.mxu0 %v361
  %1250 = vmatprep.subr.bf16.mxu0 0
  %1251 = vmatpush1.bf16.msra.mxu0 %v362
  %1252 = vmatprep.subr.bf16.mxu0 0
  %1253 = vmatpush1.bf16.msra.mxu0 %v363
  %1254 = vmatprep.subr.bf16.mxu0 0
  %1255 = vmatpush1.bf16.msra.mxu0 0
  %1256 = vmatprep.subr.bf16.mxu0 0
  %1257 = vmatpush1.bf16.msra.mxu0 0
  %1258 = vmatprep.subr.bf16.mxu0 0
  %1259 = vmatpush1.bf16.msra.mxu0 0
  %1260 = vmatprep.subr.bf16.mxu0 0
  %1261 = vmatpush1.bf16.msra.mxu0 0
  %1262 = vmatprep.subr.bf16.mxu0 0
  %1263 = vmatpush1.bf16.msra.mxu0 0
  %1264 = vmatprep.subr.bf16.mxu0 0
  %1265 = vmatpush1.bf16.msra.mxu0 0
  %1266 = vmatprep.subr.bf16.mxu0 0
  %1267 = vmatpush1.bf16.msra.mxu0 0
  %1268 = vmatprep.subr.bf16.mxu0 0
  %1269 = vmatpush1.bf16.msra.mxu0 0
  %1270 = vmatprep.subr.bf16.mxu0 0
  %1271 = vmatpush1.bf16.msra.mxu0 0
  %1272 = vmatprep.subr.bf16.mxu0 0
  %1273 = vmatpush1.bf16.msra.mxu0 0
  %1274 = vmatprep.subr.bf16.mxu0 0
  %1275 = vmatpush1.bf16.msra.mxu0 0
  %1276 = vmatprep.subr.bf16.mxu0 0
  %1277 = vmatpush1.bf16.msra.mxu0 0
  %1278 = vmatprep.mubr.bf16.mxu0 0
  %1279 = vmatmul.mubr.bf16.gmra.mrb[0].mxu0 %v184
  %v1280 = vpop.f32.mrb[0].mxu0
  %v1281 = vadd.f32 %v1184, %v1280
  %v1282 = vpop.f32.mrb[0].mxu0
  %v1283 = vpop.f32.mrb[0].mxu0
  %v1284 = vadd.f32 %v1187, %v1283
  %v1285 = vpop.f32.mrb[0].mxu0
  %1286 = vmatprep.mubr.bf16.mxu0 0
  %1287 = vmatmul.mubr.bf16.gmra.mrb[0].mxu0 %v187
  %v1288 = vpop.f32.mrb[0].mxu0
  %v1289 = vadd.f32 %v1192, %v1288
  %v1290 = vpop.f32.mrb[0].mxu0
  %v1291 = vpop.f32.mrb[0].mxu0
  %v1292 = vadd.f32 %v1195, %v1291
  %v1293 = vpop.f32.mrb[0].mxu0
  %1294 = vmatprep.mubr.bf16.mxu0 0
  %1295 = vmatmul.mubr.bf16.gmra.mrb[0].mxu0 %v190
  %v1296 = vpop.f32.mrb[0].mxu0
  %v1297 = vadd.f32 %v1200, %v1296
  %v1298 = vpop.f32.mrb[0].mxu0
  %v1299 = vpop.f32.mrb[0].mxu0
  %v1300 = vadd.f32 %v1203, %v1299
  %v1301 = vpop.f32.mrb[0].mxu0
  %1302 = vmatprep.mubr.bf16.mxu0 0
  %1303 = vmatmul.mubr.bf16.gmra.mrb[0].mxu0 %v193
  %v1304 = vpop.f32.mrb[0].mxu0
  %v1305 = vadd.f32 %v1208, %v1304
  %v1306 = vpop.f32.mrb[0].mxu0
  %v1307 = vpop.f32.mrb[0].mxu0
  %v1308 = vadd.f32 %v1211, %v1307
  %v1309 = vpop.f32.mrb[0].mxu0
  %1310 = vmatprep.mubr.bf16.mxu0 0
  %1311 = vmatmul.mubr.bf16.gmra.mrb[0].mxu0 %v196
  %v1312 = vpop.f32.mrb[0].mxu0
  %v1313 = vadd.f32 %v1216, %v1312
  %v1314 = vpop.f32.mrb[0].mxu0
  %v1315 = vpop.f32.mrb[0].mxu0
  %v1316 = vadd.f32 %v1219, %v1315
  %v1317 = vpop.f32.mrb[0].mxu0
  %1318 = vmatprep.mubr.bf16.mxu0 0
  %1319 = vmatmul.mubr.bf16.gmra.mrb[0].mxu0 %v199
  %v1320 = vpop.f32.mrb[0].mxu0
  %v1321 = vadd.f32 %v1224, %v1320
  %v1322 = vpop.f32.mrb[0].mxu0
  %v1323 = vpop.f32.mrb[0].mxu0
  %v1324 = vadd.f32 %v1227, %v1323
  %v1325 = vpop.f32.mrb[0].mxu0
  %1326 = vmatprep.mubr.bf16.mxu0 0
  %1327 = vmatmul.mubr.bf16.gmra.mrb[0].mxu0 %v202
  %v1328 = vpop.f32.mrb[0].mxu0
  %v1329 = vadd.f32 %v1232, %v1328
  %v1330 = vpop.f32.mrb[0].mxu0
  %v1331 = vpop.f32.mrb[0].mxu0
  %v1332 = vadd.f32 %v1235, %v1331
  %v1333 = vpop.f32.mrb[0].mxu0
  %1334 = vmatprep.mubr.bf16.mxu0 0
  %1335 = vmatmul.mubr.bf16.gmra.mrb[0].mxu0 %v205
  %v1336 = vpop.f32.mrb[0].mxu0
  %v1337 = vadd.f32 %v1240, %v1336
  %v1338 = vpop.f32.mrb[0].mxu0
  %v1339 = vpop.f32.mrb[0].mxu0
  %v1340 = vadd.f32 %v1243, %v1339
  %v1341 = vpop.f32.mrb[0].mxu0
  %1342 = vdwg.mxu0
  %1343 = vmatprep.subr.bf16.mxu0 0
  %1344 = vmatpush1.bf16.msra.mxu0 %v564
  %1345 = vmatprep.subr.bf16.mxu0 0
  %1346 = vmatpush1.bf16.msra.mxu0 %v565
  %1347 = vmatprep.subr.bf16.mxu0 0
  %1348 = vmatpush1.bf16.msra.mxu0 %v566
  %1349 = vmatprep.subr.bf16.mxu0 0
  %1350 = vmatpush1.bf16.msra.mxu0 %v567
  %1351 = vmatprep.subr.bf16.mxu0 0
  %1352 = vmatpush1.bf16.msra.mxu0 0
  %1353 = vmatprep.subr.bf16.mxu0 0
  %1354 = vmatpush1.bf16.msra.mxu0 0
  %1355 = vmatprep.subr.bf16.mxu0 0
  %1356 = vmatpush1.bf16.msra.mxu0 0
  %1357 = vmatprep.subr.bf16.mxu0 0
  %1358 = vmatpush1.bf16.msra.mxu0 0
  %1359 = vmatprep.subr.bf16.mxu0 0
  %1360 = vmatpush1.bf16.msra.mxu0 0
  %1361 = vmatprep.subr.bf16.mxu0 0
  %1362 = vmatpush1.bf16.msra.mxu0 0
  %1363 = vmatprep.subr.bf16.mxu0 0
  %1364 = vmatpush1.bf16.msra.mxu0 0
  %1365 = vmatprep.subr.bf16.mxu0 0
  %1366 = vmatpush1.bf16.msra.mxu0 0
  %1367 = vmatprep.subr.bf16.mxu0 0
  %1368 = vmatpush1.bf16.msra.mxu0 0
  %1369 = vmatprep.subr.bf16.mxu0 0
  %1370 = vmatpush1.bf16.msra.mxu0 0
  %1371 = vmatprep.subr.bf16.mxu0 0
  %1372 = vmatpush1.bf16.msra.mxu0 0
  %1373 = vmatprep.subr.bf16.mxu0 0
  %1374 = vmatpush1.bf16.msra.mxu0 0
  %1375 = vmatprep.mubr.bf16.mxu0 0
  %1376 = vmatmul.mubr.bf16.gmra.mrb[0].mxu0 %v793
  %v1377 = vpop.f32.mrb[0].mxu0
  %v1378 = vadd.f32 0.0, %v1377
  %v1379 = vpop.f32.mrb[0].mxu0
  %v1380 = vpop.f32.mrb[0].mxu0
  %v1381 = vadd.f32 0.0, %v1380
  %v1382 = vpop.f32.mrb[0].mxu0
  %1383 = vmatprep.mubr.bf16.mxu0 0
  %1384 = vmatmul.mubr.bf16.gmra.mrb[0].mxu0 %v796
  %v1385 = vpop.f32.mrb[0].mxu0
  %v1386 = vadd.f32 0.0, %v1385
  %v1387 = vpop.f32.mrb[0].mxu0
  %v1388 = vpop.f32.mrb[0].mxu0
  %v1389 = vadd.f32 0.0, %v1388
  %v1390 = vpop.f32.mrb[0].mxu0
  %1391 = vmatprep.mubr.bf16.mxu0 0
  %1392 = vmatmul.mubr.bf16.gmra.mrb[0].mxu0 %v799
  %v1393 = vpop.f32.mrb[0].mxu0
  %v1394 = vadd.f32 0.0, %v1393
  %v1395 = vpop.f32.mrb[0].mxu0
  %v1396 = vpop.f32.mrb[0].mxu0
  %v1397 = vadd.f32 0.0, %v1396
  %v1398 = vpop.f32.mrb[0].mxu0
  %1399 = vmatprep.mubr.bf16.mxu0 0
  %1400 = vmatmul.mubr.bf16.gmra.mrb[0].mxu0 %v802
  %v1401 = vpop.f32.mrb[0].mxu0
  %v1402 = vadd.f32 0.0, %v1401
  %v1403 = vpop.f32.mrb[0].mxu0
  %v1404 = vpop.f32.mrb[0].mxu0
  %v1405 = vadd.f32 0.0, %v1404
  %v1406 = vpop.f32.mrb[0].mxu0
  %1407 = vmatprep.mubr.bf16.mxu0 0
  %1408 = vmatmul.mubr.bf16.gmra.mrb[0].mxu0 %v805
  %v1409 = vpop.f32.mrb[0].mxu0
  %v1410 = vadd.f32 0.0, %v1409
  %v1411 = vpop.f32.mrb[0].mxu0
  %v1412 = vpop.f32.mrb[0].mxu0
  %v1413 = vadd.f32 0.0, %v1412
  %v1414 = vpop.f32.mrb[0].mxu0
  %1415 = vmatprep.mubr.bf16.mxu0 0
  %1416 = vmatmul.mubr.bf16.gmra.mrb[0].mxu0 %v808
  %v1417 = vpop.f32.mrb[0].mxu0
  %v1418 = vadd.f32 0.0, %v1417
  %v1419 = vpop.f32.mrb[0].mxu0
  %v1420 = vpop.f32.mrb[0].mxu0
  %v1421 = vadd.f32 0.0, %v1420
  %v1422 = vpop.f32.mrb[0].mxu0
  %1423 = vmatprep.mubr.bf16.mxu0 0
  %1424 = vmatmul.mubr.bf16.gmra.mrb[0].mxu0 %v811
  %v1425 = vpop.f32.mrb[0].mxu0
  %v1426 = vadd.f32 0.0, %v1425
  %v1427 = vpop.f32.mrb[0].mxu0
  %v1428 = vpop.f32.mrb[0].mxu0
  %v1429 = vadd.f32 0.0, %v1428
  %v1430 = vpop.f32.mrb[0].mxu0
  %1431 = vmatprep.mubr.bf16.mxu0 0
  %1432 = vmatmul.mubr.bf16.gmra.mrb[0].mxu0 %v814
  %v1433 = vpop.f32.mrb[0].mxu0
  %v1434 = vadd.f32 0.0, %v1433
  %v1435 = vpop.f32.mrb[0].mxu0
  %v1436 = vpop.f32.mrb[0].mxu0
  %v1437 = vadd.f32 0.0, %v1436
  %v1438 = vpop.f32.mrb[0].mxu0
  %1439 = vdwg.mxu0
  %v1440 = vadd.f32 %v1281, %v1378
  %v1441 = vadd.f32 %v1284, %v1381
  %v1442 = vadd.f32 %v1289, %v1386
  %v1443 = vadd.f32 %v1292, %v1389
  %v1444 = vadd.f32 %v1297, %v1394
  %v1445 = vadd.f32 %v1300, %v1397
  %v1446 = vadd.f32 %v1305, %v1402
  %v1447 = vadd.f32 %v1308, %v1405
  %v1448 = vadd.f32 %v1313, %v1410
  %v1449 = vadd.f32 %v1316, %v1413
  %v1450 = vadd.f32 %v1321, %v1418
  %v1451 = vadd.f32 %v1324, %v1421
  %v1452 = vadd.f32 %v1329, %v1426
  %v1453 = vadd.f32 %v1332, %v1429
  %v1454 = vadd.f32 %v1337, %v1434
  %v1455 = vadd.f32 %v1340, %v1437
  %1456 = vmatprep.subr.bf16.mxu0 0
  %1457 = vmatpush1.bf16.msra.mxu0 %v784
  %1458 = vmatprep.subr.bf16.mxu0 0
  %1459 = vmatpush1.bf16.msra.mxu0 %v785
  %1460 = vmatprep.subr.bf16.mxu0 0
  %1461 = vmatpush1.bf16.msra.mxu0 %v786
  %1462 = vmatprep.subr.bf16.mxu0 0
  %1463 = vmatpush1.bf16.msra.mxu0 %v787
  %1464 = vmatprep.subr.bf16.mxu0 0
  %1465 = vmatpush1.bf16.msra.mxu0 0
  %1466 = vmatprep.subr.bf16.mxu0 0
  %1467 = vmatpush1.bf16.msra.mxu0 0
  %1468 = vmatprep.subr.bf16.mxu0 0
  %1469 = vmatpush1.bf16.msra.mxu0 0
  %1470 = vmatprep.subr.bf16.mxu0 0
  %1471 = vmatpush1.bf16.msra.mxu0 0
  %1472 = vmatprep.subr.bf16.mxu0 0
  %1473 = vmatpush1.bf16.msra.mxu0 0
  %1474 = vmatprep.subr.bf16.mxu0 0
  %1475 = vmatpush1.bf16.msra.mxu0 0
  %1476 = vmatprep.subr.bf16.mxu0 0
  %1477 = vmatpush1.bf16.msra.mxu0 0
  %1478 = vmatprep.subr.bf16.mxu0 0
  %1479 = vmatpush1.bf16.msra.mxu0 0
  %1480 = vmatprep.subr.bf16.mxu0 0
  %1481 = vmatpush1.bf16.msra.mxu0 0
  %1482 = vmatprep.subr.bf16.mxu0 0
  %1483 = vmatpush1.bf16.msra.mxu0 0
  %1484 = vmatprep.subr.bf16.mxu0 0
  %1485 = vmatpush1.bf16.msra.mxu0 0
  %1486 = vmatprep.subr.bf16.mxu0 0
  %1487 = vmatpush1.bf16.msra.mxu0 0
  %1488 = vmatprep.mubr.bf16.mxu0 0
  %1489 = vmatmul.mubr.bf16.gmra.mrb[0].mxu0 %v1013
  %v1490 = vpop.f32.mrb[0].mxu0
  %v1491 = vadd.f32 0.0, %v1490
  %v1492 = vpop.f32.mrb[0].mxu0
  %v1493 = vpop.f32.mrb[0].mxu0
  %v1494 = vadd.f32 0.0, %v1493
  %v1495 = vpop.f32.mrb[0].mxu0
  %1496 = vmatprep.mubr.bf16.mxu0 0
  %1497 = vmatmul.mubr.bf16.gmra.mrb[0].mxu0 %v1016
  %v1498 = vpop.f32.mrb[0].mxu0
  %v1499 = vadd.f32 0.0, %v1498
  %v1500 = vpop.f32.mrb[0].mxu0
  %v1501 = vpop.f32.mrb[0].mxu0
  %v1502 = vadd.f32 0.0, %v1501
  %v1503 = vpop.f32.mrb[0].mxu0
  %1504 = vmatprep.mubr.bf16.mxu0 0
  %1505 = vmatmul.mubr.bf16.gmra.mrb[0].mxu0 %v1019
  %v1506 = vpop.f32.mrb[0].mxu0
  %v1507 = vadd.f32 0.0, %v1506
  %v1508 = vpop.f32.mrb[0].mxu0
  %v1509 = vpop.f32.mrb[0].mxu0
  %v1510 = vadd.f32 0.0, %v1509
  %v1511 = vpop.f32.mrb[0].mxu0
  %1512 = vmatprep.mubr.bf16.mxu0 0
  %1513 = vmatmul.mubr.bf16.gmra.mrb[0].mxu0 %v1022
  %v1514 = vpop.f32.mrb[0].mxu0
  %v1515 = vadd.f32 0.0, %v1514
  %v1516 = vpop.f32.mrb[0].mxu0
  %v1517 = vpop.f32.mrb[0].mxu0
  %v1518 = vadd.f32 0.0, %v1517
  %v1519 = vpop.f32.mrb[0].mxu0
  %1520 = vmatprep.mubr.bf16.mxu0 0
  %1521 = vmatmul.mubr.bf16.gmra.mrb[0].mxu0 %v1025
  %v1522 = vpop.f32.mrb[0].mxu0
  %v1523 = vadd.f32 0.0, %v1522
  %v1524 = vpop.f32.mrb[0].mxu0
  %v1525 = vpop.f32.mrb[0].mxu0
  %v1526 = vadd.f32 0.0, %v1525
  %v1527 = vpop.f32.mrb[0].mxu0
  %1528 = vmatprep.mubr.bf16.mxu0 0
  %1529 = vmatmul.mubr.bf16.gmra.mrb[0].mxu0 %v1028
  %v1530 = vpop.f32.mrb[0].mxu0
  %v1531 = vadd.f32 0.0, %v1530
  %v1532 = vpop.f32.mrb[0].mxu0
  %v1533 = vpop.f32.mrb[0].mxu0
  %v1534 = vadd.f32 0.0, %v1533
  %v1535 = vpop.f32.mrb[0].mxu0
  %1536 = vmatprep.mubr.bf16.mxu0 0
  %1537 = vmatmul.mubr.bf16.gmra.mrb[0].mxu0 %v1031
  %v1538 = vpop.f32.mrb[0].mxu0
  %v1539 = vadd.f32 0.0, %v1538
  %v1540 = vpop.f32.mrb[0].mxu0
  %v1541 = vpop.f32.mrb[0].mxu0
  %v1542 = vadd.f32 0.0, %v1541
  %v1543 = vpop.f32.mrb[0].mxu0
  %1544 = vmatprep.mubr.bf16.mxu0 0
  %1545 = vmatmul.mubr.bf16.gmra.mrb[0].mxu0 %v1034
  %v1546 = vpop.f32.mrb[0].mxu0
  %v1547 = vadd.f32 0.0, %v1546
  %v1548 = vpop.f32.mrb[0].mxu0
  %v1549 = vpop.f32.mrb[0].mxu0
  %v1550 = vadd.f32 0.0, %v1549
  %v1551 = vpop.f32.mrb[0].mxu0
  %1552 = vdwg.mxu0
  %v1553 = vadd.f32 %v1440, %v1491
  %v1554 = vadd.f32 %v1441, %v1494
  %v1555 = vadd.f32 %v1442, %v1499
  %v1556 = vadd.f32 %v1443, %v1502
  %v1557 = vadd.f32 %v1444, %v1507
  %v1558 = vadd.f32 %v1445, %v1510
  %v1559 = vadd.f32 %v1446, %v1515
  %v1560 = vadd.f32 %v1447, %v1518
  %v1561 = vadd.f32 %v1448, %v1523
  %v1562 = vadd.f32 %v1449, %v1526
  %v1563 = vadd.f32 %v1450, %v1531
  %v1564 = vadd.f32 %v1451, %v1534
  %v1565 = vadd.f32 %v1452, %v1539
  %v1566 = vadd.f32 %v1453, %v1542
  %v1567 = vadd.f32 %v1454, %v1547
  %v1568 = vadd.f32 %v1455, %v1550
  %s1569 = sadd.s32 0, 80
  %s1570 = smul.addr %s1569, 4
  %s1571 = scalar_lea.vmem %s0, %s1570
  %v1572 = vld [vmem:[%s1571] sm:$0xf]
  %v1573 = vld [vmem:[%s1571 + $0x4] sm:$0xf]
  %v1574 = vld [vmem:[%s1571 + $0x8] sm:$0xf]
  %v1575 = vld [vmem:[%s1571 + $0xc] sm:$0xf]
  %v1576 = vld [vmem:[%s1571 + $0x10] sm:$0xf]
  %v1577 = vld [vmem:[%s1571 + $0x14] sm:$0xf]
  %v1578 = vld [vmem:[%s1571 + $0x18] sm:$0xf]
  %v1579 = vld [vmem:[%s1571 + $0x1c] sm:$0xf]
  %v1580 = vld [vmem:[%s1571 + $0x20] sm:$0xf]
  %v1581 = vld [vmem:[%s1571 + $0x24] sm:$0xf]
  %v1582 = vld [vmem:[%s1571 + $0x28] sm:$0xf]
  %v1583 = vld [vmem:[%s1571 + $0x2c] sm:$0xf]
  %v1584 = vld [vmem:[%s1571 + $0x30] sm:$0xf]
  %v1585 = vld [vmem:[%s1571 + $0x34] sm:$0xf]
  %v1586 = vld [vmem:[%s1571 + $0x38] sm:$0xf]
  %v1587 = vld [vmem:[%s1571 + $0x3c] sm:$0xf]
  %v1604 = vunpack.c.l.b16 %v1572
  %v1605 = vunpack.c.l.b16 %v1573
  %v1606 = vunpack.c.l.b16 %v1574
  %v1607 = vunpack.c.l.b16 %v1575
  %v1608 = vunpack.c.l.b16 %v1576
  %v1609 = vunpack.c.l.b16 %v1577
  %v1610 = vunpack.c.l.b16 %v1578
  %v1611 = vunpack.c.l.b16 %v1579
  %v1612 = vunpack.c.l.b16 %v1580
  %v1613 = vunpack.c.l.b16 %v1581
  %v1614 = vunpack.c.l.b16 %v1582
  %v1615 = vunpack.c.l.b16 %v1583
  %v1616 = vunpack.c.l.b16 %v1584
  %v1617 = vunpack.c.l.b16 %v1585
  %v1618 = vunpack.c.l.b16 %v1586
  %v1619 = vunpack.c.l.b16 %v1587
  %v1620 = vpack.c.b16 %v1605, %v1604
  %v1621 = vpack.c.b16 %v1607, %v1606
  %v1622 = vpack.c.b16 %v1609, %v1608
  %v1623 = vpack.c.b16 %v1611, %v1610
  %v1624 = vpack.c.b16 %v1613, %v1612
  %v1625 = vpack.c.b16 %v1615, %v1614
  %v1626 = vpack.c.b16 %v1617, %v1616
  %v1627 = vpack.c.b16 %v1619, %v1618
  %v1629 = vsel %vm182, %v1620, 0
  %v1632 = vsel %vm182, %v1621, 0
  %v1635 = vsel %vm182, %v1622, 0
  %v1638 = vsel %vm182, %v1623, 0
  %v1641 = vsel %vm182, %v1624, 0
  %v1644 = vsel %vm182, %v1625, 0
  %v1647 = vsel %vm182, %v1626, 0
  %v1650 = vsel %vm182, %v1627, 0
  %1652 = vmatprep.subr.bf16.mxu0 0
  %1653 = vmatpush1.bf16.msra.mxu0 %v1004
  %1654 = vmatprep.subr.bf16.mxu0 0
  %1655 = vmatpush1.bf16.msra.mxu0 %v1005
  %1656 = vmatprep.subr.bf16.mxu0 0
  %1657 = vmatpush1.bf16.msra.mxu0 %v1006
  %1658 = vmatprep.subr.bf16.mxu0 0
  %1659 = vmatpush1.bf16.msra.mxu0 %v1007
  %1660 = vmatprep.subr.bf16.mxu0 0
  %1661 = vmatpush1.bf16.msra.mxu0 0
  %1662 = vmatprep.subr.bf16.mxu0 0
  %1663 = vmatpush1.bf16.msra.mxu0 0
  %1664 = vmatprep.subr.bf16.mxu0 0
  %1665 = vmatpush1.bf16.msra.mxu0 0
  %1666 = vmatprep.subr.bf16.mxu0 0
  %1667 = vmatpush1.bf16.msra.mxu0 0
  %1668 = vmatprep.subr.bf16.mxu0 0
  %1669 = vmatpush1.bf16.msra.mxu0 0
  %1670 = vmatprep.subr.bf16.mxu0 0
  %1671 = vmatpush1.bf16.msra.mxu0 0
  %1672 = vmatprep.subr.bf16.mxu0 0
  %1673 = vmatpush1.bf16.msra.mxu0 0
  %1674 = vmatprep.subr.bf16.mxu0 0
  %1675 = vmatpush1.bf16.msra.mxu0 0
  %1676 = vmatprep.subr.bf16.mxu0 0
  %1677 = vmatpush1.bf16.msra.mxu0 0
  %1678 = vmatprep.subr.bf16.mxu0 0
  %1679 = vmatpush1.bf16.msra.mxu0 0
  %1680 = vmatprep.subr.bf16.mxu0 0
  %1681 = vmatpush1.bf16.msra.mxu0 0
  %1682 = vmatprep.subr.bf16.mxu0 0
  %1683 = vmatpush1.bf16.msra.mxu0 0
  %1684 = vmatprep.mubr.bf16.mxu0 0
  %1685 = vmatmul.mubr.bf16.gmra.mrb[0].mxu0 %v1629
  %v1686 = vpop.f32.mrb[0].mxu0
  %v1687 = vadd.f32 0.0, %v1686
  %v1688 = vpop.f32.mrb[0].mxu0
  %v1689 = vpop.f32.mrb[0].mxu0
  %v1690 = vadd.f32 0.0, %v1689
  %v1691 = vpop.f32.mrb[0].mxu0
  %1692 = vmatprep.mubr.bf16.mxu0 0
  %1693 = vmatmul.mubr.bf16.gmra.mrb[0].mxu0 %v1632
  %v1694 = vpop.f32.mrb[0].mxu0
  %v1695 = vadd.f32 0.0, %v1694
  %v1696 = vpop.f32.mrb[0].mxu0
  %v1697 = vpop.f32.mrb[0].mxu0
  %v1698 = vadd.f32 0.0, %v1697
  %v1699 = vpop.f32.mrb[0].mxu0
  %1700 = vmatprep.mubr.bf16.mxu0 0
  %1701 = vmatmul.mubr.bf16.gmra.mrb[0].mxu0 %v1635
  %v1702 = vpop.f32.mrb[0].mxu0
  %v1703 = vadd.f32 0.0, %v1702
  %v1704 = vpop.f32.mrb[0].mxu0
  %v1705 = vpop.f32.mrb[0].mxu0
  %v1706 = vadd.f32 0.0, %v1705
  %v1707 = vpop.f32.mrb[0].mxu0
  %1708 = vmatprep.mubr.bf16.mxu0 0
  %1709 = vmatmul.mubr.bf16.gmra.mrb[0].mxu0 %v1638
  %v1710 = vpop.f32.mrb[0].mxu0
  %v1711 = vadd.f32 0.0, %v1710
  %v1712 = vpop.f32.mrb[0].mxu0
  %v1713 = vpop.f32.mrb[0].mxu0
  %v1714 = vadd.f32 0.0, %v1713
  %v1715 = vpop.f32.mrb[0].mxu0
  %1716 = vmatprep.mubr.bf16.mxu0 0
  %1717 = vmatmul.mubr.bf16.gmra.mrb[0].mxu0 %v1641
  %v1718 = vpop.f32.mrb[0].mxu0
  %v1719 = vadd.f32 0.0, %v1718
  %v1720 = vpop.f32.mrb[0].mxu0
  %v1721 = vpop.f32.mrb[0].mxu0
  %v1722 = vadd.f32 0.0, %v1721
  %v1723 = vpop.f32.mrb[0].mxu0
  %1724 = vmatprep.mubr.bf16.mxu0 0
  %1725 = vmatmul.mubr.bf16.gmra.mrb[0].mxu0 %v1644
  %v1726 = vpop.f32.mrb[0].mxu0
  %v1727 = vadd.f32 0.0, %v1726
  %v1728 = vpop.f32.mrb[0].mxu0
  %v1729 = vpop.f32.mrb[0].mxu0
  %v1730 = vadd.f32 0.0, %v1729
  %v1731 = vpop.f32.mrb[0].mxu0
  %1732 = vmatprep.mubr.bf16.mxu0 0
  %1733 = vmatmul.mubr.bf16.gmra.mrb[0].mxu0 %v1647
  %v1734 = vpop.f32.mrb[0].mxu0
  %v1735 = vadd.f32 0.0, %v1734
  %v1736 = vpop.f32.mrb[0].mxu0
  %v1737 = vpop.f32.mrb[0].mxu0
  %v1738 = vadd.f32 0.0, %v1737
  %v1739 = vpop.f32.mrb[0].mxu0
  %1740 = vmatprep.mubr.bf16.mxu0 0
  %1741 = vmatmul.mubr.bf16.gmra.mrb[0].mxu0 %v1650
  %v1742 = vpop.f32.mrb[0].mxu0
  %v1743 = vadd.f32 0.0, %v1742
  %v1744 = vpop.f32.mrb[0].mxu0
  %v1745 = vpop.f32.mrb[0].mxu0
  %v1746 = vadd.f32 0.0, %v1745
  %v1747 = vpop.f32.mrb[0].mxu0
  %1748 = vdwg.mxu0
  %v1749 = vadd.f32 %v1553, %v1687
  %v1750 = vadd.f32 %v1554, %v1690
  %v1751 = vadd.f32 %v1555, %v1695
  %v1752 = vadd.f32 %v1556, %v1698
  %v1753 = vadd.f32 %v1557, %v1703
  %v1754 = vadd.f32 %v1558, %v1706
  %v1755 = vadd.f32 %v1559, %v1711
  %v1756 = vadd.f32 %v1560, %v1714
  %v1757 = vadd.f32 %v1561, %v1719
  %v1758 = vadd.f32 %v1562, %v1722
  %v1759 = vadd.f32 %v1563, %v1727
  %v1760 = vadd.f32 %v1564, %v1730
  %v1761 = vadd.f32 %v1565, %v1735
  %v1762 = vadd.f32 %v1566, %v1738
  %v1763 = vadd.f32 %v1567, %v1743
  %v1764 = vadd.f32 %v1568, %v1746
  %v1765 = vmax.f32 %v1133, %v1749
  %v1766 = vmax.f32 %v1134, %v1750
  %v1767 = vmax.f32 %v1135, %v1751
  %v1768 = vmax.f32 %v1136, %v1752
  %v1769 = vmax.f32 %v1137, %v1753
  %v1770 = vmax.f32 %v1138, %v1754
  %v1771 = vmax.f32 %v1139, %v1755
  %v1772 = vmax.f32 %v1140, %v1756
  %v1773 = vmax.f32 %v1141, %v1757
  %v1774 = vmax.f32 %v1142, %v1758
  %v1775 = vmax.f32 %v1143, %v1759
  %v1776 = vmax.f32 %v1144, %v1760
  %v1777 = vmax.f32 %v1145, %v1761
  %v1778 = vmax.f32 %v1146, %v1762
  %v1779 = vmax.f32 %v1147, %v1763
  %v1780 = vmax.f32 %v1148, %v1764
  %1781 = vmatprep.subr.bf16.mxu0 0
  %1782 = vmatpush1.bf16.msra.mxu0 %v174
  %1783 = vmatprep.subr.bf16.mxu0 0
  %1784 = vmatpush1.bf16.msra.mxu0 %v175
  %1785 = vmatprep.subr.bf16.mxu0 0
  %1786 = vmatpush1.bf16.msra.mxu0 %v176
  %1787 = vmatprep.subr.bf16.mxu0 0
  %1788 = vmatpush1.bf16.msra.mxu0 %v177
  %1789 = vmatprep.subr.bf16.mxu0 0
  %1790 = vmatpush1.bf16.msra.mxu0 0
  %1791 = vmatprep.subr.bf16.mxu0 0
  %1792 = vmatpush1.bf16.msra.mxu0 0
  %1793 = vmatprep.subr.bf16.mxu0 0
  %1794 = vmatpush1.bf16.msra.mxu0 0
  %1795 = vmatprep.subr.bf16.mxu0 0
  %1796 = vmatpush1.bf16.msra.mxu0 0
  %1797 = vmatprep.subr.bf16.mxu0 0
  %1798 = vmatpush1.bf16.msra.mxu0 0
  %1799 = vmatprep.subr.bf16.mxu0 0
  %1800 = vmatpush1.bf16.msra.mxu0 0
  %1801 = vmatprep.subr.bf16.mxu0 0
  %1802 = vmatpush1.bf16.msra.mxu0 0
  %1803 = vmatprep.subr.bf16.mxu0 0
  %1804 = vmatpush1.bf16.msra.mxu0 0
  %1805 = vmatprep.subr.bf16.mxu0 0
  %1806 = vmatpush1.bf16.msra.mxu0 0
  %1807 = vmatprep.subr.bf16.mxu0 0
  %1808 = vmatpush1.bf16.msra.mxu0 0
  %1809 = vmatprep.subr.bf16.mxu0 0
  %1810 = vmatpush1.bf16.msra.mxu0 0
  %1811 = vmatprep.subr.bf16.mxu0 0
  %1812 = vmatpush1.bf16.msra.mxu0 0
  %1813 = vmatprep.mubr.bf16.mxu0 0
  %1814 = vmatmul.mubr.bf16.gmra.mrb[0].mxu0 %v793
  %v1815 = vpop.f32.mrb[0].mxu0
  %v1816 = vadd.f32 0.0, %v1815
  %v1817 = vpop.f32.mrb[0].mxu0
  %v1818 = vpop.f32.mrb[0].mxu0
  %v1819 = vadd.f32 0.0, %v1818
  %v1820 = vpop.f32.mrb[0].mxu0
  %1821 = vmatprep.mubr.bf16.mxu0 0
  %1822 = vmatmul.mubr.bf16.gmra.mrb[0].mxu0 %v796
  %v1823 = vpop.f32.mrb[0].mxu0
  %v1824 = vadd.f32 0.0, %v1823
  %v1825 = vpop.f32.mrb[0].mxu0
  %v1826 = vpop.f32.mrb[0].mxu0
  %v1827 = vadd.f32 0.0, %v1826
  %v1828 = vpop.f32.mrb[0].mxu0
  %1829 = vmatprep.mubr.bf16.mxu0 0
  %1830 = vmatmul.mubr.bf16.gmra.mrb[0].mxu0 %v799
  %v1831 = vpop.f32.mrb[0].mxu0
  %v1832 = vadd.f32 0.0, %v1831
  %v1833 = vpop.f32.mrb[0].mxu0
  %v1834 = vpop.f32.mrb[0].mxu0
  %v1835 = vadd.f32 0.0, %v1834
  %v1836 = vpop.f32.mrb[0].mxu0
  %1837 = vmatprep.mubr.bf16.mxu0 0
  %1838 = vmatmul.mubr.bf16.gmra.mrb[0].mxu0 %v802
  %v1839 = vpop.f32.mrb[0].mxu0
  %v1840 = vadd.f32 0.0, %v1839
  %v1841 = vpop.f32.mrb[0].mxu0
  %v1842 = vpop.f32.mrb[0].mxu0
  %v1843 = vadd.f32 0.0, %v1842
  %v1844 = vpop.f32.mrb[0].mxu0
  %1845 = vmatprep.mubr.bf16.mxu0 0
  %1846 = vmatmul.mubr.bf16.gmra.mrb[0].mxu0 %v805
  %v1847 = vpop.f32.mrb[0].mxu0
  %v1848 = vadd.f32 0.0, %v1847
  %v1849 = vpop.f32.mrb[0].mxu0
  %v1850 = vpop.f32.mrb[0].mxu0
  %v1851 = vadd.f32 0.0, %v1850
  %v1852 = vpop.f32.mrb[0].mxu0
  %1853 = vmatprep.mubr.bf16.mxu0 0
  %1854 = vmatmul.mubr.bf16.gmra.mrb[0].mxu0 %v808
  %v1855 = vpop.f32.mrb[0].mxu0
  %v1856 = vadd.f32 0.0, %v1855
  %v1857 = vpop.f32.mrb[0].mxu0
  %v1858 = vpop.f32.mrb[0].mxu0
  %v1859 = vadd.f32 0.0, %v1858
  %v1860 = vpop.f32.mrb[0].mxu0
  %1861 = vmatprep.mubr.bf16.mxu0 0
  %1862 = vmatmul.mubr.bf16.gmra.mrb[0].mxu0 %v811
  %v1863 = vpop.f32.mrb[0].mxu0
  %v1864 = vadd.f32 0.0, %v1863
  %v1865 = vpop.f32.mrb[0].mxu0
  %v1866 = vpop.f32.mrb[0].mxu0
  %v1867 = vadd.f32 0.0, %v1866
  %v1868 = vpop.f32.mrb[0].mxu0
  %1869 = vmatprep.mubr.bf16.mxu0 0
  %1870 = vmatmul.mubr.bf16.gmra.mrb[0].mxu0 %v814
  %v1871 = vpop.f32.mrb[0].mxu0
  %v1872 = vadd.f32 0.0, %v1871
  %v1873 = vpop.f32.mrb[0].mxu0
  %v1874 = vpop.f32.mrb[0].mxu0
  %v1875 = vadd.f32 0.0, %v1874
  %v1876 = vpop.f32.mrb[0].mxu0
  %1877 = vdwg.mxu0
  %1878 = vmatprep.subr.bf16.mxu0 0
  %1879 = vmatpush1.bf16.msra.mxu0 %v360
  %1880 = vmatprep.subr.bf16.mxu0 0
  %1881 = vmatpush1.bf16.msra.mxu0 %v361
  %1882 = vmatprep.subr.bf16.mxu0 0
  %1883 = vmatpush1.bf16.msra.mxu0 %v362
  %1884 = vmatprep.subr.bf16.mxu0 0
  %1885 = vmatpush1.bf16.msra.mxu0 %v363
  %1886 = vmatprep.subr.bf16.mxu0 0
  %1887 = vmatpush1.bf16.msra.mxu0 0
  %1888 = vmatprep.subr.bf16.mxu0 0
  %1889 = vmatpush1.bf16.msra.mxu0 0
  %1890 = vmatprep.subr.bf16.mxu0 0
  %1891 = vmatpush1.bf16.msra.mxu0 0
  %1892 = vmatprep.subr.bf16.mxu0 0
  %1893 = vmatpush1.bf16.msra.mxu0 0
  %1894 = vmatprep.subr.bf16.mxu0 0
  %1895 = vmatpush1.bf16.msra.mxu0 0
  %1896 = vmatprep.subr.bf16.mxu0 0
  %1897 = vmatpush1.bf16.msra.mxu0 0
  %1898 = vmatprep.subr.bf16.mxu0 0
  %1899 = vmatpush1.bf16.msra.mxu0 0
  %1900 = vmatprep.subr.bf16.mxu0 0
  %1901 = vmatpush1.bf16.msra.mxu0 0
  %1902 = vmatprep.subr.bf16.mxu0 0
  %1903 = vmatpush1.bf16.msra.mxu0 0
  %1904 = vmatprep.subr.bf16.mxu0 0
  %1905 = vmatpush1.bf16.msra.mxu0 0
  %1906 = vmatprep.subr.bf16.mxu0 0
  %1907 = vmatpush1.bf16.msra.mxu0 0
  %1908 = vmatprep.subr.bf16.mxu0 0
  %1909 = vmatpush1.bf16.msra.mxu0 0
  %1910 = vmatprep.mubr.bf16.mxu0 0
  %1911 = vmatmul.mubr.bf16.gmra.mrb[0].mxu0 %v573
  %v1912 = vpop.f32.mrb[0].mxu0
  %v1913 = vadd.f32 %v1816, %v1912
  %v1914 = vpop.f32.mrb[0].mxu0
  %v1915 = vpop.f32.mrb[0].mxu0
  %v1916 = vadd.f32 %v1819, %v1915
  %v1917 = vpop.f32.mrb[0].mxu0
  %1918 = vmatprep.mubr.bf16.mxu0 0
  %1919 = vmatmul.mubr.bf16.gmra.mrb[0].mxu0 %v576
  %v1920 = vpop.f32.mrb[0].mxu0
  %v1921 = vadd.f32 %v1824, %v1920
  %v1922 = vpop.f32.mrb[0].mxu0
  %v1923 = vpop.f32.mrb[0].mxu0
  %v1924 = vadd.f32 %v1827, %v1923
  %v1925 = vpop.f32.mrb[0].mxu0
  %1926 = vmatprep.mubr.bf16.mxu0 0
  %1927 = vmatmul.mubr.bf16.gmra.mrb[0].mxu0 %v579
  %v1928 = vpop.f32.mrb[0].mxu0
  %v1929 = vadd.f32 %v1832, %v1928
  %v1930 = vpop.f32.mrb[0].mxu0
  %v1931 = vpop.f32.mrb[0].mxu0
  %v1932 = vadd.f32 %v1835, %v1931
  %v1933 = vpop.f32.mrb[0].mxu0
  %1934 = vmatprep.mubr.bf16.mxu0 0
  %1935 = vmatmul.mubr.bf16.gmra.mrb[0].mxu0 %v582
  %v1936 = vpop.f32.mrb[0].mxu0
  %v1937 = vadd.f32 %v1840, %v1936
  %v1938 = vpop.f32.mrb[0].mxu0
  %v1939 = vpop.f32.mrb[0].mxu0
  %v1940 = vadd.f32 %v1843, %v1939
  %v1941 = vpop.f32.mrb[0].mxu0
  %1942 = vmatprep.mubr.bf16.mxu0 0
  %1943 = vmatmul.mubr.bf16.gmra.mrb[0].mxu0 %v585
  %v1944 = vpop.f32.mrb[0].mxu0
  %v1945 = vadd.f32 %v1848, %v1944
  %v1946 = vpop.f32.mrb[0].mxu0
  %v1947 = vpop.f32.mrb[0].mxu0
  %v1948 = vadd.f32 %v1851, %v1947
  %v1949 = vpop.f32.mrb[0].mxu0
  %1950 = vmatprep.mubr.bf16.mxu0 0
  %1951 = vmatmul.mubr.bf16.gmra.mrb[0].mxu0 %v588
  %v1952 = vpop.f32.mrb[0].mxu0
  %v1953 = vadd.f32 %v1856, %v1952
  %v1954 = vpop.f32.mrb[0].mxu0
  %v1955 = vpop.f32.mrb[0].mxu0
  %v1956 = vadd.f32 %v1859, %v1955
  %v1957 = vpop.f32.mrb[0].mxu0
  %1958 = vmatprep.mubr.bf16.mxu0 0
  %1959 = vmatmul.mubr.bf16.gmra.mrb[0].mxu0 %v591
  %v1960 = vpop.f32.mrb[0].mxu0
  %v1961 = vadd.f32 %v1864, %v1960
  %v1962 = vpop.f32.mrb[0].mxu0
  %v1963 = vpop.f32.mrb[0].mxu0
  %v1964 = vadd.f32 %v1867, %v1963
  %v1965 = vpop.f32.mrb[0].mxu0
  %1966 = vmatprep.mubr.bf16.mxu0 0
  %1967 = vmatmul.mubr.bf16.gmra.mrb[0].mxu0 %v594
  %v1968 = vpop.f32.mrb[0].mxu0
  %v1969 = vadd.f32 %v1872, %v1968
  %v1970 = vpop.f32.mrb[0].mxu0
  %v1971 = vpop.f32.mrb[0].mxu0
  %v1972 = vadd.f32 %v1875, %v1971
  %v1973 = vpop.f32.mrb[0].mxu0
  %1974 = vdwg.mxu0
  %1975 = vmatprep.subr.bf16.mxu0 0
  %1976 = vmatpush1.bf16.msra.mxu0 %v564
  %1977 = vmatprep.subr.bf16.mxu0 0
  %1978 = vmatpush1.bf16.msra.mxu0 %v565
  %1979 = vmatprep.subr.bf16.mxu0 0
  %1980 = vmatpush1.bf16.msra.mxu0 %v566
  %1981 = vmatprep.subr.bf16.mxu0 0
  %1982 = vmatpush1.bf16.msra.mxu0 %v567
  %1983 = vmatprep.subr.bf16.mxu0 0
  %1984 = vmatpush1.bf16.msra.mxu0 0
  %1985 = vmatprep.subr.bf16.mxu0 0
  %1986 = vmatpush1.bf16.msra.mxu0 0
  %1987 = vmatprep.subr.bf16.mxu0 0
  %1988 = vmatpush1.bf16.msra.mxu0 0
  %1989 = vmatprep.subr.bf16.mxu0 0
  %1990 = vmatpush1.bf16.msra.mxu0 0
  %1991 = vmatprep.subr.bf16.mxu0 0
  %1992 = vmatpush1.bf16.msra.mxu0 0
  %1993 = vmatprep.subr.bf16.mxu0 0
  %1994 = vmatpush1.bf16.msra.mxu0 0
  %1995 = vmatprep.subr.bf16.mxu0 0
  %1996 = vmatpush1.bf16.msra.mxu0 0
  %1997 = vmatprep.subr.bf16.mxu0 0
  %1998 = vmatpush1.bf16.msra.mxu0 0
  %1999 = vmatprep.subr.bf16.mxu0 0
  %2000 = vmatpush1.bf16.msra.mxu0 0
  %2001 = vmatprep.subr.bf16.mxu0 0
  %2002 = vmatpush1.bf16.msra.mxu0 0
  %2003 = vmatprep.subr.bf16.mxu0 0
  %2004 = vmatpush1.bf16.msra.mxu0 0
  %2005 = vmatprep.subr.bf16.mxu0 0
  %2006 = vmatpush1.bf16.msra.mxu0 0
  %2007 = vmatprep.mubr.bf16.mxu0 0
  %2008 = vmatmul.mubr.bf16.gmra.mrb[0].mxu0 %v1013
  %v2009 = vpop.f32.mrb[0].mxu0
  %v2010 = vadd.f32 0.0, %v2009
  %v2011 = vpop.f32.mrb[0].mxu0
  %v2012 = vpop.f32.mrb[0].mxu0
  %v2013 = vadd.f32 0.0, %v2012
  %v2014 = vpop.f32.mrb[0].mxu0
  %2015 = vmatprep.mubr.bf16.mxu0 0
  %2016 = vmatmul.mubr.bf16.gmra.mrb[0].mxu0 %v1016
  %v2017 = vpop.f32.mrb[0].mxu0
  %v2018 = vadd.f32 0.0, %v2017
  %v2019 = vpop.f32.mrb[0].mxu0
  %v2020 = vpop.f32.mrb[0].mxu0
  %v2021 = vadd.f32 0.0, %v2020
  %v2022 = vpop.f32.mrb[0].mxu0
  %2023 = vmatprep.mubr.bf16.mxu0 0
  %2024 = vmatmul.mubr.bf16.gmra.mrb[0].mxu0 %v1019
  %v2025 = vpop.f32.mrb[0].mxu0
  %v2026 = vadd.f32 0.0, %v2025
  %v2027 = vpop.f32.mrb[0].mxu0
  %v2028 = vpop.f32.mrb[0].mxu0
  %v2029 = vadd.f32 0.0, %v2028
  %v2030 = vpop.f32.mrb[0].mxu0
  %2031 = vmatprep.mubr.bf16.mxu0 0
  %2032 = vmatmul.mubr.bf16.gmra.mrb[0].mxu0 %v1022
  %v2033 = vpop.f32.mrb[0].mxu0
  %v2034 = vadd.f32 0.0, %v2033
  %v2035 = vpop.f32.mrb[0].mxu0
  %v2036 = vpop.f32.mrb[0].mxu0
  %v2037 = vadd.f32 0.0, %v2036
  %v2038 = vpop.f32.mrb[0].mxu0
  %2039 = vmatprep.mubr.bf16.mxu0 0
  %2040 = vmatmul.mubr.bf16.gmra.mrb[0].mxu0 %v1025
  %v2041 = vpop.f32.mrb[0].mxu0
  %v2042 = vadd.f32 0.0, %v2041
  %v2043 = vpop.f32.mrb[0].mxu0
  %v2044 = vpop.f32.mrb[0].mxu0
  %v2045 = vadd.f32 0.0, %v2044
  %v2046 = vpop.f32.mrb[0].mxu0
  %2047 = vmatprep.mubr.bf16.mxu0 0
  %2048 = vmatmul.mubr.bf16.gmra.mrb[0].mxu0 %v1028
  %v2049 = vpop.f32.mrb[0].mxu0
  %v2050 = vadd.f32 0.0, %v2049
  %v2051 = vpop.f32.mrb[0].mxu0
  %v2052 = vpop.f32.mrb[0].mxu0
  %v2053 = vadd.f32 0.0, %v2052
  %v2054 = vpop.f32.mrb[0].mxu0
  %2055 = vmatprep.mubr.bf16.mxu0 0
  %2056 = vmatmul.mubr.bf16.gmra.mrb[0].mxu0 %v1031
  %v2057 = vpop.f32.mrb[0].mxu0
  %v2058 = vadd.f32 0.0, %v2057
  %v2059 = vpop.f32.mrb[0].mxu0
  %v2060 = vpop.f32.mrb[0].mxu0
  %v2061 = vadd.f32 0.0, %v2060
  %v2062 = vpop.f32.mrb[0].mxu0
  %2063 = vmatprep.mubr.bf16.mxu0 0
  %2064 = vmatmul.mubr.bf16.gmra.mrb[0].mxu0 %v1034
  %v2065 = vpop.f32.mrb[0].mxu0
  %v2066 = vadd.f32 0.0, %v2065
  %v2067 = vpop.f32.mrb[0].mxu0
  %v2068 = vpop.f32.mrb[0].mxu0
  %v2069 = vadd.f32 0.0, %v2068
  %v2070 = vpop.f32.mrb[0].mxu0
  %2071 = vdwg.mxu0
  %v2072 = vadd.f32 %v1913, %v2010
  %v2073 = vadd.f32 %v1916, %v2013
  %v2074 = vadd.f32 %v1921, %v2018
  %v2075 = vadd.f32 %v1924, %v2021
  %v2076 = vadd.f32 %v1929, %v2026
  %v2077 = vadd.f32 %v1932, %v2029
  %v2078 = vadd.f32 %v1937, %v2034
  %v2079 = vadd.f32 %v1940, %v2037
  %v2080 = vadd.f32 %v1945, %v2042
  %v2081 = vadd.f32 %v1948, %v2045
  %v2082 = vadd.f32 %v1953, %v2050
  %v2083 = vadd.f32 %v1956, %v2053
  %v2084 = vadd.f32 %v1961, %v2058
  %v2085 = vadd.f32 %v1964, %v2061
  %v2086 = vadd.f32 %v1969, %v2066
  %v2087 = vadd.f32 %v1972, %v2069
  %2088 = vmatprep.subr.bf16.mxu0 0
  %2089 = vmatpush1.bf16.msra.mxu0 %v784
  %2090 = vmatprep.subr.bf16.mxu0 0
  %2091 = vmatpush1.bf16.msra.mxu0 %v785
  %2092 = vmatprep.subr.bf16.mxu0 0
  %2093 = vmatpush1.bf16.msra.mxu0 %v786
  %2094 = vmatprep.subr.bf16.mxu0 0
  %2095 = vmatpush1.bf16.msra.mxu0 %v787
  %2096 = vmatprep.subr.bf16.mxu0 0
  %2097 = vmatpush1.bf16.msra.mxu0 0
  %2098 = vmatprep.subr.bf16.mxu0 0
  %2099 = vmatpush1.bf16.msra.mxu0 0
  %2100 = vmatprep.subr.bf16.mxu0 0
  %2101 = vmatpush1.bf16.msra.mxu0 0
  %2102 = vmatprep.subr.bf16.mxu0 0
  %2103 = vmatpush1.bf16.msra.mxu0 0
  %2104 = vmatprep.subr.bf16.mxu0 0
  %2105 = vmatpush1.bf16.msra.mxu0 0
  %2106 = vmatprep.subr.bf16.mxu0 0
  %2107 = vmatpush1.bf16.msra.mxu0 0
  %2108 = vmatprep.subr.bf16.mxu0 0
  %2109 = vmatpush1.bf16.msra.mxu0 0
  %2110 = vmatprep.subr.bf16.mxu0 0
  %2111 = vmatpush1.bf16.msra.mxu0 0
  %2112 = vmatprep.subr.bf16.mxu0 0
  %2113 = vmatpush1.bf16.msra.mxu0 0
  %2114 = vmatprep.subr.bf16.mxu0 0
  %2115 = vmatpush1.bf16.msra.mxu0 0
  %2116 = vmatprep.subr.bf16.mxu0 0
  %2117 = vmatpush1.bf16.msra.mxu0 0
  %2118 = vmatprep.subr.bf16.mxu0 0
  %2119 = vmatpush1.bf16.msra.mxu0 0
  %2120 = vmatprep.mubr.bf16.mxu0 0
  %2121 = vmatmul.mubr.bf16.gmra.mrb[0].mxu0 %v1629
  %v2122 = vpop.f32.mrb[0].mxu0
  %v2123 = vadd.f32 0.0, %v2122
  %v2124 = vpop.f32.mrb[0].mxu0
  %v2125 = vpop.f32.mrb[0].mxu0
  %v2126 = vadd.f32 0.0, %v2125
  %v2127 = vpop.f32.mrb[0].mxu0
  %2128 = vmatprep.mubr.bf16.mxu0 0
  %2129 = vmatmul.mubr.bf16.gmra.mrb[0].mxu0 %v1632
  %v2130 = vpop.f32.mrb[0].mxu0
  %v2131 = vadd.f32 0.0, %v2130
  %v2132 = vpop.f32.mrb[0].mxu0
  %v2133 = vpop.f32.mrb[0].mxu0
  %v2134 = vadd.f32 0.0, %v2133
  %v2135 = vpop.f32.mrb[0].mxu0
  %2136 = vmatprep.mubr.bf16.mxu0 0
  %2137 = vmatmul.mubr.bf16.gmra.mrb[0].mxu0 %v1635
  %v2138 = vpop.f32.mrb[0].mxu0
  %v2139 = vadd.f32 0.0, %v2138
  %v2140 = vpop.f32.mrb[0].mxu0
  %v2141 = vpop.f32.mrb[0].mxu0
  %v2142 = vadd.f32 0.0, %v2141
  %v2143 = vpop.f32.mrb[0].mxu0
  %2144 = vmatprep.mubr.bf16.mxu0 0
  %2145 = vmatmul.mubr.bf16.gmra.mrb[0].mxu0 %v1638
  %v2146 = vpop.f32.mrb[0].mxu0
  %v2147 = vadd.f32 0.0, %v2146
  %v2148 = vpop.f32.mrb[0].mxu0
  %v2149 = vpop.f32.mrb[0].mxu0
  %v2150 = vadd.f32 0.0, %v2149
  %v2151 = vpop.f32.mrb[0].mxu0
  %2152 = vmatprep.mubr.bf16.mxu0 0
  %2153 = vmatmul.mubr.bf16.gmra.mrb[0].mxu0 %v1641
  %v2154 = vpop.f32.mrb[0].mxu0
  %v2155 = vadd.f32 0.0, %v2154
  %v2156 = vpop.f32.mrb[0].mxu0
  %v2157 = vpop.f32.mrb[0].mxu0
  %v2158 = vadd.f32 0.0, %v2157
  %v2159 = vpop.f32.mrb[0].mxu0
  %2160 = vmatprep.mubr.bf16.mxu0 0
  %2161 = vmatmul.mubr.bf16.gmra.mrb[0].mxu0 %v1644
  %v2162 = vpop.f32.mrb[0].mxu0
  %v2163 = vadd.f32 0.0, %v2162
  %v2164 = vpop.f32.mrb[0].mxu0
  %v2165 = vpop.f32.mrb[0].mxu0
  %v2166 = vadd.f32 0.0, %v2165
  %v2167 = vpop.f32.mrb[0].mxu0
  %2168 = vmatprep.mubr.bf16.mxu0 0
  %2169 = vmatmul.mubr.bf16.gmra.mrb[0].mxu0 %v1647
  %v2170 = vpop.f32.mrb[0].mxu0
  %v2171 = vadd.f32 0.0, %v2170
  %v2172 = vpop.f32.mrb[0].mxu0
  %v2173 = vpop.f32.mrb[0].mxu0
  %v2174 = vadd.f32 0.0, %v2173
  %v2175 = vpop.f32.mrb[0].mxu0
  %2176 = vmatprep.mubr.bf16.mxu0 0
  %2177 = vmatmul.mubr.bf16.gmra.mrb[0].mxu0 %v1650
  %v2178 = vpop.f32.mrb[0].mxu0
  %v2179 = vadd.f32 0.0, %v2178
  %v2180 = vpop.f32.mrb[0].mxu0
  %v2181 = vpop.f32.mrb[0].mxu0
  %v2182 = vadd.f32 0.0, %v2181
  %v2183 = vpop.f32.mrb[0].mxu0
  %2184 = vdwg.mxu0
  %v2185 = vadd.f32 %v2072, %v2123
  %v2186 = vadd.f32 %v2073, %v2126
  %v2187 = vadd.f32 %v2074, %v2131
  %v2188 = vadd.f32 %v2075, %v2134
  %v2189 = vadd.f32 %v2076, %v2139
  %v2190 = vadd.f32 %v2077, %v2142
  %v2191 = vadd.f32 %v2078, %v2147
  %v2192 = vadd.f32 %v2079, %v2150
  %v2193 = vadd.f32 %v2080, %v2155
  %v2194 = vadd.f32 %v2081, %v2158
  %v2195 = vadd.f32 %v2082, %v2163
  %v2196 = vadd.f32 %v2083, %v2166
  %v2197 = vadd.f32 %v2084, %v2171
  %v2198 = vadd.f32 %v2085, %v2174
  %v2199 = vadd.f32 %v2086, %v2179
  %v2200 = vadd.f32 %v2087, %v2182
  %s2201 = sadd.s32 0, 96
  %s2202 = smul.addr %s2201, 4
  %s2203 = scalar_lea.vmem %s0, %s2202
  %v2204 = vld [vmem:[%s2203] sm:$0xf]
  %v2205 = vld [vmem:[%s2203 + $0x4] sm:$0xf]
  %v2206 = vld [vmem:[%s2203 + $0x8] sm:$0xf]
  %v2207 = vld [vmem:[%s2203 + $0xc] sm:$0xf]
  %v2208 = vld [vmem:[%s2203 + $0x10] sm:$0xf]
  %v2209 = vld [vmem:[%s2203 + $0x14] sm:$0xf]
  %v2210 = vld [vmem:[%s2203 + $0x18] sm:$0xf]
  %v2211 = vld [vmem:[%s2203 + $0x1c] sm:$0xf]
  %v2212 = vld [vmem:[%s2203 + $0x20] sm:$0xf]
  %v2213 = vld [vmem:[%s2203 + $0x24] sm:$0xf]
  %v2214 = vld [vmem:[%s2203 + $0x28] sm:$0xf]
  %v2215 = vld [vmem:[%s2203 + $0x2c] sm:$0xf]
  %v2216 = vld [vmem:[%s2203 + $0x30] sm:$0xf]
  %v2217 = vld [vmem:[%s2203 + $0x34] sm:$0xf]
  %v2218 = vld [vmem:[%s2203 + $0x38] sm:$0xf]
  %v2219 = vld [vmem:[%s2203 + $0x3c] sm:$0xf]
  %v2236 = vunpack.c.l.b16 %v2204
  %v2237 = vunpack.c.l.b16 %v2205
  %v2238 = vunpack.c.l.b16 %v2206
  %v2239 = vunpack.c.l.b16 %v2207
  %v2240 = vunpack.c.l.b16 %v2208
  %v2241 = vunpack.c.l.b16 %v2209
  %v2242 = vunpack.c.l.b16 %v2210
  %v2243 = vunpack.c.l.b16 %v2211
  %v2244 = vunpack.c.l.b16 %v2212
  %v2245 = vunpack.c.l.b16 %v2213
  %v2246 = vunpack.c.l.b16 %v2214
  %v2247 = vunpack.c.l.b16 %v2215
  %v2248 = vunpack.c.l.b16 %v2216
  %v2249 = vunpack.c.l.b16 %v2217
  %v2250 = vunpack.c.l.b16 %v2218
  %v2251 = vunpack.c.l.b16 %v2219
  %v2252 = vpack.c.b16 %v2237, %v2236
  %v2253 = vpack.c.b16 %v2239, %v2238
  %v2254 = vpack.c.b16 %v2241, %v2240
  %v2255 = vpack.c.b16 %v2243, %v2242
  %v2256 = vpack.c.b16 %v2245, %v2244
  %v2257 = vpack.c.b16 %v2247, %v2246
  %v2258 = vpack.c.b16 %v2249, %v2248
  %v2259 = vpack.c.b16 %v2251, %v2250
  %v2261 = vsel %vm182, %v2252, 0
  %v2264 = vsel %vm182, %v2253, 0
  %v2267 = vsel %vm182, %v2254, 0
  %v2270 = vsel %vm182, %v2255, 0
  %v2273 = vsel %vm182, %v2256, 0
  %v2276 = vsel %vm182, %v2257, 0
  %v2279 = vsel %vm182, %v2258, 0
  %v2282 = vsel %vm182, %v2259, 0
  %2284 = vmatprep.subr.bf16.mxu0 0
  %2285 = vmatpush1.bf16.msra.mxu0 %v1004
  %2286 = vmatprep.subr.bf16.mxu0 0
  %2287 = vmatpush1.bf16.msra.mxu0 %v1005
  %2288 = vmatprep.subr.bf16.mxu0 0
  %2289 = vmatpush1.bf16.msra.mxu0 %v1006
  %2290 = vmatprep.subr.bf16.mxu0 0
  %2291 = vmatpush1.bf16.msra.mxu0 %v1007
  %2292 = vmatprep.subr.bf16.mxu0 0
  %2293 = vmatpush1.bf16.msra.mxu0 0
  %2294 = vmatprep.subr.bf16.mxu0 0
  %2295 = vmatpush1.bf16.msra.mxu0 0
  %2296 = vmatprep.subr.bf16.mxu0 0
  %2297 = vmatpush1.bf16.msra.mxu0 0
  %2298 = vmatprep.subr.bf16.mxu0 0
  %2299 = vmatpush1.bf16.msra.mxu0 0
  %2300 = vmatprep.subr.bf16.mxu0 0
  %2301 = vmatpush1.bf16.msra.mxu0 0
  %2302 = vmatprep.subr.bf16.mxu0 0
  %2303 = vmatpush1.bf16.msra.mxu0 0
  %2304 = vmatprep.subr.bf16.mxu0 0
  %2305 = vmatpush1.bf16.msra.mxu0 0
  %2306 = vmatprep.subr.bf16.mxu0 0
  %2307 = vmatpush1.bf16.msra.mxu0 0
  %2308 = vmatprep.subr.bf16.mxu0 0
  %2309 = vmatpush1.bf16.msra.mxu0 0
  %2310 = vmatprep.subr.bf16.mxu0 0
  %2311 = vmatpush1.bf16.msra.mxu0 0
  %2312 = vmatprep.subr.bf16.mxu0 0
  %2313 = vmatpush1.bf16.msra.mxu0 0
  %2314 = vmatprep.subr.bf16.mxu0 0
  %2315 = vmatpush1.bf16.msra.mxu0 0
  %2316 = vmatprep.mubr.bf16.mxu0 0
  %2317 = vmatmul.mubr.bf16.gmra.mrb[0].mxu0 %v2261
  %v2318 = vpop.f32.mrb[0].mxu0
  %v2319 = vadd.f32 0.0, %v2318
  %v2320 = vpop.f32.mrb[0].mxu0
  %v2321 = vpop.f32.mrb[0].mxu0
  %v2322 = vadd.f32 0.0, %v2321
  %v2323 = vpop.f32.mrb[0].mxu0
  %2324 = vmatprep.mubr.bf16.mxu0 0
  %2325 = vmatmul.mubr.bf16.gmra.mrb[0].mxu0 %v2264
  %v2326 = vpop.f32.mrb[0].mxu0
  %v2327 = vadd.f32 0.0, %v2326
  %v2328 = vpop.f32.mrb[0].mxu0
  %v2329 = vpop.f32.mrb[0].mxu0
  %v2330 = vadd.f32 0.0, %v2329
  %v2331 = vpop.f32.mrb[0].mxu0
  %2332 = vmatprep.mubr.bf16.mxu0 0
  %2333 = vmatmul.mubr.bf16.gmra.mrb[0].mxu0 %v2267
  %v2334 = vpop.f32.mrb[0].mxu0
  %v2335 = vadd.f32 0.0, %v2334
  %v2336 = vpop.f32.mrb[0].mxu0
  %v2337 = vpop.f32.mrb[0].mxu0
  %v2338 = vadd.f32 0.0, %v2337
  %v2339 = vpop.f32.mrb[0].mxu0
  %2340 = vmatprep.mubr.bf16.mxu0 0
  %2341 = vmatmul.mubr.bf16.gmra.mrb[0].mxu0 %v2270
  %v2342 = vpop.f32.mrb[0].mxu0
  %v2343 = vadd.f32 0.0, %v2342
  %v2344 = vpop.f32.mrb[0].mxu0
  %v2345 = vpop.f32.mrb[0].mxu0
  %v2346 = vadd.f32 0.0, %v2345
  %v2347 = vpop.f32.mrb[0].mxu0
  %2348 = vmatprep.mubr.bf16.mxu0 0
  %2349 = vmatmul.mubr.bf16.gmra.mrb[0].mxu0 %v2273
  %v2350 = vpop.f32.mrb[0].mxu0
  %v2351 = vadd.f32 0.0, %v2350
  %v2352 = vpop.f32.mrb[0].mxu0
  %v2353 = vpop.f32.mrb[0].mxu0
  %v2354 = vadd.f32 0.0, %v2353
  %v2355 = vpop.f32.mrb[0].mxu0
  %2356 = vmatprep.mubr.bf16.mxu0 0
  %2357 = vmatmul.mubr.bf16.gmra.mrb[0].mxu0 %v2276
  %v2358 = vpop.f32.mrb[0].mxu0
  %v2359 = vadd.f32 0.0, %v2358
  %v2360 = vpop.f32.mrb[0].mxu0
  %v2361 = vpop.f32.mrb[0].mxu0
  %v2362 = vadd.f32 0.0, %v2361
  %v2363 = vpop.f32.mrb[0].mxu0
  %2364 = vmatprep.mubr.bf16.mxu0 0
  %2365 = vmatmul.mubr.bf16.gmra.mrb[0].mxu0 %v2279
  %v2366 = vpop.f32.mrb[0].mxu0
  %v2367 = vadd.f32 0.0, %v2366
  %v2368 = vpop.f32.mrb[0].mxu0
  %v2369 = vpop.f32.mrb[0].mxu0
  %v2370 = vadd.f32 0.0, %v2369
  %v2371 = vpop.f32.mrb[0].mxu0
  %2372 = vmatprep.mubr.bf16.mxu0 0
  %2373 = vmatmul.mubr.bf16.gmra.mrb[0].mxu0 %v2282
  %v2374 = vpop.f32.mrb[0].mxu0
  %v2375 = vadd.f32 0.0, %v2374
  %v2376 = vpop.f32.mrb[0].mxu0
  %v2377 = vpop.f32.mrb[0].mxu0
  %v2378 = vadd.f32 0.0, %v2377
  %v2379 = vpop.f32.mrb[0].mxu0
  %2380 = vdwg.mxu0
  %v2381 = vadd.f32 %v2185, %v2319
  %v2382 = vadd.f32 %v2186, %v2322
  %v2383 = vadd.f32 %v2187, %v2327
  %v2384 = vadd.f32 %v2188, %v2330
  %v2385 = vadd.f32 %v2189, %v2335
  %v2386 = vadd.f32 %v2190, %v2338
  %v2387 = vadd.f32 %v2191, %v2343
  %v2388 = vadd.f32 %v2192, %v2346
  %v2389 = vadd.f32 %v2193, %v2351
  %v2390 = vadd.f32 %v2194, %v2354
  %v2391 = vadd.f32 %v2195, %v2359
  %v2392 = vadd.f32 %v2196, %v2362
  %v2393 = vadd.f32 %v2197, %v2367
  %v2394 = vadd.f32 %v2198, %v2370
  %v2395 = vadd.f32 %v2199, %v2375
  %v2396 = vadd.f32 %v2200, %v2378
  %v2397 = vmax.f32 %v1765, %v2381
  %v2398 = vmax.f32 %v1766, %v2382
  %v2399 = vmax.f32 %v1767, %v2383
  %v2400 = vmax.f32 %v1768, %v2384
  %v2401 = vmax.f32 %v1769, %v2385
  %v2402 = vmax.f32 %v1770, %v2386
  %v2403 = vmax.f32 %v1771, %v2387
  %v2404 = vmax.f32 %v1772, %v2388
  %v2405 = vmax.f32 %v1773, %v2389
  %v2406 = vmax.f32 %v1774, %v2390
  %v2407 = vmax.f32 %v1775, %v2391
  %v2408 = vmax.f32 %v1776, %v2392
  %v2409 = vmax.f32 %v1777, %v2393
  %v2410 = vmax.f32 %v1778, %v2394
  %v2411 = vmax.f32 %v1779, %v2395
  %v2412 = vmax.f32 %v1780, %v2396
  %2413 = vmatprep.subr.bf16.mxu0 0
  %2414 = vmatpush1.bf16.msra.mxu0 %v174
  %2415 = vmatprep.subr.bf16.mxu0 0
  %2416 = vmatpush1.bf16.msra.mxu0 %v175
  %2417 = vmatprep.subr.bf16.mxu0 0
  %2418 = vmatpush1.bf16.msra.mxu0 %v176
  %2419 = vmatprep.subr.bf16.mxu0 0
  %2420 = vmatpush1.bf16.msra.mxu0 %v177
  %2421 = vmatprep.subr.bf16.mxu0 0
  %2422 = vmatpush1.bf16.msra.mxu0 0
  %2423 = vmatprep.subr.bf16.mxu0 0
  %2424 = vmatpush1.bf16.msra.mxu0 0
  %2425 = vmatprep.subr.bf16.mxu0 0
  %2426 = vmatpush1.bf16.msra.mxu0 0
  %2427 = vmatprep.subr.bf16.mxu0 0
  %2428 = vmatpush1.bf16.msra.mxu0 0
  %2429 = vmatprep.subr.bf16.mxu0 0
  %2430 = vmatpush1.bf16.msra.mxu0 0
  %2431 = vmatprep.subr.bf16.mxu0 0
  %2432 = vmatpush1.bf16.msra.mxu0 0
  %2433 = vmatprep.subr.bf16.mxu0 0
  %2434 = vmatpush1.bf16.msra.mxu0 0
  %2435 = vmatprep.subr.bf16.mxu0 0
  %2436 = vmatpush1.bf16.msra.mxu0 0
  %2437 = vmatprep.subr.bf16.mxu0 0
  %2438 = vmatpush1.bf16.msra.mxu0 0
  %2439 = vmatprep.subr.bf16.mxu0 0
  %2440 = vmatpush1.bf16.msra.mxu0 0
  %2441 = vmatprep.subr.bf16.mxu0 0
  %2442 = vmatpush1.bf16.msra.mxu0 0
  %2443 = vmatprep.subr.bf16.mxu0 0
  %2444 = vmatpush1.bf16.msra.mxu0 0
  %2445 = vmatprep.mubr.bf16.mxu0 0
  %2446 = vmatmul.mubr.bf16.gmra.mrb[0].mxu0 %v1013
  %v2447 = vpop.f32.mrb[0].mxu0
  %v2448 = vadd.f32 0.0, %v2447
  %v2449 = vpop.f32.mrb[0].mxu0
  %v2450 = vpop.f32.mrb[0].mxu0
  %v2451 = vadd.f32 0.0, %v2450
  %v2452 = vpop.f32.mrb[0].mxu0
  %2453 = vmatprep.mubr.bf16.mxu0 0
  %2454 = vmatmul.mubr.bf16.gmra.mrb[0].mxu0 %v1016
  %v2455 = vpop.f32.mrb[0].mxu0
  %v2456 = vadd.f32 0.0, %v2455
  %v2457 = vpop.f32.mrb[0].mxu0
  %v2458 = vpop.f32.mrb[0].mxu0
  %v2459 = vadd.f32 0.0, %v2458
  %v2460 = vpop.f32.mrb[0].mxu0
  %2461 = vmatprep.mubr.bf16.mxu0 0
  %2462 = vmatmul.mubr.bf16.gmra.mrb[0].mxu0 %v1019
  %v2463 = vpop.f32.mrb[0].mxu0
  %v2464 = vadd.f32 0.0, %v2463
  %v2465 = vpop.f32.mrb[0].mxu0
  %v2466 = vpop.f32.mrb[0].mxu0
  %v2467 = vadd.f32 0.0, %v2466
  %v2468 = vpop.f32.mrb[0].mxu0
  %2469 = vmatprep.mubr.bf16.mxu0 0
  %2470 = vmatmul.mubr.bf16.gmra.mrb[0].mxu0 %v1022
  %v2471 = vpop.f32.mrb[0].mxu0
  %v2472 = vadd.f32 0.0, %v2471
  %v2473 = vpop.f32.mrb[0].mxu0
  %v2474 = vpop.f32.mrb[0].mxu0
  %v2475 = vadd.f32 0.0, %v2474
  %v2476 = vpop.f32.mrb[0].mxu0
  %2477 = vmatprep.mubr.bf16.mxu0 0
  %2478 = vmatmul.mubr.bf16.gmra.mrb[0].mxu0 %v1025
  %v2479 = vpop.f32.mrb[0].mxu0
  %v2480 = vadd.f32 0.0, %v2479
  %v2481 = vpop.f32.mrb[0].mxu0
  %v2482 = vpop.f32.mrb[0].mxu0
  %v2483 = vadd.f32 0.0, %v2482
  %v2484 = vpop.f32.mrb[0].mxu0
  %2485 = vmatprep.mubr.bf16.mxu0 0
  %2486 = vmatmul.mubr.bf16.gmra.mrb[0].mxu0 %v1028
  %v2487 = vpop.f32.mrb[0].mxu0
  %v2488 = vadd.f32 0.0, %v2487
  %v2489 = vpop.f32.mrb[0].mxu0
  %v2490 = vpop.f32.mrb[0].mxu0
  %v2491 = vadd.f32 0.0, %v2490
  %v2492 = vpop.f32.mrb[0].mxu0
  %2493 = vmatprep.mubr.bf16.mxu0 0
  %2494 = vmatmul.mubr.bf16.gmra.mrb[0].mxu0 %v1031
  %v2495 = vpop.f32.mrb[0].mxu0
  %v2496 = vadd.f32 0.0, %v2495
  %v2497 = vpop.f32.mrb[0].mxu0
  %v2498 = vpop.f32.mrb[0].mxu0
  %v2499 = vadd.f32 0.0, %v2498
  %v2500 = vpop.f32.mrb[0].mxu0
  %2501 = vmatprep.mubr.bf16.mxu0 0
  %2502 = vmatmul.mubr.bf16.gmra.mrb[0].mxu0 %v1034
  %v2503 = vpop.f32.mrb[0].mxu0
  %v2504 = vadd.f32 0.0, %v2503
  %v2505 = vpop.f32.mrb[0].mxu0
  %v2506 = vpop.f32.mrb[0].mxu0
  %v2507 = vadd.f32 0.0, %v2506
  %v2508 = vpop.f32.mrb[0].mxu0
  %2509 = vdwg.mxu0
  %2510 = vmatprep.subr.bf16.mxu0 0
  %2511 = vmatpush1.bf16.msra.mxu0 %v360
  %2512 = vmatprep.subr.bf16.mxu0 0
  %2513 = vmatpush1.bf16.msra.mxu0 %v361
  %2514 = vmatprep.subr.bf16.mxu0 0
  %2515 = vmatpush1.bf16.msra.mxu0 %v362
  %2516 = vmatprep.subr.bf16.mxu0 0
  %2517 = vmatpush1.bf16.msra.mxu0 %v363
  %2518 = vmatprep.subr.bf16.mxu0 0
  %2519 = vmatpush1.bf16.msra.mxu0 0
  %2520 = vmatprep.subr.bf16.mxu0 0
  %2521 = vmatpush1.bf16.msra.mxu0 0
  %2522 = vmatprep.subr.bf16.mxu0 0
  %2523 = vmatpush1.bf16.msra.mxu0 0
  %2524 = vmatprep.subr.bf16.mxu0 0
  %2525 = vmatpush1.bf16.msra.mxu0 0
  %2526 = vmatprep.subr.bf16.mxu0 0
  %2527 = vmatpush1.bf16.msra.mxu0 0
  %2528 = vmatprep.subr.bf16.mxu0 0
  %2529 = vmatpush1.bf16.msra.mxu0 0
  %2530 = vmatprep.subr.bf16.mxu0 0
  %2531 = vmatpush1.bf16.msra.mxu0 0
  %2532 = vmatprep.subr.bf16.mxu0 0
  %2533 = vmatpush1.bf16.msra.mxu0 0
  %2534 = vmatprep.subr.bf16.mxu0 0
  %2535 = vmatpush1.bf16.msra.mxu0 0
  %2536 = vmatprep.subr.bf16.mxu0 0
  %2537 = vmatpush1.bf16.msra.mxu0 0
  %2538 = vmatprep.subr.bf16.mxu0 0
  %2539 = vmatpush1.bf16.msra.mxu0 0
  %2540 = vmatprep.subr.bf16.mxu0 0
  %2541 = vmatpush1.bf16.msra.mxu0 0
  %2542 = vmatprep.mubr.bf16.mxu0 0
  %2543 = vmatmul.mubr.bf16.gmra.mrb[0].mxu0 %v793
  %v2544 = vpop.f32.mrb[0].mxu0
  %v2545 = vadd.f32 %v2448, %v2544
  %v2546 = vpop.f32.mrb[0].mxu0
  %v2547 = vpop.f32.mrb[0].mxu0
  %v2548 = vadd.f32 %v2451, %v2547
  %v2549 = vpop.f32.mrb[0].mxu0
  %2550 = vmatprep.mubr.bf16.mxu0 0
  %2551 = vmatmul.mubr.bf16.gmra.mrb[0].mxu0 %v796
  %v2552 = vpop.f32.mrb[0].mxu0
  %v2553 = vadd.f32 %v2456, %v2552
  %v2554 = vpop.f32.mrb[0].mxu0
  %v2555 = vpop.f32.mrb[0].mxu0
  %v2556 = vadd.f32 %v2459, %v2555
  %v2557 = vpop.f32.mrb[0].mxu0
  %2558 = vmatprep.mubr.bf16.mxu0 0
  %2559 = vmatmul.mubr.bf16.gmra.mrb[0].mxu0 %v799
  %v2560 = vpop.f32.mrb[0].mxu0
  %v2561 = vadd.f32 %v2464, %v2560
  %v2562 = vpop.f32.mrb[0].mxu0
  %v2563 = vpop.f32.mrb[0].mxu0
  %v2564 = vadd.f32 %v2467, %v2563
  %v2565 = vpop.f32.mrb[0].mxu0
  %2566 = vmatprep.mubr.bf16.mxu0 0
  %2567 = vmatmul.mubr.bf16.gmra.mrb[0].mxu0 %v802
  %v2568 = vpop.f32.mrb[0].mxu0
  %v2569 = vadd.f32 %v2472, %v2568
  %v2570 = vpop.f32.mrb[0].mxu0
  %v2571 = vpop.f32.mrb[0].mxu0
  %v2572 = vadd.f32 %v2475, %v2571
  %v2573 = vpop.f32.mrb[0].mxu0
  %2574 = vmatprep.mubr.bf16.mxu0 0
  %2575 = vmatmul.mubr.bf16.gmra.mrb[0].mxu0 %v805
  %v2576 = vpop.f32.mrb[0].mxu0
  %v2577 = vadd.f32 %v2480, %v2576
  %v2578 = vpop.f32.mrb[0].mxu0
  %v2579 = vpop.f32.mrb[0].mxu0
  %v2580 = vadd.f32 %v2483, %v2579
  %v2581 = vpop.f32.mrb[0].mxu0
  %2582 = vmatprep.mubr.bf16.mxu0 0
  %2583 = vmatmul.mubr.bf16.gmra.mrb[0].mxu0 %v808
  %v2584 = vpop.f32.mrb[0].mxu0
  %v2585 = vadd.f32 %v2488, %v2584
  %v2586 = vpop.f32.mrb[0].mxu0
  %v2587 = vpop.f32.mrb[0].mxu0
  %v2588 = vadd.f32 %v2491, %v2587
  %v2589 = vpop.f32.mrb[0].mxu0
  %2590 = vmatprep.mubr.bf16.mxu0 0
  %2591 = vmatmul.mubr.bf16.gmra.mrb[0].mxu0 %v811
  %v2592 = vpop.f32.mrb[0].mxu0
  %v2593 = vadd.f32 %v2496, %v2592
  %v2594 = vpop.f32.mrb[0].mxu0
  %v2595 = vpop.f32.mrb[0].mxu0
  %v2596 = vadd.f32 %v2499, %v2595
  %v2597 = vpop.f32.mrb[0].mxu0
  %2598 = vmatprep.mubr.bf16.mxu0 0
  %2599 = vmatmul.mubr.bf16.gmra.mrb[0].mxu0 %v814
  %v2600 = vpop.f32.mrb[0].mxu0
  %v2601 = vadd.f32 %v2504, %v2600
  %v2602 = vpop.f32.mrb[0].mxu0
  %v2603 = vpop.f32.mrb[0].mxu0
  %v2604 = vadd.f32 %v2507, %v2603
  %v2605 = vpop.f32.mrb[0].mxu0
  %2606 = vdwg.mxu0
  %2607 = vmatprep.subr.bf16.mxu0 0
  %2608 = vmatpush1.bf16.msra.mxu0 %v564
  %2609 = vmatprep.subr.bf16.mxu0 0
  %2610 = vmatpush1.bf16.msra.mxu0 %v565
  %2611 = vmatprep.subr.bf16.mxu0 0
  %2612 = vmatpush1.bf16.msra.mxu0 %v566
  %2613 = vmatprep.subr.bf16.mxu0 0
  %2614 = vmatpush1.bf16.msra.mxu0 %v567
  %2615 = vmatprep.subr.bf16.mxu0 0
  %2616 = vmatpush1.bf16.msra.mxu0 0
  %2617 = vmatprep.subr.bf16.mxu0 0
  %2618 = vmatpush1.bf16.msra.mxu0 0
  %2619 = vmatprep.subr.bf16.mxu0 0
  %2620 = vmatpush1.bf16.msra.mxu0 0
  %2621 = vmatprep.subr.bf16.mxu0 0
  %2622 = vmatpush1.bf16.msra.mxu0 0
  %2623 = vmatprep.subr.bf16.mxu0 0
  %2624 = vmatpush1.bf16.msra.mxu0 0
  %2625 = vmatprep.subr.bf16.mxu0 0
  %2626 = vmatpush1.bf16.msra.mxu0 0
  %2627 = vmatprep.subr.bf16.mxu0 0
  %2628 = vmatpush1.bf16.msra.mxu0 0
  %2629 = vmatprep.subr.bf16.mxu0 0
  %2630 = vmatpush1.bf16.msra.mxu0 0
  %2631 = vmatprep.subr.bf16.mxu0 0
  %2632 = vmatpush1.bf16.msra.mxu0 0
  %2633 = vmatprep.subr.bf16.mxu0 0
  %2634 = vmatpush1.bf16.msra.mxu0 0
  %2635 = vmatprep.subr.bf16.mxu0 0
  %2636 = vmatpush1.bf16.msra.mxu0 0
  %2637 = vmatprep.subr.bf16.mxu0 0
  %2638 = vmatpush1.bf16.msra.mxu0 0
  %2639 = vmatprep.mubr.bf16.mxu0 0
  %2640 = vmatmul.mubr.bf16.gmra.mrb[0].mxu0 %v1629
  %v2641 = vpop.f32.mrb[0].mxu0
  %v2642 = vadd.f32 0.0, %v2641
  %v2643 = vpop.f32.mrb[0].mxu0
  %v2644 = vpop.f32.mrb[0].mxu0
  %v2645 = vadd.f32 0.0, %v2644
  %v2646 = vpop.f32.mrb[0].mxu0
  %2647 = vmatprep.mubr.bf16.mxu0 0
  %2648 = vmatmul.mubr.bf16.gmra.mrb[0].mxu0 %v1632
  %v2649 = vpop.f32.mrb[0].mxu0
  %v2650 = vadd.f32 0.0, %v2649
  %v2651 = vpop.f32.mrb[0].mxu0
  %v2652 = vpop.f32.mrb[0].mxu0
  %v2653 = vadd.f32 0.0, %v2652
  %v2654 = vpop.f32.mrb[0].mxu0
  %2655 = vmatprep.mubr.bf16.mxu0 0
  %2656 = vmatmul.mubr.bf16.gmra.mrb[0].mxu0 %v1635
  %v2657 = vpop.f32.mrb[0].mxu0
  %v2658 = vadd.f32 0.0, %v2657
  %v2659 = vpop.f32.mrb[0].mxu0
  %v2660 = vpop.f32.mrb[0].mxu0
  %v2661 = vadd.f32 0.0, %v2660
  %v2662 = vpop.f32.mrb[0].mxu0
  %2663 = vmatprep.mubr.bf16.mxu0 0
  %2664 = vmatmul.mubr.bf16.gmra.mrb[0].mxu0 %v1638
  %v2665 = vpop.f32.mrb[0].mxu0
  %v2666 = vadd.f32 0.0, %v2665
  %v2667 = vpop.f32.mrb[0].mxu0
  %v2668 = vpop.f32.mrb[0].mxu0
  %v2669 = vadd.f32 0.0, %v2668
  %v2670 = vpop.f32.mrb[0].mxu0
  %2671 = vmatprep.mubr.bf16.mxu0 0
  %2672 = vmatmul.mubr.bf16.gmra.mrb[0].mxu0 %v1641
  %v2673 = vpop.f32.mrb[0].mxu0
  %v2674 = vadd.f32 0.0, %v2673
  %v2675 = vpop.f32.mrb[0].mxu0
  %v2676 = vpop.f32.mrb[0].mxu0
  %v2677 = vadd.f32 0.0, %v2676
  %v2678 = vpop.f32.mrb[0].mxu0
  %2679 = vmatprep.mubr.bf16.mxu0 0
  %2680 = vmatmul.mubr.bf16.gmra.mrb[0].mxu0 %v1644
  %v2681 = vpop.f32.mrb[0].mxu0
  %v2682 = vadd.f32 0.0, %v2681
  %v2683 = vpop.f32.mrb[0].mxu0
  %v2684 = vpop.f32.mrb[0].mxu0
  %v2685 = vadd.f32 0.0, %v2684
  %v2686 = vpop.f32.mrb[0].mxu0
  %2687 = vmatprep.mubr.bf16.mxu0 0
  %2688 = vmatmul.mubr.bf16.gmra.mrb[0].mxu0 %v1647
  %v2689 = vpop.f32.mrb[0].mxu0
  %v2690 = vadd.f32 0.0, %v2689
  %v2691 = vpop.f32.mrb[0].mxu0
  %v2692 = vpop.f32.mrb[0].mxu0
  %v2693 = vadd.f32 0.0, %v2692
  %v2694 = vpop.f32.mrb[0].mxu0
  %2695 = vmatprep.mubr.bf16.mxu0 0
  %2696 = vmatmul.mubr.bf16.gmra.mrb[0].mxu0 %v1650
  %v2697 = vpop.f32.mrb[0].mxu0
  %v2698 = vadd.f32 0.0, %v2697
  %v2699 = vpop.f32.mrb[0].mxu0
  %v2700 = vpop.f32.mrb[0].mxu0
  %v2701 = vadd.f32 0.0, %v2700
  %v2702 = vpop.f32.mrb[0].mxu0
  %2703 = vdwg.mxu0
  %v2704 = vadd.f32 %v2545, %v2642
  %v2705 = vadd.f32 %v2548, %v2645
  %v2706 = vadd.f32 %v2553, %v2650
  %v2707 = vadd.f32 %v2556, %v2653
  %v2708 = vadd.f32 %v2561, %v2658
  %v2709 = vadd.f32 %v2564, %v2661
  %v2710 = vadd.f32 %v2569, %v2666
  %v2711 = vadd.f32 %v2572, %v2669
  %v2712 = vadd.f32 %v2577, %v2674
  %v2713 = vadd.f32 %v2580, %v2677
  %v2714 = vadd.f32 %v2585, %v2682
  %v2715 = vadd.f32 %v2588, %v2685
  %v2716 = vadd.f32 %v2593, %v2690
  %v2717 = vadd.f32 %v2596, %v2693
  %v2718 = vadd.f32 %v2601, %v2698
  %v2719 = vadd.f32 %v2604, %v2701
  %2720 = vmatprep.subr.bf16.mxu0 0
  %2721 = vmatpush1.bf16.msra.mxu0 %v784
  %2722 = vmatprep.subr.bf16.mxu0 0
  %2723 = vmatpush1.bf16.msra.mxu0 %v785
  %2724 = vmatprep.subr.bf16.mxu0 0
  %2725 = vmatpush1.bf16.msra.mxu0 %v786
  %2726 = vmatprep.subr.bf16.mxu0 0
  %2727 = vmatpush1.bf16.msra.mxu0 %v787
  %2728 = vmatprep.subr.bf16.mxu0 0
  %2729 = vmatpush1.bf16.msra.mxu0 0
  %2730 = vmatprep.subr.bf16.mxu0 0
  %2731 = vmatpush1.bf16.msra.mxu0 0
  %2732 = vmatprep.subr.bf16.mxu0 0
  %2733 = vmatpush1.bf16.msra.mxu0 0
  %2734 = vmatprep.subr.bf16.mxu0 0
  %2735 = vmatpush1.bf16.msra.mxu0 0
  %2736 = vmatprep.subr.bf16.mxu0 0
  %2737 = vmatpush1.bf16.msra.mxu0 0
  %2738 = vmatprep.subr.bf16.mxu0 0
  %2739 = vmatpush1.bf16.msra.mxu0 0
  %2740 = vmatprep.subr.bf16.mxu0 0
  %2741 = vmatpush1.bf16.msra.mxu0 0
  %2742 = vmatprep.subr.bf16.mxu0 0
  %2743 = vmatpush1.bf16.msra.mxu0 0
  %2744 = vmatprep.subr.bf16.mxu0 0
  %2745 = vmatpush1.bf16.msra.mxu0 0
  %2746 = vmatprep.subr.bf16.mxu0 0
  %2747 = vmatpush1.bf16.msra.mxu0 0
  %2748 = vmatprep.subr.bf16.mxu0 0
  %2749 = vmatpush1.bf16.msra.mxu0 0
  %2750 = vmatprep.subr.bf16.mxu0 0
  %2751 = vmatpush1.bf16.msra.mxu0 0
  %2752 = vmatprep.mubr.bf16.mxu0 0
  %2753 = vmatmul.mubr.bf16.gmra.mrb[0].mxu0 %v2261
  %v2754 = vpop.f32.mrb[0].mxu0
  %v2755 = vadd.f32 0.0, %v2754
  %v2756 = vpop.f32.mrb[0].mxu0
  %v2757 = vpop.f32.mrb[0].mxu0
  %v2758 = vadd.f32 0.0, %v2757
  %v2759 = vpop.f32.mrb[0].mxu0
  %2760 = vmatprep.mubr.bf16.mxu0 0
  %2761 = vmatmul.mubr.bf16.gmra.mrb[0].mxu0 %v2264
  %v2762 = vpop.f32.mrb[0].mxu0
  %v2763 = vadd.f32 0.0, %v2762
  %v2764 = vpop.f32.mrb[0].mxu0
  %v2765 = vpop.f32.mrb[0].mxu0
  %v2766 = vadd.f32 0.0, %v2765
  %v2767 = vpop.f32.mrb[0].mxu0
  %2768 = vmatprep.mubr.bf16.mxu0 0
  %2769 = vmatmul.mubr.bf16.gmra.mrb[0].mxu0 %v2267
  %v2770 = vpop.f32.mrb[0].mxu0
  %v2771 = vadd.f32 0.0, %v2770
  %v2772 = vpop.f32.mrb[0].mxu0
  %v2773 = vpop.f32.mrb[0].mxu0
  %v2774 = vadd.f32 0.0, %v2773
  %v2775 = vpop.f32.mrb[0].mxu0
  %2776 = vmatprep.mubr.bf16.mxu0 0
  %2777 = vmatmul.mubr.bf16.gmra.mrb[0].mxu0 %v2270
  %v2778 = vpop.f32.mrb[0].mxu0
  %v2779 = vadd.f32 0.0, %v2778
  %v2780 = vpop.f32.mrb[0].mxu0
  %v2781 = vpop.f32.mrb[0].mxu0
  %v2782 = vadd.f32 0.0, %v2781
  %v2783 = vpop.f32.mrb[0].mxu0
  %2784 = vmatprep.mubr.bf16.mxu0 0
  %2785 = vmatmul.mubr.bf16.gmra.mrb[0].mxu0 %v2273
  %v2786 = vpop.f32.mrb[0].mxu0
  %v2787 = vadd.f32 0.0, %v2786
  %v2788 = vpop.f32.mrb[0].mxu0
  %v2789 = vpop.f32.mrb[0].mxu0
  %v2790 = vadd.f32 0.0, %v2789
  %v2791 = vpop.f32.mrb[0].mxu0
  %2792 = vmatprep.mubr.bf16.mxu0 0
  %2793 = vmatmul.mubr.bf16.gmra.mrb[0].mxu0 %v2276
  %v2794 = vpop.f32.mrb[0].mxu0
  %v2795 = vadd.f32 0.0, %v2794
  %v2796 = vpop.f32.mrb[0].mxu0
  %v2797 = vpop.f32.mrb[0].mxu0
  %v2798 = vadd.f32 0.0, %v2797
  %v2799 = vpop.f32.mrb[0].mxu0
  %2800 = vmatprep.mubr.bf16.mxu0 0
  %2801 = vmatmul.mubr.bf16.gmra.mrb[0].mxu0 %v2279
  %v2802 = vpop.f32.mrb[0].mxu0
  %v2803 = vadd.f32 0.0, %v2802
  %v2804 = vpop.f32.mrb[0].mxu0
  %v2805 = vpop.f32.mrb[0].mxu0
  %v2806 = vadd.f32 0.0, %v2805
  %v2807 = vpop.f32.mrb[0].mxu0
  %2808 = vmatprep.mubr.bf16.mxu0 0
  %2809 = vmatmul.mubr.bf16.gmra.mrb[0].mxu0 %v2282
  %v2810 = vpop.f32.mrb[0].mxu0
  %v2811 = vadd.f32 0.0, %v2810
  %v2812 = vpop.f32.mrb[0].mxu0
  %v2813 = vpop.f32.mrb[0].mxu0
  %v2814 = vadd.f32 0.0, %v2813
  %v2815 = vpop.f32.mrb[0].mxu0
  %2816 = vdwg.mxu0
  %v2817 = vadd.f32 %v2704, %v2755
  %v2818 = vadd.f32 %v2705, %v2758
  %v2819 = vadd.f32 %v2706, %v2763
  %v2820 = vadd.f32 %v2707, %v2766
  %v2821 = vadd.f32 %v2708, %v2771
  %v2822 = vadd.f32 %v2709, %v2774
  %v2823 = vadd.f32 %v2710, %v2779
  %v2824 = vadd.f32 %v2711, %v2782
  %v2825 = vadd.f32 %v2712, %v2787
  %v2826 = vadd.f32 %v2713, %v2790
  %v2827 = vadd.f32 %v2714, %v2795
  %v2828 = vadd.f32 %v2715, %v2798
  %v2829 = vadd.f32 %v2716, %v2803
  %v2830 = vadd.f32 %v2717, %v2806
  %v2831 = vadd.f32 %v2718, %v2811
  %v2832 = vadd.f32 %v2719, %v2814
  %s2833 = sadd.s32 0, 112
  %s2834 = smul.addr %s2833, 4
  %s2835 = scalar_lea.vmem %s0, %s2834
  %v2836 = vld [vmem:[%s2835] sm:$0xf]
  %v2837 = vld [vmem:[%s2835 + $0x4] sm:$0xf]
  %v2838 = vld [vmem:[%s2835 + $0x8] sm:$0xf]
  %v2839 = vld [vmem:[%s2835 + $0xc] sm:$0xf]
  %v2840 = vld [vmem:[%s2835 + $0x10] sm:$0xf]
  %v2841 = vld [vmem:[%s2835 + $0x14] sm:$0xf]
  %v2842 = vld [vmem:[%s2835 + $0x18] sm:$0xf]
  %v2843 = vld [vmem:[%s2835 + $0x1c] sm:$0xf]
  %v2844 = vld [vmem:[%s2835 + $0x20] sm:$0xf]
  %v2845 = vld [vmem:[%s2835 + $0x24] sm:$0xf]
  %v2846 = vld [vmem:[%s2835 + $0x28] sm:$0xf]
  %v2847 = vld [vmem:[%s2835 + $0x2c] sm:$0xf]
  %v2848 = vld [vmem:[%s2835 + $0x30] sm:$0xf]
  %v2849 = vld [vmem:[%s2835 + $0x34] sm:$0xf]
  %v2850 = vld [vmem:[%s2835 + $0x38] sm:$0xf]
  %v2851 = vld [vmem:[%s2835 + $0x3c] sm:$0xf]
  %v2868 = vunpack.c.l.b16 %v2836
  %v2869 = vunpack.c.l.b16 %v2837
  %v2870 = vunpack.c.l.b16 %v2838
  %v2871 = vunpack.c.l.b16 %v2839
  %v2872 = vunpack.c.l.b16 %v2840
  %v2873 = vunpack.c.l.b16 %v2841
  %v2874 = vunpack.c.l.b16 %v2842
  %v2875 = vunpack.c.l.b16 %v2843
  %v2876 = vunpack.c.l.b16 %v2844
  %v2877 = vunpack.c.l.b16 %v2845
  %v2878 = vunpack.c.l.b16 %v2846
  %v2879 = vunpack.c.l.b16 %v2847
  %v2880 = vunpack.c.l.b16 %v2848
  %v2881 = vunpack.c.l.b16 %v2849
  %v2882 = vunpack.c.l.b16 %v2850
  %v2883 = vunpack.c.l.b16 %v2851
  %v2884 = vpack.c.b16 %v2869, %v2868
  %v2885 = vpack.c.b16 %v2871, %v2870
  %v2886 = vpack.c.b16 %v2873, %v2872
  %v2887 = vpack.c.b16 %v2875, %v2874
  %v2888 = vpack.c.b16 %v2877, %v2876
  %v2889 = vpack.c.b16 %v2879, %v2878
  %v2890 = vpack.c.b16 %v2881, %v2880
  %v2891 = vpack.c.b16 %v2883, %v2882
  %v2893 = vsel %vm182, %v2884, 0
  %v2896 = vsel %vm182, %v2885, 0
  %v2899 = vsel %vm182, %v2886, 0
  %v2902 = vsel %vm182, %v2887, 0
  %v2905 = vsel %vm182, %v2888, 0
  %v2908 = vsel %vm182, %v2889, 0
  %v2911 = vsel %vm182, %v2890, 0
  %v2914 = vsel %vm182, %v2891, 0
  %2916 = vmatprep.subr.bf16.mxu0 0
  %2917 = vmatpush1.bf16.msra.mxu0 %v1004
  %2918 = vmatprep.subr.bf16.mxu0 0
  %2919 = vmatpush1.bf16.msra.mxu0 %v1005
  %2920 = vmatprep.subr.bf16.mxu0 0
  %2921 = vmatpush1.bf16.msra.mxu0 %v1006
  %2922 = vmatprep.subr.bf16.mxu0 0
  %2923 = vmatpush1.bf16.msra.mxu0 %v1007
  %2924 = vmatprep.subr.bf16.mxu0 0
  %2925 = vmatpush1.bf16.msra.mxu0 0
  %2926 = vmatprep.subr.bf16.mxu0 0
  %2927 = vmatpush1.bf16.msra.mxu0 0
  %2928 = vmatprep.subr.bf16.mxu0 0
  %2929 = vmatpush1.bf16.msra.mxu0 0
  %2930 = vmatprep.subr.bf16.mxu0 0
  %2931 = vmatpush1.bf16.msra.mxu0 0
  %2932 = vmatprep.subr.bf16.mxu0 0
  %2933 = vmatpush1.bf16.msra.mxu0 0
  %2934 = vmatprep.subr.bf16.mxu0 0
  %2935 = vmatpush1.bf16.msra.mxu0 0
  %2936 = vmatprep.subr.bf16.mxu0 0
  %2937 = vmatpush1.bf16.msra.mxu0 0
  %2938 = vmatprep.subr.bf16.mxu0 0
  %2939 = vmatpush1.bf16.msra.mxu0 0
  %2940 = vmatprep.subr.bf16.mxu0 0
  %2941 = vmatpush1.bf16.msra.mxu0 0
  %2942 = vmatprep.subr.bf16.mxu0 0
  %2943 = vmatpush1.bf16.msra.mxu0 0
  %2944 = vmatprep.subr.bf16.mxu0 0
  %2945 = vmatpush1.bf16.msra.mxu0 0
  %2946 = vmatprep.subr.bf16.mxu0 0
  %2947 = vmatpush1.bf16.msra.mxu0 0
  %2948 = vmatprep.mubr.bf16.mxu0 0
  %2949 = vmatmul.mubr.bf16.gmra.mrb[0].mxu0 %v2893
  %v2950 = vpop.f32.mrb[0].mxu0
  %v2951 = vadd.f32 0.0, %v2950
  %v2952 = vpop.f32.mrb[0].mxu0
  %v2953 = vpop.f32.mrb[0].mxu0
  %v2954 = vadd.f32 0.0, %v2953
  %v2955 = vpop.f32.mrb[0].mxu0
  %2956 = vmatprep.mubr.bf16.mxu0 0
  %2957 = vmatmul.mubr.bf16.gmra.mrb[0].mxu0 %v2896
  %v2958 = vpop.f32.mrb[0].mxu0
  %v2959 = vadd.f32 0.0, %v2958
  %v2960 = vpop.f32.mrb[0].mxu0
  %v2961 = vpop.f32.mrb[0].mxu0
  %v2962 = vadd.f32 0.0, %v2961
  %v2963 = vpop.f32.mrb[0].mxu0
  %2964 = vmatprep.mubr.bf16.mxu0 0
  %2965 = vmatmul.mubr.bf16.gmra.mrb[0].mxu0 %v2899
  %v2966 = vpop.f32.mrb[0].mxu0
  %v2967 = vadd.f32 0.0, %v2966
  %v2968 = vpop.f32.mrb[0].mxu0
  %v2969 = vpop.f32.mrb[0].mxu0
  %v2970 = vadd.f32 0.0, %v2969
  %v2971 = vpop.f32.mrb[0].mxu0
  %2972 = vmatprep.mubr.bf16.mxu0 0
  %2973 = vmatmul.mubr.bf16.gmra.mrb[0].mxu0 %v2902
  %v2974 = vpop.f32.mrb[0].mxu0
  %v2975 = vadd.f32 0.0, %v2974
  %v2976 = vpop.f32.mrb[0].mxu0
  %v2977 = vpop.f32.mrb[0].mxu0
  %v2978 = vadd.f32 0.0, %v2977
  %v2979 = vpop.f32.mrb[0].mxu0
  %2980 = vmatprep.mubr.bf16.mxu0 0
  %2981 = vmatmul.mubr.bf16.gmra.mrb[0].mxu0 %v2905
  %v2982 = vpop.f32.mrb[0].mxu0
  %v2983 = vadd.f32 0.0, %v2982
  %v2984 = vpop.f32.mrb[0].mxu0
  %v2985 = vpop.f32.mrb[0].mxu0
  %v2986 = vadd.f32 0.0, %v2985
  %v2987 = vpop.f32.mrb[0].mxu0
  %2988 = vmatprep.mubr.bf16.mxu0 0
  %2989 = vmatmul.mubr.bf16.gmra.mrb[0].mxu0 %v2908
  %v2990 = vpop.f32.mrb[0].mxu0
  %v2991 = vadd.f32 0.0, %v2990
  %v2992 = vpop.f32.mrb[0].mxu0
  %v2993 = vpop.f32.mrb[0].mxu0
  %v2994 = vadd.f32 0.0, %v2993
  %v2995 = vpop.f32.mrb[0].mxu0
  %2996 = vmatprep.mubr.bf16.mxu0 0
  %2997 = vmatmul.mubr.bf16.gmra.mrb[0].mxu0 %v2911
  %v2998 = vpop.f32.mrb[0].mxu0
  %v2999 = vadd.f32 0.0, %v2998
  %v3000 = vpop.f32.mrb[0].mxu0
  %v3001 = vpop.f32.mrb[0].mxu0
  %v3002 = vadd.f32 0.0, %v3001
  %v3003 = vpop.f32.mrb[0].mxu0
  %3004 = vmatprep.mubr.bf16.mxu0 0
  %3005 = vmatmul.mubr.bf16.gmra.mrb[0].mxu0 %v2914
  %v3006 = vpop.f32.mrb[0].mxu0
  %v3007 = vadd.f32 0.0, %v3006
  %v3008 = vpop.f32.mrb[0].mxu0
  %v3009 = vpop.f32.mrb[0].mxu0
  %v3010 = vadd.f32 0.0, %v3009
  %v3011 = vpop.f32.mrb[0].mxu0
  %3012 = vdwg.mxu0
  %v3013 = vadd.f32 %v2817, %v2951
  %v3014 = vadd.f32 %v2818, %v2954
  %v3015 = vadd.f32 %v2819, %v2959
  %v3016 = vadd.f32 %v2820, %v2962
  %v3017 = vadd.f32 %v2821, %v2967
  %v3018 = vadd.f32 %v2822, %v2970
  %v3019 = vadd.f32 %v2823, %v2975
  %v3020 = vadd.f32 %v2824, %v2978
  %v3021 = vadd.f32 %v2825, %v2983
  %v3022 = vadd.f32 %v2826, %v2986
  %v3023 = vadd.f32 %v2827, %v2991
  %v3024 = vadd.f32 %v2828, %v2994
  %v3025 = vadd.f32 %v2829, %v2999
  %v3026 = vadd.f32 %v2830, %v3002
  %v3027 = vadd.f32 %v2831, %v3007
  %v3028 = vadd.f32 %v2832, %v3010
  %v3029 = vmax.f32 %v2397, %v3013
  %v3030 = vmax.f32 %v2398, %v3014
  %v3031 = vmax.f32 %v2399, %v3015
  %v3032 = vmax.f32 %v2400, %v3016
  %v3033 = vmax.f32 %v2401, %v3017
  %v3034 = vmax.f32 %v2402, %v3018
  %v3035 = vmax.f32 %v2403, %v3019
  %v3036 = vmax.f32 %v2404, %v3020
  %v3037 = vmax.f32 %v2405, %v3021
  %v3038 = vmax.f32 %v2406, %v3022
  %v3039 = vmax.f32 %v2407, %v3023
  %v3040 = vmax.f32 %v2408, %v3024
  %v3041 = vmax.f32 %v2409, %v3025
  %v3042 = vmax.f32 %v2410, %v3026
  %v3043 = vmax.f32 %v2411, %v3027
  %v3044 = vmax.f32 %v2412, %v3028
  %3045 = vmatprep.subr.bf16.mxu0 0
  %3046 = vmatpush1.bf16.msra.mxu0 %v174
  %3047 = vmatprep.subr.bf16.mxu0 0
  %3048 = vmatpush1.bf16.msra.mxu0 %v175
  %3049 = vmatprep.subr.bf16.mxu0 0
  %3050 = vmatpush1.bf16.msra.mxu0 %v176
  %3051 = vmatprep.subr.bf16.mxu0 0
  %3052 = vmatpush1.bf16.msra.mxu0 %v177
  %3053 = vmatprep.subr.bf16.mxu0 0
  %3054 = vmatpush1.bf16.msra.mxu0 0
  %3055 = vmatprep.subr.bf16.mxu0 0
  %3056 = vmatpush1.bf16.msra.mxu0 0
  %3057 = vmatprep.subr.bf16.mxu0 0
  %3058 = vmatpush1.bf16.msra.mxu0 0
  %3059 = vmatprep.subr.bf16.mxu0 0
  %3060 = vmatpush1.bf16.msra.mxu0 0
  %3061 = vmatprep.subr.bf16.mxu0 0
  %3062 = vmatpush1.bf16.msra.mxu0 0
  %3063 = vmatprep.subr.bf16.mxu0 0
  %3064 = vmatpush1.bf16.msra.mxu0 0
  %3065 = vmatprep.subr.bf16.mxu0 0
  %3066 = vmatpush1.bf16.msra.mxu0 0
  %3067 = vmatprep.subr.bf16.mxu0 0
  %3068 = vmatpush1.bf16.msra.mxu0 0
  %3069 = vmatprep.subr.bf16.mxu0 0
  %3070 = vmatpush1.bf16.msra.mxu0 0
  %3071 = vmatprep.subr.bf16.mxu0 0
  %3072 = vmatpush1.bf16.msra.mxu0 0
  %3073 = vmatprep.subr.bf16.mxu0 0
  %3074 = vmatpush1.bf16.msra.mxu0 0
  %3075 = vmatprep.subr.bf16.mxu0 0
  %3076 = vmatpush1.bf16.msra.mxu0 0
  %3077 = vmatprep.mubr.bf16.mxu0 0
  %3078 = vmatmul.mubr.bf16.gmra.mrb[0].mxu0 %v1629
  %v3079 = vpop.f32.mrb[0].mxu0
  %v3080 = vadd.f32 0.0, %v3079
  %v3081 = vpop.f32.mrb[0].mxu0
  %v3082 = vpop.f32.mrb[0].mxu0
  %v3083 = vadd.f32 0.0, %v3082
  %v3084 = vpop.f32.mrb[0].mxu0
  %3085 = vmatprep.mubr.bf16.mxu0 0
  %3086 = vmatmul.mubr.bf16.gmra.mrb[0].mxu0 %v1632
  %v3087 = vpop.f32.mrb[0].mxu0
  %v3088 = vadd.f32 0.0, %v3087
  %v3089 = vpop.f32.mrb[0].mxu0
  %v3090 = vpop.f32.mrb[0].mxu0
  %v3091 = vadd.f32 0.0, %v3090
  %v3092 = vpop.f32.mrb[0].mxu0
  %3093 = vmatprep.mubr.bf16.mxu0 0
  %3094 = vmatmul.mubr.bf16.gmra.mrb[0].mxu0 %v1635
  %v3095 = vpop.f32.mrb[0].mxu0
  %v3096 = vadd.f32 0.0, %v3095
  %v3097 = vpop.f32.mrb[0].mxu0
  %v3098 = vpop.f32.mrb[0].mxu0
  %v3099 = vadd.f32 0.0, %v3098
  %v3100 = vpop.f32.mrb[0].mxu0
  %3101 = vmatprep.mubr.bf16.mxu0 0
  %3102 = vmatmul.mubr.bf16.gmra.mrb[0].mxu0 %v1638
  %v3103 = vpop.f32.mrb[0].mxu0
  %v3104 = vadd.f32 0.0, %v3103
  %v3105 = vpop.f32.mrb[0].mxu0
  %v3106 = vpop.f32.mrb[0].mxu0
  %v3107 = vadd.f32 0.0, %v3106
  %v3108 = vpop.f32.mrb[0].mxu0
  %3109 = vmatprep.mubr.bf16.mxu0 0
  %3110 = vmatmul.mubr.bf16.gmra.mrb[0].mxu0 %v1641
  %v3111 = vpop.f32.mrb[0].mxu0
  %v3112 = vadd.f32 0.0, %v3111
  %v3113 = vpop.f32.mrb[0].mxu0
  %v3114 = vpop.f32.mrb[0].mxu0
  %v3115 = vadd.f32 0.0, %v3114
  %v3116 = vpop.f32.mrb[0].mxu0
  %3117 = vmatprep.mubr.bf16.mxu0 0
  %3118 = vmatmul.mubr.bf16.gmra.mrb[0].mxu0 %v1644
  %v3119 = vpop.f32.mrb[0].mxu0
  %v3120 = vadd.f32 0.0, %v3119
  %v3121 = vpop.f32.mrb[0].mxu0
  %v3122 = vpop.f32.mrb[0].mxu0
  %v3123 = vadd.f32 0.0, %v3122
  %v3124 = vpop.f32.mrb[0].mxu0
  %3125 = vmatprep.mubr.bf16.mxu0 0
  %3126 = vmatmul.mubr.bf16.gmra.mrb[0].mxu0 %v1647
  %v3127 = vpop.f32.mrb[0].mxu0
  %v3128 = vadd.f32 0.0, %v3127
  %v3129 = vpop.f32.mrb[0].mxu0
  %v3130 = vpop.f32.mrb[0].mxu0
  %v3131 = vadd.f32 0.0, %v3130
  %v3132 = vpop.f32.mrb[0].mxu0
  %3133 = vmatprep.mubr.bf16.mxu0 0
  %3134 = vmatmul.mubr.bf16.gmra.mrb[0].mxu0 %v1650
  %v3135 = vpop.f32.mrb[0].mxu0
  %v3136 = vadd.f32 0.0, %v3135
  %v3137 = vpop.f32.mrb[0].mxu0
  %v3138 = vpop.f32.mrb[0].mxu0
  %v3139 = vadd.f32 0.0, %v3138
  %v3140 = vpop.f32.mrb[0].mxu0
  %3141 = vdwg.mxu0
  %3142 = vmatprep.subr.bf16.mxu0 0
  %3143 = vmatpush1.bf16.msra.mxu0 %v360
  %3144 = vmatprep.subr.bf16.mxu0 0
  %3145 = vmatpush1.bf16.msra.mxu0 %v361
  %3146 = vmatprep.subr.bf16.mxu0 0
  %3147 = vmatpush1.bf16.msra.mxu0 %v362
  %3148 = vmatprep.subr.bf16.mxu0 0
  %3149 = vmatpush1.bf16.msra.mxu0 %v363
  %3150 = vmatprep.subr.bf16.mxu0 0
  %3151 = vmatpush1.bf16.msra.mxu0 0
  %3152 = vmatprep.subr.bf16.mxu0 0
  %3153 = vmatpush1.bf16.msra.mxu0 0
  %3154 = vmatprep.subr.bf16.mxu0 0
  %3155 = vmatpush1.bf16.msra.mxu0 0
  %3156 = vmatprep.subr.bf16.mxu0 0
  %3157 = vmatpush1.bf16.msra.mxu0 0
  %3158 = vmatprep.subr.bf16.mxu0 0
  %3159 = vmatpush1.bf16.msra.mxu0 0
  %3160 = vmatprep.subr.bf16.mxu0 0
  %3161 = vmatpush1.bf16.msra.mxu0 0
  %3162 = vmatprep.subr.bf16.mxu0 0
  %3163 = vmatpush1.bf16.msra.mxu0 0
  %3164 = vmatprep.subr.bf16.mxu0 0
  %3165 = vmatpush1.bf16.msra.mxu0 0
  %3166 = vmatprep.subr.bf16.mxu0 0
  %3167 = vmatpush1.bf16.msra.mxu0 0
  %3168 = vmatprep.subr.bf16.mxu0 0
  %3169 = vmatpush1.bf16.msra.mxu0 0
  %3170 = vmatprep.subr.bf16.mxu0 0
  %3171 = vmatpush1.bf16.msra.mxu0 0
  %3172 = vmatprep.subr.bf16.mxu0 0
  %3173 = vmatpush1.bf16.msra.mxu0 0
  %3174 = vmatprep.mubr.bf16.mxu0 0
  %3175 = vmatmul.mubr.bf16.gmra.mrb[0].mxu0 %v1013
  %v3176 = vpop.f32.mrb[0].mxu0
  %v3177 = vadd.f32 %v3080, %v3176
  %v3178 = vpop.f32.mrb[0].mxu0
  %v3179 = vpop.f32.mrb[0].mxu0
  %v3180 = vadd.f32 %v3083, %v3179
  %v3181 = vpop.f32.mrb[0].mxu0
  %3182 = vmatprep.mubr.bf16.mxu0 0
  %3183 = vmatmul.mubr.bf16.gmra.mrb[0].mxu0 %v1016
  %v3184 = vpop.f32.mrb[0].mxu0
  %v3185 = vadd.f32 %v3088, %v3184
  %v3186 = vpop.f32.mrb[0].mxu0
  %v3187 = vpop.f32.mrb[0].mxu0
  %v3188 = vadd.f32 %v3091, %v3187
  %v3189 = vpop.f32.mrb[0].mxu0
  %3190 = vmatprep.mubr.bf16.mxu0 0
  %3191 = vmatmul.mubr.bf16.gmra.mrb[0].mxu0 %v1019
  %v3192 = vpop.f32.mrb[0].mxu0
  %v3193 = vadd.f32 %v3096, %v3192
  %v3194 = vpop.f32.mrb[0].mxu0
  %v3195 = vpop.f32.mrb[0].mxu0
  %v3196 = vadd.f32 %v3099, %v3195
  %v3197 = vpop.f32.mrb[0].mxu0
  %3198 = vmatprep.mubr.bf16.mxu0 0
  %3199 = vmatmul.mubr.bf16.gmra.mrb[0].mxu0 %v1022
  %v3200 = vpop.f32.mrb[0].mxu0
  %v3201 = vadd.f32 %v3104, %v3200
  %v3202 = vpop.f32.mrb[0].mxu0
  %v3203 = vpop.f32.mrb[0].mxu0
  %v3204 = vadd.f32 %v3107, %v3203
  %v3205 = vpop.f32.mrb[0].mxu0
  %3206 = vmatprep.mubr.bf16.mxu0 0
  %3207 = vmatmul.mubr.bf16.gmra.mrb[0].mxu0 %v1025
  %v3208 = vpop.f32.mrb[0].mxu0
  %v3209 = vadd.f32 %v3112, %v3208
  %v3210 = vpop.f32.mrb[0].mxu0
  %v3211 = vpop.f32.mrb[0].mxu0
  %v3212 = vadd.f32 %v3115, %v3211
  %v3213 = vpop.f32.mrb[0].mxu0
  %3214 = vmatprep.mubr.bf16.mxu0 0
  %3215 = vmatmul.mubr.bf16.gmra.mrb[0].mxu0 %v1028
  %v3216 = vpop.f32.mrb[0].mxu0
  %v3217 = vadd.f32 %v3120, %v3216
  %v3218 = vpop.f32.mrb[0].mxu0
  %v3219 = vpop.f32.mrb[0].mxu0
  %v3220 = vadd.f32 %v3123, %v3219
  %v3221 = vpop.f32.mrb[0].mxu0
  %3222 = vmatprep.mubr.bf16.mxu0 0
  %3223 = vmatmul.mubr.bf16.gmra.mrb[0].mxu0 %v1031
  %v3224 = vpop.f32.mrb[0].mxu0
  %v3225 = vadd.f32 %v3128, %v3224
  %v3226 = vpop.f32.mrb[0].mxu0
  %v3227 = vpop.f32.mrb[0].mxu0
  %v3228 = vadd.f32 %v3131, %v3227
  %v3229 = vpop.f32.mrb[0].mxu0
  %3230 = vmatprep.mubr.bf16.mxu0 0
  %3231 = vmatmul.mubr.bf16.gmra.mrb[0].mxu0 %v1034
  %v3232 = vpop.f32.mrb[0].mxu0
  %v3233 = vadd.f32 %v3136, %v3232
  %v3234 = vpop.f32.mrb[0].mxu0
  %v3235 = vpop.f32.mrb[0].mxu0
  %v3236 = vadd.f32 %v3139, %v3235
  %v3237 = vpop.f32.mrb[0].mxu0
  %3238 = vdwg.mxu0
  %3239 = vmatprep.subr.bf16.mxu0 0
  %3240 = vmatpush1.bf16.msra.mxu0 %v564
  %3241 = vmatprep.subr.bf16.mxu0 0
  %3242 = vmatpush1.bf16.msra.mxu0 %v565
  %3243 = vmatprep.subr.bf16.mxu0 0
  %3244 = vmatpush1.bf16.msra.mxu0 %v566
  %3245 = vmatprep.subr.bf16.mxu0 0
  %3246 = vmatpush1.bf16.msra.mxu0 %v567
  %3247 = vmatprep.subr.bf16.mxu0 0
  %3248 = vmatpush1.bf16.msra.mxu0 0
  %3249 = vmatprep.subr.bf16.mxu0 0
  %3250 = vmatpush1.bf16.msra.mxu0 0
  %3251 = vmatprep.subr.bf16.mxu0 0
  %3252 = vmatpush1.bf16.msra.mxu0 0
  %3253 = vmatprep.subr.bf16.mxu0 0
  %3254 = vmatpush1.bf16.msra.mxu0 0
  %3255 = vmatprep.subr.bf16.mxu0 0
  %3256 = vmatpush1.bf16.msra.mxu0 0
  %3257 = vmatprep.subr.bf16.mxu0 0
  %3258 = vmatpush1.bf16.msra.mxu0 0
  %3259 = vmatprep.subr.bf16.mxu0 0
  %3260 = vmatpush1.bf16.msra.mxu0 0
  %3261 = vmatprep.subr.bf16.mxu0 0
  %3262 = vmatpush1.bf16.msra.mxu0 0
  %3263 = vmatprep.subr.bf16.mxu0 0
  %3264 = vmatpush1.bf16.msra.mxu0 0
  %3265 = vmatprep.subr.bf16.mxu0 0
  %3266 = vmatpush1.bf16.msra.mxu0 0
  %3267 = vmatprep.subr.bf16.mxu0 0
  %3268 = vmatpush1.bf16.msra.mxu0 0
  %3269 = vmatprep.subr.bf16.mxu0 0
  %3270 = vmatpush1.bf16.msra.mxu0 0
  %3271 = vmatprep.mubr.bf16.mxu0 0
  %3272 = vmatmul.mubr.bf16.gmra.mrb[0].mxu0 %v2261
  %v3273 = vpop.f32.mrb[0].mxu0
  %v3274 = vadd.f32 0.0, %v3273
  %v3275 = vpop.f32.mrb[0].mxu0
  %v3276 = vpop.f32.mrb[0].mxu0
  %v3277 = vadd.f32 0.0, %v3276
  %v3278 = vpop.f32.mrb[0].mxu0
  %3279 = vmatprep.mubr.bf16.mxu0 0
  %3280 = vmatmul.mubr.bf16.gmra.mrb[0].mxu0 %v2264
  %v3281 = vpop.f32.mrb[0].mxu0
  %v3282 = vadd.f32 0.0, %v3281
  %v3283 = vpop.f32.mrb[0].mxu0
  %v3284 = vpop.f32.mrb[0].mxu0
  %v3285 = vadd.f32 0.0, %v3284
  %v3286 = vpop.f32.mrb[0].mxu0
  %3287 = vmatprep.mubr.bf16.mxu0 0
  %3288 = vmatmul.mubr.bf16.gmra.mrb[0].mxu0 %v2267
  %v3289 = vpop.f32.mrb[0].mxu0
  %v3290 = vadd.f32 0.0, %v3289
  %v3291 = vpop.f32.mrb[0].mxu0
  %v3292 = vpop.f32.mrb[0].mxu0
  %v3293 = vadd.f32 0.0, %v3292
  %v3294 = vpop.f32.mrb[0].mxu0
  %3295 = vmatprep.mubr.bf16.mxu0 0
  %3296 = vmatmul.mubr.bf16.gmra.mrb[0].mxu0 %v2270
  %v3297 = vpop.f32.mrb[0].mxu0
  %v3298 = vadd.f32 0.0, %v3297
  %v3299 = vpop.f32.mrb[0].mxu0
  %v3300 = vpop.f32.mrb[0].mxu0
  %v3301 = vadd.f32 0.0, %v3300
  %v3302 = vpop.f32.mrb[0].mxu0
  %3303 = vmatprep.mubr.bf16.mxu0 0
  %3304 = vmatmul.mubr.bf16.gmra.mrb[0].mxu0 %v2273
  %v3305 = vpop.f32.mrb[0].mxu0
  %v3306 = vadd.f32 0.0, %v3305
  %v3307 = vpop.f32.mrb[0].mxu0
  %v3308 = vpop.f32.mrb[0].mxu0
  %v3309 = vadd.f32 0.0, %v3308
  %v3310 = vpop.f32.mrb[0].mxu0
  %3311 = vmatprep.mubr.bf16.mxu0 0
  %3312 = vmatmul.mubr.bf16.gmra.mrb[0].mxu0 %v2276
  %v3313 = vpop.f32.mrb[0].mxu0
  %v3314 = vadd.f32 0.0, %v3313
  %v3315 = vpop.f32.mrb[0].mxu0
  %v3316 = vpop.f32.mrb[0].mxu0
  %v3317 = vadd.f32 0.0, %v3316
  %v3318 = vpop.f32.mrb[0].mxu0
  %3319 = vmatprep.mubr.bf16.mxu0 0
  %3320 = vmatmul.mubr.bf16.gmra.mrb[0].mxu0 %v2279
  %v3321 = vpop.f32.mrb[0].mxu0
  %v3322 = vadd.f32 0.0, %v3321
  %v3323 = vpop.f32.mrb[0].mxu0
  %v3324 = vpop.f32.mrb[0].mxu0
  %v3325 = vadd.f32 0.0, %v3324
  %v3326 = vpop.f32.mrb[0].mxu0
  %3327 = vmatprep.mubr.bf16.mxu0 0
  %3328 = vmatmul.mubr.bf16.gmra.mrb[0].mxu0 %v2282
  %v3329 = vpop.f32.mrb[0].mxu0
  %v3330 = vadd.f32 0.0, %v3329
  %v3331 = vpop.f32.mrb[0].mxu0
  %v3332 = vpop.f32.mrb[0].mxu0
  %v3333 = vadd.f32 0.0, %v3332
  %v3334 = vpop.f32.mrb[0].mxu0
  %3335 = vdwg.mxu0
  %v3336 = vadd.f32 %v3177, %v3274
  %v3337 = vadd.f32 %v3180, %v3277
  %v3338 = vadd.f32 %v3185, %v3282
  %v3339 = vadd.f32 %v3188, %v3285
  %v3340 = vadd.f32 %v3193, %v3290
  %v3341 = vadd.f32 %v3196, %v3293
  %v3342 = vadd.f32 %v3201, %v3298
  %v3343 = vadd.f32 %v3204, %v3301
  %v3344 = vadd.f32 %v3209, %v3306
  %v3345 = vadd.f32 %v3212, %v3309
  %v3346 = vadd.f32 %v3217, %v3314
  %v3347 = vadd.f32 %v3220, %v3317
  %v3348 = vadd.f32 %v3225, %v3322
  %v3349 = vadd.f32 %v3228, %v3325
  %v3350 = vadd.f32 %v3233, %v3330
  %v3351 = vadd.f32 %v3236, %v3333
  %3352 = vmatprep.subr.bf16.mxu0 0
  %3353 = vmatpush1.bf16.msra.mxu0 %v784
  %3354 = vmatprep.subr.bf16.mxu0 0
  %3355 = vmatpush1.bf16.msra.mxu0 %v785
  %3356 = vmatprep.subr.bf16.mxu0 0
  %3357 = vmatpush1.bf16.msra.mxu0 %v786
  %3358 = vmatprep.subr.bf16.mxu0 0
  %3359 = vmatpush1.bf16.msra.mxu0 %v787
  %3360 = vmatprep.subr.bf16.mxu0 0
  %3361 = vmatpush1.bf16.msra.mxu0 0
  %3362 = vmatprep.subr.bf16.mxu0 0
  %3363 = vmatpush1.bf16.msra.mxu0 0
  %3364 = vmatprep.subr.bf16.mxu0 0
  %3365 = vmatpush1.bf16.msra.mxu0 0
  %3366 = vmatprep.subr.bf16.mxu0 0
  %3367 = vmatpush1.bf16.msra.mxu0 0
  %3368 = vmatprep.subr.bf16.mxu0 0
  %3369 = vmatpush1.bf16.msra.mxu0 0
  %3370 = vmatprep.subr.bf16.mxu0 0
  %3371 = vmatpush1.bf16.msra.mxu0 0
  %3372 = vmatprep.subr.bf16.mxu0 0
  %3373 = vmatpush1.bf16.msra.mxu0 0
  %3374 = vmatprep.subr.bf16.mxu0 0
  %3375 = vmatpush1.bf16.msra.mxu0 0
  %3376 = vmatprep.subr.bf16.mxu0 0
  %3377 = vmatpush1.bf16.msra.mxu0 0
  %3378 = vmatprep.subr.bf16.mxu0 0
  %3379 = vmatpush1.bf16.msra.mxu0 0
  %3380 = vmatprep.subr.bf16.mxu0 0
  %3381 = vmatpush1.bf16.msra.mxu0 0
  %3382 = vmatprep.subr.bf16.mxu0 0
  %3383 = vmatpush1.bf16.msra.mxu0 0
  %3384 = vmatprep.mubr.bf16.mxu0 0
  %3385 = vmatmul.mubr.bf16.gmra.mrb[0].mxu0 %v2893
  %v3386 = vpop.f32.mrb[0].mxu0
  %v3387 = vadd.f32 0.0, %v3386
  %v3388 = vpop.f32.mrb[0].mxu0
  %v3389 = vpop.f32.mrb[0].mxu0
  %v3390 = vadd.f32 0.0, %v3389
  %v3391 = vpop.f32.mrb[0].mxu0
  %3392 = vmatprep.mubr.bf16.mxu0 0
  %3393 = vmatmul.mubr.bf16.gmra.mrb[0].mxu0 %v2896
  %v3394 = vpop.f32.mrb[0].mxu0
  %v3395 = vadd.f32 0.0, %v3394
  %v3396 = vpop.f32.mrb[0].mxu0
  %v3397 = vpop.f32.mrb[0].mxu0
  %v3398 = vadd.f32 0.0, %v3397
  %v3399 = vpop.f32.mrb[0].mxu0
  %3400 = vmatprep.mubr.bf16.mxu0 0
  %3401 = vmatmul.mubr.bf16.gmra.mrb[0].mxu0 %v2899
  %v3402 = vpop.f32.mrb[0].mxu0
  %v3403 = vadd.f32 0.0, %v3402
  %v3404 = vpop.f32.mrb[0].mxu0
  %v3405 = vpop.f32.mrb[0].mxu0
  %v3406 = vadd.f32 0.0, %v3405
  %v3407 = vpop.f32.mrb[0].mxu0
  %3408 = vmatprep.mubr.bf16.mxu0 0
  %3409 = vmatmul.mubr.bf16.gmra.mrb[0].mxu0 %v2902
  %v3410 = vpop.f32.mrb[0].mxu0
  %v3411 = vadd.f32 0.0, %v3410
  %v3412 = vpop.f32.mrb[0].mxu0
  %v3413 = vpop.f32.mrb[0].mxu0
  %v3414 = vadd.f32 0.0, %v3413
  %v3415 = vpop.f32.mrb[0].mxu0
  %3416 = vmatprep.mubr.bf16.mxu0 0
  %3417 = vmatmul.mubr.bf16.gmra.mrb[0].mxu0 %v2905
  %v3418 = vpop.f32.mrb[0].mxu0
  %v3419 = vadd.f32 0.0, %v3418
  %v3420 = vpop.f32.mrb[0].mxu0
  %v3421 = vpop.f32.mrb[0].mxu0
  %v3422 = vadd.f32 0.0, %v3421
  %v3423 = vpop.f32.mrb[0].mxu0
  %3424 = vmatprep.mubr.bf16.mxu0 0
  %3425 = vmatmul.mubr.bf16.gmra.mrb[0].mxu0 %v2908
  %v3426 = vpop.f32.mrb[0].mxu0
  %v3427 = vadd.f32 0.0, %v3426
  %v3428 = vpop.f32.mrb[0].mxu0
  %v3429 = vpop.f32.mrb[0].mxu0
  %v3430 = vadd.f32 0.0, %v3429
  %v3431 = vpop.f32.mrb[0].mxu0
  %3432 = vmatprep.mubr.bf16.mxu0 0
  %3433 = vmatmul.mubr.bf16.gmra.mrb[0].mxu0 %v2911
  %v3434 = vpop.f32.mrb[0].mxu0
  %v3435 = vadd.f32 0.0, %v3434
  %v3436 = vpop.f32.mrb[0].mxu0
  %v3437 = vpop.f32.mrb[0].mxu0
  %v3438 = vadd.f32 0.0, %v3437
  %v3439 = vpop.f32.mrb[0].mxu0
  %3440 = vmatprep.mubr.bf16.mxu0 0
  %3441 = vmatmul.mubr.bf16.gmra.mrb[0].mxu0 %v2914
  %v3442 = vpop.f32.mrb[0].mxu0
  %v3443 = vadd.f32 0.0, %v3442
  %v3444 = vpop.f32.mrb[0].mxu0
  %v3445 = vpop.f32.mrb[0].mxu0
  %v3446 = vadd.f32 0.0, %v3445
  %v3447 = vpop.f32.mrb[0].mxu0
  %3448 = vdwg.mxu0
  %v3449 = vadd.f32 %v3336, %v3387
  %v3450 = vadd.f32 %v3337, %v3390
  %v3451 = vadd.f32 %v3338, %v3395
  %v3452 = vadd.f32 %v3339, %v3398
  %v3453 = vadd.f32 %v3340, %v3403
  %v3454 = vadd.f32 %v3341, %v3406
  %v3455 = vadd.f32 %v3342, %v3411
  %v3456 = vadd.f32 %v3343, %v3414
  %v3457 = vadd.f32 %v3344, %v3419
  %v3458 = vadd.f32 %v3345, %v3422
  %v3459 = vadd.f32 %v3346, %v3427
  %v3460 = vadd.f32 %v3347, %v3430
  %v3461 = vadd.f32 %v3348, %v3435
  %v3462 = vadd.f32 %v3349, %v3438
  %v3463 = vadd.f32 %v3350, %v3443
  %v3464 = vadd.f32 %v3351, %v3446
  %s3465 = sadd.s32 0, 128
  %s3466 = smul.addr %s3465, 4
  %s3467 = scalar_lea.vmem %s0, %s3466
  %v3468 = vld [vmem:[%s3467] sm:$0xf]
  %v3469 = vld [vmem:[%s3467 + $0x4] sm:$0xf]
  %v3470 = vld [vmem:[%s3467 + $0x8] sm:$0xf]
  %v3471 = vld [vmem:[%s3467 + $0xc] sm:$0xf]
  %v3472 = vld [vmem:[%s3467 + $0x10] sm:$0xf]
  %v3473 = vld [vmem:[%s3467 + $0x14] sm:$0xf]
  %v3474 = vld [vmem:[%s3467 + $0x18] sm:$0xf]
  %v3475 = vld [vmem:[%s3467 + $0x1c] sm:$0xf]
  %v3476 = vld [vmem:[%s3467 + $0x20] sm:$0xf]
  %v3477 = vld [vmem:[%s3467 + $0x24] sm:$0xf]
  %v3478 = vld [vmem:[%s3467 + $0x28] sm:$0xf]
  %v3479 = vld [vmem:[%s3467 + $0x2c] sm:$0xf]
  %v3480 = vld [vmem:[%s3467 + $0x30] sm:$0xf]
  %v3481 = vld [vmem:[%s3467 + $0x34] sm:$0xf]
  %v3482 = vld [vmem:[%s3467 + $0x38] sm:$0xf]
  %v3483 = vld [vmem:[%s3467 + $0x3c] sm:$0xf]
  %v3500 = vunpack.c.l.b16 %v3468
  %v3501 = vunpack.c.l.b16 %v3469
  %v3502 = vunpack.c.l.b16 %v3470
  %v3503 = vunpack.c.l.b16 %v3471
  %v3504 = vunpack.c.l.b16 %v3472
  %v3505 = vunpack.c.l.b16 %v3473
  %v3506 = vunpack.c.l.b16 %v3474
  %v3507 = vunpack.c.l.b16 %v3475
  %v3508 = vunpack.c.l.b16 %v3476
  %v3509 = vunpack.c.l.b16 %v3477
  %v3510 = vunpack.c.l.b16 %v3478
  %v3511 = vunpack.c.l.b16 %v3479
  %v3512 = vunpack.c.l.b16 %v3480
  %v3513 = vunpack.c.l.b16 %v3481
  %v3514 = vunpack.c.l.b16 %v3482
  %v3515 = vunpack.c.l.b16 %v3483
  %v3516 = vpack.c.b16 %v3501, %v3500
  %v3517 = vpack.c.b16 %v3503, %v3502
  %v3518 = vpack.c.b16 %v3505, %v3504
  %v3519 = vpack.c.b16 %v3507, %v3506
  %v3520 = vpack.c.b16 %v3509, %v3508
  %v3521 = vpack.c.b16 %v3511, %v3510
  %v3522 = vpack.c.b16 %v3513, %v3512
  %v3523 = vpack.c.b16 %v3515, %v3514
  %v3525 = vsel %vm182, %v3516, 0
  %v3528 = vsel %vm182, %v3517, 0
  %v3531 = vsel %vm182, %v3518, 0
  %v3534 = vsel %vm182, %v3519, 0
  %v3537 = vsel %vm182, %v3520, 0
  %v3540 = vsel %vm182, %v3521, 0
  %v3543 = vsel %vm182, %v3522, 0
  %v3546 = vsel %vm182, %v3523, 0
  %3548 = vmatprep.subr.bf16.mxu0 0
  %3549 = vmatpush1.bf16.msra.mxu0 %v1004
  %3550 = vmatprep.subr.bf16.mxu0 0
  %3551 = vmatpush1.bf16.msra.mxu0 %v1005
  %3552 = vmatprep.subr.bf16.mxu0 0
  %3553 = vmatpush1.bf16.msra.mxu0 %v1006
  %3554 = vmatprep.subr.bf16.mxu0 0
  %3555 = vmatpush1.bf16.msra.mxu0 %v1007
  %3556 = vmatprep.subr.bf16.mxu0 0
  %3557 = vmatpush1.bf16.msra.mxu0 0
  %3558 = vmatprep.subr.bf16.mxu0 0
  %3559 = vmatpush1.bf16.msra.mxu0 0
  %3560 = vmatprep.subr.bf16.mxu0 0
  %3561 = vmatpush1.bf16.msra.mxu0 0
  %3562 = vmatprep.subr.bf16.mxu0 0
  %3563 = vmatpush1.bf16.msra.mxu0 0
  %3564 = vmatprep.subr.bf16.mxu0 0
  %3565 = vmatpush1.bf16.msra.mxu0 0
  %3566 = vmatprep.subr.bf16.mxu0 0
  %3567 = vmatpush1.bf16.msra.mxu0 0
  %3568 = vmatprep.subr.bf16.mxu0 0
  %3569 = vmatpush1.bf16.msra.mxu0 0
  %3570 = vmatprep.subr.bf16.mxu0 0
  %3571 = vmatpush1.bf16.msra.mxu0 0
  %3572 = vmatprep.subr.bf16.mxu0 0
  %3573 = vmatpush1.bf16.msra.mxu0 0
  %3574 = vmatprep.subr.bf16.mxu0 0
  %3575 = vmatpush1.bf16.msra.mxu0 0
  %3576 = vmatprep.subr.bf16.mxu0 0
  %3577 = vmatpush1.bf16.msra.mxu0 0
  %3578 = vmatprep.subr.bf16.mxu0 0
  %3579 = vmatpush1.bf16.msra.mxu0 0
  %3580 = vmatprep.mubr.bf16.mxu0 0
  %3581 = vmatmul.mubr.bf16.gmra.mrb[0].mxu0 %v3525
  %v3582 = vpop.f32.mrb[0].mxu0
  %v3583 = vadd.f32 0.0, %v3582
  %v3584 = vpop.f32.mrb[0].mxu0
  %v3585 = vpop.f32.mrb[0].mxu0
  %v3586 = vadd.f32 0.0, %v3585
  %v3587 = vpop.f32.mrb[0].mxu0
  %3588 = vmatprep.mubr.bf16.mxu0 0
  %3589 = vmatmul.mubr.bf16.gmra.mrb[0].mxu0 %v3528
  %v3590 = vpop.f32.mrb[0].mxu0
  %v3591 = vadd.f32 0.0, %v3590
  %v3592 = vpop.f32.mrb[0].mxu0
  %v3593 = vpop.f32.mrb[0].mxu0
  %v3594 = vadd.f32 0.0, %v3593
  %v3595 = vpop.f32.mrb[0].mxu0
  %3596 = vmatprep.mubr.bf16.mxu0 0
  %3597 = vmatmul.mubr.bf16.gmra.mrb[0].mxu0 %v3531
  %v3598 = vpop.f32.mrb[0].mxu0
  %v3599 = vadd.f32 0.0, %v3598
  %v3600 = vpop.f32.mrb[0].mxu0
  %v3601 = vpop.f32.mrb[0].mxu0
  %v3602 = vadd.f32 0.0, %v3601
  %v3603 = vpop.f32.mrb[0].mxu0
  %3604 = vmatprep.mubr.bf16.mxu0 0
  %3605 = vmatmul.mubr.bf16.gmra.mrb[0].mxu0 %v3534
  %v3606 = vpop.f32.mrb[0].mxu0
  %v3607 = vadd.f32 0.0, %v3606
  %v3608 = vpop.f32.mrb[0].mxu0
  %v3609 = vpop.f32.mrb[0].mxu0
  %v3610 = vadd.f32 0.0, %v3609
  %v3611 = vpop.f32.mrb[0].mxu0
  %3612 = vmatprep.mubr.bf16.mxu0 0
  %3613 = vmatmul.mubr.bf16.gmra.mrb[0].mxu0 %v3537
  %v3614 = vpop.f32.mrb[0].mxu0
  %v3615 = vadd.f32 0.0, %v3614
  %v3616 = vpop.f32.mrb[0].mxu0
  %v3617 = vpop.f32.mrb[0].mxu0
  %v3618 = vadd.f32 0.0, %v3617
  %v3619 = vpop.f32.mrb[0].mxu0
  %3620 = vmatprep.mubr.bf16.mxu0 0
  %3621 = vmatmul.mubr.bf16.gmra.mrb[0].mxu0 %v3540
  %v3622 = vpop.f32.mrb[0].mxu0
  %v3623 = vadd.f32 0.0, %v3622
  %v3624 = vpop.f32.mrb[0].mxu0
  %v3625 = vpop.f32.mrb[0].mxu0
  %v3626 = vadd.f32 0.0, %v3625
  %v3627 = vpop.f32.mrb[0].mxu0
  %3628 = vmatprep.mubr.bf16.mxu0 0
  %3629 = vmatmul.mubr.bf16.gmra.mrb[0].mxu0 %v3543
  %v3630 = vpop.f32.mrb[0].mxu0
  %v3631 = vadd.f32 0.0, %v3630
  %v3632 = vpop.f32.mrb[0].mxu0
  %v3633 = vpop.f32.mrb[0].mxu0
  %v3634 = vadd.f32 0.0, %v3633
  %v3635 = vpop.f32.mrb[0].mxu0
  %3636 = vmatprep.mubr.bf16.mxu0 0
  %3637 = vmatmul.mubr.bf16.gmra.mrb[0].mxu0 %v3546
  %v3638 = vpop.f32.mrb[0].mxu0
  %v3639 = vadd.f32 0.0, %v3638
  %v3640 = vpop.f32.mrb[0].mxu0
  %v3641 = vpop.f32.mrb[0].mxu0
  %v3642 = vadd.f32 0.0, %v3641
  %v3643 = vpop.f32.mrb[0].mxu0
  %3644 = vdwg.mxu0
  %v3645 = vadd.f32 %v3449, %v3583
  %v3646 = vadd.f32 %v3450, %v3586
  %v3647 = vadd.f32 %v3451, %v3591
  %v3648 = vadd.f32 %v3452, %v3594
  %v3649 = vadd.f32 %v3453, %v3599
  %v3650 = vadd.f32 %v3454, %v3602
  %v3651 = vadd.f32 %v3455, %v3607
  %v3652 = vadd.f32 %v3456, %v3610
  %v3653 = vadd.f32 %v3457, %v3615
  %v3654 = vadd.f32 %v3458, %v3618
  %v3655 = vadd.f32 %v3459, %v3623
  %v3656 = vadd.f32 %v3460, %v3626
  %v3657 = vadd.f32 %v3461, %v3631
  %v3658 = vadd.f32 %v3462, %v3634
  %v3659 = vadd.f32 %v3463, %v3639
  %v3660 = vadd.f32 %v3464, %v3642
  %v3661 = vmax.f32 %v3029, %v3645
  %v3662 = vmax.f32 %v3030, %v3646
  %v3663 = vmax.f32 %v3031, %v3647
  %v3664 = vmax.f32 %v3032, %v3648
  %v3665 = vmax.f32 %v3033, %v3649
  %v3666 = vmax.f32 %v3034, %v3650
  %v3667 = vmax.f32 %v3035, %v3651
  %v3668 = vmax.f32 %v3036, %v3652
  %v3669 = vmax.f32 %v3037, %v3653
  %v3670 = vmax.f32 %v3038, %v3654
  %v3671 = vmax.f32 %v3039, %v3655
  %v3672 = vmax.f32 %v3040, %v3656
  %v3673 = vmax.f32 %v3041, %v3657
  %v3674 = vmax.f32 %v3042, %v3658
  %v3675 = vmax.f32 %v3043, %v3659
  %v3676 = vmax.f32 %v3044, %v3660
  %3677 = vmatprep.subr.bf16.mxu0 0
  %3678 = vmatpush1.bf16.msra.mxu0 %v174
  %3679 = vmatprep.subr.bf16.mxu0 0
  %3680 = vmatpush1.bf16.msra.mxu0 %v175
  %3681 = vmatprep.subr.bf16.mxu0 0
  %3682 = vmatpush1.bf16.msra.mxu0 %v176
  %3683 = vmatprep.subr.bf16.mxu0 0
  %3684 = vmatpush1.bf16.msra.mxu0 %v177
  %3685 = vmatprep.subr.bf16.mxu0 0
  %3686 = vmatpush1.bf16.msra.mxu0 0
  %3687 = vmatprep.subr.bf16.mxu0 0
  %3688 = vmatpush1.bf16.msra.mxu0 0
  %3689 = vmatprep.subr.bf16.mxu0 0
  %3690 = vmatpush1.bf16.msra.mxu0 0
  %3691 = vmatprep.subr.bf16.mxu0 0
  %3692 = vmatpush1.bf16.msra.mxu0 0
  %3693 = vmatprep.subr.bf16.mxu0 0
  %3694 = vmatpush1.bf16.msra.mxu0 0
  %3695 = vmatprep.subr.bf16.mxu0 0
  %3696 = vmatpush1.bf16.msra.mxu0 0
  %3697 = vmatprep.subr.bf16.mxu0 0
  %3698 = vmatpush1.bf16.msra.mxu0 0
  %3699 = vmatprep.subr.bf16.mxu0 0
  %3700 = vmatpush1.bf16.msra.mxu0 0
  %3701 = vmatprep.subr.bf16.mxu0 0
  %3702 = vmatpush1.bf16.msra.mxu0 0
  %3703 = vmatprep.subr.bf16.mxu0 0
  %3704 = vmatpush1.bf16.msra.mxu0 0
  %3705 = vmatprep.subr.bf16.mxu0 0
  %3706 = vmatpush1.bf16.msra.mxu0 0
  %3707 = vmatprep.subr.bf16.mxu0 0
  %3708 = vmatpush1.bf16.msra.mxu0 0
  %3709 = vmatprep.mubr.bf16.mxu0 0
  %3710 = vmatmul.mubr.bf16.gmra.mrb[0].mxu0 %v2261
  %v3711 = vpop.f32.mrb[0].mxu0
  %v3712 = vadd.f32 0.0, %v3711
  %v3713 = vpop.f32.mrb[0].mxu0
  %v3714 = vpop.f32.mrb[0].mxu0
  %v3715 = vadd.f32 0.0, %v3714
  %v3716 = vpop.f32.mrb[0].mxu0
  %3717 = vmatprep.mubr.bf16.mxu0 0
  %3718 = vmatmul.mubr.bf16.gmra.mrb[0].mxu0 %v2264
  %v3719 = vpop.f32.mrb[0].mxu0
  %v3720 = vadd.f32 0.0, %v3719
  %v3721 = vpop.f32.mrb[0].mxu0
  %v3722 = vpop.f32.mrb[0].mxu0
  %v3723 = vadd.f32 0.0, %v3722
  %v3724 = vpop.f32.mrb[0].mxu0
  %3725 = vmatprep.mubr.bf16.mxu0 0
  %3726 = vmatmul.mubr.bf16.gmra.mrb[0].mxu0 %v2267
  %v3727 = vpop.f32.mrb[0].mxu0
  %v3728 = vadd.f32 0.0, %v3727
  %v3729 = vpop.f32.mrb[0].mxu0
  %v3730 = vpop.f32.mrb[0].mxu0
  %v3731 = vadd.f32 0.0, %v3730
  %v3732 = vpop.f32.mrb[0].mxu0
  %3733 = vmatprep.mubr.bf16.mxu0 0
  %3734 = vmatmul.mubr.bf16.gmra.mrb[0].mxu0 %v2270
  %v3735 = vpop.f32.mrb[0].mxu0
  %v3736 = vadd.f32 0.0, %v3735
  %v3737 = vpop.f32.mrb[0].mxu0
  %v3738 = vpop.f32.mrb[0].mxu0
  %v3739 = vadd.f32 0.0, %v3738
  %v3740 = vpop.f32.mrb[0].mxu0
  %3741 = vmatprep.mubr.bf16.mxu0 0
  %3742 = vmatmul.mubr.bf16.gmra.mrb[0].mxu0 %v2273
  %v3743 = vpop.f32.mrb[0].mxu0
  %v3744 = vadd.f32 0.0, %v3743
  %v3745 = vpop.f32.mrb[0].mxu0
  %v3746 = vpop.f32.mrb[0].mxu0
  %v3747 = vadd.f32 0.0, %v3746
  %v3748 = vpop.f32.mrb[0].mxu0
  %3749 = vmatprep.mubr.bf16.mxu0 0
  %3750 = vmatmul.mubr.bf16.gmra.mrb[0].mxu0 %v2276
  %v3751 = vpop.f32.mrb[0].mxu0
  %v3752 = vadd.f32 0.0, %v3751
  %v3753 = vpop.f32.mrb[0].mxu0
  %v3754 = vpop.f32.mrb[0].mxu0
  %v3755 = vadd.f32 0.0, %v3754
  %v3756 = vpop.f32.mrb[0].mxu0
  %3757 = vmatprep.mubr.bf16.mxu0 0
  %3758 = vmatmul.mubr.bf16.gmra.mrb[0].mxu0 %v2279
  %v3759 = vpop.f32.mrb[0].mxu0
  %v3760 = vadd.f32 0.0, %v3759
  %v3761 = vpop.f32.mrb[0].mxu0
  %v3762 = vpop.f32.mrb[0].mxu0
  %v3763 = vadd.f32 0.0, %v3762
  %v3764 = vpop.f32.mrb[0].mxu0
  %3765 = vmatprep.mubr.bf16.mxu0 0
  %3766 = vmatmul.mubr.bf16.gmra.mrb[0].mxu0 %v2282
  %v3767 = vpop.f32.mrb[0].mxu0
  %v3768 = vadd.f32 0.0, %v3767
  %v3769 = vpop.f32.mrb[0].mxu0
  %v3770 = vpop.f32.mrb[0].mxu0
  %v3771 = vadd.f32 0.0, %v3770
  %v3772 = vpop.f32.mrb[0].mxu0
  %3773 = vdwg.mxu0
  %3774 = vmatprep.subr.bf16.mxu0 0
  %3775 = vmatpush1.bf16.msra.mxu0 %v360
  %3776 = vmatprep.subr.bf16.mxu0 0
  %3777 = vmatpush1.bf16.msra.mxu0 %v361
  %3778 = vmatprep.subr.bf16.mxu0 0
  %3779 = vmatpush1.bf16.msra.mxu0 %v362
  %3780 = vmatprep.subr.bf16.mxu0 0
  %3781 = vmatpush1.bf16.msra.mxu0 %v363
  %3782 = vmatprep.subr.bf16.mxu0 0
  %3783 = vmatpush1.bf16.msra.mxu0 0
  %3784 = vmatprep.subr.bf16.mxu0 0
  %3785 = vmatpush1.bf16.msra.mxu0 0
  %3786 = vmatprep.subr.bf16.mxu0 0
  %3787 = vmatpush1.bf16.msra.mxu0 0
  %3788 = vmatprep.subr.bf16.mxu0 0
  %3789 = vmatpush1.bf16.msra.mxu0 0
  %3790 = vmatprep.subr.bf16.mxu0 0
  %3791 = vmatpush1.bf16.msra.mxu0 0
  %3792 = vmatprep.subr.bf16.mxu0 0
  %3793 = vmatpush1.bf16.msra.mxu0 0
  %3794 = vmatprep.subr.bf16.mxu0 0
  %3795 = vmatpush1.bf16.msra.mxu0 0
  %3796 = vmatprep.subr.bf16.mxu0 0
  %3797 = vmatpush1.bf16.msra.mxu0 0
  %3798 = vmatprep.subr.bf16.mxu0 0
  %3799 = vmatpush1.bf16.msra.mxu0 0
  %3800 = vmatprep.subr.bf16.mxu0 0
  %3801 = vmatpush1.bf16.msra.mxu0 0
  %3802 = vmatprep.subr.bf16.mxu0 0
  %3803 = vmatpush1.bf16.msra.mxu0 0
  %3804 = vmatprep.subr.bf16.mxu0 0
  %3805 = vmatpush1.bf16.msra.mxu0 0
  %3806 = vmatprep.mubr.bf16.mxu0 0
  %3807 = vmatmul.mubr.bf16.gmra.mrb[0].mxu0 %v1629
  %v3808 = vpop.f32.mrb[0].mxu0
  %v3809 = vadd.f32 %v3712, %v3808
  %v3810 = vpop.f32.mrb[0].mxu0
  %v3811 = vpop.f32.mrb[0].mxu0
  %v3812 = vadd.f32 %v3715, %v3811
  %v3813 = vpop.f32.mrb[0].mxu0
  %3814 = vmatprep.mubr.bf16.mxu0 0
  %3815 = vmatmul.mubr.bf16.gmra.mrb[0].mxu0 %v1632
  %v3816 = vpop.f32.mrb[0].mxu0
  %v3817 = vadd.f32 %v3720, %v3816
  %v3818 = vpop.f32.mrb[0].mxu0
  %v3819 = vpop.f32.mrb[0].mxu0
  %v3820 = vadd.f32 %v3723, %v3819
  %v3821 = vpop.f32.mrb[0].mxu0
  %3822 = vmatprep.mubr.bf16.mxu0 0
  %3823 = vmatmul.mubr.bf16.gmra.mrb[0].mxu0 %v1635
  %v3824 = vpop.f32.mrb[0].mxu0
  %v3825 = vadd.f32 %v3728, %v3824
  %v3826 = vpop.f32.mrb[0].mxu0
  %v3827 = vpop.f32.mrb[0].mxu0
  %v3828 = vadd.f32 %v3731, %v3827
  %v3829 = vpop.f32.mrb[0].mxu0
  %3830 = vmatprep.mubr.bf16.mxu0 0
  %3831 = vmatmul.mubr.bf16.gmra.mrb[0].mxu0 %v1638
  %v3832 = vpop.f32.mrb[0].mxu0
  %v3833 = vadd.f32 %v3736, %v3832
  %v3834 = vpop.f32.mrb[0].mxu0
  %v3835 = vpop.f32.mrb[0].mxu0
  %v3836 = vadd.f32 %v3739, %v3835
  %v3837 = vpop.f32.mrb[0].mxu0
  %3838 = vmatprep.mubr.bf16.mxu0 0
  %3839 = vmatmul.mubr.bf16.gmra.mrb[0].mxu0 %v1641
  %v3840 = vpop.f32.mrb[0].mxu0
  %v3841 = vadd.f32 %v3744, %v3840
  %v3842 = vpop.f32.mrb[0].mxu0
  %v3843 = vpop.f32.mrb[0].mxu0
  %v3844 = vadd.f32 %v3747, %v3843
  %v3845 = vpop.f32.mrb[0].mxu0
  %3846 = vmatprep.mubr.bf16.mxu0 0
  %3847 = vmatmul.mubr.bf16.gmra.mrb[0].mxu0 %v1644
  %v3848 = vpop.f32.mrb[0].mxu0
  %v3849 = vadd.f32 %v3752, %v3848
  %v3850 = vpop.f32.mrb[0].mxu0
  %v3851 = vpop.f32.mrb[0].mxu0
  %v3852 = vadd.f32 %v3755, %v3851
  %v3853 = vpop.f32.mrb[0].mxu0
  %3854 = vmatprep.mubr.bf16.mxu0 0
  %3855 = vmatmul.mubr.bf16.gmra.mrb[0].mxu0 %v1647
  %v3856 = vpop.f32.mrb[0].mxu0
  %v3857 = vadd.f32 %v3760, %v3856
  %v3858 = vpop.f32.mrb[0].mxu0
  %v3859 = vpop.f32.mrb[0].mxu0
  %v3860 = vadd.f32 %v3763, %v3859
  %v3861 = vpop.f32.mrb[0].mxu0
  %3862 = vmatprep.mubr.bf16.mxu0 0
  %3863 = vmatmul.mubr.bf16.gmra.mrb[0].mxu0 %v1650
  %v3864 = vpop.f32.mrb[0].mxu0
  %v3865 = vadd.f32 %v3768, %v3864
  %v3866 = vpop.f32.mrb[0].mxu0
  %v3867 = vpop.f32.mrb[0].mxu0
  %v3868 = vadd.f32 %v3771, %v3867
  %v3869 = vpop.f32.mrb[0].mxu0
  %3870 = vdwg.mxu0
  %3871 = vmatprep.subr.bf16.mxu0 0
  %3872 = vmatpush1.bf16.msra.mxu0 %v564
  %3873 = vmatprep.subr.bf16.mxu0 0
  %3874 = vmatpush1.bf16.msra.mxu0 %v565
  %3875 = vmatprep.subr.bf16.mxu0 0
  %3876 = vmatpush1.bf16.msra.mxu0 %v566
  %3877 = vmatprep.subr.bf16.mxu0 0
  %3878 = vmatpush1.bf16.msra.mxu0 %v567
  %3879 = vmatprep.subr.bf16.mxu0 0
  %3880 = vmatpush1.bf16.msra.mxu0 0
  %3881 = vmatprep.subr.bf16.mxu0 0
  %3882 = vmatpush1.bf16.msra.mxu0 0
  %3883 = vmatprep.subr.bf16.mxu0 0
  %3884 = vmatpush1.bf16.msra.mxu0 0
  %3885 = vmatprep.subr.bf16.mxu0 0
  %3886 = vmatpush1.bf16.msra.mxu0 0
  %3887 = vmatprep.subr.bf16.mxu0 0
  %3888 = vmatpush1.bf16.msra.mxu0 0
  %3889 = vmatprep.subr.bf16.mxu0 0
  %3890 = vmatpush1.bf16.msra.mxu0 0
  %3891 = vmatprep.subr.bf16.mxu0 0
  %3892 = vmatpush1.bf16.msra.mxu0 0
  %3893 = vmatprep.subr.bf16.mxu0 0
  %3894 = vmatpush1.bf16.msra.mxu0 0
  %3895 = vmatprep.subr.bf16.mxu0 0
  %3896 = vmatpush1.bf16.msra.mxu0 0
  %3897 = vmatprep.subr.bf16.mxu0 0
  %3898 = vmatpush1.bf16.msra.mxu0 0
  %3899 = vmatprep.subr.bf16.mxu0 0
  %3900 = vmatpush1.bf16.msra.mxu0 0
  %3901 = vmatprep.subr.bf16.mxu0 0
  %3902 = vmatpush1.bf16.msra.mxu0 0
  %3903 = vmatprep.mubr.bf16.mxu0 0
  %3904 = vmatmul.mubr.bf16.gmra.mrb[0].mxu0 %v2893
  %v3905 = vpop.f32.mrb[0].mxu0
  %v3906 = vadd.f32 0.0, %v3905
  %v3907 = vpop.f32.mrb[0].mxu0
  %v3908 = vpop.f32.mrb[0].mxu0
  %v3909 = vadd.f32 0.0, %v3908
  %v3910 = vpop.f32.mrb[0].mxu0
  %3911 = vmatprep.mubr.bf16.mxu0 0
  %3912 = vmatmul.mubr.bf16.gmra.mrb[0].mxu0 %v2896
  %v3913 = vpop.f32.mrb[0].mxu0
  %v3914 = vadd.f32 0.0, %v3913
  %v3915 = vpop.f32.mrb[0].mxu0
  %v3916 = vpop.f32.mrb[0].mxu0
  %v3917 = vadd.f32 0.0, %v3916
  %v3918 = vpop.f32.mrb[0].mxu0
  %3919 = vmatprep.mubr.bf16.mxu0 0
  %3920 = vmatmul.mubr.bf16.gmra.mrb[0].mxu0 %v2899
  %v3921 = vpop.f32.mrb[0].mxu0
  %v3922 = vadd.f32 0.0, %v3921
  %v3923 = vpop.f32.mrb[0].mxu0
  %v3924 = vpop.f32.mrb[0].mxu0
  %v3925 = vadd.f32 0.0, %v3924
  %v3926 = vpop.f32.mrb[0].mxu0
  %3927 = vmatprep.mubr.bf16.mxu0 0
  %3928 = vmatmul.mubr.bf16.gmra.mrb[0].mxu0 %v2902
  %v3929 = vpop.f32.mrb[0].mxu0
  %v3930 = vadd.f32 0.0, %v3929
  %v3931 = vpop.f32.mrb[0].mxu0
  %v3932 = vpop.f32.mrb[0].mxu0
  %v3933 = vadd.f32 0.0, %v3932
  %v3934 = vpop.f32.mrb[0].mxu0
  %3935 = vmatprep.mubr.bf16.mxu0 0
  %3936 = vmatmul.mubr.bf16.gmra.mrb[0].mxu0 %v2905
  %v3937 = vpop.f32.mrb[0].mxu0
  %v3938 = vadd.f32 0.0, %v3937
  %v3939 = vpop.f32.mrb[0].mxu0
  %v3940 = vpop.f32.mrb[0].mxu0
  %v3941 = vadd.f32 0.0, %v3940
  %v3942 = vpop.f32.mrb[0].mxu0
  %3943 = vmatprep.mubr.bf16.mxu0 0
  %3944 = vmatmul.mubr.bf16.gmra.mrb[0].mxu0 %v2908
  %v3945 = vpop.f32.mrb[0].mxu0
  %v3946 = vadd.f32 0.0, %v3945
  %v3947 = vpop.f32.mrb[0].mxu0
  %v3948 = vpop.f32.mrb[0].mxu0
  %v3949 = vadd.f32 0.0, %v3948
  %v3950 = vpop.f32.mrb[0].mxu0
  %3951 = vmatprep.mubr.bf16.mxu0 0
  %3952 = vmatmul.mubr.bf16.gmra.mrb[0].mxu0 %v2911
  %v3953 = vpop.f32.mrb[0].mxu0
  %v3954 = vadd.f32 0.0, %v3953
  %v3955 = vpop.f32.mrb[0].mxu0
  %v3956 = vpop.f32.mrb[0].mxu0
  %v3957 = vadd.f32 0.0, %v3956
  %v3958 = vpop.f32.mrb[0].mxu0
  %3959 = vmatprep.mubr.bf16.mxu0 0
  %3960 = vmatmul.mubr.bf16.gmra.mrb[0].mxu0 %v2914
  %v3961 = vpop.f32.mrb[0].mxu0
  %v3962 = vadd.f32 0.0, %v3961
  %v3963 = vpop.f32.mrb[0].mxu0
  %v3964 = vpop.f32.mrb[0].mxu0
  %v3965 = vadd.f32 0.0, %v3964
  %v3966 = vpop.f32.mrb[0].mxu0
  %3967 = vdwg.mxu0
  %v3968 = vadd.f32 %v3809, %v3906
  %v3969 = vadd.f32 %v3812, %v3909
  %v3970 = vadd.f32 %v3817, %v3914
  %v3971 = vadd.f32 %v3820, %v3917
  %v3972 = vadd.f32 %v3825, %v3922
  %v3973 = vadd.f32 %v3828, %v3925
  %v3974 = vadd.f32 %v3833, %v3930
  %v3975 = vadd.f32 %v3836, %v3933
  %v3976 = vadd.f32 %v3841, %v3938
  %v3977 = vadd.f32 %v3844, %v3941
  %v3978 = vadd.f32 %v3849, %v3946
  %v3979 = vadd.f32 %v3852, %v3949
  %v3980 = vadd.f32 %v3857, %v3954
  %v3981 = vadd.f32 %v3860, %v3957
  %v3982 = vadd.f32 %v3865, %v3962
  %v3983 = vadd.f32 %v3868, %v3965
  %3984 = vmatprep.subr.bf16.mxu0 0
  %3985 = vmatpush1.bf16.msra.mxu0 %v784
  %3986 = vmatprep.subr.bf16.mxu0 0
  %3987 = vmatpush1.bf16.msra.mxu0 %v785
  %3988 = vmatprep.subr.bf16.mxu0 0
  %3989 = vmatpush1.bf16.msra.mxu0 %v786
  %3990 = vmatprep.subr.bf16.mxu0 0
  %3991 = vmatpush1.bf16.msra.mxu0 %v787
  %3992 = vmatprep.subr.bf16.mxu0 0
  %3993 = vmatpush1.bf16.msra.mxu0 0
  %3994 = vmatprep.subr.bf16.mxu0 0
  %3995 = vmatpush1.bf16.msra.mxu0 0
  %3996 = vmatprep.subr.bf16.mxu0 0
  %3997 = vmatpush1.bf16.msra.mxu0 0
  %3998 = vmatprep.subr.bf16.mxu0 0
  %3999 = vmatpush1.bf16.msra.mxu0 0
  %4000 = vmatprep.subr.bf16.mxu0 0
  %4001 = vmatpush1.bf16.msra.mxu0 0
  %4002 = vmatprep.subr.bf16.mxu0 0
  %4003 = vmatpush1.bf16.msra.mxu0 0
  %4004 = vmatprep.subr.bf16.mxu0 0
  %4005 = vmatpush1.bf16.msra.mxu0 0
  %4006 = vmatprep.subr.bf16.mxu0 0
  %4007 = vmatpush1.bf16.msra.mxu0 0
  %4008 = vmatprep.subr.bf16.mxu0 0
  %4009 = vmatpush1.bf16.msra.mxu0 0
  %4010 = vmatprep.subr.bf16.mxu0 0
  %4011 = vmatpush1.bf16.msra.mxu0 0
  %4012 = vmatprep.subr.bf16.mxu0 0
  %4013 = vmatpush1.bf16.msra.mxu0 0
  %4014 = vmatprep.subr.bf16.mxu0 0
  %4015 = vmatpush1.bf16.msra.mxu0 0
  %4016 = vmatprep.mubr.bf16.mxu0 0
  %4017 = vmatmul.mubr.bf16.gmra.mrb[0].mxu0 %v3525
  %v4018 = vpop.f32.mrb[0].mxu0
  %v4019 = vadd.f32 0.0, %v4018
  %v4020 = vpop.f32.mrb[0].mxu0
  %v4021 = vpop.f32.mrb[0].mxu0
  %v4022 = vadd.f32 0.0, %v4021
  %v4023 = vpop.f32.mrb[0].mxu0
  %4024 = vmatprep.mubr.bf16.mxu0 0
  %4025 = vmatmul.mubr.bf16.gmra.mrb[0].mxu0 %v3528
  %v4026 = vpop.f32.mrb[0].mxu0
  %v4027 = vadd.f32 0.0, %v4026
  %v4028 = vpop.f32.mrb[0].mxu0
  %v4029 = vpop.f32.mrb[0].mxu0
  %v4030 = vadd.f32 0.0, %v4029
  %v4031 = vpop.f32.mrb[0].mxu0
  %4032 = vmatprep.mubr.bf16.mxu0 0
  %4033 = vmatmul.mubr.bf16.gmra.mrb[0].mxu0 %v3531
  %v4034 = vpop.f32.mrb[0].mxu0
  %v4035 = vadd.f32 0.0, %v4034
  %v4036 = vpop.f32.mrb[0].mxu0
  %v4037 = vpop.f32.mrb[0].mxu0
  %v4038 = vadd.f32 0.0, %v4037
  %v4039 = vpop.f32.mrb[0].mxu0
  %4040 = vmatprep.mubr.bf16.mxu0 0
  %4041 = vmatmul.mubr.bf16.gmra.mrb[0].mxu0 %v3534
  %v4042 = vpop.f32.mrb[0].mxu0
  %v4043 = vadd.f32 0.0, %v4042
  %v4044 = vpop.f32.mrb[0].mxu0
  %v4045 = vpop.f32.mrb[0].mxu0
  %v4046 = vadd.f32 0.0, %v4045
  %v4047 = vpop.f32.mrb[0].mxu0
  %4048 = vmatprep.mubr.bf16.mxu0 0
  %4049 = vmatmul.mubr.bf16.gmra.mrb[0].mxu0 %v3537
  %v4050 = vpop.f32.mrb[0].mxu0
  %v4051 = vadd.f32 0.0, %v4050
  %v4052 = vpop.f32.mrb[0].mxu0
  %v4053 = vpop.f32.mrb[0].mxu0
  %v4054 = vadd.f32 0.0, %v4053
  %v4055 = vpop.f32.mrb[0].mxu0
  %4056 = vmatprep.mubr.bf16.mxu0 0
  %4057 = vmatmul.mubr.bf16.gmra.mrb[0].mxu0 %v3540
  %v4058 = vpop.f32.mrb[0].mxu0
  %v4059 = vadd.f32 0.0, %v4058
  %v4060 = vpop.f32.mrb[0].mxu0
  %v4061 = vpop.f32.mrb[0].mxu0
  %v4062 = vadd.f32 0.0, %v4061
  %v4063 = vpop.f32.mrb[0].mxu0
  %4064 = vmatprep.mubr.bf16.mxu0 0
  %4065 = vmatmul.mubr.bf16.gmra.mrb[0].mxu0 %v3543
  %v4066 = vpop.f32.mrb[0].mxu0
  %v4067 = vadd.f32 0.0, %v4066
  %v4068 = vpop.f32.mrb[0].mxu0
  %v4069 = vpop.f32.mrb[0].mxu0
  %v4070 = vadd.f32 0.0, %v4069
  %v4071 = vpop.f32.mrb[0].mxu0
  %4072 = vmatprep.mubr.bf16.mxu0 0
  %4073 = vmatmul.mubr.bf16.gmra.mrb[0].mxu0 %v3546
  %v4074 = vpop.f32.mrb[0].mxu0
  %v4075 = vadd.f32 0.0, %v4074
  %v4076 = vpop.f32.mrb[0].mxu0
  %v4077 = vpop.f32.mrb[0].mxu0
  %v4078 = vadd.f32 0.0, %v4077
  %v4079 = vpop.f32.mrb[0].mxu0
  %4080 = vdwg.mxu0
  %v4081 = vadd.f32 %v3968, %v4019
  %v4082 = vadd.f32 %v3969, %v4022
  %v4083 = vadd.f32 %v3970, %v4027
  %v4084 = vadd.f32 %v3971, %v4030
  %v4085 = vadd.f32 %v3972, %v4035
  %v4086 = vadd.f32 %v3973, %v4038
  %v4087 = vadd.f32 %v3974, %v4043
  %v4088 = vadd.f32 %v3975, %v4046
  %v4089 = vadd.f32 %v3976, %v4051
  %v4090 = vadd.f32 %v3977, %v4054
  %v4091 = vadd.f32 %v3978, %v4059
  %v4092 = vadd.f32 %v3979, %v4062
  %v4093 = vadd.f32 %v3980, %v4067
  %v4094 = vadd.f32 %v3981, %v4070
  %v4095 = vadd.f32 %v3982, %v4075
  %v4096 = vadd.f32 %v3983, %v4078
  %s4097 = sadd.s32 0, 144
  %s4098 = smul.addr %s4097, 4
  %s4099 = scalar_lea.vmem %s0, %s4098
  %v4100 = vld [vmem:[%s4099] sm:$0xf]
  %v4101 = vld [vmem:[%s4099 + $0x4] sm:$0xf]
  %v4102 = vld [vmem:[%s4099 + $0x8] sm:$0xf]
  %v4103 = vld [vmem:[%s4099 + $0xc] sm:$0xf]
  %v4104 = vld [vmem:[%s4099 + $0x10] sm:$0xf]
  %v4105 = vld [vmem:[%s4099 + $0x14] sm:$0xf]
  %v4106 = vld [vmem:[%s4099 + $0x18] sm:$0xf]
  %v4107 = vld [vmem:[%s4099 + $0x1c] sm:$0xf]
  %v4108 = vld [vmem:[%s4099 + $0x20] sm:$0xf]
  %v4109 = vld [vmem:[%s4099 + $0x24] sm:$0xf]
  %v4110 = vld [vmem:[%s4099 + $0x28] sm:$0xf]
  %v4111 = vld [vmem:[%s4099 + $0x2c] sm:$0xf]
  %v4112 = vld [vmem:[%s4099 + $0x30] sm:$0xf]
  %v4113 = vld [vmem:[%s4099 + $0x34] sm:$0xf]
  %v4114 = vld [vmem:[%s4099 + $0x38] sm:$0xf]
  %v4115 = vld [vmem:[%s4099 + $0x3c] sm:$0xf]
  %v4132 = vunpack.c.l.b16 %v4100
  %v4133 = vunpack.c.l.b16 %v4101
  %v4134 = vunpack.c.l.b16 %v4102
  %v4135 = vunpack.c.l.b16 %v4103
  %v4136 = vunpack.c.l.b16 %v4104
  %v4137 = vunpack.c.l.b16 %v4105
  %v4138 = vunpack.c.l.b16 %v4106
  %v4139 = vunpack.c.l.b16 %v4107
  %v4140 = vunpack.c.l.b16 %v4108
  %v4141 = vunpack.c.l.b16 %v4109
  %v4142 = vunpack.c.l.b16 %v4110
  %v4143 = vunpack.c.l.b16 %v4111
  %v4144 = vunpack.c.l.b16 %v4112
  %v4145 = vunpack.c.l.b16 %v4113
  %v4146 = vunpack.c.l.b16 %v4114
  %v4147 = vunpack.c.l.b16 %v4115
  %v4148 = vpack.c.b16 %v4133, %v4132
  %v4149 = vpack.c.b16 %v4135, %v4134
  %v4150 = vpack.c.b16 %v4137, %v4136
  %v4151 = vpack.c.b16 %v4139, %v4138
  %v4152 = vpack.c.b16 %v4141, %v4140
  %v4153 = vpack.c.b16 %v4143, %v4142
  %v4154 = vpack.c.b16 %v4145, %v4144
  %v4155 = vpack.c.b16 %v4147, %v4146
  %v4157 = vsel %vm182, %v4148, 0
  %v4160 = vsel %vm182, %v4149, 0
  %v4163 = vsel %vm182, %v4150, 0
  %v4166 = vsel %vm182, %v4151, 0
  %v4169 = vsel %vm182, %v4152, 0
  %v4172 = vsel %vm182, %v4153, 0
  %v4175 = vsel %vm182, %v4154, 0
  %v4178 = vsel %vm182, %v4155, 0
  %4180 = vmatprep.subr.bf16.mxu0 0
  %4181 = vmatpush1.bf16.msra.mxu0 %v1004
  %4182 = vmatprep.subr.bf16.mxu0 0
  %4183 = vmatpush1.bf16.msra.mxu0 %v1005
  %4184 = vmatprep.subr.bf16.mxu0 0
  %4185 = vmatpush1.bf16.msra.mxu0 %v1006
  %4186 = vmatprep.subr.bf16.mxu0 0
  %4187 = vmatpush1.bf16.msra.mxu0 %v1007
  %4188 = vmatprep.subr.bf16.mxu0 0
  %4189 = vmatpush1.bf16.msra.mxu0 0
  %4190 = vmatprep.subr.bf16.mxu0 0
  %4191 = vmatpush1.bf16.msra.mxu0 0
  %4192 = vmatprep.subr.bf16.mxu0 0
  %4193 = vmatpush1.bf16.msra.mxu0 0
  %4194 = vmatprep.subr.bf16.mxu0 0
  %4195 = vmatpush1.bf16.msra.mxu0 0
  %4196 = vmatprep.subr.bf16.mxu0 0
  %4197 = vmatpush1.bf16.msra.mxu0 0
  %4198 = vmatprep.subr.bf16.mxu0 0
  %4199 = vmatpush1.bf16.msra.mxu0 0
  %4200 = vmatprep.subr.bf16.mxu0 0
  %4201 = vmatpush1.bf16.msra.mxu0 0
  %4202 = vmatprep.subr.bf16.mxu0 0
  %4203 = vmatpush1.bf16.msra.mxu0 0
  %4204 = vmatprep.subr.bf16.mxu0 0
  %4205 = vmatpush1.bf16.msra.mxu0 0
  %4206 = vmatprep.subr.bf16.mxu0 0
  %4207 = vmatpush1.bf16.msra.mxu0 0
  %4208 = vmatprep.subr.bf16.mxu0 0
  %4209 = vmatpush1.bf16.msra.mxu0 0
  %4210 = vmatprep.subr.bf16.mxu0 0
  %4211 = vmatpush1.bf16.msra.mxu0 0
  %4212 = vmatprep.mubr.bf16.mxu0 0
  %4213 = vmatmul.mubr.bf16.gmra.mrb[0].mxu0 %v4157
  %v4214 = vpop.f32.mrb[0].mxu0
  %v4215 = vadd.f32 0.0, %v4214
  %v4216 = vpop.f32.mrb[0].mxu0
  %v4217 = vpop.f32.mrb[0].mxu0
  %v4218 = vadd.f32 0.0, %v4217
  %v4219 = vpop.f32.mrb[0].mxu0
  %4220 = vmatprep.mubr.bf16.mxu0 0
  %4221 = vmatmul.mubr.bf16.gmra.mrb[0].mxu0 %v4160
  %v4222 = vpop.f32.mrb[0].mxu0
  %v4223 = vadd.f32 0.0, %v4222
  %v4224 = vpop.f32.mrb[0].mxu0
  %v4225 = vpop.f32.mrb[0].mxu0
  %v4226 = vadd.f32 0.0, %v4225
  %v4227 = vpop.f32.mrb[0].mxu0
  %4228 = vmatprep.mubr.bf16.mxu0 0
  %4229 = vmatmul.mubr.bf16.gmra.mrb[0].mxu0 %v4163
  %v4230 = vpop.f32.mrb[0].mxu0
  %v4231 = vadd.f32 0.0, %v4230
  %v4232 = vpop.f32.mrb[0].mxu0
  %v4233 = vpop.f32.mrb[0].mxu0
  %v4234 = vadd.f32 0.0, %v4233
  %v4235 = vpop.f32.mrb[0].mxu0
  %4236 = vmatprep.mubr.bf16.mxu0 0
  %4237 = vmatmul.mubr.bf16.gmra.mrb[0].mxu0 %v4166
  %v4238 = vpop.f32.mrb[0].mxu0
  %v4239 = vadd.f32 0.0, %v4238
  %v4240 = vpop.f32.mrb[0].mxu0
  %v4241 = vpop.f32.mrb[0].mxu0
  %v4242 = vadd.f32 0.0, %v4241
  %v4243 = vpop.f32.mrb[0].mxu0
  %4244 = vmatprep.mubr.bf16.mxu0 0
  %4245 = vmatmul.mubr.bf16.gmra.mrb[0].mxu0 %v4169
  %v4246 = vpop.f32.mrb[0].mxu0
  %v4247 = vadd.f32 0.0, %v4246
  %v4248 = vpop.f32.mrb[0].mxu0
  %v4249 = vpop.f32.mrb[0].mxu0
  %v4250 = vadd.f32 0.0, %v4249
  %v4251 = vpop.f32.mrb[0].mxu0
  %4252 = vmatprep.mubr.bf16.mxu0 0
  %4253 = vmatmul.mubr.bf16.gmra.mrb[0].mxu0 %v4172
  %v4254 = vpop.f32.mrb[0].mxu0
  %v4255 = vadd.f32 0.0, %v4254
  %v4256 = vpop.f32.mrb[0].mxu0
  %v4257 = vpop.f32.mrb[0].mxu0
  %v4258 = vadd.f32 0.0, %v4257
  %v4259 = vpop.f32.mrb[0].mxu0
  %4260 = vmatprep.mubr.bf16.mxu0 0
  %4261 = vmatmul.mubr.bf16.gmra.mrb[0].mxu0 %v4175
  %v4262 = vpop.f32.mrb[0].mxu0
  %v4263 = vadd.f32 0.0, %v4262
  %v4264 = vpop.f32.mrb[0].mxu0
  %v4265 = vpop.f32.mrb[0].mxu0
  %v4266 = vadd.f32 0.0, %v4265
  %v4267 = vpop.f32.mrb[0].mxu0
  %4268 = vmatprep.mubr.bf16.mxu0 0
  %4269 = vmatmul.mubr.bf16.gmra.mrb[0].mxu0 %v4178
  %v4270 = vpop.f32.mrb[0].mxu0
  %v4271 = vadd.f32 0.0, %v4270
  %v4272 = vpop.f32.mrb[0].mxu0
  %v4273 = vpop.f32.mrb[0].mxu0
  %v4274 = vadd.f32 0.0, %v4273
  %v4275 = vpop.f32.mrb[0].mxu0
  %4276 = vdwg.mxu0
  %v4277 = vadd.f32 %v4081, %v4215
  %v4278 = vadd.f32 %v4082, %v4218
  %v4279 = vadd.f32 %v4083, %v4223
  %v4280 = vadd.f32 %v4084, %v4226
  %v4281 = vadd.f32 %v4085, %v4231
  %v4282 = vadd.f32 %v4086, %v4234
  %v4283 = vadd.f32 %v4087, %v4239
  %v4284 = vadd.f32 %v4088, %v4242
  %v4285 = vadd.f32 %v4089, %v4247
  %v4286 = vadd.f32 %v4090, %v4250
  %v4287 = vadd.f32 %v4091, %v4255
  %v4288 = vadd.f32 %v4092, %v4258
  %v4289 = vadd.f32 %v4093, %v4263
  %v4290 = vadd.f32 %v4094, %v4266
  %v4291 = vadd.f32 %v4095, %v4271
  %v4292 = vadd.f32 %v4096, %v4274
  %v4293 = vmax.f32 %v3661, %v4277
  %v4294 = vmax.f32 %v3662, %v4278
  %v4295 = vmax.f32 %v3663, %v4279
  %v4296 = vmax.f32 %v3664, %v4280
  %v4297 = vmax.f32 %v3665, %v4281
  %v4298 = vmax.f32 %v3666, %v4282
  %v4299 = vmax.f32 %v3667, %v4283
  %v4300 = vmax.f32 %v3668, %v4284
  %v4301 = vmax.f32 %v3669, %v4285
  %v4302 = vmax.f32 %v3670, %v4286
  %v4303 = vmax.f32 %v3671, %v4287
  %v4304 = vmax.f32 %v3672, %v4288
  %v4305 = vmax.f32 %v3673, %v4289
  %v4306 = vmax.f32 %v3674, %v4290
  %v4307 = vmax.f32 %v3675, %v4291
  %v4308 = vmax.f32 %v3676, %v4292
  %4309 = vmatprep.subr.bf16.mxu0 0
  %4310 = vmatpush1.bf16.msra.mxu0 %v174
  %4311 = vmatprep.subr.bf16.mxu0 0
  %4312 = vmatpush1.bf16.msra.mxu0 %v175
  %4313 = vmatprep.subr.bf16.mxu0 0
  %4314 = vmatpush1.bf16.msra.mxu0 %v176
  %4315 = vmatprep.subr.bf16.mxu0 0
  %4316 = vmatpush1.bf16.msra.mxu0 %v177
  %4317 = vmatprep.subr.bf16.mxu0 0
  %4318 = vmatpush1.bf16.msra.mxu0 0
  %4319 = vmatprep.subr.bf16.mxu0 0
  %4320 = vmatpush1.bf16.msra.mxu0 0
  %4321 = vmatprep.subr.bf16.mxu0 0
  %4322 = vmatpush1.bf16.msra.mxu0 0
  %4323 = vmatprep.subr.bf16.mxu0 0
  %4324 = vmatpush1.bf16.msra.mxu0 0
  %4325 = vmatprep.subr.bf16.mxu0 0
  %4326 = vmatpush1.bf16.msra.mxu0 0
  %4327 = vmatprep.subr.bf16.mxu0 0
  %4328 = vmatpush1.bf16.msra.mxu0 0
  %4329 = vmatprep.subr.bf16.mxu0 0
  %4330 = vmatpush1.bf16.msra.mxu0 0
  %4331 = vmatprep.subr.bf16.mxu0 0
  %4332 = vmatpush1.bf16.msra.mxu0 0
  %4333 = vmatprep.subr.bf16.mxu0 0
  %4334 = vmatpush1.bf16.msra.mxu0 0
  %4335 = vmatprep.subr.bf16.mxu0 0
  %4336 = vmatpush1.bf16.msra.mxu0 0
  %4337 = vmatprep.subr.bf16.mxu0 0
  %4338 = vmatpush1.bf16.msra.mxu0 0
  %4339 = vmatprep.subr.bf16.mxu0 0
  %4340 = vmatpush1.bf16.msra.mxu0 0
  %4341 = vmatprep.mubr.bf16.mxu0 0
  %4342 = vmatmul.mubr.bf16.gmra.mrb[0].mxu0 %v2893
  %v4343 = vpop.f32.mrb[0].mxu0
  %v4344 = vadd.f32 0.0, %v4343
  %v4345 = vpop.f32.mrb[0].mxu0
  %v4346 = vpop.f32.mrb[0].mxu0
  %v4347 = vadd.f32 0.0, %v4346
  %v4348 = vpop.f32.mrb[0].mxu0
  %4349 = vmatprep.mubr.bf16.mxu0 0
  %4350 = vmatmul.mubr.bf16.gmra.mrb[0].mxu0 %v2896
  %v4351 = vpop.f32.mrb[0].mxu0
  %v4352 = vadd.f32 0.0, %v4351
  %v4353 = vpop.f32.mrb[0].mxu0
  %v4354 = vpop.f32.mrb[0].mxu0
  %v4355 = vadd.f32 0.0, %v4354
  %v4356 = vpop.f32.mrb[0].mxu0
  %4357 = vmatprep.mubr.bf16.mxu0 0
  %4358 = vmatmul.mubr.bf16.gmra.mrb[0].mxu0 %v2899
  %v4359 = vpop.f32.mrb[0].mxu0
  %v4360 = vadd.f32 0.0, %v4359
  %v4361 = vpop.f32.mrb[0].mxu0
  %v4362 = vpop.f32.mrb[0].mxu0
  %v4363 = vadd.f32 0.0, %v4362
  %v4364 = vpop.f32.mrb[0].mxu0
  %4365 = vmatprep.mubr.bf16.mxu0 0
  %4366 = vmatmul.mubr.bf16.gmra.mrb[0].mxu0 %v2902
  %v4367 = vpop.f32.mrb[0].mxu0
  %v4368 = vadd.f32 0.0, %v4367
  %v4369 = vpop.f32.mrb[0].mxu0
  %v4370 = vpop.f32.mrb[0].mxu0
  %v4371 = vadd.f32 0.0, %v4370
  %v4372 = vpop.f32.mrb[0].mxu0
  %4373 = vmatprep.mubr.bf16.mxu0 0
  %4374 = vmatmul.mubr.bf16.gmra.mrb[0].mxu0 %v2905
  %v4375 = vpop.f32.mrb[0].mxu0
  %v4376 = vadd.f32 0.0, %v4375
  %v4377 = vpop.f32.mrb[0].mxu0
  %v4378 = vpop.f32.mrb[0].mxu0
  %v4379 = vadd.f32 0.0, %v4378
  %v4380 = vpop.f32.mrb[0].mxu0
  %4381 = vmatprep.mubr.bf16.mxu0 0
  %4382 = vmatmul.mubr.bf16.gmra.mrb[0].mxu0 %v2908
  %v4383 = vpop.f32.mrb[0].mxu0
  %v4384 = vadd.f32 0.0, %v4383
  %v4385 = vpop.f32.mrb[0].mxu0
  %v4386 = vpop.f32.mrb[0].mxu0
  %v4387 = vadd.f32 0.0, %v4386
  %v4388 = vpop.f32.mrb[0].mxu0
  %4389 = vmatprep.mubr.bf16.mxu0 0
  %4390 = vmatmul.mubr.bf16.gmra.mrb[0].mxu0 %v2911
  %v4391 = vpop.f32.mrb[0].mxu0
  %v4392 = vadd.f32 0.0, %v4391
  %v4393 = vpop.f32.mrb[0].mxu0
  %v4394 = vpop.f32.mrb[0].mxu0
  %v4395 = vadd.f32 0.0, %v4394
  %v4396 = vpop.f32.mrb[0].mxu0
  %4397 = vmatprep.mubr.bf16.mxu0 0
  %4398 = vmatmul.mubr.bf16.gmra.mrb[0].mxu0 %v2914
  %v4399 = vpop.f32.mrb[0].mxu0
  %v4400 = vadd.f32 0.0, %v4399
  %v4401 = vpop.f32.mrb[0].mxu0
  %v4402 = vpop.f32.mrb[0].mxu0
  %v4403 = vadd.f32 0.0, %v4402
  %v4404 = vpop.f32.mrb[0].mxu0
  %4405 = vdwg.mxu0
  %4406 = vmatprep.subr.bf16.mxu0 0
  %4407 = vmatpush1.bf16.msra.mxu0 %v360
  %4408 = vmatprep.subr.bf16.mxu0 0
  %4409 = vmatpush1.bf16.msra.mxu0 %v361
  %4410 = vmatprep.subr.bf16.mxu0 0
  %4411 = vmatpush1.bf16.msra.mxu0 %v362
  %4412 = vmatprep.subr.bf16.mxu0 0
  %4413 = vmatpush1.bf16.msra.mxu0 %v363
  %4414 = vmatprep.subr.bf16.mxu0 0
  %4415 = vmatpush1.bf16.msra.mxu0 0
  %4416 = vmatprep.subr.bf16.mxu0 0
  %4417 = vmatpush1.bf16.msra.mxu0 0
  %4418 = vmatprep.subr.bf16.mxu0 0
  %4419 = vmatpush1.bf16.msra.mxu0 0
  %4420 = vmatprep.subr.bf16.mxu0 0
  %4421 = vmatpush1.bf16.msra.mxu0 0
  %4422 = vmatprep.subr.bf16.mxu0 0
  %4423 = vmatpush1.bf16.msra.mxu0 0
  %4424 = vmatprep.subr.bf16.mxu0 0
  %4425 = vmatpush1.bf16.msra.mxu0 0
  %4426 = vmatprep.subr.bf16.mxu0 0
  %4427 = vmatpush1.bf16.msra.mxu0 0
  %4428 = vmatprep.subr.bf16.mxu0 0
  %4429 = vmatpush1.bf16.msra.mxu0 0
  %4430 = vmatprep.subr.bf16.mxu0 0
  %4431 = vmatpush1.bf16.msra.mxu0 0
  %4432 = vmatprep.subr.bf16.mxu0 0
  %4433 = vmatpush1.bf16.msra.mxu0 0
  %4434 = vmatprep.subr.bf16.mxu0 0
  %4435 = vmatpush1.bf16.msra.mxu0 0
  %4436 = vmatprep.subr.bf16.mxu0 0
  %4437 = vmatpush1.bf16.msra.mxu0 0
  %4438 = vmatprep.mubr.bf16.mxu0 0
  %4439 = vmatmul.mubr.bf16.gmra.mrb[0].mxu0 %v2261
  %v4440 = vpop.f32.mrb[0].mxu0
  %v4441 = vadd.f32 %v4344, %v4440
  %v4442 = vpop.f32.mrb[0].mxu0
  %v4443 = vpop.f32.mrb[0].mxu0
  %v4444 = vadd.f32 %v4347, %v4443
  %v4445 = vpop.f32.mrb[0].mxu0
  %4446 = vmatprep.mubr.bf16.mxu0 0
  %4447 = vmatmul.mubr.bf16.gmra.mrb[0].mxu0 %v2264
  %v4448 = vpop.f32.mrb[0].mxu0
  %v4449 = vadd.f32 %v4352, %v4448
  %v4450 = vpop.f32.mrb[0].mxu0
  %v4451 = vpop.f32.mrb[0].mxu0
  %v4452 = vadd.f32 %v4355, %v4451
  %v4453 = vpop.f32.mrb[0].mxu0
  %4454 = vmatprep.mubr.bf16.mxu0 0
  %4455 = vmatmul.mubr.bf16.gmra.mrb[0].mxu0 %v2267
  %v4456 = vpop.f32.mrb[0].mxu0
  %v4457 = vadd.f32 %v4360, %v4456
  %v4458 = vpop.f32.mrb[0].mxu0
  %v4459 = vpop.f32.mrb[0].mxu0
  %v4460 = vadd.f32 %v4363, %v4459
  %v4461 = vpop.f32.mrb[0].mxu0
  %4462 = vmatprep.mubr.bf16.mxu0 0
  %4463 = vmatmul.mubr.bf16.gmra.mrb[0].mxu0 %v2270
  %v4464 = vpop.f32.mrb[0].mxu0
  %v4465 = vadd.f32 %v4368, %v4464
  %v4466 = vpop.f32.mrb[0].mxu0
  %v4467 = vpop.f32.mrb[0].mxu0
  %v4468 = vadd.f32 %v4371, %v4467
  %v4469 = vpop.f32.mrb[0].mxu0
  %4470 = vmatprep.mubr.bf16.mxu0 0
  %4471 = vmatmul.mubr.bf16.gmra.mrb[0].mxu0 %v2273
  %v4472 = vpop.f32.mrb[0].mxu0
  %v4473 = vadd.f32 %v4376, %v4472
  %v4474 = vpop.f32.mrb[0].mxu0
  %v4475 = vpop.f32.mrb[0].mxu0
  %v4476 = vadd.f32 %v4379, %v4475
  %v4477 = vpop.f32.mrb[0].mxu0
  %4478 = vmatprep.mubr.bf16.mxu0 0
  %4479 = vmatmul.mubr.bf16.gmra.mrb[0].mxu0 %v2276
  %v4480 = vpop.f32.mrb[0].mxu0
  %v4481 = vadd.f32 %v4384, %v4480
  %v4482 = vpop.f32.mrb[0].mxu0
  %v4483 = vpop.f32.mrb[0].mxu0
  %v4484 = vadd.f32 %v4387, %v4483
  %v4485 = vpop.f32.mrb[0].mxu0
  %4486 = vmatprep.mubr.bf16.mxu0 0
  %4487 = vmatmul.mubr.bf16.gmra.mrb[0].mxu0 %v2279
  %v4488 = vpop.f32.mrb[0].mxu0
  %v4489 = vadd.f32 %v4392, %v4488
  %v4490 = vpop.f32.mrb[0].mxu0
  %v4491 = vpop.f32.mrb[0].mxu0
  %v4492 = vadd.f32 %v4395, %v4491
  %v4493 = vpop.f32.mrb[0].mxu0
  %4494 = vmatprep.mubr.bf16.mxu0 0
  %4495 = vmatmul.mubr.bf16.gmra.mrb[0].mxu0 %v2282
  %v4496 = vpop.f32.mrb[0].mxu0
  %v4497 = vadd.f32 %v4400, %v4496
  %v4498 = vpop.f32.mrb[0].mxu0
  %v4499 = vpop.f32.mrb[0].mxu0
  %v4500 = vadd.f32 %v4403, %v4499
  %v4501 = vpop.f32.mrb[0].mxu0
  %4502 = vdwg.mxu0
  %4503 = vmatprep.subr.bf16.mxu0 0
  %4504 = vmatpush1.bf16.msra.mxu0 %v564
  %4505 = vmatprep.subr.bf16.mxu0 0
  %4506 = vmatpush1.bf16.msra.mxu0 %v565
  %4507 = vmatprep.subr.bf16.mxu0 0
  %4508 = vmatpush1.bf16.msra.mxu0 %v566
  %4509 = vmatprep.subr.bf16.mxu0 0
  %4510 = vmatpush1.bf16.msra.mxu0 %v567
  %4511 = vmatprep.subr.bf16.mxu0 0
  %4512 = vmatpush1.bf16.msra.mxu0 0
  %4513 = vmatprep.subr.bf16.mxu0 0
  %4514 = vmatpush1.bf16.msra.mxu0 0
  %4515 = vmatprep.subr.bf16.mxu0 0
  %4516 = vmatpush1.bf16.msra.mxu0 0
  %4517 = vmatprep.subr.bf16.mxu0 0
  %4518 = vmatpush1.bf16.msra.mxu0 0
  %4519 = vmatprep.subr.bf16.mxu0 0
  %4520 = vmatpush1.bf16.msra.mxu0 0
  %4521 = vmatprep.subr.bf16.mxu0 0
  %4522 = vmatpush1.bf16.msra.mxu0 0
  %4523 = vmatprep.subr.bf16.mxu0 0
  %4524 = vmatpush1.bf16.msra.mxu0 0
  %4525 = vmatprep.subr.bf16.mxu0 0
  %4526 = vmatpush1.bf16.msra.mxu0 0
  %4527 = vmatprep.subr.bf16.mxu0 0
  %4528 = vmatpush1.bf16.msra.mxu0 0
  %4529 = vmatprep.subr.bf16.mxu0 0
  %4530 = vmatpush1.bf16.msra.mxu0 0
  %4531 = vmatprep.subr.bf16.mxu0 0
  %4532 = vmatpush1.bf16.msra.mxu0 0
  %4533 = vmatprep.subr.bf16.mxu0 0
  %4534 = vmatpush1.bf16.msra.mxu0 0
  %4535 = vmatprep.mubr.bf16.mxu0 0
  %4536 = vmatmul.mubr.bf16.gmra.mrb[0].mxu0 %v3525
  %v4537 = vpop.f32.mrb[0].mxu0
  %v4538 = vadd.f32 0.0, %v4537
  %v4539 = vpop.f32.mrb[0].mxu0
  %v4540 = vpop.f32.mrb[0].mxu0
  %v4541 = vadd.f32 0.0, %v4540
  %v4542 = vpop.f32.mrb[0].mxu0
  %4543 = vmatprep.mubr.bf16.mxu0 0
  %4544 = vmatmul.mubr.bf16.gmra.mrb[0].mxu0 %v3528
  %v4545 = vpop.f32.mrb[0].mxu0
  %v4546 = vadd.f32 0.0, %v4545
  %v4547 = vpop.f32.mrb[0].mxu0
  %v4548 = vpop.f32.mrb[0].mxu0
  %v4549 = vadd.f32 0.0, %v4548
  %v4550 = vpop.f32.mrb[0].mxu0
  %4551 = vmatprep.mubr.bf16.mxu0 0
  %4552 = vmatmul.mubr.bf16.gmra.mrb[0].mxu0 %v3531
  %v4553 = vpop.f32.mrb[0].mxu0
  %v4554 = vadd.f32 0.0, %v4553
  %v4555 = vpop.f32.mrb[0].mxu0
  %v4556 = vpop.f32.mrb[0].mxu0
  %v4557 = vadd.f32 0.0, %v4556
  %v4558 = vpop.f32.mrb[0].mxu0
  %4559 = vmatprep.mubr.bf16.mxu0 0
  %4560 = vmatmul.mubr.bf16.gmra.mrb[0].mxu0 %v3534
  %v4561 = vpop.f32.mrb[0].mxu0
  %v4562 = vadd.f32 0.0, %v4561
  %v4563 = vpop.f32.mrb[0].mxu0
  %v4564 = vpop.f32.mrb[0].mxu0
  %v4565 = vadd.f32 0.0, %v4564
  %v4566 = vpop.f32.mrb[0].mxu0
  %4567 = vmatprep.mubr.bf16.mxu0 0
  %4568 = vmatmul.mubr.bf16.gmra.mrb[0].mxu0 %v3537
  %v4569 = vpop.f32.mrb[0].mxu0
  %v4570 = vadd.f32 0.0, %v4569
  %v4571 = vpop.f32.mrb[0].mxu0
  %v4572 = vpop.f32.mrb[0].mxu0
  %v4573 = vadd.f32 0.0, %v4572
  %v4574 = vpop.f32.mrb[0].mxu0
  %4575 = vmatprep.mubr.bf16.mxu0 0
  %4576 = vmatmul.mubr.bf16.gmra.mrb[0].mxu0 %v3540
  %v4577 = vpop.f32.mrb[0].mxu0
  %v4578 = vadd.f32 0.0, %v4577
  %v4579 = vpop.f32.mrb[0].mxu0
  %v4580 = vpop.f32.mrb[0].mxu0
  %v4581 = vadd.f32 0.0, %v4580
  %v4582 = vpop.f32.mrb[0].mxu0
  %4583 = vmatprep.mubr.bf16.mxu0 0
  %4584 = vmatmul.mubr.bf16.gmra.mrb[0].mxu0 %v3543
  %v4585 = vpop.f32.mrb[0].mxu0
  %v4586 = vadd.f32 0.0, %v4585
  %v4587 = vpop.f32.mrb[0].mxu0
  %v4588 = vpop.f32.mrb[0].mxu0
  %v4589 = vadd.f32 0.0, %v4588
  %v4590 = vpop.f32.mrb[0].mxu0
  %4591 = vmatprep.mubr.bf16.mxu0 0
  %4592 = vmatmul.mubr.bf16.gmra.mrb[0].mxu0 %v3546
  %v4593 = vpop.f32.mrb[0].mxu0
  %v4594 = vadd.f32 0.0, %v4593
  %v4595 = vpop.f32.mrb[0].mxu0
  %v4596 = vpop.f32.mrb[0].mxu0
  %v4597 = vadd.f32 0.0, %v4596
  %v4598 = vpop.f32.mrb[0].mxu0
  %4599 = vdwg.mxu0
  %v4600 = vadd.f32 %v4441, %v4538
  %v4601 = vadd.f32 %v4444, %v4541
  %v4602 = vadd.f32 %v4449, %v4546
  %v4603 = vadd.f32 %v4452, %v4549
  %v4604 = vadd.f32 %v4457, %v4554
  %v4605 = vadd.f32 %v4460, %v4557
  %v4606 = vadd.f32 %v4465, %v4562
  %v4607 = vadd.f32 %v4468, %v4565
  %v4608 = vadd.f32 %v4473, %v4570
  %v4609 = vadd.f32 %v4476, %v4573
  %v4610 = vadd.f32 %v4481, %v4578
  %v4611 = vadd.f32 %v4484, %v4581
  %v4612 = vadd.f32 %v4489, %v4586
  %v4613 = vadd.f32 %v4492, %v4589
  %v4614 = vadd.f32 %v4497, %v4594
  %v4615 = vadd.f32 %v4500, %v4597
  %4616 = vmatprep.subr.bf16.mxu0 0
  %4617 = vmatpush1.bf16.msra.mxu0 %v784
  %4618 = vmatprep.subr.bf16.mxu0 0
  %4619 = vmatpush1.bf16.msra.mxu0 %v785
  %4620 = vmatprep.subr.bf16.mxu0 0
  %4621 = vmatpush1.bf16.msra.mxu0 %v786
  %4622 = vmatprep.subr.bf16.mxu0 0
  %4623 = vmatpush1.bf16.msra.mxu0 %v787
  %4624 = vmatprep.subr.bf16.mxu0 0
  %4625 = vmatpush1.bf16.msra.mxu0 0
  %4626 = vmatprep.subr.bf16.mxu0 0
  %4627 = vmatpush1.bf16.msra.mxu0 0
  %4628 = vmatprep.subr.bf16.mxu0 0
  %4629 = vmatpush1.bf16.msra.mxu0 0
  %4630 = vmatprep.subr.bf16.mxu0 0
  %4631 = vmatpush1.bf16.msra.mxu0 0
  %4632 = vmatprep.subr.bf16.mxu0 0
  %4633 = vmatpush1.bf16.msra.mxu0 0
  %4634 = vmatprep.subr.bf16.mxu0 0
  %4635 = vmatpush1.bf16.msra.mxu0 0
  %4636 = vmatprep.subr.bf16.mxu0 0
  %4637 = vmatpush1.bf16.msra.mxu0 0
  %4638 = vmatprep.subr.bf16.mxu0 0
  %4639 = vmatpush1.bf16.msra.mxu0 0
  %4640 = vmatprep.subr.bf16.mxu0 0
  %4641 = vmatpush1.bf16.msra.mxu0 0
  %4642 = vmatprep.subr.bf16.mxu0 0
  %4643 = vmatpush1.bf16.msra.mxu0 0
  %4644 = vmatprep.subr.bf16.mxu0 0
  %4645 = vmatpush1.bf16.msra.mxu0 0
  %4646 = vmatprep.subr.bf16.mxu0 0
  %4647 = vmatpush1.bf16.msra.mxu0 0
  %4648 = vmatprep.mubr.bf16.mxu0 0
  %4649 = vmatmul.mubr.bf16.gmra.mrb[0].mxu0 %v4157
  %v4650 = vpop.f32.mrb[0].mxu0
  %v4651 = vadd.f32 0.0, %v4650
  %v4652 = vpop.f32.mrb[0].mxu0
  %v4653 = vpop.f32.mrb[0].mxu0
  %v4654 = vadd.f32 0.0, %v4653
  %v4655 = vpop.f32.mrb[0].mxu0
  %4656 = vmatprep.mubr.bf16.mxu0 0
  %4657 = vmatmul.mubr.bf16.gmra.mrb[0].mxu0 %v4160
  %v4658 = vpop.f32.mrb[0].mxu0
  %v4659 = vadd.f32 0.0, %v4658
  %v4660 = vpop.f32.mrb[0].mxu0
  %v4661 = vpop.f32.mrb[0].mxu0
  %v4662 = vadd.f32 0.0, %v4661
  %v4663 = vpop.f32.mrb[0].mxu0
  %4664 = vmatprep.mubr.bf16.mxu0 0
  %4665 = vmatmul.mubr.bf16.gmra.mrb[0].mxu0 %v4163
  %v4666 = vpop.f32.mrb[0].mxu0
  %v4667 = vadd.f32 0.0, %v4666
  %v4668 = vpop.f32.mrb[0].mxu0
  %v4669 = vpop.f32.mrb[0].mxu0
  %v4670 = vadd.f32 0.0, %v4669
  %v4671 = vpop.f32.mrb[0].mxu0
  %4672 = vmatprep.mubr.bf16.mxu0 0
  %4673 = vmatmul.mubr.bf16.gmra.mrb[0].mxu0 %v4166
  %v4674 = vpop.f32.mrb[0].mxu0
  %v4675 = vadd.f32 0.0, %v4674
  %v4676 = vpop.f32.mrb[0].mxu0
  %v4677 = vpop.f32.mrb[0].mxu0
  %v4678 = vadd.f32 0.0, %v4677
  %v4679 = vpop.f32.mrb[0].mxu0
  %4680 = vmatprep.mubr.bf16.mxu0 0
  %4681 = vmatmul.mubr.bf16.gmra.mrb[0].mxu0 %v4169
  %v4682 = vpop.f32.mrb[0].mxu0
  %v4683 = vadd.f32 0.0, %v4682
  %v4684 = vpop.f32.mrb[0].mxu0
  %v4685 = vpop.f32.mrb[0].mxu0
  %v4686 = vadd.f32 0.0, %v4685
  %v4687 = vpop.f32.mrb[0].mxu0
  %4688 = vmatprep.mubr.bf16.mxu0 0
  %4689 = vmatmul.mubr.bf16.gmra.mrb[0].mxu0 %v4172
  %v4690 = vpop.f32.mrb[0].mxu0
  %v4691 = vadd.f32 0.0, %v4690
  %v4692 = vpop.f32.mrb[0].mxu0
  %v4693 = vpop.f32.mrb[0].mxu0
  %v4694 = vadd.f32 0.0, %v4693
  %v4695 = vpop.f32.mrb[0].mxu0
  %4696 = vmatprep.mubr.bf16.mxu0 0
  %4697 = vmatmul.mubr.bf16.gmra.mrb[0].mxu0 %v4175
  %v4698 = vpop.f32.mrb[0].mxu0
  %v4699 = vadd.f32 0.0, %v4698
  %v4700 = vpop.f32.mrb[0].mxu0
  %v4701 = vpop.f32.mrb[0].mxu0
  %v4702 = vadd.f32 0.0, %v4701
  %v4703 = vpop.f32.mrb[0].mxu0
  %4704 = vmatprep.mubr.bf16.mxu0 0
  %4705 = vmatmul.mubr.bf16.gmra.mrb[0].mxu0 %v4178
  %v4706 = vpop.f32.mrb[0].mxu0
  %v4707 = vadd.f32 0.0, %v4706
  %v4708 = vpop.f32.mrb[0].mxu0
  %v4709 = vpop.f32.mrb[0].mxu0
  %v4710 = vadd.f32 0.0, %v4709
  %v4711 = vpop.f32.mrb[0].mxu0
  %4712 = vdwg.mxu0
  %v4713 = vadd.f32 %v4600, %v4651
  %v4714 = vadd.f32 %v4601, %v4654
  %v4715 = vadd.f32 %v4602, %v4659
  %v4716 = vadd.f32 %v4603, %v4662
  %v4717 = vadd.f32 %v4604, %v4667
  %v4718 = vadd.f32 %v4605, %v4670
  %v4719 = vadd.f32 %v4606, %v4675
  %v4720 = vadd.f32 %v4607, %v4678
  %v4721 = vadd.f32 %v4608, %v4683
  %v4722 = vadd.f32 %v4609, %v4686
  %v4723 = vadd.f32 %v4610, %v4691
  %v4724 = vadd.f32 %v4611, %v4694
  %v4725 = vadd.f32 %v4612, %v4699
  %v4726 = vadd.f32 %v4613, %v4702
  %v4727 = vadd.f32 %v4614, %v4707
  %v4728 = vadd.f32 %v4615, %v4710
  %s4729 = sadd.s32 0, 160
  %s4730 = smul.addr %s4729, 4
  %s4731 = scalar_lea.vmem %s0, %s4730
  %v4732 = vld [vmem:[%s4731] sm:$0xf]
  %v4733 = vld [vmem:[%s4731 + $0x4] sm:$0xf]
  %v4734 = vld [vmem:[%s4731 + $0x8] sm:$0xf]
  %v4735 = vld [vmem:[%s4731 + $0xc] sm:$0xf]
  %v4736 = vld [vmem:[%s4731 + $0x10] sm:$0xf]
  %v4737 = vld [vmem:[%s4731 + $0x14] sm:$0xf]
  %v4738 = vld [vmem:[%s4731 + $0x18] sm:$0xf]
  %v4739 = vld [vmem:[%s4731 + $0x1c] sm:$0xf]
  %v4740 = vld [vmem:[%s4731 + $0x20] sm:$0xf]
  %v4741 = vld [vmem:[%s4731 + $0x24] sm:$0xf]
  %v4742 = vld [vmem:[%s4731 + $0x28] sm:$0xf]
  %v4743 = vld [vmem:[%s4731 + $0x2c] sm:$0xf]
  %v4744 = vld [vmem:[%s4731 + $0x30] sm:$0xf]
  %v4745 = vld [vmem:[%s4731 + $0x34] sm:$0xf]
  %v4746 = vld [vmem:[%s4731 + $0x38] sm:$0xf]
  %v4747 = vld [vmem:[%s4731 + $0x3c] sm:$0xf]
  %v4764 = vunpack.c.l.b16 %v4732
  %v4765 = vunpack.c.l.b16 %v4733
  %v4766 = vunpack.c.l.b16 %v4734
  %v4767 = vunpack.c.l.b16 %v4735
  %v4768 = vunpack.c.l.b16 %v4736
  %v4769 = vunpack.c.l.b16 %v4737
  %v4770 = vunpack.c.l.b16 %v4738
  %v4771 = vunpack.c.l.b16 %v4739
  %v4772 = vunpack.c.l.b16 %v4740
  %v4773 = vunpack.c.l.b16 %v4741
  %v4774 = vunpack.c.l.b16 %v4742
  %v4775 = vunpack.c.l.b16 %v4743
  %v4776 = vunpack.c.l.b16 %v4744
  %v4777 = vunpack.c.l.b16 %v4745
  %v4778 = vunpack.c.l.b16 %v4746
  %v4779 = vunpack.c.l.b16 %v4747
  %v4780 = vpack.c.b16 %v4765, %v4764
  %v4781 = vpack.c.b16 %v4767, %v4766
  %v4782 = vpack.c.b16 %v4769, %v4768
  %v4783 = vpack.c.b16 %v4771, %v4770
  %v4784 = vpack.c.b16 %v4773, %v4772
  %v4785 = vpack.c.b16 %v4775, %v4774
  %v4786 = vpack.c.b16 %v4777, %v4776
  %v4787 = vpack.c.b16 %v4779, %v4778
  %v4789 = vsel %vm182, %v4780, 0
  %v4792 = vsel %vm182, %v4781, 0
  %v4795 = vsel %vm182, %v4782, 0
  %v4798 = vsel %vm182, %v4783, 0
  %v4801 = vsel %vm182, %v4784, 0
  %v4804 = vsel %vm182, %v4785, 0
  %v4807 = vsel %vm182, %v4786, 0
  %v4810 = vsel %vm182, %v4787, 0
  %4812 = vmatprep.subr.bf16.mxu0 0
  %4813 = vmatpush1.bf16.msra.mxu0 %v1004
  %4814 = vmatprep.subr.bf16.mxu0 0
  %4815 = vmatpush1.bf16.msra.mxu0 %v1005
  %4816 = vmatprep.subr.bf16.mxu0 0
  %4817 = vmatpush1.bf16.msra.mxu0 %v1006
  %4818 = vmatprep.subr.bf16.mxu0 0
  %4819 = vmatpush1.bf16.msra.mxu0 %v1007
  %4820 = vmatprep.subr.bf16.mxu0 0
  %4821 = vmatpush1.bf16.msra.mxu0 0
  %4822 = vmatprep.subr.bf16.mxu0 0
  %4823 = vmatpush1.bf16.msra.mxu0 0
  %4824 = vmatprep.subr.bf16.mxu0 0
  %4825 = vmatpush1.bf16.msra.mxu0 0
  %4826 = vmatprep.subr.bf16.mxu0 0
  %4827 = vmatpush1.bf16.msra.mxu0 0
  %4828 = vmatprep.subr.bf16.mxu0 0
  %4829 = vmatpush1.bf16.msra.mxu0 0
  %4830 = vmatprep.subr.bf16.mxu0 0
  %4831 = vmatpush1.bf16.msra.mxu0 0
  %4832 = vmatprep.subr.bf16.mxu0 0
  %4833 = vmatpush1.bf16.msra.mxu0 0
  %4834 = vmatprep.subr.bf16.mxu0 0
  %4835 = vmatpush1.bf16.msra.mxu0 0
  %4836 = vmatprep.subr.bf16.mxu0 0
  %4837 = vmatpush1.bf16.msra.mxu0 0
  %4838 = vmatprep.subr.bf16.mxu0 0
  %4839 = vmatpush1.bf16.msra.mxu0 0
  %4840 = vmatprep.subr.bf16.mxu0 0
  %4841 = vmatpush1.bf16.msra.mxu0 0
  %4842 = vmatprep.subr.bf16.mxu0 0
  %4843 = vmatpush1.bf16.msra.mxu0 0
  %4844 = vmatprep.mubr.bf16.mxu0 0
  %4845 = vmatmul.mubr.bf16.gmra.mrb[0].mxu0 %v4789
  %v4846 = vpop.f32.mrb[0].mxu0
  %v4847 = vadd.f32 0.0, %v4846
  %v4848 = vpop.f32.mrb[0].mxu0
  %v4849 = vpop.f32.mrb[0].mxu0
  %v4850 = vadd.f32 0.0, %v4849
  %v4851 = vpop.f32.mrb[0].mxu0
  %4852 = vmatprep.mubr.bf16.mxu0 0
  %4853 = vmatmul.mubr.bf16.gmra.mrb[0].mxu0 %v4792
  %v4854 = vpop.f32.mrb[0].mxu0
  %v4855 = vadd.f32 0.0, %v4854
  %v4856 = vpop.f32.mrb[0].mxu0
  %v4857 = vpop.f32.mrb[0].mxu0
  %v4858 = vadd.f32 0.0, %v4857
  %v4859 = vpop.f32.mrb[0].mxu0
  %4860 = vmatprep.mubr.bf16.mxu0 0
  %4861 = vmatmul.mubr.bf16.gmra.mrb[0].mxu0 %v4795
  %v4862 = vpop.f32.mrb[0].mxu0
  %v4863 = vadd.f32 0.0, %v4862
  %v4864 = vpop.f32.mrb[0].mxu0
  %v4865 = vpop.f32.mrb[0].mxu0
  %v4866 = vadd.f32 0.0, %v4865
  %v4867 = vpop.f32.mrb[0].mxu0
  %4868 = vmatprep.mubr.bf16.mxu0 0
  %4869 = vmatmul.mubr.bf16.gmra.mrb[0].mxu0 %v4798
  %v4870 = vpop.f32.mrb[0].mxu0
  %v4871 = vadd.f32 0.0, %v4870
  %v4872 = vpop.f32.mrb[0].mxu0
  %v4873 = vpop.f32.mrb[0].mxu0
  %v4874 = vadd.f32 0.0, %v4873
  %v4875 = vpop.f32.mrb[0].mxu0
  %4876 = vmatprep.mubr.bf16.mxu0 0
  %4877 = vmatmul.mubr.bf16.gmra.mrb[0].mxu0 %v4801
  %v4878 = vpop.f32.mrb[0].mxu0
  %v4879 = vadd.f32 0.0, %v4878
  %v4880 = vpop.f32.mrb[0].mxu0
  %v4881 = vpop.f32.mrb[0].mxu0
  %v4882 = vadd.f32 0.0, %v4881
  %v4883 = vpop.f32.mrb[0].mxu0
  %4884 = vmatprep.mubr.bf16.mxu0 0
  %4885 = vmatmul.mubr.bf16.gmra.mrb[0].mxu0 %v4804
  %v4886 = vpop.f32.mrb[0].mxu0
  %v4887 = vadd.f32 0.0, %v4886
  %v4888 = vpop.f32.mrb[0].mxu0
  %v4889 = vpop.f32.mrb[0].mxu0
  %v4890 = vadd.f32 0.0, %v4889
  %v4891 = vpop.f32.mrb[0].mxu0
  %4892 = vmatprep.mubr.bf16.mxu0 0
  %4893 = vmatmul.mubr.bf16.gmra.mrb[0].mxu0 %v4807
  %v4894 = vpop.f32.mrb[0].mxu0
  %v4895 = vadd.f32 0.0, %v4894
  %v4896 = vpop.f32.mrb[0].mxu0
  %v4897 = vpop.f32.mrb[0].mxu0
  %v4898 = vadd.f32 0.0, %v4897
  %v4899 = vpop.f32.mrb[0].mxu0
  %4900 = vmatprep.mubr.bf16.mxu0 0
  %4901 = vmatmul.mubr.bf16.gmra.mrb[0].mxu0 %v4810
  %v4902 = vpop.f32.mrb[0].mxu0
  %v4903 = vadd.f32 0.0, %v4902
  %v4904 = vpop.f32.mrb[0].mxu0
  %v4905 = vpop.f32.mrb[0].mxu0
  %v4906 = vadd.f32 0.0, %v4905
  %v4907 = vpop.f32.mrb[0].mxu0
  %4908 = vdwg.mxu0
  %v4909 = vadd.f32 %v4713, %v4847
  %v4910 = vadd.f32 %v4714, %v4850
  %v4911 = vadd.f32 %v4715, %v4855
  %v4912 = vadd.f32 %v4716, %v4858
  %v4913 = vadd.f32 %v4717, %v4863
  %v4914 = vadd.f32 %v4718, %v4866
  %v4915 = vadd.f32 %v4719, %v4871
  %v4916 = vadd.f32 %v4720, %v4874
  %v4917 = vadd.f32 %v4721, %v4879
  %v4918 = vadd.f32 %v4722, %v4882
  %v4919 = vadd.f32 %v4723, %v4887
  %v4920 = vadd.f32 %v4724, %v4890
  %v4921 = vadd.f32 %v4725, %v4895
  %v4922 = vadd.f32 %v4726, %v4898
  %v4923 = vadd.f32 %v4727, %v4903
  %v4924 = vadd.f32 %v4728, %v4906
  %v4925 = vmax.f32 %v4293, %v4909
  %v4926 = vmax.f32 %v4294, %v4910
  %v4927 = vmax.f32 %v4295, %v4911
  %v4928 = vmax.f32 %v4296, %v4912
  %v4929 = vmax.f32 %v4297, %v4913
  %v4930 = vmax.f32 %v4298, %v4914
  %v4931 = vmax.f32 %v4299, %v4915
  %v4932 = vmax.f32 %v4300, %v4916
  %v4933 = vmax.f32 %v4301, %v4917
  %v4934 = vmax.f32 %v4302, %v4918
  %v4935 = vmax.f32 %v4303, %v4919
  %v4936 = vmax.f32 %v4304, %v4920
  %v4937 = vmax.f32 %v4305, %v4921
  %v4938 = vmax.f32 %v4306, %v4922
  %v4939 = vmax.f32 %v4307, %v4923
  %v4940 = vmax.f32 %v4308, %v4924
  %4941 = vmatprep.subr.bf16.mxu0 0
  %4942 = vmatpush1.bf16.msra.mxu0 %v174
  %4943 = vmatprep.subr.bf16.mxu0 0
  %4944 = vmatpush1.bf16.msra.mxu0 %v175
  %4945 = vmatprep.subr.bf16.mxu0 0
  %4946 = vmatpush1.bf16.msra.mxu0 %v176
  %4947 = vmatprep.subr.bf16.mxu0 0
  %4948 = vmatpush1.bf16.msra.mxu0 %v177
  %4949 = vmatprep.subr.bf16.mxu0 0
  %4950 = vmatpush1.bf16.msra.mxu0 0
  %4951 = vmatprep.subr.bf16.mxu0 0
  %4952 = vmatpush1.bf16.msra.mxu0 0
  %4953 = vmatprep.subr.bf16.mxu0 0
  %4954 = vmatpush1.bf16.msra.mxu0 0
  %4955 = vmatprep.subr.bf16.mxu0 0
  %4956 = vmatpush1.bf16.msra.mxu0 0
  %4957 = vmatprep.subr.bf16.mxu0 0
  %4958 = vmatpush1.bf16.msra.mxu0 0
  %4959 = vmatprep.subr.bf16.mxu0 0
  %4960 = vmatpush1.bf16.msra.mxu0 0
  %4961 = vmatprep.subr.bf16.mxu0 0
  %4962 = vmatpush1.bf16.msra.mxu0 0
  %4963 = vmatprep.subr.bf16.mxu0 0
  %4964 = vmatpush1.bf16.msra.mxu0 0
  %4965 = vmatprep.subr.bf16.mxu0 0
  %4966 = vmatpush1.bf16.msra.mxu0 0
  %4967 = vmatprep.subr.bf16.mxu0 0
  %4968 = vmatpush1.bf16.msra.mxu0 0
  %4969 = vmatprep.subr.bf16.mxu0 0
  %4970 = vmatpush1.bf16.msra.mxu0 0
  %4971 = vmatprep.subr.bf16.mxu0 0
  %4972 = vmatpush1.bf16.msra.mxu0 0
  %4973 = vmatprep.mubr.bf16.mxu0 0
  %4974 = vmatmul.mubr.bf16.gmra.mrb[0].mxu0 %v3525
  %v4975 = vpop.f32.mrb[0].mxu0
  %v4976 = vadd.f32 0.0, %v4975
  %v4977 = vpop.f32.mrb[0].mxu0
  %v4978 = vpop.f32.mrb[0].mxu0
  %v4979 = vadd.f32 0.0, %v4978
  %v4980 = vpop.f32.mrb[0].mxu0
  %4981 = vmatprep.mubr.bf16.mxu0 0
  %4982 = vmatmul.mubr.bf16.gmra.mrb[0].mxu0 %v3528
  %v4983 = vpop.f32.mrb[0].mxu0
  %v4984 = vadd.f32 0.0, %v4983
  %v4985 = vpop.f32.mrb[0].mxu0
  %v4986 = vpop.f32.mrb[0].mxu0
  %v4987 = vadd.f32 0.0, %v4986
  %v4988 = vpop.f32.mrb[0].mxu0
  %4989 = vmatprep.mubr.bf16.mxu0 0
  %4990 = vmatmul.mubr.bf16.gmra.mrb[0].mxu0 %v3531
  %v4991 = vpop.f32.mrb[0].mxu0
  %v4992 = vadd.f32 0.0, %v4991
  %v4993 = vpop.f32.mrb[0].mxu0
  %v4994 = vpop.f32.mrb[0].mxu0
  %v4995 = vadd.f32 0.0, %v4994
  %v4996 = vpop.f32.mrb[0].mxu0
  %4997 = vmatprep.mubr.bf16.mxu0 0
  %4998 = vmatmul.mubr.bf16.gmra.mrb[0].mxu0 %v3534
  %v4999 = vpop.f32.mrb[0].mxu0
  %v5000 = vadd.f32 0.0, %v4999
  %v5001 = vpop.f32.mrb[0].mxu0
  %v5002 = vpop.f32.mrb[0].mxu0
  %v5003 = vadd.f32 0.0, %v5002
  %v5004 = vpop.f32.mrb[0].mxu0
  %5005 = vmatprep.mubr.bf16.mxu0 0
  %5006 = vmatmul.mubr.bf16.gmra.mrb[0].mxu0 %v3537
  %v5007 = vpop.f32.mrb[0].mxu0
  %v5008 = vadd.f32 0.0, %v5007
  %v5009 = vpop.f32.mrb[0].mxu0
  %v5010 = vpop.f32.mrb[0].mxu0
  %v5011 = vadd.f32 0.0, %v5010
  %v5012 = vpop.f32.mrb[0].mxu0
  %5013 = vmatprep.mubr.bf16.mxu0 0
  %5014 = vmatmul.mubr.bf16.gmra.mrb[0].mxu0 %v3540
  %v5015 = vpop.f32.mrb[0].mxu0
  %v5016 = vadd.f32 0.0, %v5015
  %v5017 = vpop.f32.mrb[0].mxu0
  %v5018 = vpop.f32.mrb[0].mxu0
  %v5019 = vadd.f32 0.0, %v5018
  %v5020 = vpop.f32.mrb[0].mxu0
  %5021 = vmatprep.mubr.bf16.mxu0 0
  %5022 = vmatmul.mubr.bf16.gmra.mrb[0].mxu0 %v3543
  %v5023 = vpop.f32.mrb[0].mxu0
  %v5024 = vadd.f32 0.0, %v5023
  %v5025 = vpop.f32.mrb[0].mxu0
  %v5026 = vpop.f32.mrb[0].mxu0
  %v5027 = vadd.f32 0.0, %v5026
  %v5028 = vpop.f32.mrb[0].mxu0
  %5029 = vmatprep.mubr.bf16.mxu0 0
  %5030 = vmatmul.mubr.bf16.gmra.mrb[0].mxu0 %v3546
  %v5031 = vpop.f32.mrb[0].mxu0
  %v5032 = vadd.f32 0.0, %v5031
  %v5033 = vpop.f32.mrb[0].mxu0
  %v5034 = vpop.f32.mrb[0].mxu0
  %v5035 = vadd.f32 0.0, %v5034
  %v5036 = vpop.f32.mrb[0].mxu0
  %5037 = vdwg.mxu0
  %5038 = vmatprep.subr.bf16.mxu0 0
  %5039 = vmatpush1.bf16.msra.mxu0 %v360
  %5040 = vmatprep.subr.bf16.mxu0 0
  %5041 = vmatpush1.bf16.msra.mxu0 %v361
  %5042 = vmatprep.subr.bf16.mxu0 0
  %5043 = vmatpush1.bf16.msra.mxu0 %v362
  %5044 = vmatprep.subr.bf16.mxu0 0
  %5045 = vmatpush1.bf16.msra.mxu0 %v363
  %5046 = vmatprep.subr.bf16.mxu0 0
  %5047 = vmatpush1.bf16.msra.mxu0 0
  %5048 = vmatprep.subr.bf16.mxu0 0
  %5049 = vmatpush1.bf16.msra.mxu0 0
  %5050 = vmatprep.subr.bf16.mxu0 0
  %5051 = vmatpush1.bf16.msra.mxu0 0
  %5052 = vmatprep.subr.bf16.mxu0 0
  %5053 = vmatpush1.bf16.msra.mxu0 0
  %5054 = vmatprep.subr.bf16.mxu0 0
  %5055 = vmatpush1.bf16.msra.mxu0 0
  %5056 = vmatprep.subr.bf16.mxu0 0
  %5057 = vmatpush1.bf16.msra.mxu0 0
  %5058 = vmatprep.subr.bf16.mxu0 0
  %5059 = vmatpush1.bf16.msra.mxu0 0
  %5060 = vmatprep.subr.bf16.mxu0 0
  %5061 = vmatpush1.bf16.msra.mxu0 0
  %5062 = vmatprep.subr.bf16.mxu0 0
  %5063 = vmatpush1.bf16.msra.mxu0 0
  %5064 = vmatprep.subr.bf16.mxu0 0
  %5065 = vmatpush1.bf16.msra.mxu0 0
  %5066 = vmatprep.subr.bf16.mxu0 0
  %5067 = vmatpush1.bf16.msra.mxu0 0
  %5068 = vmatprep.subr.bf16.mxu0 0
  %5069 = vmatpush1.bf16.msra.mxu0 0
  %5070 = vmatprep.mubr.bf16.mxu0 0
  %5071 = vmatmul.mubr.bf16.gmra.mrb[0].mxu0 %v2893
  %v5072 = vpop.f32.mrb[0].mxu0
  %v5073 = vadd.f32 %v4976, %v5072
  %v5074 = vpop.f32.mrb[0].mxu0
  %v5075 = vpop.f32.mrb[0].mxu0
  %v5076 = vadd.f32 %v4979, %v5075
  %v5077 = vpop.f32.mrb[0].mxu0
  %5078 = vmatprep.mubr.bf16.mxu0 0
  %5079 = vmatmul.mubr.bf16.gmra.mrb[0].mxu0 %v2896
  %v5080 = vpop.f32.mrb[0].mxu0
  %v5081 = vadd.f32 %v4984, %v5080
  %v5082 = vpop.f32.mrb[0].mxu0
  %v5083 = vpop.f32.mrb[0].mxu0
  %v5084 = vadd.f32 %v4987, %v5083
  %v5085 = vpop.f32.mrb[0].mxu0
  %5086 = vmatprep.mubr.bf16.mxu0 0
  %5087 = vmatmul.mubr.bf16.gmra.mrb[0].mxu0 %v2899
  %v5088 = vpop.f32.mrb[0].mxu0
  %v5089 = vadd.f32 %v4992, %v5088
  %v5090 = vpop.f32.mrb[0].mxu0
  %v5091 = vpop.f32.mrb[0].mxu0
  %v5092 = vadd.f32 %v4995, %v5091
  %v5093 = vpop.f32.mrb[0].mxu0
  %5094 = vmatprep.mubr.bf16.mxu0 0
  %5095 = vmatmul.mubr.bf16.gmra.mrb[0].mxu0 %v2902
  %v5096 = vpop.f32.mrb[0].mxu0
  %v5097 = vadd.f32 %v5000, %v5096
  %v5098 = vpop.f32.mrb[0].mxu0
  %v5099 = vpop.f32.mrb[0].mxu0
  %v5100 = vadd.f32 %v5003, %v5099
  %v5101 = vpop.f32.mrb[0].mxu0
  %5102 = vmatprep.mubr.bf16.mxu0 0
  %5103 = vmatmul.mubr.bf16.gmra.mrb[0].mxu0 %v2905
  %v5104 = vpop.f32.mrb[0].mxu0
  %v5105 = vadd.f32 %v5008, %v5104
  %v5106 = vpop.f32.mrb[0].mxu0
  %v5107 = vpop.f32.mrb[0].mxu0
  %v5108 = vadd.f32 %v5011, %v5107
  %v5109 = vpop.f32.mrb[0].mxu0
  %5110 = vmatprep.mubr.bf16.mxu0 0
  %5111 = vmatmul.mubr.bf16.gmra.mrb[0].mxu0 %v2908
  %v5112 = vpop.f32.mrb[0].mxu0
  %v5113 = vadd.f32 %v5016, %v5112
  %v5114 = vpop.f32.mrb[0].mxu0
  %v5115 = vpop.f32.mrb[0].mxu0
  %v5116 = vadd.f32 %v5019, %v5115
  %v5117 = vpop.f32.mrb[0].mxu0
  %5118 = vmatprep.mubr.bf16.mxu0 0
  %5119 = vmatmul.mubr.bf16.gmra.mrb[0].mxu0 %v2911
  %v5120 = vpop.f32.mrb[0].mxu0
  %v5121 = vadd.f32 %v5024, %v5120
  %v5122 = vpop.f32.mrb[0].mxu0
  %v5123 = vpop.f32.mrb[0].mxu0
  %v5124 = vadd.f32 %v5027, %v5123
  %v5125 = vpop.f32.mrb[0].mxu0
  %5126 = vmatprep.mubr.bf16.mxu0 0
  %5127 = vmatmul.mubr.bf16.gmra.mrb[0].mxu0 %v2914
  %v5128 = vpop.f32.mrb[0].mxu0
  %v5129 = vadd.f32 %v5032, %v5128
  %v5130 = vpop.f32.mrb[0].mxu0
  %v5131 = vpop.f32.mrb[0].mxu0
  %v5132 = vadd.f32 %v5035, %v5131
  %v5133 = vpop.f32.mrb[0].mxu0
  %5134 = vdwg.mxu0
  %5135 = vmatprep.subr.bf16.mxu0 0
  %5136 = vmatpush1.bf16.msra.mxu0 %v564
  %5137 = vmatprep.subr.bf16.mxu0 0
  %5138 = vmatpush1.bf16.msra.mxu0 %v565
  %5139 = vmatprep.subr.bf16.mxu0 0
  %5140 = vmatpush1.bf16.msra.mxu0 %v566
  %5141 = vmatprep.subr.bf16.mxu0 0
  %5142 = vmatpush1.bf16.msra.mxu0 %v567
  %5143 = vmatprep.subr.bf16.mxu0 0
  %5144 = vmatpush1.bf16.msra.mxu0 0
  %5145 = vmatprep.subr.bf16.mxu0 0
  %5146 = vmatpush1.bf16.msra.mxu0 0
  %5147 = vmatprep.subr.bf16.mxu0 0
  %5148 = vmatpush1.bf16.msra.mxu0 0
  %5149 = vmatprep.subr.bf16.mxu0 0
  %5150 = vmatpush1.bf16.msra.mxu0 0
  %5151 = vmatprep.subr.bf16.mxu0 0
  %5152 = vmatpush1.bf16.msra.mxu0 0
  %5153 = vmatprep.subr.bf16.mxu0 0
  %5154 = vmatpush1.bf16.msra.mxu0 0
  %5155 = vmatprep.subr.bf16.mxu0 0
  %5156 = vmatpush1.bf16.msra.mxu0 0
  %5157 = vmatprep.subr.bf16.mxu0 0
  %5158 = vmatpush1.bf16.msra.mxu0 0
  %5159 = vmatprep.subr.bf16.mxu0 0
  %5160 = vmatpush1.bf16.msra.mxu0 0
  %5161 = vmatprep.subr.bf16.mxu0 0
  %5162 = vmatpush1.bf16.msra.mxu0 0
  %5163 = vmatprep.subr.bf16.mxu0 0
  %5164 = vmatpush1.bf16.msra.mxu0 0
  %5165 = vmatprep.subr.bf16.mxu0 0
  %5166 = vmatpush1.bf16.msra.mxu0 0
  %5167 = vmatprep.mubr.bf16.mxu0 0
  %5168 = vmatmul.mubr.bf16.gmra.mrb[0].mxu0 %v4157
  %v5169 = vpop.f32.mrb[0].mxu0
  %v5170 = vadd.f32 0.0, %v5169
  %v5171 = vpop.f32.mrb[0].mxu0
  %v5172 = vpop.f32.mrb[0].mxu0
  %v5173 = vadd.f32 0.0, %v5172
  %v5174 = vpop.f32.mrb[0].mxu0
  %5175 = vmatprep.mubr.bf16.mxu0 0
  %5176 = vmatmul.mubr.bf16.gmra.mrb[0].mxu0 %v4160
  %v5177 = vpop.f32.mrb[0].mxu0
  %v5178 = vadd.f32 0.0, %v5177
  %v5179 = vpop.f32.mrb[0].mxu0
  %v5180 = vpop.f32.mrb[0].mxu0
  %v5181 = vadd.f32 0.0, %v5180
  %v5182 = vpop.f32.mrb[0].mxu0
  %5183 = vmatprep.mubr.bf16.mxu0 0
  %5184 = vmatmul.mubr.bf16.gmra.mrb[0].mxu0 %v4163
  %v5185 = vpop.f32.mrb[0].mxu0
  %v5186 = vadd.f32 0.0, %v5185
  %v5187 = vpop.f32.mrb[0].mxu0
  %v5188 = vpop.f32.mrb[0].mxu0
  %v5189 = vadd.f32 0.0, %v5188
  %v5190 = vpop.f32.mrb[0].mxu0
  %5191 = vmatprep.mubr.bf16.mxu0 0
  %5192 = vmatmul.mubr.bf16.gmra.mrb[0].mxu0 %v4166
  %v5193 = vpop.f32.mrb[0].mxu0
  %v5194 = vadd.f32 0.0, %v5193
  %v5195 = vpop.f32.mrb[0].mxu0
  %v5196 = vpop.f32.mrb[0].mxu0
  %v5197 = vadd.f32 0.0, %v5196
  %v5198 = vpop.f32.mrb[0].mxu0
  %5199 = vmatprep.mubr.bf16.mxu0 0
  %5200 = vmatmul.mubr.bf16.gmra.mrb[0].mxu0 %v4169
  %v5201 = vpop.f32.mrb[0].mxu0
  %v5202 = vadd.f32 0.0, %v5201
  %v5203 = vpop.f32.mrb[0].mxu0
  %v5204 = vpop.f32.mrb[0].mxu0
  %v5205 = vadd.f32 0.0, %v5204
  %v5206 = vpop.f32.mrb[0].mxu0
  %5207 = vmatprep.mubr.bf16.mxu0 0
  %5208 = vmatmul.mubr.bf16.gmra.mrb[0].mxu0 %v4172
  %v5209 = vpop.f32.mrb[0].mxu0
  %v5210 = vadd.f32 0.0, %v5209
  %v5211 = vpop.f32.mrb[0].mxu0
  %v5212 = vpop.f32.mrb[0].mxu0
  %v5213 = vadd.f32 0.0, %v5212
  %v5214 = vpop.f32.mrb[0].mxu0
  %5215 = vmatprep.mubr.bf16.mxu0 0
  %5216 = vmatmul.mubr.bf16.gmra.mrb[0].mxu0 %v4175
  %v5217 = vpop.f32.mrb[0].mxu0
  %v5218 = vadd.f32 0.0, %v5217
  %v5219 = vpop.f32.mrb[0].mxu0
  %v5220 = vpop.f32.mrb[0].mxu0
  %v5221 = vadd.f32 0.0, %v5220
  %v5222 = vpop.f32.mrb[0].mxu0
  %5223 = vmatprep.mubr.bf16.mxu0 0
  %5224 = vmatmul.mubr.bf16.gmra.mrb[0].mxu0 %v4178
  %v5225 = vpop.f32.mrb[0].mxu0
  %v5226 = vadd.f32 0.0, %v5225
  %v5227 = vpop.f32.mrb[0].mxu0
  %v5228 = vpop.f32.mrb[0].mxu0
  %v5229 = vadd.f32 0.0, %v5228
  %v5230 = vpop.f32.mrb[0].mxu0
  %5231 = vdwg.mxu0
  %v5232 = vadd.f32 %v5073, %v5170
  %v5233 = vadd.f32 %v5076, %v5173
  %v5234 = vadd.f32 %v5081, %v5178
  %v5235 = vadd.f32 %v5084, %v5181
  %v5236 = vadd.f32 %v5089, %v5186
  %v5237 = vadd.f32 %v5092, %v5189
  %v5238 = vadd.f32 %v5097, %v5194
  %v5239 = vadd.f32 %v5100, %v5197
  %v5240 = vadd.f32 %v5105, %v5202
  %v5241 = vadd.f32 %v5108, %v5205
  %v5242 = vadd.f32 %v5113, %v5210
  %v5243 = vadd.f32 %v5116, %v5213
  %v5244 = vadd.f32 %v5121, %v5218
  %v5245 = vadd.f32 %v5124, %v5221
  %v5246 = vadd.f32 %v5129, %v5226
  %v5247 = vadd.f32 %v5132, %v5229
  %5248 = vmatprep.subr.bf16.mxu0 0
  %5249 = vmatpush1.bf16.msra.mxu0 %v784
  %5250 = vmatprep.subr.bf16.mxu0 0
  %5251 = vmatpush1.bf16.msra.mxu0 %v785
  %5252 = vmatprep.subr.bf16.mxu0 0
  %5253 = vmatpush1.bf16.msra.mxu0 %v786
  %5254 = vmatprep.subr.bf16.mxu0 0
  %5255 = vmatpush1.bf16.msra.mxu0 %v787
  %5256 = vmatprep.subr.bf16.mxu0 0
  %5257 = vmatpush1.bf16.msra.mxu0 0
  %5258 = vmatprep.subr.bf16.mxu0 0
  %5259 = vmatpush1.bf16.msra.mxu0 0
  %5260 = vmatprep.subr.bf16.mxu0 0
  %5261 = vmatpush1.bf16.msra.mxu0 0
  %5262 = vmatprep.subr.bf16.mxu0 0
  %5263 = vmatpush1.bf16.msra.mxu0 0
  %5264 = vmatprep.subr.bf16.mxu0 0
  %5265 = vmatpush1.bf16.msra.mxu0 0
  %5266 = vmatprep.subr.bf16.mxu0 0
  %5267 = vmatpush1.bf16.msra.mxu0 0
  %5268 = vmatprep.subr.bf16.mxu0 0
  %5269 = vmatpush1.bf16.msra.mxu0 0
  %5270 = vmatprep.subr.bf16.mxu0 0
  %5271 = vmatpush1.bf16.msra.mxu0 0
  %5272 = vmatprep.subr.bf16.mxu0 0
  %5273 = vmatpush1.bf16.msra.mxu0 0
  %5274 = vmatprep.subr.bf16.mxu0 0
  %5275 = vmatpush1.bf16.msra.mxu0 0
  %5276 = vmatprep.subr.bf16.mxu0 0
  %5277 = vmatpush1.bf16.msra.mxu0 0
  %5278 = vmatprep.subr.bf16.mxu0 0
  %5279 = vmatpush1.bf16.msra.mxu0 0
  %5280 = vmatprep.mubr.bf16.mxu0 0
  %5281 = vmatmul.mubr.bf16.gmra.mrb[0].mxu0 %v4789
  %v5282 = vpop.f32.mrb[0].mxu0
  %v5283 = vadd.f32 0.0, %v5282
  %v5284 = vpop.f32.mrb[0].mxu0
  %v5285 = vpop.f32.mrb[0].mxu0
  %v5286 = vadd.f32 0.0, %v5285
  %v5287 = vpop.f32.mrb[0].mxu0
  %5288 = vmatprep.mubr.bf16.mxu0 0
  %5289 = vmatmul.mubr.bf16.gmra.mrb[0].mxu0 %v4792
  %v5290 = vpop.f32.mrb[0].mxu0
  %v5291 = vadd.f32 0.0, %v5290
  %v5292 = vpop.f32.mrb[0].mxu0
  %v5293 = vpop.f32.mrb[0].mxu0
  %v5294 = vadd.f32 0.0, %v5293
  %v5295 = vpop.f32.mrb[0].mxu0
  %5296 = vmatprep.mubr.bf16.mxu0 0
  %5297 = vmatmul.mubr.bf16.gmra.mrb[0].mxu0 %v4795
  %v5298 = vpop.f32.mrb[0].mxu0
  %v5299 = vadd.f32 0.0, %v5298
  %v5300 = vpop.f32.mrb[0].mxu0
  %v5301 = vpop.f32.mrb[0].mxu0
  %v5302 = vadd.f32 0.0, %v5301
  %v5303 = vpop.f32.mrb[0].mxu0
  %5304 = vmatprep.mubr.bf16.mxu0 0
  %5305 = vmatmul.mubr.bf16.gmra.mrb[0].mxu0 %v4798
  %v5306 = vpop.f32.mrb[0].mxu0
  %v5307 = vadd.f32 0.0, %v5306
  %v5308 = vpop.f32.mrb[0].mxu0
  %v5309 = vpop.f32.mrb[0].mxu0
  %v5310 = vadd.f32 0.0, %v5309
  %v5311 = vpop.f32.mrb[0].mxu0
  %5312 = vmatprep.mubr.bf16.mxu0 0
  %5313 = vmatmul.mubr.bf16.gmra.mrb[0].mxu0 %v4801
  %v5314 = vpop.f32.mrb[0].mxu0
  %v5315 = vadd.f32 0.0, %v5314
  %v5316 = vpop.f32.mrb[0].mxu0
  %v5317 = vpop.f32.mrb[0].mxu0
  %v5318 = vadd.f32 0.0, %v5317
  %v5319 = vpop.f32.mrb[0].mxu0
  %5320 = vmatprep.mubr.bf16.mxu0 0
  %5321 = vmatmul.mubr.bf16.gmra.mrb[0].mxu0 %v4804
  %v5322 = vpop.f32.mrb[0].mxu0
  %v5323 = vadd.f32 0.0, %v5322
  %v5324 = vpop.f32.mrb[0].mxu0
  %v5325 = vpop.f32.mrb[0].mxu0
  %v5326 = vadd.f32 0.0, %v5325
  %v5327 = vpop.f32.mrb[0].mxu0
  %5328 = vmatprep.mubr.bf16.mxu0 0
  %5329 = vmatmul.mubr.bf16.gmra.mrb[0].mxu0 %v4807
  %v5330 = vpop.f32.mrb[0].mxu0
  %v5331 = vadd.f32 0.0, %v5330
  %v5332 = vpop.f32.mrb[0].mxu0
  %v5333 = vpop.f32.mrb[0].mxu0
  %v5334 = vadd.f32 0.0, %v5333
  %v5335 = vpop.f32.mrb[0].mxu0
  %5336 = vmatprep.mubr.bf16.mxu0 0
  %5337 = vmatmul.mubr.bf16.gmra.mrb[0].mxu0 %v4810
  %v5338 = vpop.f32.mrb[0].mxu0
  %v5339 = vadd.f32 0.0, %v5338
  %v5340 = vpop.f32.mrb[0].mxu0
  %v5341 = vpop.f32.mrb[0].mxu0
  %v5342 = vadd.f32 0.0, %v5341
  %v5343 = vpop.f32.mrb[0].mxu0
  %5344 = vdwg.mxu0
  %v5345 = vadd.f32 %v5232, %v5283
  %v5346 = vadd.f32 %v5233, %v5286
  %v5347 = vadd.f32 %v5234, %v5291
  %v5348 = vadd.f32 %v5235, %v5294
  %v5349 = vadd.f32 %v5236, %v5299
  %v5350 = vadd.f32 %v5237, %v5302
  %v5351 = vadd.f32 %v5238, %v5307
  %v5352 = vadd.f32 %v5239, %v5310
  %v5353 = vadd.f32 %v5240, %v5315
  %v5354 = vadd.f32 %v5241, %v5318
  %v5355 = vadd.f32 %v5242, %v5323
  %v5356 = vadd.f32 %v5243, %v5326
  %v5357 = vadd.f32 %v5244, %v5331
  %v5358 = vadd.f32 %v5245, %v5334
  %v5359 = vadd.f32 %v5246, %v5339
  %v5360 = vadd.f32 %v5247, %v5342
  %s5361 = sadd.s32 0, 176
  %s5362 = smul.addr %s5361, 4
  %s5363 = scalar_lea.vmem %s0, %s5362
  %v5364 = vld [vmem:[%s5363] sm:$0xf]
  %v5365 = vld [vmem:[%s5363 + $0x4] sm:$0xf]
  %v5366 = vld [vmem:[%s5363 + $0x8] sm:$0xf]
  %v5367 = vld [vmem:[%s5363 + $0xc] sm:$0xf]
  %v5368 = vld [vmem:[%s5363 + $0x10] sm:$0xf]
  %v5369 = vld [vmem:[%s5363 + $0x14] sm:$0xf]
  %v5370 = vld [vmem:[%s5363 + $0x18] sm:$0xf]
  %v5371 = vld [vmem:[%s5363 + $0x1c] sm:$0xf]
  %v5372 = vld [vmem:[%s5363 + $0x20] sm:$0xf]
  %v5373 = vld [vmem:[%s5363 + $0x24] sm:$0xf]
  %v5374 = vld [vmem:[%s5363 + $0x28] sm:$0xf]
  %v5375 = vld [vmem:[%s5363 + $0x2c] sm:$0xf]
  %v5376 = vld [vmem:[%s5363 + $0x30] sm:$0xf]
  %v5377 = vld [vmem:[%s5363 + $0x34] sm:$0xf]
  %v5378 = vld [vmem:[%s5363 + $0x38] sm:$0xf]
  %v5379 = vld [vmem:[%s5363 + $0x3c] sm:$0xf]
  %v5396 = vunpack.c.l.b16 %v5364
  %v5397 = vunpack.c.l.b16 %v5365
  %v5398 = vunpack.c.l.b16 %v5366
  %v5399 = vunpack.c.l.b16 %v5367
  %v5400 = vunpack.c.l.b16 %v5368
  %v5401 = vunpack.c.l.b16 %v5369
  %v5402 = vunpack.c.l.b16 %v5370
  %v5403 = vunpack.c.l.b16 %v5371
  %v5404 = vunpack.c.l.b16 %v5372
  %v5405 = vunpack.c.l.b16 %v5373
  %v5406 = vunpack.c.l.b16 %v5374
  %v5407 = vunpack.c.l.b16 %v5375
  %v5408 = vunpack.c.l.b16 %v5376
  %v5409 = vunpack.c.l.b16 %v5377
  %v5410 = vunpack.c.l.b16 %v5378
  %v5411 = vunpack.c.l.b16 %v5379
  %v5412 = vpack.c.b16 %v5397, %v5396
  %v5413 = vpack.c.b16 %v5399, %v5398
  %v5414 = vpack.c.b16 %v5401, %v5400
  %v5415 = vpack.c.b16 %v5403, %v5402
  %v5416 = vpack.c.b16 %v5405, %v5404
  %v5417 = vpack.c.b16 %v5407, %v5406
  %v5418 = vpack.c.b16 %v5409, %v5408
  %v5419 = vpack.c.b16 %v5411, %v5410
  %v5421 = vsel %vm182, %v5412, 0
  %v5424 = vsel %vm182, %v5413, 0
  %v5427 = vsel %vm182, %v5414, 0
  %v5430 = vsel %vm182, %v5415, 0
  %v5433 = vsel %vm182, %v5416, 0
  %v5436 = vsel %vm182, %v5417, 0
  %v5439 = vsel %vm182, %v5418, 0
  %v5442 = vsel %vm182, %v5419, 0
  %5444 = vmatprep.subr.bf16.mxu0 0
  %5445 = vmatpush1.bf16.msra.mxu0 %v1004
  %5446 = vmatprep.subr.bf16.mxu0 0
  %5447 = vmatpush1.bf16.msra.mxu0 %v1005
  %5448 = vmatprep.subr.bf16.mxu0 0
  %5449 = vmatpush1.bf16.msra.mxu0 %v1006
  %5450 = vmatprep.subr.bf16.mxu0 0
  %5451 = vmatpush1.bf16.msra.mxu0 %v1007
  %5452 = vmatprep.subr.bf16.mxu0 0
  %5453 = vmatpush1.bf16.msra.mxu0 0
  %5454 = vmatprep.subr.bf16.mxu0 0
  %5455 = vmatpush1.bf16.msra.mxu0 0
  %5456 = vmatprep.subr.bf16.mxu0 0
  %5457 = vmatpush1.bf16.msra.mxu0 0
  %5458 = vmatprep.subr.bf16.mxu0 0
  %5459 = vmatpush1.bf16.msra.mxu0 0
  %5460 = vmatprep.subr.bf16.mxu0 0
  %5461 = vmatpush1.bf16.msra.mxu0 0
  %5462 = vmatprep.subr.bf16.mxu0 0
  %5463 = vmatpush1.bf16.msra.mxu0 0
  %5464 = vmatprep.subr.bf16.mxu0 0
  %5465 = vmatpush1.bf16.msra.mxu0 0
  %5466 = vmatprep.subr.bf16.mxu0 0
  %5467 = vmatpush1.bf16.msra.mxu0 0
  %5468 = vmatprep.subr.bf16.mxu0 0
  %5469 = vmatpush1.bf16.msra.mxu0 0
  %5470 = vmatprep.subr.bf16.mxu0 0
  %5471 = vmatpush1.bf16.msra.mxu0 0
  %5472 = vmatprep.subr.bf16.mxu0 0
  %5473 = vmatpush1.bf16.msra.mxu0 0
  %5474 = vmatprep.subr.bf16.mxu0 0
  %5475 = vmatpush1.bf16.msra.mxu0 0
  %5476 = vmatprep.mubr.bf16.mxu0 0
  %5477 = vmatmul.mubr.bf16.gmra.mrb[0].mxu0 %v5421
  %v5478 = vpop.f32.mrb[0].mxu0
  %v5479 = vadd.f32 0.0, %v5478
  %v5480 = vpop.f32.mrb[0].mxu0
  %v5481 = vpop.f32.mrb[0].mxu0
  %v5482 = vadd.f32 0.0, %v5481
  %v5483 = vpop.f32.mrb[0].mxu0
  %5484 = vmatprep.mubr.bf16.mxu0 0
  %5485 = vmatmul.mubr.bf16.gmra.mrb[0].mxu0 %v5424
  %v5486 = vpop.f32.mrb[0].mxu0
  %v5487 = vadd.f32 0.0, %v5486
  %v5488 = vpop.f32.mrb[0].mxu0
  %v5489 = vpop.f32.mrb[0].mxu0
  %v5490 = vadd.f32 0.0, %v5489
  %v5491 = vpop.f32.mrb[0].mxu0
  %5492 = vmatprep.mubr.bf16.mxu0 0
  %5493 = vmatmul.mubr.bf16.gmra.mrb[0].mxu0 %v5427
  %v5494 = vpop.f32.mrb[0].mxu0
  %v5495 = vadd.f32 0.0, %v5494
  %v5496 = vpop.f32.mrb[0].mxu0
  %v5497 = vpop.f32.mrb[0].mxu0
  %v5498 = vadd.f32 0.0, %v5497
  %v5499 = vpop.f32.mrb[0].mxu0
  %5500 = vmatprep.mubr.bf16.mxu0 0
  %5501 = vmatmul.mubr.bf16.gmra.mrb[0].mxu0 %v5430
  %v5502 = vpop.f32.mrb[0].mxu0
  %v5503 = vadd.f32 0.0, %v5502
  %v5504 = vpop.f32.mrb[0].mxu0
  %v5505 = vpop.f32.mrb[0].mxu0
  %v5506 = vadd.f32 0.0, %v5505
  %v5507 = vpop.f32.mrb[0].mxu0
  %5508 = vmatprep.mubr.bf16.mxu0 0
  %5509 = vmatmul.mubr.bf16.gmra.mrb[0].mxu0 %v5433
  %v5510 = vpop.f32.mrb[0].mxu0
  %v5511 = vadd.f32 0.0, %v5510
  %v5512 = vpop.f32.mrb[0].mxu0
  %v5513 = vpop.f32.mrb[0].mxu0
  %v5514 = vadd.f32 0.0, %v5513
  %v5515 = vpop.f32.mrb[0].mxu0
  %5516 = vmatprep.mubr.bf16.mxu0 0
  %5517 = vmatmul.mubr.bf16.gmra.mrb[0].mxu0 %v5436
  %v5518 = vpop.f32.mrb[0].mxu0
  %v5519 = vadd.f32 0.0, %v5518
  %v5520 = vpop.f32.mrb[0].mxu0
  %v5521 = vpop.f32.mrb[0].mxu0
  %v5522 = vadd.f32 0.0, %v5521
  %v5523 = vpop.f32.mrb[0].mxu0
  %5524 = vmatprep.mubr.bf16.mxu0 0
  %5525 = vmatmul.mubr.bf16.gmra.mrb[0].mxu0 %v5439
  %v5526 = vpop.f32.mrb[0].mxu0
  %v5527 = vadd.f32 0.0, %v5526
  %v5528 = vpop.f32.mrb[0].mxu0
  %v5529 = vpop.f32.mrb[0].mxu0
  %v5530 = vadd.f32 0.0, %v5529
  %v5531 = vpop.f32.mrb[0].mxu0
  %5532 = vmatprep.mubr.bf16.mxu0 0
  %5533 = vmatmul.mubr.bf16.gmra.mrb[0].mxu0 %v5442
  %v5534 = vpop.f32.mrb[0].mxu0
  %v5535 = vadd.f32 0.0, %v5534
  %v5536 = vpop.f32.mrb[0].mxu0
  %v5537 = vpop.f32.mrb[0].mxu0
  %v5538 = vadd.f32 0.0, %v5537
  %v5539 = vpop.f32.mrb[0].mxu0
  %5540 = vdwg.mxu0
  %v5541 = vadd.f32 %v5345, %v5479
  %v5542 = vadd.f32 %v5346, %v5482
  %v5543 = vadd.f32 %v5347, %v5487
  %v5544 = vadd.f32 %v5348, %v5490
  %v5545 = vadd.f32 %v5349, %v5495
  %v5546 = vadd.f32 %v5350, %v5498
  %v5547 = vadd.f32 %v5351, %v5503
  %v5548 = vadd.f32 %v5352, %v5506
  %v5549 = vadd.f32 %v5353, %v5511
  %v5550 = vadd.f32 %v5354, %v5514
  %v5551 = vadd.f32 %v5355, %v5519
  %v5552 = vadd.f32 %v5356, %v5522
  %v5553 = vadd.f32 %v5357, %v5527
  %v5554 = vadd.f32 %v5358, %v5530
  %v5555 = vadd.f32 %v5359, %v5535
  %v5556 = vadd.f32 %v5360, %v5538
  %v5557 = vmax.f32 %v4925, %v5541
  %v5558 = vmax.f32 %v4926, %v5542
  %v5559 = vmax.f32 %v4927, %v5543
  %v5560 = vmax.f32 %v4928, %v5544
  %v5561 = vmax.f32 %v4929, %v5545
  %v5562 = vmax.f32 %v4930, %v5546
  %v5563 = vmax.f32 %v4931, %v5547
  %v5564 = vmax.f32 %v4932, %v5548
  %v5565 = vmax.f32 %v4933, %v5549
  %v5566 = vmax.f32 %v4934, %v5550
  %v5567 = vmax.f32 %v4935, %v5551
  %v5568 = vmax.f32 %v4936, %v5552
  %v5569 = vmax.f32 %v4937, %v5553
  %v5570 = vmax.f32 %v4938, %v5554
  %v5571 = vmax.f32 %v4939, %v5555
  %v5572 = vmax.f32 %v4940, %v5556
  %5573 = vmatprep.subr.bf16.mxu0 0
  %5574 = vmatpush1.bf16.msra.mxu0 %v174
  %5575 = vmatprep.subr.bf16.mxu0 0
  %5576 = vmatpush1.bf16.msra.mxu0 %v175
  %5577 = vmatprep.subr.bf16.mxu0 0
  %5578 = vmatpush1.bf16.msra.mxu0 %v176
  %5579 = vmatprep.subr.bf16.mxu0 0
  %5580 = vmatpush1.bf16.msra.mxu0 %v177
  %5581 = vmatprep.subr.bf16.mxu0 0
  %5582 = vmatpush1.bf16.msra.mxu0 0
  %5583 = vmatprep.subr.bf16.mxu0 0
  %5584 = vmatpush1.bf16.msra.mxu0 0
  %5585 = vmatprep.subr.bf16.mxu0 0
  %5586 = vmatpush1.bf16.msra.mxu0 0
  %5587 = vmatprep.subr.bf16.mxu0 0
  %5588 = vmatpush1.bf16.msra.mxu0 0
  %5589 = vmatprep.subr.bf16.mxu0 0
  %5590 = vmatpush1.bf16.msra.mxu0 0
  %5591 = vmatprep.subr.bf16.mxu0 0
  %5592 = vmatpush1.bf16.msra.mxu0 0
  %5593 = vmatprep.subr.bf16.mxu0 0
  %5594 = vmatpush1.bf16.msra.mxu0 0
  %5595 = vmatprep.subr.bf16.mxu0 0
  %5596 = vmatpush1.bf16.msra.mxu0 0
  %5597 = vmatprep.subr.bf16.mxu0 0
  %5598 = vmatpush1.bf16.msra.mxu0 0
  %5599 = vmatprep.subr.bf16.mxu0 0
  %5600 = vmatpush1.bf16.msra.mxu0 0
  %5601 = vmatprep.subr.bf16.mxu0 0
  %5602 = vmatpush1.bf16.msra.mxu0 0
  %5603 = vmatprep.subr.bf16.mxu0 0
  %5604 = vmatpush1.bf16.msra.mxu0 0
  %5605 = vmatprep.mubr.bf16.mxu0 0
  %5606 = vmatmul.mubr.bf16.gmra.mrb[0].mxu0 %v4157
  %v5607 = vpop.f32.mrb[0].mxu0
  %v5608 = vadd.f32 0.0, %v5607
  %v5609 = vpop.f32.mrb[0].mxu0
  %v5610 = vpop.f32.mrb[0].mxu0
  %v5611 = vadd.f32 0.0, %v5610
  %v5612 = vpop.f32.mrb[0].mxu0
  %5613 = vmatprep.mubr.bf16.mxu0 0
  %5614 = vmatmul.mubr.bf16.gmra.mrb[0].mxu0 %v4160
  %v5615 = vpop.f32.mrb[0].mxu0
  %v5616 = vadd.f32 0.0, %v5615
  %v5617 = vpop.f32.mrb[0].mxu0
  %v5618 = vpop.f32.mrb[0].mxu0
  %v5619 = vadd.f32 0.0, %v5618
  %v5620 = vpop.f32.mrb[0].mxu0
  %5621 = vmatprep.mubr.bf16.mxu0 0
  %5622 = vmatmul.mubr.bf16.gmra.mrb[0].mxu0 %v4163
  %v5623 = vpop.f32.mrb[0].mxu0
  %v5624 = vadd.f32 0.0, %v5623
  %v5625 = vpop.f32.mrb[0].mxu0
  %v5626 = vpop.f32.mrb[0].mxu0
  %v5627 = vadd.f32 0.0, %v5626
  %v5628 = vpop.f32.mrb[0].mxu0
  %5629 = vmatprep.mubr.bf16.mxu0 0
  %5630 = vmatmul.mubr.bf16.gmra.mrb[0].mxu0 %v4166
  %v5631 = vpop.f32.mrb[0].mxu0
  %v5632 = vadd.f32 0.0, %v5631
  %v5633 = vpop.f32.mrb[0].mxu0
  %v5634 = vpop.f32.mrb[0].mxu0
  %v5635 = vadd.f32 0.0, %v5634
  %v5636 = vpop.f32.mrb[0].mxu0
  %5637 = vmatprep.mubr.bf16.mxu0 0
  %5638 = vmatmul.mubr.bf16.gmra.mrb[0].mxu0 %v4169
  %v5639 = vpop.f32.mrb[0].mxu0
  %v5640 = vadd.f32 0.0, %v5639
  %v5641 = vpop.f32.mrb[0].mxu0
  %v5642 = vpop.f32.mrb[0].mxu0
  %v5643 = vadd.f32 0.0, %v5642
  %v5644 = vpop.f32.mrb[0].mxu0
  %5645 = vmatprep.mubr.bf16.mxu0 0
  %5646 = vmatmul.mubr.bf16.gmra.mrb[0].mxu0 %v4172
  %v5647 = vpop.f32.mrb[0].mxu0
  %v5648 = vadd.f32 0.0, %v5647
  %v5649 = vpop.f32.mrb[0].mxu0
  %v5650 = vpop.f32.mrb[0].mxu0
  %v5651 = vadd.f32 0.0, %v5650
  %v5652 = vpop.f32.mrb[0].mxu0
  %5653 = vmatprep.mubr.bf16.mxu0 0
  %5654 = vmatmul.mubr.bf16.gmra.mrb[0].mxu0 %v4175
  %v5655 = vpop.f32.mrb[0].mxu0
  %v5656 = vadd.f32 0.0, %v5655
  %v5657 = vpop.f32.mrb[0].mxu0
  %v5658 = vpop.f32.mrb[0].mxu0
  %v5659 = vadd.f32 0.0, %v5658
  %v5660 = vpop.f32.mrb[0].mxu0
  %5661 = vmatprep.mubr.bf16.mxu0 0
  %5662 = vmatmul.mubr.bf16.gmra.mrb[0].mxu0 %v4178
  %v5663 = vpop.f32.mrb[0].mxu0
  %v5664 = vadd.f32 0.0, %v5663
  %v5665 = vpop.f32.mrb[0].mxu0
  %v5666 = vpop.f32.mrb[0].mxu0
  %v5667 = vadd.f32 0.0, %v5666
  %v5668 = vpop.f32.mrb[0].mxu0
  %5669 = vdwg.mxu0
  %5670 = vmatprep.subr.bf16.mxu0 0
  %5671 = vmatpush1.bf16.msra.mxu0 %v360
  %5672 = vmatprep.subr.bf16.mxu0 0
  %5673 = vmatpush1.bf16.msra.mxu0 %v361
  %5674 = vmatprep.subr.bf16.mxu0 0
  %5675 = vmatpush1.bf16.msra.mxu0 %v362
  %5676 = vmatprep.subr.bf16.mxu0 0
  %5677 = vmatpush1.bf16.msra.mxu0 %v363
  %5678 = vmatprep.subr.bf16.mxu0 0
  %5679 = vmatpush1.bf16.msra.mxu0 0
  %5680 = vmatprep.subr.bf16.mxu0 0
  %5681 = vmatpush1.bf16.msra.mxu0 0
  %5682 = vmatprep.subr.bf16.mxu0 0
  %5683 = vmatpush1.bf16.msra.mxu0 0
  %5684 = vmatprep.subr.bf16.mxu0 0
  %5685 = vmatpush1.bf16.msra.mxu0 0
  %5686 = vmatprep.subr.bf16.mxu0 0
  %5687 = vmatpush1.bf16.msra.mxu0 0
  %5688 = vmatprep.subr.bf16.mxu0 0
  %5689 = vmatpush1.bf16.msra.mxu0 0
  %5690 = vmatprep.subr.bf16.mxu0 0
  %5691 = vmatpush1.bf16.msra.mxu0 0
  %5692 = vmatprep.subr.bf16.mxu0 0
  %5693 = vmatpush1.bf16.msra.mxu0 0
  %5694 = vmatprep.subr.bf16.mxu0 0
  %5695 = vmatpush1.bf16.msra.mxu0 0
  %5696 = vmatprep.subr.bf16.mxu0 0
  %5697 = vmatpush1.bf16.msra.mxu0 0
  %5698 = vmatprep.subr.bf16.mxu0 0
  %5699 = vmatpush1.bf16.msra.mxu0 0
  %5700 = vmatprep.subr.bf16.mxu0 0
  %5701 = vmatpush1.bf16.msra.mxu0 0
  %5702 = vmatprep.mubr.bf16.mxu0 0
  %5703 = vmatmul.mubr.bf16.gmra.mrb[0].mxu0 %v3525
  %v5704 = vpop.f32.mrb[0].mxu0
  %v5705 = vadd.f32 %v5608, %v5704
  %v5706 = vpop.f32.mrb[0].mxu0
  %v5707 = vpop.f32.mrb[0].mxu0
  %v5708 = vadd.f32 %v5611, %v5707
  %v5709 = vpop.f32.mrb[0].mxu0
  %5710 = vmatprep.mubr.bf16.mxu0 0
  %5711 = vmatmul.mubr.bf16.gmra.mrb[0].mxu0 %v3528
  %v5712 = vpop.f32.mrb[0].mxu0
  %v5713 = vadd.f32 %v5616, %v5712
  %v5714 = vpop.f32.mrb[0].mxu0
  %v5715 = vpop.f32.mrb[0].mxu0
  %v5716 = vadd.f32 %v5619, %v5715
  %v5717 = vpop.f32.mrb[0].mxu0
  %5718 = vmatprep.mubr.bf16.mxu0 0
  %5719 = vmatmul.mubr.bf16.gmra.mrb[0].mxu0 %v3531
  %v5720 = vpop.f32.mrb[0].mxu0
  %v5721 = vadd.f32 %v5624, %v5720
  %v5722 = vpop.f32.mrb[0].mxu0
  %v5723 = vpop.f32.mrb[0].mxu0
  %v5724 = vadd.f32 %v5627, %v5723
  %v5725 = vpop.f32.mrb[0].mxu0
  %5726 = vmatprep.mubr.bf16.mxu0 0
  %5727 = vmatmul.mubr.bf16.gmra.mrb[0].mxu0 %v3534
  %v5728 = vpop.f32.mrb[0].mxu0
  %v5729 = vadd.f32 %v5632, %v5728
  %v5730 = vpop.f32.mrb[0].mxu0
  %v5731 = vpop.f32.mrb[0].mxu0
  %v5732 = vadd.f32 %v5635, %v5731
  %v5733 = vpop.f32.mrb[0].mxu0
  %5734 = vmatprep.mubr.bf16.mxu0 0
  %5735 = vmatmul.mubr.bf16.gmra.mrb[0].mxu0 %v3537
  %v5736 = vpop.f32.mrb[0].mxu0
  %v5737 = vadd.f32 %v5640, %v5736
  %v5738 = vpop.f32.mrb[0].mxu0
  %v5739 = vpop.f32.mrb[0].mxu0
  %v5740 = vadd.f32 %v5643, %v5739
  %v5741 = vpop.f32.mrb[0].mxu0
  %5742 = vmatprep.mubr.bf16.mxu0 0
  %5743 = vmatmul.mubr.bf16.gmra.mrb[0].mxu0 %v3540
  %v5744 = vpop.f32.mrb[0].mxu0
  %v5745 = vadd.f32 %v5648, %v5744
  %v5746 = vpop.f32.mrb[0].mxu0
  %v5747 = vpop.f32.mrb[0].mxu0
  %v5748 = vadd.f32 %v5651, %v5747
  %v5749 = vpop.f32.mrb[0].mxu0
  %5750 = vmatprep.mubr.bf16.mxu0 0
  %5751 = vmatmul.mubr.bf16.gmra.mrb[0].mxu0 %v3543
  %v5752 = vpop.f32.mrb[0].mxu0
  %v5753 = vadd.f32 %v5656, %v5752
  %v5754 = vpop.f32.mrb[0].mxu0
  %v5755 = vpop.f32.mrb[0].mxu0
  %v5756 = vadd.f32 %v5659, %v5755
  %v5757 = vpop.f32.mrb[0].mxu0
  %5758 = vmatprep.mubr.bf16.mxu0 0
  %5759 = vmatmul.mubr.bf16.gmra.mrb[0].mxu0 %v3546
  %v5760 = vpop.f32.mrb[0].mxu0
  %v5761 = vadd.f32 %v5664, %v5760
  %v5762 = vpop.f32.mrb[0].mxu0
  %v5763 = vpop.f32.mrb[0].mxu0
  %v5764 = vadd.f32 %v5667, %v5763
  %v5765 = vpop.f32.mrb[0].mxu0
  %5766 = vdwg.mxu0
  %5767 = vmatprep.subr.bf16.mxu0 0
  %5768 = vmatpush1.bf16.msra.mxu0 %v564
  %5769 = vmatprep.subr.bf16.mxu0 0
  %5770 = vmatpush1.bf16.msra.mxu0 %v565
  %5771 = vmatprep.subr.bf16.mxu0 0
  %5772 = vmatpush1.bf16.msra.mxu0 %v566
  %5773 = vmatprep.subr.bf16.mxu0 0
  %5774 = vmatpush1.bf16.msra.mxu0 %v567
  %5775 = vmatprep.subr.bf16.mxu0 0
  %5776 = vmatpush1.bf16.msra.mxu0 0
  %5777 = vmatprep.subr.bf16.mxu0 0
  %5778 = vmatpush1.bf16.msra.mxu0 0
  %5779 = vmatprep.subr.bf16.mxu0 0
  %5780 = vmatpush1.bf16.msra.mxu0 0
  %5781 = vmatprep.subr.bf16.mxu0 0
  %5782 = vmatpush1.bf16.msra.mxu0 0
  %5783 = vmatprep.subr.bf16.mxu0 0
  %5784 = vmatpush1.bf16.msra.mxu0 0
  %5785 = vmatprep.subr.bf16.mxu0 0
  %5786 = vmatpush1.bf16.msra.mxu0 0
  %5787 = vmatprep.subr.bf16.mxu0 0
  %5788 = vmatpush1.bf16.msra.mxu0 0
  %5789 = vmatprep.subr.bf16.mxu0 0
  %5790 = vmatpush1.bf16.msra.mxu0 0
  %5791 = vmatprep.subr.bf16.mxu0 0
  %5792 = vmatpush1.bf16.msra.mxu0 0
  %5793 = vmatprep.subr.bf16.mxu0 0
  %5794 = vmatpush1.bf16.msra.mxu0 0
  %5795 = vmatprep.subr.bf16.mxu0 0
  %5796 = vmatpush1.bf16.msra.mxu0 0
  %5797 = vmatprep.subr.bf16.mxu0 0
  %5798 = vmatpush1.bf16.msra.mxu0 0
  %5799 = vmatprep.mubr.bf16.mxu0 0
  %5800 = vmatmul.mubr.bf16.gmra.mrb[0].mxu0 %v4789
  %v5801 = vpop.f32.mrb[0].mxu0
  %v5802 = vadd.f32 0.0, %v5801
  %v5803 = vpop.f32.mrb[0].mxu0
  %v5804 = vpop.f32.mrb[0].mxu0
  %v5805 = vadd.f32 0.0, %v5804
  %v5806 = vpop.f32.mrb[0].mxu0
  %5807 = vmatprep.mubr.bf16.mxu0 0
  %5808 = vmatmul.mubr.bf16.gmra.mrb[0].mxu0 %v4792
  %v5809 = vpop.f32.mrb[0].mxu0
  %v5810 = vadd.f32 0.0, %v5809
  %v5811 = vpop.f32.mrb[0].mxu0
  %v5812 = vpop.f32.mrb[0].mxu0
  %v5813 = vadd.f32 0.0, %v5812
  %v5814 = vpop.f32.mrb[0].mxu0
  %5815 = vmatprep.mubr.bf16.mxu0 0
  %5816 = vmatmul.mubr.bf16.gmra.mrb[0].mxu0 %v4795
  %v5817 = vpop.f32.mrb[0].mxu0
  %v5818 = vadd.f32 0.0, %v5817
  %v5819 = vpop.f32.mrb[0].mxu0
  %v5820 = vpop.f32.mrb[0].mxu0
  %v5821 = vadd.f32 0.0, %v5820
  %v5822 = vpop.f32.mrb[0].mxu0
  %5823 = vmatprep.mubr.bf16.mxu0 0
  %5824 = vmatmul.mubr.bf16.gmra.mrb[0].mxu0 %v4798
  %v5825 = vpop.f32.mrb[0].mxu0
  %v5826 = vadd.f32 0.0, %v5825
  %v5827 = vpop.f32.mrb[0].mxu0
  %v5828 = vpop.f32.mrb[0].mxu0
  %v5829 = vadd.f32 0.0, %v5828
  %v5830 = vpop.f32.mrb[0].mxu0
  %5831 = vmatprep.mubr.bf16.mxu0 0
  %5832 = vmatmul.mubr.bf16.gmra.mrb[0].mxu0 %v4801
  %v5833 = vpop.f32.mrb[0].mxu0
  %v5834 = vadd.f32 0.0, %v5833
  %v5835 = vpop.f32.mrb[0].mxu0
  %v5836 = vpop.f32.mrb[0].mxu0
  %v5837 = vadd.f32 0.0, %v5836
  %v5838 = vpop.f32.mrb[0].mxu0
  %5839 = vmatprep.mubr.bf16.mxu0 0
  %5840 = vmatmul.mubr.bf16.gmra.mrb[0].mxu0 %v4804
  %v5841 = vpop.f32.mrb[0].mxu0
  %v5842 = vadd.f32 0.0, %v5841
  %v5843 = vpop.f32.mrb[0].mxu0
  %v5844 = vpop.f32.mrb[0].mxu0
  %v5845 = vadd.f32 0.0, %v5844
  %v5846 = vpop.f32.mrb[0].mxu0
  %5847 = vmatprep.mubr.bf16.mxu0 0
  %5848 = vmatmul.mubr.bf16.gmra.mrb[0].mxu0 %v4807
  %v5849 = vpop.f32.mrb[0].mxu0
  %v5850 = vadd.f32 0.0, %v5849
  %v5851 = vpop.f32.mrb[0].mxu0
  %v5852 = vpop.f32.mrb[0].mxu0
  %v5853 = vadd.f32 0.0, %v5852
  %v5854 = vpop.f32.mrb[0].mxu0
  %5855 = vmatprep.mubr.bf16.mxu0 0
  %5856 = vmatmul.mubr.bf16.gmra.mrb[0].mxu0 %v4810
  %v5857 = vpop.f32.mrb[0].mxu0
  %v5858 = vadd.f32 0.0, %v5857
  %v5859 = vpop.f32.mrb[0].mxu0
  %v5860 = vpop.f32.mrb[0].mxu0
  %v5861 = vadd.f32 0.0, %v5860
  %v5862 = vpop.f32.mrb[0].mxu0
  %5863 = vdwg.mxu0
  %v5864 = vadd.f32 %v5705, %v5802
  %v5865 = vadd.f32 %v5708, %v5805
  %v5866 = vadd.f32 %v5713, %v5810
  %v5867 = vadd.f32 %v5716, %v5813
  %v5868 = vadd.f32 %v5721, %v5818
  %v5869 = vadd.f32 %v5724, %v5821
  %v5870 = vadd.f32 %v5729, %v5826
  %v5871 = vadd.f32 %v5732, %v5829
  %v5872 = vadd.f32 %v5737, %v5834
  %v5873 = vadd.f32 %v5740, %v5837
  %v5874 = vadd.f32 %v5745, %v5842
  %v5875 = vadd.f32 %v5748, %v5845
  %v5876 = vadd.f32 %v5753, %v5850
  %v5877 = vadd.f32 %v5756, %v5853
  %v5878 = vadd.f32 %v5761, %v5858
  %v5879 = vadd.f32 %v5764, %v5861
  %5880 = vmatprep.subr.bf16.mxu0 0
  %5881 = vmatpush1.bf16.msra.mxu0 %v784
  %5882 = vmatprep.subr.bf16.mxu0 0
  %5883 = vmatpush1.bf16.msra.mxu0 %v785
  %5884 = vmatprep.subr.bf16.mxu0 0
  %5885 = vmatpush1.bf16.msra.mxu0 %v786
  %5886 = vmatprep.subr.bf16.mxu0 0
  %5887 = vmatpush1.bf16.msra.mxu0 %v787
  %5888 = vmatprep.subr.bf16.mxu0 0
  %5889 = vmatpush1.bf16.msra.mxu0 0
  %5890 = vmatprep.subr.bf16.mxu0 0
  %5891 = vmatpush1.bf16.msra.mxu0 0
  %5892 = vmatprep.subr.bf16.mxu0 0
  %5893 = vmatpush1.bf16.msra.mxu0 0
  %5894 = vmatprep.subr.bf16.mxu0 0
  %5895 = vmatpush1.bf16.msra.mxu0 0
  %5896 = vmatprep.subr.bf16.mxu0 0
  %5897 = vmatpush1.bf16.msra.mxu0 0
  %5898 = vmatprep.subr.bf16.mxu0 0
  %5899 = vmatpush1.bf16.msra.mxu0 0
  %5900 = vmatprep.subr.bf16.mxu0 0
  %5901 = vmatpush1.bf16.msra.mxu0 0
  %5902 = vmatprep.subr.bf16.mxu0 0
  %5903 = vmatpush1.bf16.msra.mxu0 0
  %5904 = vmatprep.subr.bf16.mxu0 0
  %5905 = vmatpush1.bf16.msra.mxu0 0
  %5906 = vmatprep.subr.bf16.mxu0 0
  %5907 = vmatpush1.bf16.msra.mxu0 0
  %5908 = vmatprep.subr.bf16.mxu0 0
  %5909 = vmatpush1.bf16.msra.mxu0 0
  %5910 = vmatprep.subr.bf16.mxu0 0
  %5911 = vmatpush1.bf16.msra.mxu0 0
  %5912 = vmatprep.mubr.bf16.mxu0 0
  %5913 = vmatmul.mubr.bf16.gmra.mrb[0].mxu0 %v5421
  %v5914 = vpop.f32.mrb[0].mxu0
  %v5915 = vadd.f32 0.0, %v5914
  %v5916 = vpop.f32.mrb[0].mxu0
  %v5917 = vpop.f32.mrb[0].mxu0
  %v5918 = vadd.f32 0.0, %v5917
  %v5919 = vpop.f32.mrb[0].mxu0
  %5920 = vmatprep.mubr.bf16.mxu0 0
  %5921 = vmatmul.mubr.bf16.gmra.mrb[0].mxu0 %v5424
  %v5922 = vpop.f32.mrb[0].mxu0
  %v5923 = vadd.f32 0.0, %v5922
  %v5924 = vpop.f32.mrb[0].mxu0
  %v5925 = vpop.f32.mrb[0].mxu0
  %v5926 = vadd.f32 0.0, %v5925
  %v5927 = vpop.f32.mrb[0].mxu0
  %5928 = vmatprep.mubr.bf16.mxu0 0
  %5929 = vmatmul.mubr.bf16.gmra.mrb[0].mxu0 %v5427
  %v5930 = vpop.f32.mrb[0].mxu0
  %v5931 = vadd.f32 0.0, %v5930
  %v5932 = vpop.f32.mrb[0].mxu0
  %v5933 = vpop.f32.mrb[0].mxu0
  %v5934 = vadd.f32 0.0, %v5933
  %v5935 = vpop.f32.mrb[0].mxu0
  %5936 = vmatprep.mubr.bf16.mxu0 0
  %5937 = vmatmul.mubr.bf16.gmra.mrb[0].mxu0 %v5430
  %v5938 = vpop.f32.mrb[0].mxu0
  %v5939 = vadd.f32 0.0, %v5938
  %v5940 = vpop.f32.mrb[0].mxu0
  %v5941 = vpop.f32.mrb[0].mxu0
  %v5942 = vadd.f32 0.0, %v5941
  %v5943 = vpop.f32.mrb[0].mxu0
  %5944 = vmatprep.mubr.bf16.mxu0 0
  %5945 = vmatmul.mubr.bf16.gmra.mrb[0].mxu0 %v5433
  %v5946 = vpop.f32.mrb[0].mxu0
  %v5947 = vadd.f32 0.0, %v5946
  %v5948 = vpop.f32.mrb[0].mxu0
  %v5949 = vpop.f32.mrb[0].mxu0
  %v5950 = vadd.f32 0.0, %v5949
  %v5951 = vpop.f32.mrb[0].mxu0
  %5952 = vmatprep.mubr.bf16.mxu0 0
  %5953 = vmatmul.mubr.bf16.gmra.mrb[0].mxu0 %v5436
  %v5954 = vpop.f32.mrb[0].mxu0
  %v5955 = vadd.f32 0.0, %v5954
  %v5956 = vpop.f32.mrb[0].mxu0
  %v5957 = vpop.f32.mrb[0].mxu0
  %v5958 = vadd.f32 0.0, %v5957
  %v5959 = vpop.f32.mrb[0].mxu0
  %5960 = vmatprep.mubr.bf16.mxu0 0
  %5961 = vmatmul.mubr.bf16.gmra.mrb[0].mxu0 %v5439
  %v5962 = vpop.f32.mrb[0].mxu0
  %v5963 = vadd.f32 0.0, %v5962
  %v5964 = vpop.f32.mrb[0].mxu0
  %v5965 = vpop.f32.mrb[0].mxu0
  %v5966 = vadd.f32 0.0, %v5965
  %v5967 = vpop.f32.mrb[0].mxu0
  %5968 = vmatprep.mubr.bf16.mxu0 0
  %5969 = vmatmul.mubr.bf16.gmra.mrb[0].mxu0 %v5442
  %v5970 = vpop.f32.mrb[0].mxu0
  %v5971 = vadd.f32 0.0, %v5970
  %v5972 = vpop.f32.mrb[0].mxu0
  %v5973 = vpop.f32.mrb[0].mxu0
  %v5974 = vadd.f32 0.0, %v5973
  %v5975 = vpop.f32.mrb[0].mxu0
  %5976 = vdwg.mxu0
  %v5977 = vadd.f32 %v5864, %v5915
  %v5978 = vadd.f32 %v5865, %v5918
  %v5979 = vadd.f32 %v5866, %v5923
  %v5980 = vadd.f32 %v5867, %v5926
  %v5981 = vadd.f32 %v5868, %v5931
  %v5982 = vadd.f32 %v5869, %v5934
  %v5983 = vadd.f32 %v5870, %v5939
  %v5984 = vadd.f32 %v5871, %v5942
  %v5985 = vadd.f32 %v5872, %v5947
  %v5986 = vadd.f32 %v5873, %v5950
  %v5987 = vadd.f32 %v5874, %v5955
  %v5988 = vadd.f32 %v5875, %v5958
  %v5989 = vadd.f32 %v5876, %v5963
  %v5990 = vadd.f32 %v5877, %v5966
  %v5991 = vadd.f32 %v5878, %v5971
  %v5992 = vadd.f32 %v5879, %v5974
  %s5993 = sadd.s32 0, 192
  %s5994 = smul.addr %s5993, 4
  %s5995 = scalar_lea.vmem %s0, %s5994
  %v5996 = vld [vmem:[%s5995] sm:$0xf]
  %v5997 = vld [vmem:[%s5995 + $0x4] sm:$0xf]
  %v5998 = vld [vmem:[%s5995 + $0x8] sm:$0xf]
  %v5999 = vld [vmem:[%s5995 + $0xc] sm:$0xf]
  %v6000 = vld [vmem:[%s5995 + $0x10] sm:$0xf]
  %v6001 = vld [vmem:[%s5995 + $0x14] sm:$0xf]
  %v6002 = vld [vmem:[%s5995 + $0x18] sm:$0xf]
  %v6003 = vld [vmem:[%s5995 + $0x1c] sm:$0xf]
  %v6004 = vld [vmem:[%s5995 + $0x20] sm:$0xf]
  %v6005 = vld [vmem:[%s5995 + $0x24] sm:$0xf]
  %v6006 = vld [vmem:[%s5995 + $0x28] sm:$0xf]
  %v6007 = vld [vmem:[%s5995 + $0x2c] sm:$0xf]
  %v6008 = vld [vmem:[%s5995 + $0x30] sm:$0xf]
  %v6009 = vld [vmem:[%s5995 + $0x34] sm:$0xf]
  %v6010 = vld [vmem:[%s5995 + $0x38] sm:$0xf]
  %v6011 = vld [vmem:[%s5995 + $0x3c] sm:$0xf]
  %v6028 = vunpack.c.l.b16 %v5996
  %v6029 = vunpack.c.l.b16 %v5997
  %v6030 = vunpack.c.l.b16 %v5998
  %v6031 = vunpack.c.l.b16 %v5999
  %v6032 = vunpack.c.l.b16 %v6000
  %v6033 = vunpack.c.l.b16 %v6001
  %v6034 = vunpack.c.l.b16 %v6002
  %v6035 = vunpack.c.l.b16 %v6003
  %v6036 = vunpack.c.l.b16 %v6004
  %v6037 = vunpack.c.l.b16 %v6005
  %v6038 = vunpack.c.l.b16 %v6006
  %v6039 = vunpack.c.l.b16 %v6007
  %v6040 = vunpack.c.l.b16 %v6008
  %v6041 = vunpack.c.l.b16 %v6009
  %v6042 = vunpack.c.l.b16 %v6010
  %v6043 = vunpack.c.l.b16 %v6011
  %v6044 = vpack.c.b16 %v6029, %v6028
  %v6045 = vpack.c.b16 %v6031, %v6030
  %v6046 = vpack.c.b16 %v6033, %v6032
  %v6047 = vpack.c.b16 %v6035, %v6034
  %v6048 = vpack.c.b16 %v6037, %v6036
  %v6049 = vpack.c.b16 %v6039, %v6038
  %v6050 = vpack.c.b16 %v6041, %v6040
  %v6051 = vpack.c.b16 %v6043, %v6042
  %v6053 = vsel %vm182, %v6044, 0
  %v6056 = vsel %vm182, %v6045, 0
  %v6059 = vsel %vm182, %v6046, 0
  %v6062 = vsel %vm182, %v6047, 0
  %v6065 = vsel %vm182, %v6048, 0
  %v6068 = vsel %vm182, %v6049, 0
  %v6071 = vsel %vm182, %v6050, 0
  %v6074 = vsel %vm182, %v6051, 0
  %6076 = vmatprep.subr.bf16.mxu0 0
  %6077 = vmatpush1.bf16.msra.mxu0 %v1004
  %6078 = vmatprep.subr.bf16.mxu0 0
  %6079 = vmatpush1.bf16.msra.mxu0 %v1005
  %6080 = vmatprep.subr.bf16.mxu0 0
  %6081 = vmatpush1.bf16.msra.mxu0 %v1006
  %6082 = vmatprep.subr.bf16.mxu0 0
  %6083 = vmatpush1.bf16.msra.mxu0 %v1007
  %6084 = vmatprep.subr.bf16.mxu0 0
  %6085 = vmatpush1.bf16.msra.mxu0 0
  %6086 = vmatprep.subr.bf16.mxu0 0
  %6087 = vmatpush1.bf16.msra.mxu0 0
  %6088 = vmatprep.subr.bf16.mxu0 0
  %6089 = vmatpush1.bf16.msra.mxu0 0
  %6090 = vmatprep.subr.bf16.mxu0 0
  %6091 = vmatpush1.bf16.msra.mxu0 0
  %6092 = vmatprep.subr.bf16.mxu0 0
  %6093 = vmatpush1.bf16.msra.mxu0 0
  %6094 = vmatprep.subr.bf16.mxu0 0
  %6095 = vmatpush1.bf16.msra.mxu0 0
  %6096 = vmatprep.subr.bf16.mxu0 0
  %6097 = vmatpush1.bf16.msra.mxu0 0
  %6098 = vmatprep.subr.bf16.mxu0 0
  %6099 = vmatpush1.bf16.msra.mxu0 0
  %6100 = vmatprep.subr.bf16.mxu0 0
  %6101 = vmatpush1.bf16.msra.mxu0 0
  %6102 = vmatprep.subr.bf16.mxu0 0
  %6103 = vmatpush1.bf16.msra.mxu0 0
  %6104 = vmatprep.subr.bf16.mxu0 0
  %6105 = vmatpush1.bf16.msra.mxu0 0
  %6106 = vmatprep.subr.bf16.mxu0 0
  %6107 = vmatpush1.bf16.msra.mxu0 0
  %6108 = vmatprep.mubr.bf16.mxu0 0
  %6109 = vmatmul.mubr.bf16.gmra.mrb[0].mxu0 %v6053
  %v6110 = vpop.f32.mrb[0].mxu0
  %v6111 = vadd.f32 0.0, %v6110
  %v6112 = vpop.f32.mrb[0].mxu0
  %v6113 = vpop.f32.mrb[0].mxu0
  %v6114 = vadd.f32 0.0, %v6113
  %v6115 = vpop.f32.mrb[0].mxu0
  %6116 = vmatprep.mubr.bf16.mxu0 0
  %6117 = vmatmul.mubr.bf16.gmra.mrb[0].mxu0 %v6056
  %v6118 = vpop.f32.mrb[0].mxu0
  %v6119 = vadd.f32 0.0, %v6118
  %v6120 = vpop.f32.mrb[0].mxu0
  %v6121 = vpop.f32.mrb[0].mxu0
  %v6122 = vadd.f32 0.0, %v6121
  %v6123 = vpop.f32.mrb[0].mxu0
  %6124 = vmatprep.mubr.bf16.mxu0 0
  %6125 = vmatmul.mubr.bf16.gmra.mrb[0].mxu0 %v6059
  %v6126 = vpop.f32.mrb[0].mxu0
  %v6127 = vadd.f32 0.0, %v6126
  %v6128 = vpop.f32.mrb[0].mxu0
  %v6129 = vpop.f32.mrb[0].mxu0
  %v6130 = vadd.f32 0.0, %v6129
  %v6131 = vpop.f32.mrb[0].mxu0
  %6132 = vmatprep.mubr.bf16.mxu0 0
  %6133 = vmatmul.mubr.bf16.gmra.mrb[0].mxu0 %v6062
  %v6134 = vpop.f32.mrb[0].mxu0
  %v6135 = vadd.f32 0.0, %v6134
  %v6136 = vpop.f32.mrb[0].mxu0
  %v6137 = vpop.f32.mrb[0].mxu0
  %v6138 = vadd.f32 0.0, %v6137
  %v6139 = vpop.f32.mrb[0].mxu0
  %6140 = vmatprep.mubr.bf16.mxu0 0
  %6141 = vmatmul.mubr.bf16.gmra.mrb[0].mxu0 %v6065
  %v6142 = vpop.f32.mrb[0].mxu0
  %v6143 = vadd.f32 0.0, %v6142
  %v6144 = vpop.f32.mrb[0].mxu0
  %v6145 = vpop.f32.mrb[0].mxu0
  %v6146 = vadd.f32 0.0, %v6145
  %v6147 = vpop.f32.mrb[0].mxu0
  %6148 = vmatprep.mubr.bf16.mxu0 0
  %6149 = vmatmul.mubr.bf16.gmra.mrb[0].mxu0 %v6068
  %v6150 = vpop.f32.mrb[0].mxu0
  %v6151 = vadd.f32 0.0, %v6150
  %v6152 = vpop.f32.mrb[0].mxu0
  %v6153 = vpop.f32.mrb[0].mxu0
  %v6154 = vadd.f32 0.0, %v6153
  %v6155 = vpop.f32.mrb[0].mxu0
  %6156 = vmatprep.mubr.bf16.mxu0 0
  %6157 = vmatmul.mubr.bf16.gmra.mrb[0].mxu0 %v6071
  %v6158 = vpop.f32.mrb[0].mxu0
  %v6159 = vadd.f32 0.0, %v6158
  %v6160 = vpop.f32.mrb[0].mxu0
  %v6161 = vpop.f32.mrb[0].mxu0
  %v6162 = vadd.f32 0.0, %v6161
  %v6163 = vpop.f32.mrb[0].mxu0
  %6164 = vmatprep.mubr.bf16.mxu0 0
  %6165 = vmatmul.mubr.bf16.gmra.mrb[0].mxu0 %v6074
  %v6166 = vpop.f32.mrb[0].mxu0
  %v6167 = vadd.f32 0.0, %v6166
  %v6168 = vpop.f32.mrb[0].mxu0
  %v6169 = vpop.f32.mrb[0].mxu0
  %v6170 = vadd.f32 0.0, %v6169
  %v6171 = vpop.f32.mrb[0].mxu0
  %6172 = vdwg.mxu0
  %v6173 = vadd.f32 %v5977, %v6111
  %v6174 = vadd.f32 %v5978, %v6114
  %v6175 = vadd.f32 %v5979, %v6119
  %v6176 = vadd.f32 %v5980, %v6122
  %v6177 = vadd.f32 %v5981, %v6127
  %v6178 = vadd.f32 %v5982, %v6130
  %v6179 = vadd.f32 %v5983, %v6135
  %v6180 = vadd.f32 %v5984, %v6138
  %v6181 = vadd.f32 %v5985, %v6143
  %v6182 = vadd.f32 %v5986, %v6146
  %v6183 = vadd.f32 %v5987, %v6151
  %v6184 = vadd.f32 %v5988, %v6154
  %v6185 = vadd.f32 %v5989, %v6159
  %v6186 = vadd.f32 %v5990, %v6162
  %v6187 = vadd.f32 %v5991, %v6167
  %v6188 = vadd.f32 %v5992, %v6170
  %v6189 = vmax.f32 %v5557, %v6173
  %v6190 = vmax.f32 %v5558, %v6174
  %v6191 = vmax.f32 %v5559, %v6175
  %v6192 = vmax.f32 %v5560, %v6176
  %v6193 = vmax.f32 %v5561, %v6177
  %v6194 = vmax.f32 %v5562, %v6178
  %v6195 = vmax.f32 %v5563, %v6179
  %v6196 = vmax.f32 %v5564, %v6180
  %v6197 = vmax.f32 %v5565, %v6181
  %v6198 = vmax.f32 %v5566, %v6182
  %v6199 = vmax.f32 %v5567, %v6183
  %v6200 = vmax.f32 %v5568, %v6184
  %v6201 = vmax.f32 %v5569, %v6185
  %v6202 = vmax.f32 %v5570, %v6186
  %v6203 = vmax.f32 %v5571, %v6187
  %v6204 = vmax.f32 %v5572, %v6188
  %6205 = vmatprep.subr.bf16.mxu0 0
  %6206 = vmatpush1.bf16.msra.mxu0 %v174
  %6207 = vmatprep.subr.bf16.mxu0 0
  %6208 = vmatpush1.bf16.msra.mxu0 %v175
  %6209 = vmatprep.subr.bf16.mxu0 0
  %6210 = vmatpush1.bf16.msra.mxu0 %v176
  %6211 = vmatprep.subr.bf16.mxu0 0
  %6212 = vmatpush1.bf16.msra.mxu0 %v177
  %6213 = vmatprep.subr.bf16.mxu0 0
  %6214 = vmatpush1.bf16.msra.mxu0 0
  %6215 = vmatprep.subr.bf16.mxu0 0
  %6216 = vmatpush1.bf16.msra.mxu0 0
  %6217 = vmatprep.subr.bf16.mxu0 0
  %6218 = vmatpush1.bf16.msra.mxu0 0
  %6219 = vmatprep.subr.bf16.mxu0 0
  %6220 = vmatpush1.bf16.msra.mxu0 0
  %6221 = vmatprep.subr.bf16.mxu0 0
  %6222 = vmatpush1.bf16.msra.mxu0 0
  %6223 = vmatprep.subr.bf16.mxu0 0
  %6224 = vmatpush1.bf16.msra.mxu0 0
  %6225 = vmatprep.subr.bf16.mxu0 0
  %6226 = vmatpush1.bf16.msra.mxu0 0
  %6227 = vmatprep.subr.bf16.mxu0 0
  %6228 = vmatpush1.bf16.msra.mxu0 0
  %6229 = vmatprep.subr.bf16.mxu0 0
  %6230 = vmatpush1.bf16.msra.mxu0 0
  %6231 = vmatprep.subr.bf16.mxu0 0
  %6232 = vmatpush1.bf16.msra.mxu0 0
  %6233 = vmatprep.subr.bf16.mxu0 0
  %6234 = vmatpush1.bf16.msra.mxu0 0
  %6235 = vmatprep.subr.bf16.mxu0 0
  %6236 = vmatpush1.bf16.msra.mxu0 0
  %6237 = vmatprep.mubr.bf16.mxu0 0
  %6238 = vmatmul.mubr.bf16.gmra.mrb[0].mxu0 %v4789
  %v6239 = vpop.f32.mrb[0].mxu0
  %v6240 = vadd.f32 0.0, %v6239
  %v6241 = vpop.f32.mrb[0].mxu0
  %v6242 = vpop.f32.mrb[0].mxu0
  %v6243 = vadd.f32 0.0, %v6242
  %v6244 = vpop.f32.mrb[0].mxu0
  %6245 = vmatprep.mubr.bf16.mxu0 0
  %6246 = vmatmul.mubr.bf16.gmra.mrb[0].mxu0 %v4792
  %v6247 = vpop.f32.mrb[0].mxu0
  %v6248 = vadd.f32 0.0, %v6247
  %v6249 = vpop.f32.mrb[0].mxu0
  %v6250 = vpop.f32.mrb[0].mxu0
  %v6251 = vadd.f32 0.0, %v6250
  %v6252 = vpop.f32.mrb[0].mxu0
  %6253 = vmatprep.mubr.bf16.mxu0 0
  %6254 = vmatmul.mubr.bf16.gmra.mrb[0].mxu0 %v4795
  %v6255 = vpop.f32.mrb[0].mxu0
  %v6256 = vadd.f32 0.0, %v6255
  %v6257 = vpop.f32.mrb[0].mxu0
  %v6258 = vpop.f32.mrb[0].mxu0
  %v6259 = vadd.f32 0.0, %v6258
  %v6260 = vpop.f32.mrb[0].mxu0
  %6261 = vmatprep.mubr.bf16.mxu0 0
  %6262 = vmatmul.mubr.bf16.gmra.mrb[0].mxu0 %v4798
  %v6263 = vpop.f32.mrb[0].mxu0
  %v6264 = vadd.f32 0.0, %v6263
  %v6265 = vpop.f32.mrb[0].mxu0
  %v6266 = vpop.f32.mrb[0].mxu0
  %v6267 = vadd.f32 0.0, %v6266
  %v6268 = vpop.f32.mrb[0].mxu0
  %6269 = vmatprep.mubr.bf16.mxu0 0
  %6270 = vmatmul.mubr.bf16.gmra.mrb[0].mxu0 %v4801
  %v6271 = vpop.f32.mrb[0].mxu0
  %v6272 = vadd.f32 0.0, %v6271
  %v6273 = vpop.f32.mrb[0].mxu0
  %v6274 = vpop.f32.mrb[0].mxu0
  %v6275 = vadd.f32 0.0, %v6274
  %v6276 = vpop.f32.mrb[0].mxu0
  %6277 = vmatprep.mubr.bf16.mxu0 0
  %6278 = vmatmul.mubr.bf16.gmra.mrb[0].mxu0 %v4804
  %v6279 = vpop.f32.mrb[0].mxu0
  %v6280 = vadd.f32 0.0, %v6279
  %v6281 = vpop.f32.mrb[0].mxu0
  %v6282 = vpop.f32.mrb[0].mxu0
  %v6283 = vadd.f32 0.0, %v6282
  %v6284 = vpop.f32.mrb[0].mxu0
  %6285 = vmatprep.mubr.bf16.mxu0 0
  %6286 = vmatmul.mubr.bf16.gmra.mrb[0].mxu0 %v4807
  %v6287 = vpop.f32.mrb[0].mxu0
  %v6288 = vadd.f32 0.0, %v6287
  %v6289 = vpop.f32.mrb[0].mxu0
  %v6290 = vpop.f32.mrb[0].mxu0
  %v6291 = vadd.f32 0.0, %v6290
  %v6292 = vpop.f32.mrb[0].mxu0
  %6293 = vmatprep.mubr.bf16.mxu0 0
  %6294 = vmatmul.mubr.bf16.gmra.mrb[0].mxu0 %v4810
  %v6295 = vpop.f32.mrb[0].mxu0
  %v6296 = vadd.f32 0.0, %v6295
  %v6297 = vpop.f32.mrb[0].mxu0
  %v6298 = vpop.f32.mrb[0].mxu0
  %v6299 = vadd.f32 0.0, %v6298
  %v6300 = vpop.f32.mrb[0].mxu0
  %6301 = vdwg.mxu0
  %6302 = vmatprep.subr.bf16.mxu0 0
  %6303 = vmatpush1.bf16.msra.mxu0 %v360
  %6304 = vmatprep.subr.bf16.mxu0 0
  %6305 = vmatpush1.bf16.msra.mxu0 %v361
  %6306 = vmatprep.subr.bf16.mxu0 0
  %6307 = vmatpush1.bf16.msra.mxu0 %v362
  %6308 = vmatprep.subr.bf16.mxu0 0
  %6309 = vmatpush1.bf16.msra.mxu0 %v363
  %6310 = vmatprep.subr.bf16.mxu0 0
  %6311 = vmatpush1.bf16.msra.mxu0 0
  %6312 = vmatprep.subr.bf16.mxu0 0
  %6313 = vmatpush1.bf16.msra.mxu0 0
  %6314 = vmatprep.subr.bf16.mxu0 0
  %6315 = vmatpush1.bf16.msra.mxu0 0
  %6316 = vmatprep.subr.bf16.mxu0 0
  %6317 = vmatpush1.bf16.msra.mxu0 0
  %6318 = vmatprep.subr.bf16.mxu0 0
  %6319 = vmatpush1.bf16.msra.mxu0 0
  %6320 = vmatprep.subr.bf16.mxu0 0
  %6321 = vmatpush1.bf16.msra.mxu0 0
  %6322 = vmatprep.subr.bf16.mxu0 0
  %6323 = vmatpush1.bf16.msra.mxu0 0
  %6324 = vmatprep.subr.bf16.mxu0 0
  %6325 = vmatpush1.bf16.msra.mxu0 0
  %6326 = vmatprep.subr.bf16.mxu0 0
  %6327 = vmatpush1.bf16.msra.mxu0 0
  %6328 = vmatprep.subr.bf16.mxu0 0
  %6329 = vmatpush1.bf16.msra.mxu0 0
  %6330 = vmatprep.subr.bf16.mxu0 0
  %6331 = vmatpush1.bf16.msra.mxu0 0
  %6332 = vmatprep.subr.bf16.mxu0 0
  %6333 = vmatpush1.bf16.msra.mxu0 0
  %6334 = vmatprep.mubr.bf16.mxu0 0
  %6335 = vmatmul.mubr.bf16.gmra.mrb[0].mxu0 %v4157
  %v6336 = vpop.f32.mrb[0].mxu0
  %v6337 = vadd.f32 %v6240, %v6336
  %v6338 = vpop.f32.mrb[0].mxu0
  %v6339 = vpop.f32.mrb[0].mxu0
  %v6340 = vadd.f32 %v6243, %v6339
  %v6341 = vpop.f32.mrb[0].mxu0
  %6342 = vmatprep.mubr.bf16.mxu0 0
  %6343 = vmatmul.mubr.bf16.gmra.mrb[0].mxu0 %v4160
  %v6344 = vpop.f32.mrb[0].mxu0
  %v6345 = vadd.f32 %v6248, %v6344
  %v6346 = vpop.f32.mrb[0].mxu0
  %v6347 = vpop.f32.mrb[0].mxu0
  %v6348 = vadd.f32 %v6251, %v6347
  %v6349 = vpop.f32.mrb[0].mxu0
  %6350 = vmatprep.mubr.bf16.mxu0 0
  %6351 = vmatmul.mubr.bf16.gmra.mrb[0].mxu0 %v4163
  %v6352 = vpop.f32.mrb[0].mxu0
  %v6353 = vadd.f32 %v6256, %v6352
  %v6354 = vpop.f32.mrb[0].mxu0
  %v6355 = vpop.f32.mrb[0].mxu0
  %v6356 = vadd.f32 %v6259, %v6355
  %v6357 = vpop.f32.mrb[0].mxu0
  %6358 = vmatprep.mubr.bf16.mxu0 0
  %6359 = vmatmul.mubr.bf16.gmra.mrb[0].mxu0 %v4166
  %v6360 = vpop.f32.mrb[0].mxu0
  %v6361 = vadd.f32 %v6264, %v6360
  %v6362 = vpop.f32.mrb[0].mxu0
  %v6363 = vpop.f32.mrb[0].mxu0
  %v6364 = vadd.f32 %v6267, %v6363
  %v6365 = vpop.f32.mrb[0].mxu0
  %6366 = vmatprep.mubr.bf16.mxu0 0
  %6367 = vmatmul.mubr.bf16.gmra.mrb[0].mxu0 %v4169
  %v6368 = vpop.f32.mrb[0].mxu0
  %v6369 = vadd.f32 %v6272, %v6368
  %v6370 = vpop.f32.mrb[0].mxu0
  %v6371 = vpop.f32.mrb[0].mxu0
  %v6372 = vadd.f32 %v6275, %v6371
  %v6373 = vpop.f32.mrb[0].mxu0
  %6374 = vmatprep.mubr.bf16.mxu0 0
  %6375 = vmatmul.mubr.bf16.gmra.mrb[0].mxu0 %v4172
  %v6376 = vpop.f32.mrb[0].mxu0
  %v6377 = vadd.f32 %v6280, %v6376
  %v6378 = vpop.f32.mrb[0].mxu0
  %v6379 = vpop.f32.mrb[0].mxu0
  %v6380 = vadd.f32 %v6283, %v6379
  %v6381 = vpop.f32.mrb[0].mxu0
  %6382 = vmatprep.mubr.bf16.mxu0 0
  %6383 = vmatmul.mubr.bf16.gmra.mrb[0].mxu0 %v4175
  %v6384 = vpop.f32.mrb[0].mxu0
  %v6385 = vadd.f32 %v6288, %v6384
  %v6386 = vpop.f32.mrb[0].mxu0
  %v6387 = vpop.f32.mrb[0].mxu0
  %v6388 = vadd.f32 %v6291, %v6387
  %v6389 = vpop.f32.mrb[0].mxu0
  %6390 = vmatprep.mubr.bf16.mxu0 0
  %6391 = vmatmul.mubr.bf16.gmra.mrb[0].mxu0 %v4178
  %v6392 = vpop.f32.mrb[0].mxu0
  %v6393 = vadd.f32 %v6296, %v6392
  %v6394 = vpop.f32.mrb[0].mxu0
  %v6395 = vpop.f32.mrb[0].mxu0
  %v6396 = vadd.f32 %v6299, %v6395
  %v6397 = vpop.f32.mrb[0].mxu0
  %6398 = vdwg.mxu0
  %6399 = vmatprep.subr.bf16.mxu0 0
  %6400 = vmatpush1.bf16.msra.mxu0 %v564
  %6401 = vmatprep.subr.bf16.mxu0 0
  %6402 = vmatpush1.bf16.msra.mxu0 %v565
  %6403 = vmatprep.subr.bf16.mxu0 0
  %6404 = vmatpush1.bf16.msra.mxu0 %v566
  %6405 = vmatprep.subr.bf16.mxu0 0
  %6406 = vmatpush1.bf16.msra.mxu0 %v567
  %6407 = vmatprep.subr.bf16.mxu0 0
  %6408 = vmatpush1.bf16.msra.mxu0 0
  %6409 = vmatprep.subr.bf16.mxu0 0
  %6410 = vmatpush1.bf16.msra.mxu0 0
  %6411 = vmatprep.subr.bf16.mxu0 0
  %6412 = vmatpush1.bf16.msra.mxu0 0
  %6413 = vmatprep.subr.bf16.mxu0 0
  %6414 = vmatpush1.bf16.msra.mxu0 0
  %6415 = vmatprep.subr.bf16.mxu0 0
  %6416 = vmatpush1.bf16.msra.mxu0 0
  %6417 = vmatprep.subr.bf16.mxu0 0
  %6418 = vmatpush1.bf16.msra.mxu0 0
  %6419 = vmatprep.subr.bf16.mxu0 0
  %6420 = vmatpush1.bf16.msra.mxu0 0
  %6421 = vmatprep.subr.bf16.mxu0 0
  %6422 = vmatpush1.bf16.msra.mxu0 0
  %6423 = vmatprep.subr.bf16.mxu0 0
  %6424 = vmatpush1.bf16.msra.mxu0 0
  %6425 = vmatprep.subr.bf16.mxu0 0
  %6426 = vmatpush1.bf16.msra.mxu0 0
  %6427 = vmatprep.subr.bf16.mxu0 0
  %6428 = vmatpush1.bf16.msra.mxu0 0
  %6429 = vmatprep.subr.bf16.mxu0 0
  %6430 = vmatpush1.bf16.msra.mxu0 0
  %6431 = vmatprep.mubr.bf16.mxu0 0
  %6432 = vmatmul.mubr.bf16.gmra.mrb[0].mxu0 %v5421
  %v6433 = vpop.f32.mrb[0].mxu0
  %v6434 = vadd.f32 0.0, %v6433
  %v6435 = vpop.f32.mrb[0].mxu0
  %v6436 = vpop.f32.mrb[0].mxu0
  %v6437 = vadd.f32 0.0, %v6436
  %v6438 = vpop.f32.mrb[0].mxu0
  %6439 = vmatprep.mubr.bf16.mxu0 0
  %6440 = vmatmul.mubr.bf16.gmra.mrb[0].mxu0 %v5424
  %v6441 = vpop.f32.mrb[0].mxu0
  %v6442 = vadd.f32 0.0, %v6441
  %v6443 = vpop.f32.mrb[0].mxu0
  %v6444 = vpop.f32.mrb[0].mxu0
  %v6445 = vadd.f32 0.0, %v6444
  %v6446 = vpop.f32.mrb[0].mxu0
  %6447 = vmatprep.mubr.bf16.mxu0 0
  %6448 = vmatmul.mubr.bf16.gmra.mrb[0].mxu0 %v5427
  %v6449 = vpop.f32.mrb[0].mxu0
  %v6450 = vadd.f32 0.0, %v6449
  %v6451 = vpop.f32.mrb[0].mxu0
  %v6452 = vpop.f32.mrb[0].mxu0
  %v6453 = vadd.f32 0.0, %v6452
  %v6454 = vpop.f32.mrb[0].mxu0
  %6455 = vmatprep.mubr.bf16.mxu0 0
  %6456 = vmatmul.mubr.bf16.gmra.mrb[0].mxu0 %v5430
  %v6457 = vpop.f32.mrb[0].mxu0
  %v6458 = vadd.f32 0.0, %v6457
  %v6459 = vpop.f32.mrb[0].mxu0
  %v6460 = vpop.f32.mrb[0].mxu0
  %v6461 = vadd.f32 0.0, %v6460
  %v6462 = vpop.f32.mrb[0].mxu0
  %6463 = vmatprep.mubr.bf16.mxu0 0
  %6464 = vmatmul.mubr.bf16.gmra.mrb[0].mxu0 %v5433
  %v6465 = vpop.f32.mrb[0].mxu0
  %v6466 = vadd.f32 0.0, %v6465
  %v6467 = vpop.f32.mrb[0].mxu0
  %v6468 = vpop.f32.mrb[0].mxu0
  %v6469 = vadd.f32 0.0, %v6468
  %v6470 = vpop.f32.mrb[0].mxu0
  %6471 = vmatprep.mubr.bf16.mxu0 0
  %6472 = vmatmul.mubr.bf16.gmra.mrb[0].mxu0 %v5436
  %v6473 = vpop.f32.mrb[0].mxu0
  %v6474 = vadd.f32 0.0, %v6473
  %v6475 = vpop.f32.mrb[0].mxu0
  %v6476 = vpop.f32.mrb[0].mxu0
  %v6477 = vadd.f32 0.0, %v6476
  %v6478 = vpop.f32.mrb[0].mxu0
  %6479 = vmatprep.mubr.bf16.mxu0 0
  %6480 = vmatmul.mubr.bf16.gmra.mrb[0].mxu0 %v5439
  %v6481 = vpop.f32.mrb[0].mxu0
  %v6482 = vadd.f32 0.0, %v6481
  %v6483 = vpop.f32.mrb[0].mxu0
  %v6484 = vpop.f32.mrb[0].mxu0
  %v6485 = vadd.f32 0.0, %v6484
  %v6486 = vpop.f32.mrb[0].mxu0
  %6487 = vmatprep.mubr.bf16.mxu0 0
  %6488 = vmatmul.mubr.bf16.gmra.mrb[0].mxu0 %v5442
  %v6489 = vpop.f32.mrb[0].mxu0
  %v6490 = vadd.f32 0.0, %v6489
  %v6491 = vpop.f32.mrb[0].mxu0
  %v6492 = vpop.f32.mrb[0].mxu0
  %v6493 = vadd.f32 0.0, %v6492
  %v6494 = vpop.f32.mrb[0].mxu0
  %6495 = vdwg.mxu0
  %v6496 = vadd.f32 %v6337, %v6434
  %v6497 = vadd.f32 %v6340, %v6437
  %v6498 = vadd.f32 %v6345, %v6442
  %v6499 = vadd.f32 %v6348, %v6445
  %v6500 = vadd.f32 %v6353, %v6450
  %v6501 = vadd.f32 %v6356, %v6453
  %v6502 = vadd.f32 %v6361, %v6458
  %v6503 = vadd.f32 %v6364, %v6461
  %v6504 = vadd.f32 %v6369, %v6466
  %v6505 = vadd.f32 %v6372, %v6469
  %v6506 = vadd.f32 %v6377, %v6474
  %v6507 = vadd.f32 %v6380, %v6477
  %v6508 = vadd.f32 %v6385, %v6482
  %v6509 = vadd.f32 %v6388, %v6485
  %v6510 = vadd.f32 %v6393, %v6490
  %v6511 = vadd.f32 %v6396, %v6493
  %6512 = vmatprep.subr.bf16.mxu0 0
  %6513 = vmatpush1.bf16.msra.mxu0 %v784
  %6514 = vmatprep.subr.bf16.mxu0 0
  %6515 = vmatpush1.bf16.msra.mxu0 %v785
  %6516 = vmatprep.subr.bf16.mxu0 0
  %6517 = vmatpush1.bf16.msra.mxu0 %v786
  %6518 = vmatprep.subr.bf16.mxu0 0
  %6519 = vmatpush1.bf16.msra.mxu0 %v787
  %6520 = vmatprep.subr.bf16.mxu0 0
  %6521 = vmatpush1.bf16.msra.mxu0 0
  %6522 = vmatprep.subr.bf16.mxu0 0
  %6523 = vmatpush1.bf16.msra.mxu0 0
  %6524 = vmatprep.subr.bf16.mxu0 0
  %6525 = vmatpush1.bf16.msra.mxu0 0
  %6526 = vmatprep.subr.bf16.mxu0 0
  %6527 = vmatpush1.bf16.msra.mxu0 0
  %6528 = vmatprep.subr.bf16.mxu0 0
  %6529 = vmatpush1.bf16.msra.mxu0 0
  %6530 = vmatprep.subr.bf16.mxu0 0
  %6531 = vmatpush1.bf16.msra.mxu0 0
  %6532 = vmatprep.subr.bf16.mxu0 0
  %6533 = vmatpush1.bf16.msra.mxu0 0
  %6534 = vmatprep.subr.bf16.mxu0 0
  %6535 = vmatpush1.bf16.msra.mxu0 0
  %6536 = vmatprep.subr.bf16.mxu0 0
  %6537 = vmatpush1.bf16.msra.mxu0 0
  %6538 = vmatprep.subr.bf16.mxu0 0
  %6539 = vmatpush1.bf16.msra.mxu0 0
  %6540 = vmatprep.subr.bf16.mxu0 0
  %6541 = vmatpush1.bf16.msra.mxu0 0
  %6542 = vmatprep.subr.bf16.mxu0 0
  %6543 = vmatpush1.bf16.msra.mxu0 0
  %6544 = vmatprep.mubr.bf16.mxu0 0
  %6545 = vmatmul.mubr.bf16.gmra.mrb[0].mxu0 %v6053
  %v6546 = vpop.f32.mrb[0].mxu0
  %v6547 = vadd.f32 0.0, %v6546
  %v6548 = vpop.f32.mrb[0].mxu0
  %v6549 = vpop.f32.mrb[0].mxu0
  %v6550 = vadd.f32 0.0, %v6549
  %v6551 = vpop.f32.mrb[0].mxu0
  %6552 = vmatprep.mubr.bf16.mxu0 0
  %6553 = vmatmul.mubr.bf16.gmra.mrb[0].mxu0 %v6056
  %v6554 = vpop.f32.mrb[0].mxu0
  %v6555 = vadd.f32 0.0, %v6554
  %v6556 = vpop.f32.mrb[0].mxu0
  %v6557 = vpop.f32.mrb[0].mxu0
  %v6558 = vadd.f32 0.0, %v6557
  %v6559 = vpop.f32.mrb[0].mxu0
  %6560 = vmatprep.mubr.bf16.mxu0 0
  %6561 = vmatmul.mubr.bf16.gmra.mrb[0].mxu0 %v6059
  %v6562 = vpop.f32.mrb[0].mxu0
  %v6563 = vadd.f32 0.0, %v6562
  %v6564 = vpop.f32.mrb[0].mxu0
  %v6565 = vpop.f32.mrb[0].mxu0
  %v6566 = vadd.f32 0.0, %v6565
  %v6567 = vpop.f32.mrb[0].mxu0
  %6568 = vmatprep.mubr.bf16.mxu0 0
  %6569 = vmatmul.mubr.bf16.gmra.mrb[0].mxu0 %v6062
  %v6570 = vpop.f32.mrb[0].mxu0
  %v6571 = vadd.f32 0.0, %v6570
  %v6572 = vpop.f32.mrb[0].mxu0
  %v6573 = vpop.f32.mrb[0].mxu0
  %v6574 = vadd.f32 0.0, %v6573
  %v6575 = vpop.f32.mrb[0].mxu0
  %6576 = vmatprep.mubr.bf16.mxu0 0
  %6577 = vmatmul.mubr.bf16.gmra.mrb[0].mxu0 %v6065
  %v6578 = vpop.f32.mrb[0].mxu0
  %v6579 = vadd.f32 0.0, %v6578
  %v6580 = vpop.f32.mrb[0].mxu0
  %v6581 = vpop.f32.mrb[0].mxu0
  %v6582 = vadd.f32 0.0, %v6581
  %v6583 = vpop.f32.mrb[0].mxu0
  %6584 = vmatprep.mubr.bf16.mxu0 0
  %6585 = vmatmul.mubr.bf16.gmra.mrb[0].mxu0 %v6068
  %v6586 = vpop.f32.mrb[0].mxu0
  %v6587 = vadd.f32 0.0, %v6586
  %v6588 = vpop.f32.mrb[0].mxu0
  %v6589 = vpop.f32.mrb[0].mxu0
  %v6590 = vadd.f32 0.0, %v6589
  %v6591 = vpop.f32.mrb[0].mxu0
  %6592 = vmatprep.mubr.bf16.mxu0 0
  %6593 = vmatmul.mubr.bf16.gmra.mrb[0].mxu0 %v6071
  %v6594 = vpop.f32.mrb[0].mxu0
  %v6595 = vadd.f32 0.0, %v6594
  %v6596 = vpop.f32.mrb[0].mxu0
  %v6597 = vpop.f32.mrb[0].mxu0
  %v6598 = vadd.f32 0.0, %v6597
  %v6599 = vpop.f32.mrb[0].mxu0
  %6600 = vmatprep.mubr.bf16.mxu0 0
  %6601 = vmatmul.mubr.bf16.gmra.mrb[0].mxu0 %v6074
  %v6602 = vpop.f32.mrb[0].mxu0
  %v6603 = vadd.f32 0.0, %v6602
  %v6604 = vpop.f32.mrb[0].mxu0
  %v6605 = vpop.f32.mrb[0].mxu0
  %v6606 = vadd.f32 0.0, %v6605
  %v6607 = vpop.f32.mrb[0].mxu0
  %6608 = vdwg.mxu0
  %v6609 = vadd.f32 %v6496, %v6547
  %v6610 = vadd.f32 %v6497, %v6550
  %v6611 = vadd.f32 %v6498, %v6555
  %v6612 = vadd.f32 %v6499, %v6558
  %v6613 = vadd.f32 %v6500, %v6563
  %v6614 = vadd.f32 %v6501, %v6566
  %v6615 = vadd.f32 %v6502, %v6571
  %v6616 = vadd.f32 %v6503, %v6574
  %v6617 = vadd.f32 %v6504, %v6579
  %v6618 = vadd.f32 %v6505, %v6582
  %v6619 = vadd.f32 %v6506, %v6587
  %v6620 = vadd.f32 %v6507, %v6590
  %v6621 = vadd.f32 %v6508, %v6595
  %v6622 = vadd.f32 %v6509, %v6598
  %v6623 = vadd.f32 %v6510, %v6603
  %v6624 = vadd.f32 %v6511, %v6606
  %s6625 = sadd.s32 0, 208
  %s6626 = smul.addr %s6625, 4
  %s6627 = scalar_lea.vmem %s0, %s6626
  %v6628 = vld [vmem:[%s6627] sm:$0xf]
  %v6629 = vld [vmem:[%s6627 + $0x4] sm:$0xf]
  %v6630 = vld [vmem:[%s6627 + $0x8] sm:$0xf]
  %v6631 = vld [vmem:[%s6627 + $0xc] sm:$0xf]
  %v6632 = vld [vmem:[%s6627 + $0x10] sm:$0xf]
  %v6633 = vld [vmem:[%s6627 + $0x14] sm:$0xf]
  %v6634 = vld [vmem:[%s6627 + $0x18] sm:$0xf]
  %v6635 = vld [vmem:[%s6627 + $0x1c] sm:$0xf]
  %v6636 = vld [vmem:[%s6627 + $0x20] sm:$0xf]
  %v6637 = vld [vmem:[%s6627 + $0x24] sm:$0xf]
  %v6638 = vld [vmem:[%s6627 + $0x28] sm:$0xf]
  %v6639 = vld [vmem:[%s6627 + $0x2c] sm:$0xf]
  %v6640 = vld [vmem:[%s6627 + $0x30] sm:$0xf]
  %v6641 = vld [vmem:[%s6627 + $0x34] sm:$0xf]
  %v6642 = vld [vmem:[%s6627 + $0x38] sm:$0xf]
  %v6643 = vld [vmem:[%s6627 + $0x3c] sm:$0xf]
  %v6660 = vunpack.c.l.b16 %v6628
  %v6661 = vunpack.c.l.b16 %v6629
  %v6662 = vunpack.c.l.b16 %v6630
  %v6663 = vunpack.c.l.b16 %v6631
  %v6664 = vunpack.c.l.b16 %v6632
  %v6665 = vunpack.c.l.b16 %v6633
  %v6666 = vunpack.c.l.b16 %v6634
  %v6667 = vunpack.c.l.b16 %v6635
  %v6668 = vunpack.c.l.b16 %v6636
  %v6669 = vunpack.c.l.b16 %v6637
  %v6670 = vunpack.c.l.b16 %v6638
  %v6671 = vunpack.c.l.b16 %v6639
  %v6672 = vunpack.c.l.b16 %v6640
  %v6673 = vunpack.c.l.b16 %v6641
  %v6674 = vunpack.c.l.b16 %v6642
  %v6675 = vunpack.c.l.b16 %v6643
  %v6676 = vpack.c.b16 %v6661, %v6660
  %v6677 = vpack.c.b16 %v6663, %v6662
  %v6678 = vpack.c.b16 %v6665, %v6664
  %v6679 = vpack.c.b16 %v6667, %v6666
  %v6680 = vpack.c.b16 %v6669, %v6668
  %v6681 = vpack.c.b16 %v6671, %v6670
  %v6682 = vpack.c.b16 %v6673, %v6672
  %v6683 = vpack.c.b16 %v6675, %v6674
  %v6685 = vsel %vm182, %v6676, 0
  %v6688 = vsel %vm182, %v6677, 0
  %v6691 = vsel %vm182, %v6678, 0
  %v6694 = vsel %vm182, %v6679, 0
  %v6697 = vsel %vm182, %v6680, 0
  %v6700 = vsel %vm182, %v6681, 0
  %v6703 = vsel %vm182, %v6682, 0
  %v6706 = vsel %vm182, %v6683, 0
  %6708 = vmatprep.subr.bf16.mxu0 0
  %6709 = vmatpush1.bf16.msra.mxu0 %v1004
  %6710 = vmatprep.subr.bf16.mxu0 0
  %6711 = vmatpush1.bf16.msra.mxu0 %v1005
  %6712 = vmatprep.subr.bf16.mxu0 0
  %6713 = vmatpush1.bf16.msra.mxu0 %v1006
  %6714 = vmatprep.subr.bf16.mxu0 0
  %6715 = vmatpush1.bf16.msra.mxu0 %v1007
  %6716 = vmatprep.subr.bf16.mxu0 0
  %6717 = vmatpush1.bf16.msra.mxu0 0
  %6718 = vmatprep.subr.bf16.mxu0 0
  %6719 = vmatpush1.bf16.msra.mxu0 0
  %6720 = vmatprep.subr.bf16.mxu0 0
  %6721 = vmatpush1.bf16.msra.mxu0 0
  %6722 = vmatprep.subr.bf16.mxu0 0
  %6723 = vmatpush1.bf16.msra.mxu0 0
  %6724 = vmatprep.subr.bf16.mxu0 0
  %6725 = vmatpush1.bf16.msra.mxu0 0
  %6726 = vmatprep.subr.bf16.mxu0 0
  %6727 = vmatpush1.bf16.msra.mxu0 0
  %6728 = vmatprep.subr.bf16.mxu0 0
  %6729 = vmatpush1.bf16.msra.mxu0 0
  %6730 = vmatprep.subr.bf16.mxu0 0
  %6731 = vmatpush1.bf16.msra.mxu0 0
  %6732 = vmatprep.subr.bf16.mxu0 0
  %6733 = vmatpush1.bf16.msra.mxu0 0
  %6734 = vmatprep.subr.bf16.mxu0 0
  %6735 = vmatpush1.bf16.msra.mxu0 0
  %6736 = vmatprep.subr.bf16.mxu0 0
  %6737 = vmatpush1.bf16.msra.mxu0 0
  %6738 = vmatprep.subr.bf16.mxu0 0
  %6739 = vmatpush1.bf16.msra.mxu0 0
  %6740 = vmatprep.mubr.bf16.mxu0 0
  %6741 = vmatmul.mubr.bf16.gmra.mrb[0].mxu0 %v6685
  %v6742 = vpop.f32.mrb[0].mxu0
  %v6743 = vadd.f32 0.0, %v6742
  %v6744 = vpop.f32.mrb[0].mxu0
  %v6745 = vpop.f32.mrb[0].mxu0
  %v6746 = vadd.f32 0.0, %v6745
  %v6747 = vpop.f32.mrb[0].mxu0
  %6748 = vmatprep.mubr.bf16.mxu0 0
  %6749 = vmatmul.mubr.bf16.gmra.mrb[0].mxu0 %v6688
  %v6750 = vpop.f32.mrb[0].mxu0
  %v6751 = vadd.f32 0.0, %v6750
  %v6752 = vpop.f32.mrb[0].mxu0
  %v6753 = vpop.f32.mrb[0].mxu0
  %v6754 = vadd.f32 0.0, %v6753
  %v6755 = vpop.f32.mrb[0].mxu0
  %6756 = vmatprep.mubr.bf16.mxu0 0
  %6757 = vmatmul.mubr.bf16.gmra.mrb[0].mxu0 %v6691
  %v6758 = vpop.f32.mrb[0].mxu0
  %v6759 = vadd.f32 0.0, %v6758
  %v6760 = vpop.f32.mrb[0].mxu0
  %v6761 = vpop.f32.mrb[0].mxu0
  %v6762 = vadd.f32 0.0, %v6761
  %v6763 = vpop.f32.mrb[0].mxu0
  %6764 = vmatprep.mubr.bf16.mxu0 0
  %6765 = vmatmul.mubr.bf16.gmra.mrb[0].mxu0 %v6694
  %v6766 = vpop.f32.mrb[0].mxu0
  %v6767 = vadd.f32 0.0, %v6766
  %v6768 = vpop.f32.mrb[0].mxu0
  %v6769 = vpop.f32.mrb[0].mxu0
  %v6770 = vadd.f32 0.0, %v6769
  %v6771 = vpop.f32.mrb[0].mxu0
  %6772 = vmatprep.mubr.bf16.mxu0 0
  %6773 = vmatmul.mubr.bf16.gmra.mrb[0].mxu0 %v6697
  %v6774 = vpop.f32.mrb[0].mxu0
  %v6775 = vadd.f32 0.0, %v6774
  %v6776 = vpop.f32.mrb[0].mxu0
  %v6777 = vpop.f32.mrb[0].mxu0
  %v6778 = vadd.f32 0.0, %v6777
  %v6779 = vpop.f32.mrb[0].mxu0
  %6780 = vmatprep.mubr.bf16.mxu0 0
  %6781 = vmatmul.mubr.bf16.gmra.mrb[0].mxu0 %v6700
  %v6782 = vpop.f32.mrb[0].mxu0
  %v6783 = vadd.f32 0.0, %v6782
  %v6784 = vpop.f32.mrb[0].mxu0
  %v6785 = vpop.f32.mrb[0].mxu0
  %v6786 = vadd.f32 0.0, %v6785
  %v6787 = vpop.f32.mrb[0].mxu0
  %6788 = vmatprep.mubr.bf16.mxu0 0
  %6789 = vmatmul.mubr.bf16.gmra.mrb[0].mxu0 %v6703
  %v6790 = vpop.f32.mrb[0].mxu0
  %v6791 = vadd.f32 0.0, %v6790
  %v6792 = vpop.f32.mrb[0].mxu0
  %v6793 = vpop.f32.mrb[0].mxu0
  %v6794 = vadd.f32 0.0, %v6793
  %v6795 = vpop.f32.mrb[0].mxu0
  %6796 = vmatprep.mubr.bf16.mxu0 0
  %6797 = vmatmul.mubr.bf16.gmra.mrb[0].mxu0 %v6706
  %v6798 = vpop.f32.mrb[0].mxu0
  %v6799 = vadd.f32 0.0, %v6798
  %v6800 = vpop.f32.mrb[0].mxu0
  %v6801 = vpop.f32.mrb[0].mxu0
  %v6802 = vadd.f32 0.0, %v6801
  %v6803 = vpop.f32.mrb[0].mxu0
  %6804 = vdwg.mxu0
  %v6805 = vadd.f32 %v6609, %v6743
  %v6806 = vadd.f32 %v6610, %v6746
  %v6807 = vadd.f32 %v6611, %v6751
  %v6808 = vadd.f32 %v6612, %v6754
  %v6809 = vadd.f32 %v6613, %v6759
  %v6810 = vadd.f32 %v6614, %v6762
  %v6811 = vadd.f32 %v6615, %v6767
  %v6812 = vadd.f32 %v6616, %v6770
  %v6813 = vadd.f32 %v6617, %v6775
  %v6814 = vadd.f32 %v6618, %v6778
  %v6815 = vadd.f32 %v6619, %v6783
  %v6816 = vadd.f32 %v6620, %v6786
  %v6817 = vadd.f32 %v6621, %v6791
  %v6818 = vadd.f32 %v6622, %v6794
  %v6819 = vadd.f32 %v6623, %v6799
  %v6820 = vadd.f32 %v6624, %v6802
  %v6821 = vmax.f32 %v6189, %v6805
  %v6822 = vmax.f32 %v6190, %v6806
  %v6823 = vmax.f32 %v6191, %v6807
  %v6824 = vmax.f32 %v6192, %v6808
  %v6825 = vmax.f32 %v6193, %v6809
  %v6826 = vmax.f32 %v6194, %v6810
  %v6827 = vmax.f32 %v6195, %v6811
  %v6828 = vmax.f32 %v6196, %v6812
  %v6829 = vmax.f32 %v6197, %v6813
  %v6830 = vmax.f32 %v6198, %v6814
  %v6831 = vmax.f32 %v6199, %v6815
  %v6832 = vmax.f32 %v6200, %v6816
  %v6833 = vmax.f32 %v6201, %v6817
  %v6834 = vmax.f32 %v6202, %v6818
  %v6835 = vmax.f32 %v6203, %v6819
  %v6836 = vmax.f32 %v6204, %v6820
  %6837 = vmatprep.subr.bf16.mxu0 0
  %6838 = vmatpush1.bf16.msra.mxu0 %v174
  %6839 = vmatprep.subr.bf16.mxu0 0
  %6840 = vmatpush1.bf16.msra.mxu0 %v175
  %6841 = vmatprep.subr.bf16.mxu0 0
  %6842 = vmatpush1.bf16.msra.mxu0 %v176
  %6843 = vmatprep.subr.bf16.mxu0 0
  %6844 = vmatpush1.bf16.msra.mxu0 %v177
  %6845 = vmatprep.subr.bf16.mxu0 0
  %6846 = vmatpush1.bf16.msra.mxu0 0
  %6847 = vmatprep.subr.bf16.mxu0 0
  %6848 = vmatpush1.bf16.msra.mxu0 0
  %6849 = vmatprep.subr.bf16.mxu0 0
  %6850 = vmatpush1.bf16.msra.mxu0 0
  %6851 = vmatprep.subr.bf16.mxu0 0
  %6852 = vmatpush1.bf16.msra.mxu0 0
  %6853 = vmatprep.subr.bf16.mxu0 0
  %6854 = vmatpush1.bf16.msra.mxu0 0
  %6855 = vmatprep.subr.bf16.mxu0 0
  %6856 = vmatpush1.bf16.msra.mxu0 0
  %6857 = vmatprep.subr.bf16.mxu0 0
  %6858 = vmatpush1.bf16.msra.mxu0 0
  %6859 = vmatprep.subr.bf16.mxu0 0
  %6860 = vmatpush1.bf16.msra.mxu0 0
  %6861 = vmatprep.subr.bf16.mxu0 0
  %6862 = vmatpush1.bf16.msra.mxu0 0
  %6863 = vmatprep.subr.bf16.mxu0 0
  %6864 = vmatpush1.bf16.msra.mxu0 0
  %6865 = vmatprep.subr.bf16.mxu0 0
  %6866 = vmatpush1.bf16.msra.mxu0 0
  %6867 = vmatprep.subr.bf16.mxu0 0
  %6868 = vmatpush1.bf16.msra.mxu0 0
  %6869 = vmatprep.mubr.bf16.mxu0 0
  %6870 = vmatmul.mubr.bf16.gmra.mrb[0].mxu0 %v5421
  %v6871 = vpop.f32.mrb[0].mxu0
  %v6872 = vadd.f32 0.0, %v6871
  %v6873 = vpop.f32.mrb[0].mxu0
  %v6874 = vpop.f32.mrb[0].mxu0
  %v6875 = vadd.f32 0.0, %v6874
  %v6876 = vpop.f32.mrb[0].mxu0
  %6877 = vmatprep.mubr.bf16.mxu0 0
  %6878 = vmatmul.mubr.bf16.gmra.mrb[0].mxu0 %v5424
  %v6879 = vpop.f32.mrb[0].mxu0
  %v6880 = vadd.f32 0.0, %v6879
  %v6881 = vpop.f32.mrb[0].mxu0
  %v6882 = vpop.f32.mrb[0].mxu0
  %v6883 = vadd.f32 0.0, %v6882
  %v6884 = vpop.f32.mrb[0].mxu0
  %6885 = vmatprep.mubr.bf16.mxu0 0
  %6886 = vmatmul.mubr.bf16.gmra.mrb[0].mxu0 %v5427
  %v6887 = vpop.f32.mrb[0].mxu0
  %v6888 = vadd.f32 0.0, %v6887
  %v6889 = vpop.f32.mrb[0].mxu0
  %v6890 = vpop.f32.mrb[0].mxu0
  %v6891 = vadd.f32 0.0, %v6890
  %v6892 = vpop.f32.mrb[0].mxu0
  %6893 = vmatprep.mubr.bf16.mxu0 0
  %6894 = vmatmul.mubr.bf16.gmra.mrb[0].mxu0 %v5430
  %v6895 = vpop.f32.mrb[0].mxu0
  %v6896 = vadd.f32 0.0, %v6895
  %v6897 = vpop.f32.mrb[0].mxu0
  %v6898 = vpop.f32.mrb[0].mxu0
  %v6899 = vadd.f32 0.0, %v6898
  %v6900 = vpop.f32.mrb[0].mxu0
  %6901 = vmatprep.mubr.bf16.mxu0 0
  %6902 = vmatmul.mubr.bf16.gmra.mrb[0].mxu0 %v5433
  %v6903 = vpop.f32.mrb[0].mxu0
  %v6904 = vadd.f32 0.0, %v6903
  %v6905 = vpop.f32.mrb[0].mxu0
  %v6906 = vpop.f32.mrb[0].mxu0
  %v6907 = vadd.f32 0.0, %v6906
  %v6908 = vpop.f32.mrb[0].mxu0
  %6909 = vmatprep.mubr.bf16.mxu0 0
  %6910 = vmatmul.mubr.bf16.gmra.mrb[0].mxu0 %v5436
  %v6911 = vpop.f32.mrb[0].mxu0
  %v6912 = vadd.f32 0.0, %v6911
  %v6913 = vpop.f32.mrb[0].mxu0
  %v6914 = vpop.f32.mrb[0].mxu0
  %v6915 = vadd.f32 0.0, %v6914
  %v6916 = vpop.f32.mrb[0].mxu0
  %6917 = vmatprep.mubr.bf16.mxu0 0
  %6918 = vmatmul.mubr.bf16.gmra.mrb[0].mxu0 %v5439
  %v6919 = vpop.f32.mrb[0].mxu0
  %v6920 = vadd.f32 0.0, %v6919
  %v6921 = vpop.f32.mrb[0].mxu0
  %v6922 = vpop.f32.mrb[0].mxu0
  %v6923 = vadd.f32 0.0, %v6922
  %v6924 = vpop.f32.mrb[0].mxu0
  %6925 = vmatprep.mubr.bf16.mxu0 0
  %6926 = vmatmul.mubr.bf16.gmra.mrb[0].mxu0 %v5442
  %v6927 = vpop.f32.mrb[0].mxu0
  %v6928 = vadd.f32 0.0, %v6927
  %v6929 = vpop.f32.mrb[0].mxu0
  %v6930 = vpop.f32.mrb[0].mxu0
  %v6931 = vadd.f32 0.0, %v6930
  %v6932 = vpop.f32.mrb[0].mxu0
  %6933 = vdwg.mxu0
  %6934 = vmatprep.subr.bf16.mxu0 0
  %6935 = vmatpush1.bf16.msra.mxu0 %v360
  %6936 = vmatprep.subr.bf16.mxu0 0
  %6937 = vmatpush1.bf16.msra.mxu0 %v361
  %6938 = vmatprep.subr.bf16.mxu0 0
  %6939 = vmatpush1.bf16.msra.mxu0 %v362
  %6940 = vmatprep.subr.bf16.mxu0 0
  %6941 = vmatpush1.bf16.msra.mxu0 %v363
  %6942 = vmatprep.subr.bf16.mxu0 0
  %6943 = vmatpush1.bf16.msra.mxu0 0
  %6944 = vmatprep.subr.bf16.mxu0 0
  %6945 = vmatpush1.bf16.msra.mxu0 0
  %6946 = vmatprep.subr.bf16.mxu0 0
  %6947 = vmatpush1.bf16.msra.mxu0 0
  %6948 = vmatprep.subr.bf16.mxu0 0
  %6949 = vmatpush1.bf16.msra.mxu0 0
  %6950 = vmatprep.subr.bf16.mxu0 0
  %6951 = vmatpush1.bf16.msra.mxu0 0
  %6952 = vmatprep.subr.bf16.mxu0 0
  %6953 = vmatpush1.bf16.msra.mxu0 0
  %6954 = vmatprep.subr.bf16.mxu0 0
  %6955 = vmatpush1.bf16.msra.mxu0 0
  %6956 = vmatprep.subr.bf16.mxu0 0
  %6957 = vmatpush1.bf16.msra.mxu0 0
  %6958 = vmatprep.subr.bf16.mxu0 0
  %6959 = vmatpush1.bf16.msra.mxu0 0
  %6960 = vmatprep.subr.bf16.mxu0 0
  %6961 = vmatpush1.bf16.msra.mxu0 0
  %6962 = vmatprep.subr.bf16.mxu0 0
  %6963 = vmatpush1.bf16.msra.mxu0 0
  %6964 = vmatprep.subr.bf16.mxu0 0
  %6965 = vmatpush1.bf16.msra.mxu0 0
  %6966 = vmatprep.mubr.bf16.mxu0 0
  %6967 = vmatmul.mubr.bf16.gmra.mrb[0].mxu0 %v4789
  %v6968 = vpop.f32.mrb[0].mxu0
  %v6969 = vadd.f32 %v6872, %v6968
  %v6970 = vpop.f32.mrb[0].mxu0
  %v6971 = vpop.f32.mrb[0].mxu0
  %v6972 = vadd.f32 %v6875, %v6971
  %v6973 = vpop.f32.mrb[0].mxu0
  %6974 = vmatprep.mubr.bf16.mxu0 0
  %6975 = vmatmul.mubr.bf16.gmra.mrb[0].mxu0 %v4792
  %v6976 = vpop.f32.mrb[0].mxu0
  %v6977 = vadd.f32 %v6880, %v6976
  %v6978 = vpop.f32.mrb[0].mxu0
  %v6979 = vpop.f32.mrb[0].mxu0
  %v6980 = vadd.f32 %v6883, %v6979
  %v6981 = vpop.f32.mrb[0].mxu0
  %6982 = vmatprep.mubr.bf16.mxu0 0
  %6983 = vmatmul.mubr.bf16.gmra.mrb[0].mxu0 %v4795
  %v6984 = vpop.f32.mrb[0].mxu0
  %v6985 = vadd.f32 %v6888, %v6984
  %v6986 = vpop.f32.mrb[0].mxu0
  %v6987 = vpop.f32.mrb[0].mxu0
  %v6988 = vadd.f32 %v6891, %v6987
  %v6989 = vpop.f32.mrb[0].mxu0
  %6990 = vmatprep.mubr.bf16.mxu0 0
  %6991 = vmatmul.mubr.bf16.gmra.mrb[0].mxu0 %v4798
  %v6992 = vpop.f32.mrb[0].mxu0
  %v6993 = vadd.f32 %v6896, %v6992
  %v6994 = vpop.f32.mrb[0].mxu0
  %v6995 = vpop.f32.mrb[0].mxu0
  %v6996 = vadd.f32 %v6899, %v6995
  %v6997 = vpop.f32.mrb[0].mxu0
  %6998 = vmatprep.mubr.bf16.mxu0 0
  %6999 = vmatmul.mubr.bf16.gmra.mrb[0].mxu0 %v4801
  %v7000 = vpop.f32.mrb[0].mxu0
  %v7001 = vadd.f32 %v6904, %v7000
  %v7002 = vpop.f32.mrb[0].mxu0
  %v7003 = vpop.f32.mrb[0].mxu0
  %v7004 = vadd.f32 %v6907, %v7003
  %v7005 = vpop.f32.mrb[0].mxu0
  %7006 = vmatprep.mubr.bf16.mxu0 0
  %7007 = vmatmul.mubr.bf16.gmra.mrb[0].mxu0 %v4804
  %v7008 = vpop.f32.mrb[0].mxu0
  %v7009 = vadd.f32 %v6912, %v7008
  %v7010 = vpop.f32.mrb[0].mxu0
  %v7011 = vpop.f32.mrb[0].mxu0
  %v7012 = vadd.f32 %v6915, %v7011
  %v7013 = vpop.f32.mrb[0].mxu0
  %7014 = vmatprep.mubr.bf16.mxu0 0
  %7015 = vmatmul.mubr.bf16.gmra.mrb[0].mxu0 %v4807
  %v7016 = vpop.f32.mrb[0].mxu0
  %v7017 = vadd.f32 %v6920, %v7016
  %v7018 = vpop.f32.mrb[0].mxu0
  %v7019 = vpop.f32.mrb[0].mxu0
  %v7020 = vadd.f32 %v6923, %v7019
  %v7021 = vpop.f32.mrb[0].mxu0
  %7022 = vmatprep.mubr.bf16.mxu0 0
  %7023 = vmatmul.mubr.bf16.gmra.mrb[0].mxu0 %v4810
  %v7024 = vpop.f32.mrb[0].mxu0
  %v7025 = vadd.f32 %v6928, %v7024
  %v7026 = vpop.f32.mrb[0].mxu0
  %v7027 = vpop.f32.mrb[0].mxu0
  %v7028 = vadd.f32 %v6931, %v7027
  %v7029 = vpop.f32.mrb[0].mxu0
  %7030 = vdwg.mxu0
  %7031 = vmatprep.subr.bf16.mxu0 0
  %7032 = vmatpush1.bf16.msra.mxu0 %v564
  %7033 = vmatprep.subr.bf16.mxu0 0
  %7034 = vmatpush1.bf16.msra.mxu0 %v565
  %7035 = vmatprep.subr.bf16.mxu0 0
  %7036 = vmatpush1.bf16.msra.mxu0 %v566
  %7037 = vmatprep.subr.bf16.mxu0 0
  %7038 = vmatpush1.bf16.msra.mxu0 %v567
  %7039 = vmatprep.subr.bf16.mxu0 0
  %7040 = vmatpush1.bf16.msra.mxu0 0
  %7041 = vmatprep.subr.bf16.mxu0 0
  %7042 = vmatpush1.bf16.msra.mxu0 0
  %7043 = vmatprep.subr.bf16.mxu0 0
  %7044 = vmatpush1.bf16.msra.mxu0 0
  %7045 = vmatprep.subr.bf16.mxu0 0
  %7046 = vmatpush1.bf16.msra.mxu0 0
  %7047 = vmatprep.subr.bf16.mxu0 0
  %7048 = vmatpush1.bf16.msra.mxu0 0
  %7049 = vmatprep.subr.bf16.mxu0 0
  %7050 = vmatpush1.bf16.msra.mxu0 0
  %7051 = vmatprep.subr.bf16.mxu0 0
  %7052 = vmatpush1.bf16.msra.mxu0 0
  %7053 = vmatprep.subr.bf16.mxu0 0
  %7054 = vmatpush1.bf16.msra.mxu0 0
  %7055 = vmatprep.subr.bf16.mxu0 0
  %7056 = vmatpush1.bf16.msra.mxu0 0
  %7057 = vmatprep.subr.bf16.mxu0 0
  %7058 = vmatpush1.bf16.msra.mxu0 0
  %7059 = vmatprep.subr.bf16.mxu0 0
  %7060 = vmatpush1.bf16.msra.mxu0 0
  %7061 = vmatprep.subr.bf16.mxu0 0
  %7062 = vmatpush1.bf16.msra.mxu0 0
  %7063 = vmatprep.mubr.bf16.mxu0 0
  %7064 = vmatmul.mubr.bf16.gmra.mrb[0].mxu0 %v6053
  %v7065 = vpop.f32.mrb[0].mxu0
  %v7066 = vadd.f32 0.0, %v7065
  %v7067 = vpop.f32.mrb[0].mxu0
  %v7068 = vpop.f32.mrb[0].mxu0
  %v7069 = vadd.f32 0.0, %v7068
  %v7070 = vpop.f32.mrb[0].mxu0
  %7071 = vmatprep.mubr.bf16.mxu0 0
  %7072 = vmatmul.mubr.bf16.gmra.mrb[0].mxu0 %v6056
  %v7073 = vpop.f32.mrb[0].mxu0
  %v7074 = vadd.f32 0.0, %v7073
  %v7075 = vpop.f32.mrb[0].mxu0
  %v7076 = vpop.f32.mrb[0].mxu0
  %v7077 = vadd.f32 0.0, %v7076
  %v7078 = vpop.f32.mrb[0].mxu0
  %7079 = vmatprep.mubr.bf16.mxu0 0
  %7080 = vmatmul.mubr.bf16.gmra.mrb[0].mxu0 %v6059
  %v7081 = vpop.f32.mrb[0].mxu0
  %v7082 = vadd.f32 0.0, %v7081
  %v7083 = vpop.f32.mrb[0].mxu0
  %v7084 = vpop.f32.mrb[0].mxu0
  %v7085 = vadd.f32 0.0, %v7084
  %v7086 = vpop.f32.mrb[0].mxu0
  %7087 = vmatprep.mubr.bf16.mxu0 0
  %7088 = vmatmul.mubr.bf16.gmra.mrb[0].mxu0 %v6062
  %v7089 = vpop.f32.mrb[0].mxu0
  %v7090 = vadd.f32 0.0, %v7089
  %v7091 = vpop.f32.mrb[0].mxu0
  %v7092 = vpop.f32.mrb[0].mxu0
  %v7093 = vadd.f32 0.0, %v7092
  %v7094 = vpop.f32.mrb[0].mxu0
  %7095 = vmatprep.mubr.bf16.mxu0 0
  %7096 = vmatmul.mubr.bf16.gmra.mrb[0].mxu0 %v6065
  %v7097 = vpop.f32.mrb[0].mxu0
  %v7098 = vadd.f32 0.0, %v7097
  %v7099 = vpop.f32.mrb[0].mxu0
  %v7100 = vpop.f32.mrb[0].mxu0
  %v7101 = vadd.f32 0.0, %v7100
  %v7102 = vpop.f32.mrb[0].mxu0
  %7103 = vmatprep.mubr.bf16.mxu0 0
  %7104 = vmatmul.mubr.bf16.gmra.mrb[0].mxu0 %v6068
  %v7105 = vpop.f32.mrb[0].mxu0
  %v7106 = vadd.f32 0.0, %v7105
  %v7107 = vpop.f32.mrb[0].mxu0
  %v7108 = vpop.f32.mrb[0].mxu0
  %v7109 = vadd.f32 0.0, %v7108
  %v7110 = vpop.f32.mrb[0].mxu0
  %7111 = vmatprep.mubr.bf16.mxu0 0
  %7112 = vmatmul.mubr.bf16.gmra.mrb[0].mxu0 %v6071
  %v7113 = vpop.f32.mrb[0].mxu0
  %v7114 = vadd.f32 0.0, %v7113
  %v7115 = vpop.f32.mrb[0].mxu0
  %v7116 = vpop.f32.mrb[0].mxu0
  %v7117 = vadd.f32 0.0, %v7116
  %v7118 = vpop.f32.mrb[0].mxu0
  %7119 = vmatprep.mubr.bf16.mxu0 0
  %7120 = vmatmul.mubr.bf16.gmra.mrb[0].mxu0 %v6074
  %v7121 = vpop.f32.mrb[0].mxu0
  %v7122 = vadd.f32 0.0, %v7121
  %v7123 = vpop.f32.mrb[0].mxu0
  %v7124 = vpop.f32.mrb[0].mxu0
  %v7125 = vadd.f32 0.0, %v7124
  %v7126 = vpop.f32.mrb[0].mxu0
  %7127 = vdwg.mxu0
  %v7128 = vadd.f32 %v6969, %v7066
  %v7129 = vadd.f32 %v6972, %v7069
  %v7130 = vadd.f32 %v6977, %v7074
  %v7131 = vadd.f32 %v6980, %v7077
  %v7132 = vadd.f32 %v6985, %v7082
  %v7133 = vadd.f32 %v6988, %v7085
  %v7134 = vadd.f32 %v6993, %v7090
  %v7135 = vadd.f32 %v6996, %v7093
  %v7136 = vadd.f32 %v7001, %v7098
  %v7137 = vadd.f32 %v7004, %v7101
  %v7138 = vadd.f32 %v7009, %v7106
  %v7139 = vadd.f32 %v7012, %v7109
  %v7140 = vadd.f32 %v7017, %v7114
  %v7141 = vadd.f32 %v7020, %v7117
  %v7142 = vadd.f32 %v7025, %v7122
  %v7143 = vadd.f32 %v7028, %v7125
  %7144 = vmatprep.subr.bf16.mxu0 0
  %7145 = vmatpush1.bf16.msra.mxu0 %v784
  %7146 = vmatprep.subr.bf16.mxu0 0
  %7147 = vmatpush1.bf16.msra.mxu0 %v785
  %7148 = vmatprep.subr.bf16.mxu0 0
  %7149 = vmatpush1.bf16.msra.mxu0 %v786
  %7150 = vmatprep.subr.bf16.mxu0 0
  %7151 = vmatpush1.bf16.msra.mxu0 %v787
  %7152 = vmatprep.subr.bf16.mxu0 0
  %7153 = vmatpush1.bf16.msra.mxu0 0
  %7154 = vmatprep.subr.bf16.mxu0 0
  %7155 = vmatpush1.bf16.msra.mxu0 0
  %7156 = vmatprep.subr.bf16.mxu0 0
  %7157 = vmatpush1.bf16.msra.mxu0 0
  %7158 = vmatprep.subr.bf16.mxu0 0
  %7159 = vmatpush1.bf16.msra.mxu0 0
  %7160 = vmatprep.subr.bf16.mxu0 0
  %7161 = vmatpush1.bf16.msra.mxu0 0
  %7162 = vmatprep.subr.bf16.mxu0 0
  %7163 = vmatpush1.bf16.msra.mxu0 0
  %7164 = vmatprep.subr.bf16.mxu0 0
  %7165 = vmatpush1.bf16.msra.mxu0 0
  %7166 = vmatprep.subr.bf16.mxu0 0
  %7167 = vmatpush1.bf16.msra.mxu0 0
  %7168 = vmatprep.subr.bf16.mxu0 0
  %7169 = vmatpush1.bf16.msra.mxu0 0
  %7170 = vmatprep.subr.bf16.mxu0 0
  %7171 = vmatpush1.bf16.msra.mxu0 0
  %7172 = vmatprep.subr.bf16.mxu0 0
  %7173 = vmatpush1.bf16.msra.mxu0 0
  %7174 = vmatprep.subr.bf16.mxu0 0
  %7175 = vmatpush1.bf16.msra.mxu0 0
  %7176 = vmatprep.mubr.bf16.mxu0 0
  %7177 = vmatmul.mubr.bf16.gmra.mrb[0].mxu0 %v6685
  %v7178 = vpop.f32.mrb[0].mxu0
  %v7179 = vadd.f32 0.0, %v7178
  %v7180 = vpop.f32.mrb[0].mxu0
  %v7181 = vpop.f32.mrb[0].mxu0
  %v7182 = vadd.f32 0.0, %v7181
  %v7183 = vpop.f32.mrb[0].mxu0
  %7184 = vmatprep.mubr.bf16.mxu0 0
  %7185 = vmatmul.mubr.bf16.gmra.mrb[0].mxu0 %v6688
  %v7186 = vpop.f32.mrb[0].mxu0
  %v7187 = vadd.f32 0.0, %v7186
  %v7188 = vpop.f32.mrb[0].mxu0
  %v7189 = vpop.f32.mrb[0].mxu0
  %v7190 = vadd.f32 0.0, %v7189
  %v7191 = vpop.f32.mrb[0].mxu0
  %7192 = vmatprep.mubr.bf16.mxu0 0
  %7193 = vmatmul.mubr.bf16.gmra.mrb[0].mxu0 %v6691
  %v7194 = vpop.f32.mrb[0].mxu0
  %v7195 = vadd.f32 0.0, %v7194
  %v7196 = vpop.f32.mrb[0].mxu0
  %v7197 = vpop.f32.mrb[0].mxu0
  %v7198 = vadd.f32 0.0, %v7197
  %v7199 = vpop.f32.mrb[0].mxu0
  %7200 = vmatprep.mubr.bf16.mxu0 0
  %7201 = vmatmul.mubr.bf16.gmra.mrb[0].mxu0 %v6694
  %v7202 = vpop.f32.mrb[0].mxu0
  %v7203 = vadd.f32 0.0, %v7202
  %v7204 = vpop.f32.mrb[0].mxu0
  %v7205 = vpop.f32.mrb[0].mxu0
  %v7206 = vadd.f32 0.0, %v7205
  %v7207 = vpop.f32.mrb[0].mxu0
  %7208 = vmatprep.mubr.bf16.mxu0 0
  %7209 = vmatmul.mubr.bf16.gmra.mrb[0].mxu0 %v6697
  %v7210 = vpop.f32.mrb[0].mxu0
  %v7211 = vadd.f32 0.0, %v7210
  %v7212 = vpop.f32.mrb[0].mxu0
  %v7213 = vpop.f32.mrb[0].mxu0
  %v7214 = vadd.f32 0.0, %v7213
  %v7215 = vpop.f32.mrb[0].mxu0
  %7216 = vmatprep.mubr.bf16.mxu0 0
  %7217 = vmatmul.mubr.bf16.gmra.mrb[0].mxu0 %v6700
  %v7218 = vpop.f32.mrb[0].mxu0
  %v7219 = vadd.f32 0.0, %v7218
  %v7220 = vpop.f32.mrb[0].mxu0
  %v7221 = vpop.f32.mrb[0].mxu0
  %v7222 = vadd.f32 0.0, %v7221
  %v7223 = vpop.f32.mrb[0].mxu0
  %7224 = vmatprep.mubr.bf16.mxu0 0
  %7225 = vmatmul.mubr.bf16.gmra.mrb[0].mxu0 %v6703
  %v7226 = vpop.f32.mrb[0].mxu0
  %v7227 = vadd.f32 0.0, %v7226
  %v7228 = vpop.f32.mrb[0].mxu0
  %v7229 = vpop.f32.mrb[0].mxu0
  %v7230 = vadd.f32 0.0, %v7229
  %v7231 = vpop.f32.mrb[0].mxu0
  %7232 = vmatprep.mubr.bf16.mxu0 0
  %7233 = vmatmul.mubr.bf16.gmra.mrb[0].mxu0 %v6706
  %v7234 = vpop.f32.mrb[0].mxu0
  %v7235 = vadd.f32 0.0, %v7234
  %v7236 = vpop.f32.mrb[0].mxu0
  %v7237 = vpop.f32.mrb[0].mxu0
  %v7238 = vadd.f32 0.0, %v7237
  %v7239 = vpop.f32.mrb[0].mxu0
  %7240 = vdwg.mxu0
  %v7241 = vadd.f32 %v7128, %v7179
  %v7242 = vadd.f32 %v7129, %v7182
  %v7243 = vadd.f32 %v7130, %v7187
  %v7244 = vadd.f32 %v7131, %v7190
  %v7245 = vadd.f32 %v7132, %v7195
  %v7246 = vadd.f32 %v7133, %v7198
  %v7247 = vadd.f32 %v7134, %v7203
  %v7248 = vadd.f32 %v7135, %v7206
  %v7249 = vadd.f32 %v7136, %v7211
  %v7250 = vadd.f32 %v7137, %v7214
  %v7251 = vadd.f32 %v7138, %v7219
  %v7252 = vadd.f32 %v7139, %v7222
  %v7253 = vadd.f32 %v7140, %v7227
  %v7254 = vadd.f32 %v7141, %v7230
  %v7255 = vadd.f32 %v7142, %v7235
  %v7256 = vadd.f32 %v7143, %v7238
  %s7257 = sadd.s32 0, 224
  %s7258 = smul.addr %s7257, 4
  %s7259 = scalar_lea.vmem %s0, %s7258
  %v7260 = vld [vmem:[%s7259] sm:$0xf]
  %v7261 = vld [vmem:[%s7259 + $0x4] sm:$0xf]
  %v7262 = vld [vmem:[%s7259 + $0x8] sm:$0xf]
  %v7263 = vld [vmem:[%s7259 + $0xc] sm:$0xf]
  %v7264 = vld [vmem:[%s7259 + $0x10] sm:$0xf]
  %v7265 = vld [vmem:[%s7259 + $0x14] sm:$0xf]
  %v7266 = vld [vmem:[%s7259 + $0x18] sm:$0xf]
  %v7267 = vld [vmem:[%s7259 + $0x1c] sm:$0xf]
  %v7268 = vld [vmem:[%s7259 + $0x20] sm:$0xf]
  %v7269 = vld [vmem:[%s7259 + $0x24] sm:$0xf]
  %v7270 = vld [vmem:[%s7259 + $0x28] sm:$0xf]
  %v7271 = vld [vmem:[%s7259 + $0x2c] sm:$0xf]
  %v7272 = vld [vmem:[%s7259 + $0x30] sm:$0xf]
  %v7273 = vld [vmem:[%s7259 + $0x34] sm:$0xf]
  %v7274 = vld [vmem:[%s7259 + $0x38] sm:$0xf]
  %v7275 = vld [vmem:[%s7259 + $0x3c] sm:$0xf]
  %v7292 = vunpack.c.l.b16 %v7260
  %v7293 = vunpack.c.l.b16 %v7261
  %v7294 = vunpack.c.l.b16 %v7262
  %v7295 = vunpack.c.l.b16 %v7263
  %v7296 = vunpack.c.l.b16 %v7264
  %v7297 = vunpack.c.l.b16 %v7265
  %v7298 = vunpack.c.l.b16 %v7266
  %v7299 = vunpack.c.l.b16 %v7267
  %v7300 = vunpack.c.l.b16 %v7268
  %v7301 = vunpack.c.l.b16 %v7269
  %v7302 = vunpack.c.l.b16 %v7270
  %v7303 = vunpack.c.l.b16 %v7271
  %v7304 = vunpack.c.l.b16 %v7272
  %v7305 = vunpack.c.l.b16 %v7273
  %v7306 = vunpack.c.l.b16 %v7274
  %v7307 = vunpack.c.l.b16 %v7275
  %v7308 = vpack.c.b16 %v7293, %v7292
  %v7309 = vpack.c.b16 %v7295, %v7294
  %v7310 = vpack.c.b16 %v7297, %v7296
  %v7311 = vpack.c.b16 %v7299, %v7298
  %v7312 = vpack.c.b16 %v7301, %v7300
  %v7313 = vpack.c.b16 %v7303, %v7302
  %v7314 = vpack.c.b16 %v7305, %v7304
  %v7315 = vpack.c.b16 %v7307, %v7306
  %v7317 = vsel %vm182, %v7308, 0
  %v7320 = vsel %vm182, %v7309, 0
  %v7323 = vsel %vm182, %v7310, 0
  %v7326 = vsel %vm182, %v7311, 0
  %v7329 = vsel %vm182, %v7312, 0
  %v7332 = vsel %vm182, %v7313, 0
  %v7335 = vsel %vm182, %v7314, 0
  %v7338 = vsel %vm182, %v7315, 0
  %7340 = vmatprep.subr.bf16.mxu0 0
  %7341 = vmatpush1.bf16.msra.mxu0 %v1004
  %7342 = vmatprep.subr.bf16.mxu0 0
  %7343 = vmatpush1.bf16.msra.mxu0 %v1005
  %7344 = vmatprep.subr.bf16.mxu0 0
  %7345 = vmatpush1.bf16.msra.mxu0 %v1006
  %7346 = vmatprep.subr.bf16.mxu0 0
  %7347 = vmatpush1.bf16.msra.mxu0 %v1007
  %7348 = vmatprep.subr.bf16.mxu0 0
  %7349 = vmatpush1.bf16.msra.mxu0 0
  %7350 = vmatprep.subr.bf16.mxu0 0
  %7351 = vmatpush1.bf16.msra.mxu0 0
  %7352 = vmatprep.subr.bf16.mxu0 0
  %7353 = vmatpush1.bf16.msra.mxu0 0
  %7354 = vmatprep.subr.bf16.mxu0 0
  %7355 = vmatpush1.bf16.msra.mxu0 0
  %7356 = vmatprep.subr.bf16.mxu0 0
  %7357 = vmatpush1.bf16.msra.mxu0 0
  %7358 = vmatprep.subr.bf16.mxu0 0
  %7359 = vmatpush1.bf16.msra.mxu0 0
  %7360 = vmatprep.subr.bf16.mxu0 0
  %7361 = vmatpush1.bf16.msra.mxu0 0
  %7362 = vmatprep.subr.bf16.mxu0 0
  %7363 = vmatpush1.bf16.msra.mxu0 0
  %7364 = vmatprep.subr.bf16.mxu0 0
  %7365 = vmatpush1.bf16.msra.mxu0 0
  %7366 = vmatprep.subr.bf16.mxu0 0
  %7367 = vmatpush1.bf16.msra.mxu0 0
  %7368 = vmatprep.subr.bf16.mxu0 0
  %7369 = vmatpush1.bf16.msra.mxu0 0
  %7370 = vmatprep.subr.bf16.mxu0 0
  %7371 = vmatpush1.bf16.msra.mxu0 0
  %7372 = vmatprep.mubr.bf16.mxu0 0
  %7373 = vmatmul.mubr.bf16.gmra.mrb[0].mxu0 %v7317
  %v7374 = vpop.f32.mrb[0].mxu0
  %v7375 = vadd.f32 0.0, %v7374
  %v7376 = vpop.f32.mrb[0].mxu0
  %v7377 = vpop.f32.mrb[0].mxu0
  %v7378 = vadd.f32 0.0, %v7377
  %v7379 = vpop.f32.mrb[0].mxu0
  %7380 = vmatprep.mubr.bf16.mxu0 0
  %7381 = vmatmul.mubr.bf16.gmra.mrb[0].mxu0 %v7320
  %v7382 = vpop.f32.mrb[0].mxu0
  %v7383 = vadd.f32 0.0, %v7382
  %v7384 = vpop.f32.mrb[0].mxu0
  %v7385 = vpop.f32.mrb[0].mxu0
  %v7386 = vadd.f32 0.0, %v7385
  %v7387 = vpop.f32.mrb[0].mxu0
  %7388 = vmatprep.mubr.bf16.mxu0 0
  %7389 = vmatmul.mubr.bf16.gmra.mrb[0].mxu0 %v7323
  %v7390 = vpop.f32.mrb[0].mxu0
  %v7391 = vadd.f32 0.0, %v7390
  %v7392 = vpop.f32.mrb[0].mxu0
  %v7393 = vpop.f32.mrb[0].mxu0
  %v7394 = vadd.f32 0.0, %v7393
  %v7395 = vpop.f32.mrb[0].mxu0
  %7396 = vmatprep.mubr.bf16.mxu0 0
  %7397 = vmatmul.mubr.bf16.gmra.mrb[0].mxu0 %v7326
  %v7398 = vpop.f32.mrb[0].mxu0
  %v7399 = vadd.f32 0.0, %v7398
  %v7400 = vpop.f32.mrb[0].mxu0
  %v7401 = vpop.f32.mrb[0].mxu0
  %v7402 = vadd.f32 0.0, %v7401
  %v7403 = vpop.f32.mrb[0].mxu0
  %7404 = vmatprep.mubr.bf16.mxu0 0
  %7405 = vmatmul.mubr.bf16.gmra.mrb[0].mxu0 %v7329
  %v7406 = vpop.f32.mrb[0].mxu0
  %v7407 = vadd.f32 0.0, %v7406
  %v7408 = vpop.f32.mrb[0].mxu0
  %v7409 = vpop.f32.mrb[0].mxu0
  %v7410 = vadd.f32 0.0, %v7409
  %v7411 = vpop.f32.mrb[0].mxu0
  %7412 = vmatprep.mubr.bf16.mxu0 0
  %7413 = vmatmul.mubr.bf16.gmra.mrb[0].mxu0 %v7332
  %v7414 = vpop.f32.mrb[0].mxu0
  %v7415 = vadd.f32 0.0, %v7414
  %v7416 = vpop.f32.mrb[0].mxu0
  %v7417 = vpop.f32.mrb[0].mxu0
  %v7418 = vadd.f32 0.0, %v7417
  %v7419 = vpop.f32.mrb[0].mxu0
  %7420 = vmatprep.mubr.bf16.mxu0 0
  %7421 = vmatmul.mubr.bf16.gmra.mrb[0].mxu0 %v7335
  %v7422 = vpop.f32.mrb[0].mxu0
  %v7423 = vadd.f32 0.0, %v7422
  %v7424 = vpop.f32.mrb[0].mxu0
  %v7425 = vpop.f32.mrb[0].mxu0
  %v7426 = vadd.f32 0.0, %v7425
  %v7427 = vpop.f32.mrb[0].mxu0
  %7428 = vmatprep.mubr.bf16.mxu0 0
  %7429 = vmatmul.mubr.bf16.gmra.mrb[0].mxu0 %v7338
  %v7430 = vpop.f32.mrb[0].mxu0
  %v7431 = vadd.f32 0.0, %v7430
  %v7432 = vpop.f32.mrb[0].mxu0
  %v7433 = vpop.f32.mrb[0].mxu0
  %v7434 = vadd.f32 0.0, %v7433
  %v7435 = vpop.f32.mrb[0].mxu0
  %7436 = vdwg.mxu0
  %v7437 = vadd.f32 %v7241, %v7375
  %v7438 = vadd.f32 %v7242, %v7378
  %v7439 = vadd.f32 %v7243, %v7383
  %v7440 = vadd.f32 %v7244, %v7386
  %v7441 = vadd.f32 %v7245, %v7391
  %v7442 = vadd.f32 %v7246, %v7394
  %v7443 = vadd.f32 %v7247, %v7399
  %v7444 = vadd.f32 %v7248, %v7402
  %v7445 = vadd.f32 %v7249, %v7407
  %v7446 = vadd.f32 %v7250, %v7410
  %v7447 = vadd.f32 %v7251, %v7415
  %v7448 = vadd.f32 %v7252, %v7418
  %v7449 = vadd.f32 %v7253, %v7423
  %v7450 = vadd.f32 %v7254, %v7426
  %v7451 = vadd.f32 %v7255, %v7431
  %v7452 = vadd.f32 %v7256, %v7434
  %v7453 = vmax.f32 %v6821, %v7437
  %v7454 = vmax.f32 %v6822, %v7438
  %v7455 = vmax.f32 %v6823, %v7439
  %v7456 = vmax.f32 %v6824, %v7440
  %v7457 = vmax.f32 %v6825, %v7441
  %v7458 = vmax.f32 %v6826, %v7442
  %v7459 = vmax.f32 %v6827, %v7443
  %v7460 = vmax.f32 %v6828, %v7444
  %v7461 = vmax.f32 %v6829, %v7445
  %v7462 = vmax.f32 %v6830, %v7446
  %v7463 = vmax.f32 %v6831, %v7447
  %v7464 = vmax.f32 %v6832, %v7448
  %v7465 = vmax.f32 %v6833, %v7449
  %v7466 = vmax.f32 %v6834, %v7450
  %v7467 = vmax.f32 %v6835, %v7451
  %v7468 = vmax.f32 %v6836, %v7452
  %7469 = vmatprep.subr.bf16.mxu0 0
  %7470 = vmatpush1.bf16.msra.mxu0 %v174
  %7471 = vmatprep.subr.bf16.mxu0 0
  %7472 = vmatpush1.bf16.msra.mxu0 %v175
  %7473 = vmatprep.subr.bf16.mxu0 0
  %7474 = vmatpush1.bf16.msra.mxu0 %v176
  %7475 = vmatprep.subr.bf16.mxu0 0
  %7476 = vmatpush1.bf16.msra.mxu0 %v177
  %7477 = vmatprep.subr.bf16.mxu0 0
  %7478 = vmatpush1.bf16.msra.mxu0 0
  %7479 = vmatprep.subr.bf16.mxu0 0
  %7480 = vmatpush1.bf16.msra.mxu0 0
  %7481 = vmatprep.subr.bf16.mxu0 0
  %7482 = vmatpush1.bf16.msra.mxu0 0
  %7483 = vmatprep.subr.bf16.mxu0 0
  %7484 = vmatpush1.bf16.msra.mxu0 0
  %7485 = vmatprep.subr.bf16.mxu0 0
  %7486 = vmatpush1.bf16.msra.mxu0 0
  %7487 = vmatprep.subr.bf16.mxu0 0
  %7488 = vmatpush1.bf16.msra.mxu0 0
  %7489 = vmatprep.subr.bf16.mxu0 0
  %7490 = vmatpush1.bf16.msra.mxu0 0
  %7491 = vmatprep.subr.bf16.mxu0 0
  %7492 = vmatpush1.bf16.msra.mxu0 0
  %7493 = vmatprep.subr.bf16.mxu0 0
  %7494 = vmatpush1.bf16.msra.mxu0 0
  %7495 = vmatprep.subr.bf16.mxu0 0
  %7496 = vmatpush1.bf16.msra.mxu0 0
  %7497 = vmatprep.subr.bf16.mxu0 0
  %7498 = vmatpush1.bf16.msra.mxu0 0
  %7499 = vmatprep.subr.bf16.mxu0 0
  %7500 = vmatpush1.bf16.msra.mxu0 0
  %7501 = vmatprep.mubr.bf16.mxu0 0
  %7502 = vmatmul.mubr.bf16.gmra.mrb[0].mxu0 %v6053
  %v7503 = vpop.f32.mrb[0].mxu0
  %v7504 = vadd.f32 0.0, %v7503
  %v7505 = vpop.f32.mrb[0].mxu0
  %v7506 = vpop.f32.mrb[0].mxu0
  %v7507 = vadd.f32 0.0, %v7506
  %v7508 = vpop.f32.mrb[0].mxu0
  %7509 = vmatprep.mubr.bf16.mxu0 0
  %7510 = vmatmul.mubr.bf16.gmra.mrb[0].mxu0 %v6056
  %v7511 = vpop.f32.mrb[0].mxu0
  %v7512 = vadd.f32 0.0, %v7511
  %v7513 = vpop.f32.mrb[0].mxu0
  %v7514 = vpop.f32.mrb[0].mxu0
  %v7515 = vadd.f32 0.0, %v7514
  %v7516 = vpop.f32.mrb[0].mxu0
  %7517 = vmatprep.mubr.bf16.mxu0 0
  %7518 = vmatmul.mubr.bf16.gmra.mrb[0].mxu0 %v6059
  %v7519 = vpop.f32.mrb[0].mxu0
  %v7520 = vadd.f32 0.0, %v7519
  %v7521 = vpop.f32.mrb[0].mxu0
  %v7522 = vpop.f32.mrb[0].mxu0
  %v7523 = vadd.f32 0.0, %v7522
  %v7524 = vpop.f32.mrb[0].mxu0
  %7525 = vmatprep.mubr.bf16.mxu0 0
  %7526 = vmatmul.mubr.bf16.gmra.mrb[0].mxu0 %v6062
  %v7527 = vpop.f32.mrb[0].mxu0
  %v7528 = vadd.f32 0.0, %v7527
  %v7529 = vpop.f32.mrb[0].mxu0
  %v7530 = vpop.f32.mrb[0].mxu0
  %v7531 = vadd.f32 0.0, %v7530
  %v7532 = vpop.f32.mrb[0].mxu0
  %7533 = vmatprep.mubr.bf16.mxu0 0
  %7534 = vmatmul.mubr.bf16.gmra.mrb[0].mxu0 %v6065
  %v7535 = vpop.f32.mrb[0].mxu0
  %v7536 = vadd.f32 0.0, %v7535
  %v7537 = vpop.f32.mrb[0].mxu0
  %v7538 = vpop.f32.mrb[0].mxu0
  %v7539 = vadd.f32 0.0, %v7538
  %v7540 = vpop.f32.mrb[0].mxu0
  %7541 = vmatprep.mubr.bf16.mxu0 0
  %7542 = vmatmul.mubr.bf16.gmra.mrb[0].mxu0 %v6068
  %v7543 = vpop.f32.mrb[0].mxu0
  %v7544 = vadd.f32 0.0, %v7543
  %v7545 = vpop.f32.mrb[0].mxu0
  %v7546 = vpop.f32.mrb[0].mxu0
  %v7547 = vadd.f32 0.0, %v7546
  %v7548 = vpop.f32.mrb[0].mxu0
  %7549 = vmatprep.mubr.bf16.mxu0 0
  %7550 = vmatmul.mubr.bf16.gmra.mrb[0].mxu0 %v6071
  %v7551 = vpop.f32.mrb[0].mxu0
  %v7552 = vadd.f32 0.0, %v7551
  %v7553 = vpop.f32.mrb[0].mxu0
  %v7554 = vpop.f32.mrb[0].mxu0
  %v7555 = vadd.f32 0.0, %v7554
  %v7556 = vpop.f32.mrb[0].mxu0
  %7557 = vmatprep.mubr.bf16.mxu0 0
  %7558 = vmatmul.mubr.bf16.gmra.mrb[0].mxu0 %v6074
  %v7559 = vpop.f32.mrb[0].mxu0
  %v7560 = vadd.f32 0.0, %v7559
  %v7561 = vpop.f32.mrb[0].mxu0
  %v7562 = vpop.f32.mrb[0].mxu0
  %v7563 = vadd.f32 0.0, %v7562
  %v7564 = vpop.f32.mrb[0].mxu0
  %7565 = vdwg.mxu0
  %7566 = vmatprep.subr.bf16.mxu0 0
  %7567 = vmatpush1.bf16.msra.mxu0 %v360
  %7568 = vmatprep.subr.bf16.mxu0 0
  %7569 = vmatpush1.bf16.msra.mxu0 %v361
  %7570 = vmatprep.subr.bf16.mxu0 0
  %7571 = vmatpush1.bf16.msra.mxu0 %v362
  %7572 = vmatprep.subr.bf16.mxu0 0
  %7573 = vmatpush1.bf16.msra.mxu0 %v363
  %7574 = vmatprep.subr.bf16.mxu0 0
  %7575 = vmatpush1.bf16.msra.mxu0 0
  %7576 = vmatprep.subr.bf16.mxu0 0
  %7577 = vmatpush1.bf16.msra.mxu0 0
  %7578 = vmatprep.subr.bf16.mxu0 0
  %7579 = vmatpush1.bf16.msra.mxu0 0
  %7580 = vmatprep.subr.bf16.mxu0 0
  %7581 = vmatpush1.bf16.msra.mxu0 0
  %7582 = vmatprep.subr.bf16.mxu0 0
  %7583 = vmatpush1.bf16.msra.mxu0 0
  %7584 = vmatprep.subr.bf16.mxu0 0
  %7585 = vmatpush1.bf16.msra.mxu0 0
  %7586 = vmatprep.subr.bf16.mxu0 0
  %7587 = vmatpush1.bf16.msra.mxu0 0
  %7588 = vmatprep.subr.bf16.mxu0 0
  %7589 = vmatpush1.bf16.msra.mxu0 0
  %7590 = vmatprep.subr.bf16.mxu0 0
  %7591 = vmatpush1.bf16.msra.mxu0 0
  %7592 = vmatprep.subr.bf16.mxu0 0
  %7593 = vmatpush1.bf16.msra.mxu0 0
  %7594 = vmatprep.subr.bf16.mxu0 0
  %7595 = vmatpush1.bf16.msra.mxu0 0
  %7596 = vmatprep.subr.bf16.mxu0 0
  %7597 = vmatpush1.bf16.msra.mxu0 0
  %7598 = vmatprep.mubr.bf16.mxu0 0
  %7599 = vmatmul.mubr.bf16.gmra.mrb[0].mxu0 %v5421
  %v7600 = vpop.f32.mrb[0].mxu0
  %v7601 = vadd.f32 %v7504, %v7600
  %v7602 = vpop.f32.mrb[0].mxu0
  %v7603 = vpop.f32.mrb[0].mxu0
  %v7604 = vadd.f32 %v7507, %v7603
  %v7605 = vpop.f32.mrb[0].mxu0
  %7606 = vmatprep.mubr.bf16.mxu0 0
  %7607 = vmatmul.mubr.bf16.gmra.mrb[0].mxu0 %v5424
  %v7608 = vpop.f32.mrb[0].mxu0
  %v7609 = vadd.f32 %v7512, %v7608
  %v7610 = vpop.f32.mrb[0].mxu0
  %v7611 = vpop.f32.mrb[0].mxu0
  %v7612 = vadd.f32 %v7515, %v7611
  %v7613 = vpop.f32.mrb[0].mxu0
  %7614 = vmatprep.mubr.bf16.mxu0 0
  %7615 = vmatmul.mubr.bf16.gmra.mrb[0].mxu0 %v5427
  %v7616 = vpop.f32.mrb[0].mxu0
  %v7617 = vadd.f32 %v7520, %v7616
  %v7618 = vpop.f32.mrb[0].mxu0
  %v7619 = vpop.f32.mrb[0].mxu0
  %v7620 = vadd.f32 %v7523, %v7619
  %v7621 = vpop.f32.mrb[0].mxu0
  %7622 = vmatprep.mubr.bf16.mxu0 0
  %7623 = vmatmul.mubr.bf16.gmra.mrb[0].mxu0 %v5430
  %v7624 = vpop.f32.mrb[0].mxu0
  %v7625 = vadd.f32 %v7528, %v7624
  %v7626 = vpop.f32.mrb[0].mxu0
  %v7627 = vpop.f32.mrb[0].mxu0
  %v7628 = vadd.f32 %v7531, %v7627
  %v7629 = vpop.f32.mrb[0].mxu0
  %7630 = vmatprep.mubr.bf16.mxu0 0
  %7631 = vmatmul.mubr.bf16.gmra.mrb[0].mxu0 %v5433
  %v7632 = vpop.f32.mrb[0].mxu0
  %v7633 = vadd.f32 %v7536, %v7632
  %v7634 = vpop.f32.mrb[0].mxu0
  %v7635 = vpop.f32.mrb[0].mxu0
  %v7636 = vadd.f32 %v7539, %v7635
  %v7637 = vpop.f32.mrb[0].mxu0
  %7638 = vmatprep.mubr.bf16.mxu0 0
  %7639 = vmatmul.mubr.bf16.gmra.mrb[0].mxu0 %v5436
  %v7640 = vpop.f32.mrb[0].mxu0
  %v7641 = vadd.f32 %v7544, %v7640
  %v7642 = vpop.f32.mrb[0].mxu0
  %v7643 = vpop.f32.mrb[0].mxu0
  %v7644 = vadd.f32 %v7547, %v7643
  %v7645 = vpop.f32.mrb[0].mxu0
  %7646 = vmatprep.mubr.bf16.mxu0 0
  %7647 = vmatmul.mubr.bf16.gmra.mrb[0].mxu0 %v5439
  %v7648 = vpop.f32.mrb[0].mxu0
  %v7649 = vadd.f32 %v7552, %v7648
  %v7650 = vpop.f32.mrb[0].mxu0
  %v7651 = vpop.f32.mrb[0].mxu0
  %v7652 = vadd.f32 %v7555, %v7651
  %v7653 = vpop.f32.mrb[0].mxu0
  %7654 = vmatprep.mubr.bf16.mxu0 0
  %7655 = vmatmul.mubr.bf16.gmra.mrb[0].mxu0 %v5442
  %v7656 = vpop.f32.mrb[0].mxu0
  %v7657 = vadd.f32 %v7560, %v7656
  %v7658 = vpop.f32.mrb[0].mxu0
  %v7659 = vpop.f32.mrb[0].mxu0
  %v7660 = vadd.f32 %v7563, %v7659
  %v7661 = vpop.f32.mrb[0].mxu0
  %7662 = vdwg.mxu0
  %7663 = vmatprep.subr.bf16.mxu0 0
  %7664 = vmatpush1.bf16.msra.mxu0 %v564
  %7665 = vmatprep.subr.bf16.mxu0 0
  %7666 = vmatpush1.bf16.msra.mxu0 %v565
  %7667 = vmatprep.subr.bf16.mxu0 0
  %7668 = vmatpush1.bf16.msra.mxu0 %v566
  %7669 = vmatprep.subr.bf16.mxu0 0
  %7670 = vmatpush1.bf16.msra.mxu0 %v567
  %7671 = vmatprep.subr.bf16.mxu0 0
  %7672 = vmatpush1.bf16.msra.mxu0 0
  %7673 = vmatprep.subr.bf16.mxu0 0
  %7674 = vmatpush1.bf16.msra.mxu0 0
  %7675 = vmatprep.subr.bf16.mxu0 0
  %7676 = vmatpush1.bf16.msra.mxu0 0
  %7677 = vmatprep.subr.bf16.mxu0 0
  %7678 = vmatpush1.bf16.msra.mxu0 0
  %7679 = vmatprep.subr.bf16.mxu0 0
  %7680 = vmatpush1.bf16.msra.mxu0 0
  %7681 = vmatprep.subr.bf16.mxu0 0
  %7682 = vmatpush1.bf16.msra.mxu0 0
  %7683 = vmatprep.subr.bf16.mxu0 0
  %7684 = vmatpush1.bf16.msra.mxu0 0
  %7685 = vmatprep.subr.bf16.mxu0 0
  %7686 = vmatpush1.bf16.msra.mxu0 0
  %7687 = vmatprep.subr.bf16.mxu0 0
  %7688 = vmatpush1.bf16.msra.mxu0 0
  %7689 = vmatprep.subr.bf16.mxu0 0
  %7690 = vmatpush1.bf16.msra.mxu0 0
  %7691 = vmatprep.subr.bf16.mxu0 0
  %7692 = vmatpush1.bf16.msra.mxu0 0
  %7693 = vmatprep.subr.bf16.mxu0 0
  %7694 = vmatpush1.bf16.msra.mxu0 0
  %7695 = vmatprep.mubr.bf16.mxu0 0
  %7696 = vmatmul.mubr.bf16.gmra.mrb[0].mxu0 %v6685
  %v7697 = vpop.f32.mrb[0].mxu0
  %v7698 = vadd.f32 0.0, %v7697
  %v7699 = vpop.f32.mrb[0].mxu0
  %v7700 = vpop.f32.mrb[0].mxu0
  %v7701 = vadd.f32 0.0, %v7700
  %v7702 = vpop.f32.mrb[0].mxu0
  %7703 = vmatprep.mubr.bf16.mxu0 0
  %7704 = vmatmul.mubr.bf16.gmra.mrb[0].mxu0 %v6688
  %v7705 = vpop.f32.mrb[0].mxu0
  %v7706 = vadd.f32 0.0, %v7705
  %v7707 = vpop.f32.mrb[0].mxu0
  %v7708 = vpop.f32.mrb[0].mxu0
  %v7709 = vadd.f32 0.0, %v7708
  %v7710 = vpop.f32.mrb[0].mxu0
  %7711 = vmatprep.mubr.bf16.mxu0 0
  %7712 = vmatmul.mubr.bf16.gmra.mrb[0].mxu0 %v6691
  %v7713 = vpop.f32.mrb[0].mxu0
  %v7714 = vadd.f32 0.0, %v7713
  %v7715 = vpop.f32.mrb[0].mxu0
  %v7716 = vpop.f32.mrb[0].mxu0
  %v7717 = vadd.f32 0.0, %v7716
  %v7718 = vpop.f32.mrb[0].mxu0
  %7719 = vmatprep.mubr.bf16.mxu0 0
  %7720 = vmatmul.mubr.bf16.gmra.mrb[0].mxu0 %v6694
  %v7721 = vpop.f32.mrb[0].mxu0
  %v7722 = vadd.f32 0.0, %v7721
  %v7723 = vpop.f32.mrb[0].mxu0
  %v7724 = vpop.f32.mrb[0].mxu0
  %v7725 = vadd.f32 0.0, %v7724
  %v7726 = vpop.f32.mrb[0].mxu0
  %7727 = vmatprep.mubr.bf16.mxu0 0
  %7728 = vmatmul.mubr.bf16.gmra.mrb[0].mxu0 %v6697
  %v7729 = vpop.f32.mrb[0].mxu0
  %v7730 = vadd.f32 0.0, %v7729
  %v7731 = vpop.f32.mrb[0].mxu0
  %v7732 = vpop.f32.mrb[0].mxu0
  %v7733 = vadd.f32 0.0, %v7732
  %v7734 = vpop.f32.mrb[0].mxu0
  %7735 = vmatprep.mubr.bf16.mxu0 0
  %7736 = vmatmul.mubr.bf16.gmra.mrb[0].mxu0 %v6700
  %v7737 = vpop.f32.mrb[0].mxu0
  %v7738 = vadd.f32 0.0, %v7737
  %v7739 = vpop.f32.mrb[0].mxu0
  %v7740 = vpop.f32.mrb[0].mxu0
  %v7741 = vadd.f32 0.0, %v7740
  %v7742 = vpop.f32.mrb[0].mxu0
  %7743 = vmatprep.mubr.bf16.mxu0 0
  %7744 = vmatmul.mubr.bf16.gmra.mrb[0].mxu0 %v6703
  %v7745 = vpop.f32.mrb[0].mxu0
  %v7746 = vadd.f32 0.0, %v7745
  %v7747 = vpop.f32.mrb[0].mxu0
  %v7748 = vpop.f32.mrb[0].mxu0
  %v7749 = vadd.f32 0.0, %v7748
  %v7750 = vpop.f32.mrb[0].mxu0
  %7751 = vmatprep.mubr.bf16.mxu0 0
  %7752 = vmatmul.mubr.bf16.gmra.mrb[0].mxu0 %v6706
  %v7753 = vpop.f32.mrb[0].mxu0
  %v7754 = vadd.f32 0.0, %v7753
  %v7755 = vpop.f32.mrb[0].mxu0
  %v7756 = vpop.f32.mrb[0].mxu0
  %v7757 = vadd.f32 0.0, %v7756
  %v7758 = vpop.f32.mrb[0].mxu0
  %7759 = vdwg.mxu0
  %v7760 = vadd.f32 %v7601, %v7698
  %v7761 = vadd.f32 %v7604, %v7701
  %v7762 = vadd.f32 %v7609, %v7706
  %v7763 = vadd.f32 %v7612, %v7709
  %v7764 = vadd.f32 %v7617, %v7714
  %v7765 = vadd.f32 %v7620, %v7717
  %v7766 = vadd.f32 %v7625, %v7722
  %v7767 = vadd.f32 %v7628, %v7725
  %v7768 = vadd.f32 %v7633, %v7730
  %v7769 = vadd.f32 %v7636, %v7733
  %v7770 = vadd.f32 %v7641, %v7738
  %v7771 = vadd.f32 %v7644, %v7741
  %v7772 = vadd.f32 %v7649, %v7746
  %v7773 = vadd.f32 %v7652, %v7749
  %v7774 = vadd.f32 %v7657, %v7754
  %v7775 = vadd.f32 %v7660, %v7757
  %7776 = vmatprep.subr.bf16.mxu0 0
  %7777 = vmatpush1.bf16.msra.mxu0 %v784
  %7778 = vmatprep.subr.bf16.mxu0 0
  %7779 = vmatpush1.bf16.msra.mxu0 %v785
  %7780 = vmatprep.subr.bf16.mxu0 0
  %7781 = vmatpush1.bf16.msra.mxu0 %v786
  %7782 = vmatprep.subr.bf16.mxu0 0
  %7783 = vmatpush1.bf16.msra.mxu0 %v787
  %7784 = vmatprep.subr.bf16.mxu0 0
  %7785 = vmatpush1.bf16.msra.mxu0 0
  %7786 = vmatprep.subr.bf16.mxu0 0
  %7787 = vmatpush1.bf16.msra.mxu0 0
  %7788 = vmatprep.subr.bf16.mxu0 0
  %7789 = vmatpush1.bf16.msra.mxu0 0
  %7790 = vmatprep.subr.bf16.mxu0 0
  %7791 = vmatpush1.bf16.msra.mxu0 0
  %7792 = vmatprep.subr.bf16.mxu0 0
  %7793 = vmatpush1.bf16.msra.mxu0 0
  %7794 = vmatprep.subr.bf16.mxu0 0
  %7795 = vmatpush1.bf16.msra.mxu0 0
  %7796 = vmatprep.subr.bf16.mxu0 0
  %7797 = vmatpush1.bf16.msra.mxu0 0
  %7798 = vmatprep.subr.bf16.mxu0 0
  %7799 = vmatpush1.bf16.msra.mxu0 0
  %7800 = vmatprep.subr.bf16.mxu0 0
  %7801 = vmatpush1.bf16.msra.mxu0 0
  %7802 = vmatprep.subr.bf16.mxu0 0
  %7803 = vmatpush1.bf16.msra.mxu0 0
  %7804 = vmatprep.subr.bf16.mxu0 0
  %7805 = vmatpush1.bf16.msra.mxu0 0
  %7806 = vmatprep.subr.bf16.mxu0 0
  %7807 = vmatpush1.bf16.msra.mxu0 0
  %7808 = vmatprep.mubr.bf16.mxu0 0
  %7809 = vmatmul.mubr.bf16.gmra.mrb[0].mxu0 %v7317
  %v7810 = vpop.f32.mrb[0].mxu0
  %v7811 = vadd.f32 0.0, %v7810
  %v7812 = vpop.f32.mrb[0].mxu0
  %v7813 = vpop.f32.mrb[0].mxu0
  %v7814 = vadd.f32 0.0, %v7813
  %v7815 = vpop.f32.mrb[0].mxu0
  %7816 = vmatprep.mubr.bf16.mxu0 0
  %7817 = vmatmul.mubr.bf16.gmra.mrb[0].mxu0 %v7320
  %v7818 = vpop.f32.mrb[0].mxu0
  %v7819 = vadd.f32 0.0, %v7818
  %v7820 = vpop.f32.mrb[0].mxu0
  %v7821 = vpop.f32.mrb[0].mxu0
  %v7822 = vadd.f32 0.0, %v7821
  %v7823 = vpop.f32.mrb[0].mxu0
  %7824 = vmatprep.mubr.bf16.mxu0 0
  %7825 = vmatmul.mubr.bf16.gmra.mrb[0].mxu0 %v7323
  %v7826 = vpop.f32.mrb[0].mxu0
  %v7827 = vadd.f32 0.0, %v7826
  %v7828 = vpop.f32.mrb[0].mxu0
  %v7829 = vpop.f32.mrb[0].mxu0
  %v7830 = vadd.f32 0.0, %v7829
  %v7831 = vpop.f32.mrb[0].mxu0
  %7832 = vmatprep.mubr.bf16.mxu0 0
  %7833 = vmatmul.mubr.bf16.gmra.mrb[0].mxu0 %v7326
  %v7834 = vpop.f32.mrb[0].mxu0
  %v7835 = vadd.f32 0.0, %v7834
  %v7836 = vpop.f32.mrb[0].mxu0
  %v7837 = vpop.f32.mrb[0].mxu0
  %v7838 = vadd.f32 0.0, %v7837
  %v7839 = vpop.f32.mrb[0].mxu0
  %7840 = vmatprep.mubr.bf16.mxu0 0
  %7841 = vmatmul.mubr.bf16.gmra.mrb[0].mxu0 %v7329
  %v7842 = vpop.f32.mrb[0].mxu0
  %v7843 = vadd.f32 0.0, %v7842
  %v7844 = vpop.f32.mrb[0].mxu0
  %v7845 = vpop.f32.mrb[0].mxu0
  %v7846 = vadd.f32 0.0, %v7845
  %v7847 = vpop.f32.mrb[0].mxu0
  %7848 = vmatprep.mubr.bf16.mxu0 0
  %7849 = vmatmul.mubr.bf16.gmra.mrb[0].mxu0 %v7332
  %v7850 = vpop.f32.mrb[0].mxu0
  %v7851 = vadd.f32 0.0, %v7850
  %v7852 = vpop.f32.mrb[0].mxu0
  %v7853 = vpop.f32.mrb[0].mxu0
  %v7854 = vadd.f32 0.0, %v7853
  %v7855 = vpop.f32.mrb[0].mxu0
  %7856 = vmatprep.mubr.bf16.mxu0 0
  %7857 = vmatmul.mubr.bf16.gmra.mrb[0].mxu0 %v7335
  %v7858 = vpop.f32.mrb[0].mxu0
  %v7859 = vadd.f32 0.0, %v7858
  %v7860 = vpop.f32.mrb[0].mxu0
  %v7861 = vpop.f32.mrb[0].mxu0
  %v7862 = vadd.f32 0.0, %v7861
  %v7863 = vpop.f32.mrb[0].mxu0
  %7864 = vmatprep.mubr.bf16.mxu0 0
  %7865 = vmatmul.mubr.bf16.gmra.mrb[0].mxu0 %v7338
  %v7866 = vpop.f32.mrb[0].mxu0
  %v7867 = vadd.f32 0.0, %v7866
  %v7868 = vpop.f32.mrb[0].mxu0
  %v7869 = vpop.f32.mrb[0].mxu0
  %v7870 = vadd.f32 0.0, %v7869
  %v7871 = vpop.f32.mrb[0].mxu0
  %7872 = vdwg.mxu0
  %v7873 = vadd.f32 %v7760, %v7811
  %v7874 = vadd.f32 %v7761, %v7814
  %v7875 = vadd.f32 %v7762, %v7819
  %v7876 = vadd.f32 %v7763, %v7822
  %v7877 = vadd.f32 %v7764, %v7827
  %v7878 = vadd.f32 %v7765, %v7830
  %v7879 = vadd.f32 %v7766, %v7835
  %v7880 = vadd.f32 %v7767, %v7838
  %v7881 = vadd.f32 %v7768, %v7843
  %v7882 = vadd.f32 %v7769, %v7846
  %v7883 = vadd.f32 %v7770, %v7851
  %v7884 = vadd.f32 %v7771, %v7854
  %v7885 = vadd.f32 %v7772, %v7859
  %v7886 = vadd.f32 %v7773, %v7862
  %v7887 = vadd.f32 %v7774, %v7867
  %v7888 = vadd.f32 %v7775, %v7870
  %s7889 = sadd.s32 0, 240
  %s7890 = smul.addr %s7889, 4
  %s7891 = scalar_lea.vmem %s0, %s7890
  %v7892 = vld [vmem:[%s7891] sm:$0xf]
  %v7893 = vld [vmem:[%s7891 + $0x4] sm:$0xf]
  %v7894 = vld [vmem:[%s7891 + $0x8] sm:$0xf]
  %v7895 = vld [vmem:[%s7891 + $0xc] sm:$0xf]
  %v7896 = vld [vmem:[%s7891 + $0x10] sm:$0xf]
  %v7897 = vld [vmem:[%s7891 + $0x14] sm:$0xf]
  %v7898 = vld [vmem:[%s7891 + $0x18] sm:$0xf]
  %v7899 = vld [vmem:[%s7891 + $0x1c] sm:$0xf]
  %v7900 = vld [vmem:[%s7891 + $0x20] sm:$0xf]
  %v7901 = vld [vmem:[%s7891 + $0x24] sm:$0xf]
  %v7902 = vld [vmem:[%s7891 + $0x28] sm:$0xf]
  %v7903 = vld [vmem:[%s7891 + $0x2c] sm:$0xf]
  %v7904 = vld [vmem:[%s7891 + $0x30] sm:$0xf]
  %v7905 = vld [vmem:[%s7891 + $0x34] sm:$0xf]
  %v7906 = vld [vmem:[%s7891 + $0x38] sm:$0xf]
  %v7907 = vld [vmem:[%s7891 + $0x3c] sm:$0xf]
  %v7924 = vunpack.c.l.b16 %v7892
  %v7925 = vunpack.c.l.b16 %v7893
  %v7926 = vunpack.c.l.b16 %v7894
  %v7927 = vunpack.c.l.b16 %v7895
  %v7928 = vunpack.c.l.b16 %v7896
  %v7929 = vunpack.c.l.b16 %v7897
  %v7930 = vunpack.c.l.b16 %v7898
  %v7931 = vunpack.c.l.b16 %v7899
  %v7932 = vunpack.c.l.b16 %v7900
  %v7933 = vunpack.c.l.b16 %v7901
  %v7934 = vunpack.c.l.b16 %v7902
  %v7935 = vunpack.c.l.b16 %v7903
  %v7936 = vunpack.c.l.b16 %v7904
  %v7937 = vunpack.c.l.b16 %v7905
  %v7938 = vunpack.c.l.b16 %v7906
  %v7939 = vunpack.c.l.b16 %v7907
  %v7940 = vpack.c.b16 %v7925, %v7924
  %v7941 = vpack.c.b16 %v7927, %v7926
  %v7942 = vpack.c.b16 %v7929, %v7928
  %v7943 = vpack.c.b16 %v7931, %v7930
  %v7944 = vpack.c.b16 %v7933, %v7932
  %v7945 = vpack.c.b16 %v7935, %v7934
  %v7946 = vpack.c.b16 %v7937, %v7936
  %v7947 = vpack.c.b16 %v7939, %v7938
  %v7949 = vsel %vm182, %v7940, 0
  %v7952 = vsel %vm182, %v7941, 0
  %v7955 = vsel %vm182, %v7942, 0
  %v7958 = vsel %vm182, %v7943, 0
  %v7961 = vsel %vm182, %v7944, 0
  %v7964 = vsel %vm182, %v7945, 0
  %v7967 = vsel %vm182, %v7946, 0
  %v7970 = vsel %vm182, %v7947, 0
  %7972 = vmatprep.subr.bf16.mxu0 0
  %7973 = vmatpush1.bf16.msra.mxu0 %v1004
  %7974 = vmatprep.subr.bf16.mxu0 0
  %7975 = vmatpush1.bf16.msra.mxu0 %v1005
  %7976 = vmatprep.subr.bf16.mxu0 0
  %7977 = vmatpush1.bf16.msra.mxu0 %v1006
  %7978 = vmatprep.subr.bf16.mxu0 0
  %7979 = vmatpush1.bf16.msra.mxu0 %v1007
  %7980 = vmatprep.subr.bf16.mxu0 0
  %7981 = vmatpush1.bf16.msra.mxu0 0
  %7982 = vmatprep.subr.bf16.mxu0 0
  %7983 = vmatpush1.bf16.msra.mxu0 0
  %7984 = vmatprep.subr.bf16.mxu0 0
  %7985 = vmatpush1.bf16.msra.mxu0 0
  %7986 = vmatprep.subr.bf16.mxu0 0
  %7987 = vmatpush1.bf16.msra.mxu0 0
  %7988 = vmatprep.subr.bf16.mxu0 0
  %7989 = vmatpush1.bf16.msra.mxu0 0
  %7990 = vmatprep.subr.bf16.mxu0 0
  %7991 = vmatpush1.bf16.msra.mxu0 0
  %7992 = vmatprep.subr.bf16.mxu0 0
  %7993 = vmatpush1.bf16.msra.mxu0 0
  %7994 = vmatprep.subr.bf16.mxu0 0
  %7995 = vmatpush1.bf16.msra.mxu0 0
  %7996 = vmatprep.subr.bf16.mxu0 0
  %7997 = vmatpush1.bf16.msra.mxu0 0
  %7998 = vmatprep.subr.bf16.mxu0 0
  %7999 = vmatpush1.bf16.msra.mxu0 0
  %8000 = vmatprep.subr.bf16.mxu0 0
  %8001 = vmatpush1.bf16.msra.mxu0 0
  %8002 = vmatprep.subr.bf16.mxu0 0
  %8003 = vmatpush1.bf16.msra.mxu0 0
  %8004 = vmatprep.mubr.bf16.mxu0 0
  %8005 = vmatmul.mubr.bf16.gmra.mrb[0].mxu0 %v7949
  %v8006 = vpop.f32.mrb[0].mxu0
  %v8007 = vadd.f32 0.0, %v8006
  %v8008 = vpop.f32.mrb[0].mxu0
  %v8009 = vpop.f32.mrb[0].mxu0
  %v8010 = vadd.f32 0.0, %v8009
  %v8011 = vpop.f32.mrb[0].mxu0
  %8012 = vmatprep.mubr.bf16.mxu0 0
  %8013 = vmatmul.mubr.bf16.gmra.mrb[0].mxu0 %v7952
  %v8014 = vpop.f32.mrb[0].mxu0
  %v8015 = vadd.f32 0.0, %v8014
  %v8016 = vpop.f32.mrb[0].mxu0
  %v8017 = vpop.f32.mrb[0].mxu0
  %v8018 = vadd.f32 0.0, %v8017
  %v8019 = vpop.f32.mrb[0].mxu0
  %8020 = vmatprep.mubr.bf16.mxu0 0
  %8021 = vmatmul.mubr.bf16.gmra.mrb[0].mxu0 %v7955
  %v8022 = vpop.f32.mrb[0].mxu0
  %v8023 = vadd.f32 0.0, %v8022
  %v8024 = vpop.f32.mrb[0].mxu0
  %v8025 = vpop.f32.mrb[0].mxu0
  %v8026 = vadd.f32 0.0, %v8025
  %v8027 = vpop.f32.mrb[0].mxu0
  %8028 = vmatprep.mubr.bf16.mxu0 0
  %8029 = vmatmul.mubr.bf16.gmra.mrb[0].mxu0 %v7958
  %v8030 = vpop.f32.mrb[0].mxu0
  %v8031 = vadd.f32 0.0, %v8030
  %v8032 = vpop.f32.mrb[0].mxu0
  %v8033 = vpop.f32.mrb[0].mxu0
  %v8034 = vadd.f32 0.0, %v8033
  %v8035 = vpop.f32.mrb[0].mxu0
  %8036 = vmatprep.mubr.bf16.mxu0 0
  %8037 = vmatmul.mubr.bf16.gmra.mrb[0].mxu0 %v7961
  %v8038 = vpop.f32.mrb[0].mxu0
  %v8039 = vadd.f32 0.0, %v8038
  %v8040 = vpop.f32.mrb[0].mxu0
  %v8041 = vpop.f32.mrb[0].mxu0
  %v8042 = vadd.f32 0.0, %v8041
  %v8043 = vpop.f32.mrb[0].mxu0
  %8044 = vmatprep.mubr.bf16.mxu0 0
  %8045 = vmatmul.mubr.bf16.gmra.mrb[0].mxu0 %v7964
  %v8046 = vpop.f32.mrb[0].mxu0
  %v8047 = vadd.f32 0.0, %v8046
  %v8048 = vpop.f32.mrb[0].mxu0
  %v8049 = vpop.f32.mrb[0].mxu0
  %v8050 = vadd.f32 0.0, %v8049
  %v8051 = vpop.f32.mrb[0].mxu0
  %8052 = vmatprep.mubr.bf16.mxu0 0
  %8053 = vmatmul.mubr.bf16.gmra.mrb[0].mxu0 %v7967
  %v8054 = vpop.f32.mrb[0].mxu0
  %v8055 = vadd.f32 0.0, %v8054
  %v8056 = vpop.f32.mrb[0].mxu0
  %v8057 = vpop.f32.mrb[0].mxu0
  %v8058 = vadd.f32 0.0, %v8057
  %v8059 = vpop.f32.mrb[0].mxu0
  %8060 = vmatprep.mubr.bf16.mxu0 0
  %8061 = vmatmul.mubr.bf16.gmra.mrb[0].mxu0 %v7970
  %v8062 = vpop.f32.mrb[0].mxu0
  %v8063 = vadd.f32 0.0, %v8062
  %v8064 = vpop.f32.mrb[0].mxu0
  %v8065 = vpop.f32.mrb[0].mxu0
  %v8066 = vadd.f32 0.0, %v8065
  %v8067 = vpop.f32.mrb[0].mxu0
  %8068 = vdwg.mxu0
  %v8069 = vadd.f32 %v7873, %v8007
  %v8070 = vadd.f32 %v7874, %v8010
  %v8071 = vadd.f32 %v7875, %v8015
  %v8072 = vadd.f32 %v7876, %v8018
  %v8073 = vadd.f32 %v7877, %v8023
  %v8074 = vadd.f32 %v7878, %v8026
  %v8075 = vadd.f32 %v7879, %v8031
  %v8076 = vadd.f32 %v7880, %v8034
  %v8077 = vadd.f32 %v7881, %v8039
  %v8078 = vadd.f32 %v7882, %v8042
  %v8079 = vadd.f32 %v7883, %v8047
  %v8080 = vadd.f32 %v7884, %v8050
  %v8081 = vadd.f32 %v7885, %v8055
  %v8082 = vadd.f32 %v7886, %v8058
  %v8083 = vadd.f32 %v7887, %v8063
  %v8084 = vadd.f32 %v7888, %v8066
  %v8085 = vmax.f32 %v7453, %v8069
  %v8086 = vmax.f32 %v7454, %v8070
  %v8087 = vmax.f32 %v7455, %v8071
  %v8088 = vmax.f32 %v7456, %v8072
  %v8089 = vmax.f32 %v7457, %v8073
  %v8090 = vmax.f32 %v7458, %v8074
  %v8091 = vmax.f32 %v7459, %v8075
  %v8092 = vmax.f32 %v7460, %v8076
  %v8093 = vmax.f32 %v7461, %v8077
  %v8094 = vmax.f32 %v7462, %v8078
  %v8095 = vmax.f32 %v7463, %v8079
  %v8096 = vmax.f32 %v7464, %v8080
  %v8097 = vmax.f32 %v7465, %v8081
  %v8098 = vmax.f32 %v7466, %v8082
  %v8099 = vmax.f32 %v7467, %v8083
  %v8100 = vmax.f32 %v7468, %v8084
  %8101 = vmatprep.subr.bf16.mxu0 0
  %8102 = vmatpush1.bf16.msra.mxu0 %v174
  %8103 = vmatprep.subr.bf16.mxu0 0
  %8104 = vmatpush1.bf16.msra.mxu0 %v175
  %8105 = vmatprep.subr.bf16.mxu0 0
  %8106 = vmatpush1.bf16.msra.mxu0 %v176
  %8107 = vmatprep.subr.bf16.mxu0 0
  %8108 = vmatpush1.bf16.msra.mxu0 %v177
  %8109 = vmatprep.subr.bf16.mxu0 0
  %8110 = vmatpush1.bf16.msra.mxu0 0
  %8111 = vmatprep.subr.bf16.mxu0 0
  %8112 = vmatpush1.bf16.msra.mxu0 0
  %8113 = vmatprep.subr.bf16.mxu0 0
  %8114 = vmatpush1.bf16.msra.mxu0 0
  %8115 = vmatprep.subr.bf16.mxu0 0
  %8116 = vmatpush1.bf16.msra.mxu0 0
  %8117 = vmatprep.subr.bf16.mxu0 0
  %8118 = vmatpush1.bf16.msra.mxu0 0
  %8119 = vmatprep.subr.bf16.mxu0 0
  %8120 = vmatpush1.bf16.msra.mxu0 0
  %8121 = vmatprep.subr.bf16.mxu0 0
  %8122 = vmatpush1.bf16.msra.mxu0 0
  %8123 = vmatprep.subr.bf16.mxu0 0
  %8124 = vmatpush1.bf16.msra.mxu0 0
  %8125 = vmatprep.subr.bf16.mxu0 0
  %8126 = vmatpush1.bf16.msra.mxu0 0
  %8127 = vmatprep.subr.bf16.mxu0 0
  %8128 = vmatpush1.bf16.msra.mxu0 0
  %8129 = vmatprep.subr.bf16.mxu0 0
  %8130 = vmatpush1.bf16.msra.mxu0 0
  %8131 = vmatprep.subr.bf16.mxu0 0
  %8132 = vmatpush1.bf16.msra.mxu0 0
  %8133 = vmatprep.mubr.bf16.mxu0 0
  %8134 = vmatmul.mubr.bf16.gmra.mrb[0].mxu0 %v6685
  %v8135 = vpop.f32.mrb[0].mxu0
  %v8136 = vadd.f32 0.0, %v8135
  %v8137 = vpop.f32.mrb[0].mxu0
  %v8138 = vpop.f32.mrb[0].mxu0
  %v8139 = vadd.f32 0.0, %v8138
  %v8140 = vpop.f32.mrb[0].mxu0
  %8141 = vmatprep.mubr.bf16.mxu0 0
  %8142 = vmatmul.mubr.bf16.gmra.mrb[0].mxu0 %v6688
  %v8143 = vpop.f32.mrb[0].mxu0
  %v8144 = vadd.f32 0.0, %v8143
  %v8145 = vpop.f32.mrb[0].mxu0
  %v8146 = vpop.f32.mrb[0].mxu0
  %v8147 = vadd.f32 0.0, %v8146
  %v8148 = vpop.f32.mrb[0].mxu0
  %8149 = vmatprep.mubr.bf16.mxu0 0
  %8150 = vmatmul.mubr.bf16.gmra.mrb[0].mxu0 %v6691
  %v8151 = vpop.f32.mrb[0].mxu0
  %v8152 = vadd.f32 0.0, %v8151
  %v8153 = vpop.f32.mrb[0].mxu0
  %v8154 = vpop.f32.mrb[0].mxu0
  %v8155 = vadd.f32 0.0, %v8154
  %v8156 = vpop.f32.mrb[0].mxu0
  %8157 = vmatprep.mubr.bf16.mxu0 0
  %8158 = vmatmul.mubr.bf16.gmra.mrb[0].mxu0 %v6694
  %v8159 = vpop.f32.mrb[0].mxu0
  %v8160 = vadd.f32 0.0, %v8159
  %v8161 = vpop.f32.mrb[0].mxu0
  %v8162 = vpop.f32.mrb[0].mxu0
  %v8163 = vadd.f32 0.0, %v8162
  %v8164 = vpop.f32.mrb[0].mxu0
  %8165 = vmatprep.mubr.bf16.mxu0 0
  %8166 = vmatmul.mubr.bf16.gmra.mrb[0].mxu0 %v6697
  %v8167 = vpop.f32.mrb[0].mxu0
  %v8168 = vadd.f32 0.0, %v8167
  %v8169 = vpop.f32.mrb[0].mxu0
  %v8170 = vpop.f32.mrb[0].mxu0
  %v8171 = vadd.f32 0.0, %v8170
  %v8172 = vpop.f32.mrb[0].mxu0
  %8173 = vmatprep.mubr.bf16.mxu0 0
  %8174 = vmatmul.mubr.bf16.gmra.mrb[0].mxu0 %v6700
  %v8175 = vpop.f32.mrb[0].mxu0
  %v8176 = vadd.f32 0.0, %v8175
  %v8177 = vpop.f32.mrb[0].mxu0
  %v8178 = vpop.f32.mrb[0].mxu0
  %v8179 = vadd.f32 0.0, %v8178
  %v8180 = vpop.f32.mrb[0].mxu0
  %8181 = vmatprep.mubr.bf16.mxu0 0
  %8182 = vmatmul.mubr.bf16.gmra.mrb[0].mxu0 %v6703
  %v8183 = vpop.f32.mrb[0].mxu0
  %v8184 = vadd.f32 0.0, %v8183
  %v8185 = vpop.f32.mrb[0].mxu0
  %v8186 = vpop.f32.mrb[0].mxu0
  %v8187 = vadd.f32 0.0, %v8186
  %v8188 = vpop.f32.mrb[0].mxu0
  %8189 = vmatprep.mubr.bf16.mxu0 0
  %8190 = vmatmul.mubr.bf16.gmra.mrb[0].mxu0 %v6706
  %v8191 = vpop.f32.mrb[0].mxu0
  %v8192 = vadd.f32 0.0, %v8191
  %v8193 = vpop.f32.mrb[0].mxu0
  %v8194 = vpop.f32.mrb[0].mxu0
  %v8195 = vadd.f32 0.0, %v8194
  %v8196 = vpop.f32.mrb[0].mxu0
  %8197 = vdwg.mxu0
  %8198 = vmatprep.subr.bf16.mxu0 0
  %8199 = vmatpush1.bf16.msra.mxu0 %v360
  %8200 = vmatprep.subr.bf16.mxu0 0
  %8201 = vmatpush1.bf16.msra.mxu0 %v361
  %8202 = vmatprep.subr.bf16.mxu0 0
  %8203 = vmatpush1.bf16.msra.mxu0 %v362
  %8204 = vmatprep.subr.bf16.mxu0 0
  %8205 = vmatpush1.bf16.msra.mxu0 %v363
  %8206 = vmatprep.subr.bf16.mxu0 0
  %8207 = vmatpush1.bf16.msra.mxu0 0
  %8208 = vmatprep.subr.bf16.mxu0 0
  %8209 = vmatpush1.bf16.msra.mxu0 0
  %8210 = vmatprep.subr.bf16.mxu0 0
  %8211 = vmatpush1.bf16.msra.mxu0 0
  %8212 = vmatprep.subr.bf16.mxu0 0
  %8213 = vmatpush1.bf16.msra.mxu0 0
  %8214 = vmatprep.subr.bf16.mxu0 0
  %8215 = vmatpush1.bf16.msra.mxu0 0
  %8216 = vmatprep.subr.bf16.mxu0 0
  %8217 = vmatpush1.bf16.msra.mxu0 0
  %8218 = vmatprep.subr.bf16.mxu0 0
  %8219 = vmatpush1.bf16.msra.mxu0 0
  %8220 = vmatprep.subr.bf16.mxu0 0
  %8221 = vmatpush1.bf16.msra.mxu0 0
  %8222 = vmatprep.subr.bf16.mxu0 0
  %8223 = vmatpush1.bf16.msra.mxu0 0
  %8224 = vmatprep.subr.bf16.mxu0 0
  %8225 = vmatpush1.bf16.msra.mxu0 0
  %8226 = vmatprep.subr.bf16.mxu0 0
  %8227 = vmatpush1.bf16.msra.mxu0 0
  %8228 = vmatprep.subr.bf16.mxu0 0
  %8229 = vmatpush1.bf16.msra.mxu0 0
  %8230 = vmatprep.mubr.bf16.mxu0 0
  %8231 = vmatmul.mubr.bf16.gmra.mrb[0].mxu0 %v6053
  %v8232 = vpop.f32.mrb[0].mxu0
  %v8233 = vadd.f32 %v8136, %v8232
  %v8234 = vpop.f32.mrb[0].mxu0
  %v8235 = vpop.f32.mrb[0].mxu0
  %v8236 = vadd.f32 %v8139, %v8235
  %v8237 = vpop.f32.mrb[0].mxu0
  %8238 = vmatprep.mubr.bf16.mxu0 0
  %8239 = vmatmul.mubr.bf16.gmra.mrb[0].mxu0 %v6056
  %v8240 = vpop.f32.mrb[0].mxu0
  %v8241 = vadd.f32 %v8144, %v8240
  %v8242 = vpop.f32.mrb[0].mxu0
  %v8243 = vpop.f32.mrb[0].mxu0
  %v8244 = vadd.f32 %v8147, %v8243
  %v8245 = vpop.f32.mrb[0].mxu0
  %8246 = vmatprep.mubr.bf16.mxu0 0
  %8247 = vmatmul.mubr.bf16.gmra.mrb[0].mxu0 %v6059
  %v8248 = vpop.f32.mrb[0].mxu0
  %v8249 = vadd.f32 %v8152, %v8248
  %v8250 = vpop.f32.mrb[0].mxu0
  %v8251 = vpop.f32.mrb[0].mxu0
  %v8252 = vadd.f32 %v8155, %v8251
  %v8253 = vpop.f32.mrb[0].mxu0
  %8254 = vmatprep.mubr.bf16.mxu0 0
  %8255 = vmatmul.mubr.bf16.gmra.mrb[0].mxu0 %v6062
  %v8256 = vpop.f32.mrb[0].mxu0
  %v8257 = vadd.f32 %v8160, %v8256
  %v8258 = vpop.f32.mrb[0].mxu0
  %v8259 = vpop.f32.mrb[0].mxu0
  %v8260 = vadd.f32 %v8163, %v8259
  %v8261 = vpop.f32.mrb[0].mxu0
  %8262 = vmatprep.mubr.bf16.mxu0 0
  %8263 = vmatmul.mubr.bf16.gmra.mrb[0].mxu0 %v6065
  %v8264 = vpop.f32.mrb[0].mxu0
  %v8265 = vadd.f32 %v8168, %v8264
  %v8266 = vpop.f32.mrb[0].mxu0
  %v8267 = vpop.f32.mrb[0].mxu0
  %v8268 = vadd.f32 %v8171, %v8267
  %v8269 = vpop.f32.mrb[0].mxu0
  %8270 = vmatprep.mubr.bf16.mxu0 0
  %8271 = vmatmul.mubr.bf16.gmra.mrb[0].mxu0 %v6068
  %v8272 = vpop.f32.mrb[0].mxu0
  %v8273 = vadd.f32 %v8176, %v8272
  %v8274 = vpop.f32.mrb[0].mxu0
  %v8275 = vpop.f32.mrb[0].mxu0
  %v8276 = vadd.f32 %v8179, %v8275
  %v8277 = vpop.f32.mrb[0].mxu0
  %8278 = vmatprep.mubr.bf16.mxu0 0
  %8279 = vmatmul.mubr.bf16.gmra.mrb[0].mxu0 %v6071
  %v8280 = vpop.f32.mrb[0].mxu0
  %v8281 = vadd.f32 %v8184, %v8280
  %v8282 = vpop.f32.mrb[0].mxu0
  %v8283 = vpop.f32.mrb[0].mxu0
  %v8284 = vadd.f32 %v8187, %v8283
  %v8285 = vpop.f32.mrb[0].mxu0
  %8286 = vmatprep.mubr.bf16.mxu0 0
  %8287 = vmatmul.mubr.bf16.gmra.mrb[0].mxu0 %v6074
  %v8288 = vpop.f32.mrb[0].mxu0
  %v8289 = vadd.f32 %v8192, %v8288
  %v8290 = vpop.f32.mrb[0].mxu0
  %v8291 = vpop.f32.mrb[0].mxu0
  %v8292 = vadd.f32 %v8195, %v8291
  %v8293 = vpop.f32.mrb[0].mxu0
  %8294 = vdwg.mxu0
  %8295 = vmatprep.subr.bf16.mxu0 0
  %8296 = vmatpush1.bf16.msra.mxu0 %v564
  %8297 = vmatprep.subr.bf16.mxu0 0
  %8298 = vmatpush1.bf16.msra.mxu0 %v565
  %8299 = vmatprep.subr.bf16.mxu0 0
  %8300 = vmatpush1.bf16.msra.mxu0 %v566
  %8301 = vmatprep.subr.bf16.mxu0 0
  %8302 = vmatpush1.bf16.msra.mxu0 %v567
  %8303 = vmatprep.subr.bf16.mxu0 0
  %8304 = vmatpush1.bf16.msra.mxu0 0
  %8305 = vmatprep.subr.bf16.mxu0 0
  %8306 = vmatpush1.bf16.msra.mxu0 0
  %8307 = vmatprep.subr.bf16.mxu0 0
  %8308 = vmatpush1.bf16.msra.mxu0 0
  %8309 = vmatprep.subr.bf16.mxu0 0
  %8310 = vmatpush1.bf16.msra.mxu0 0
  %8311 = vmatprep.subr.bf16.mxu0 0
  %8312 = vmatpush1.bf16.msra.mxu0 0
  %8313 = vmatprep.subr.bf16.mxu0 0
  %8314 = vmatpush1.bf16.msra.mxu0 0
  %8315 = vmatprep.subr.bf16.mxu0 0
  %8316 = vmatpush1.bf16.msra.mxu0 0
  %8317 = vmatprep.subr.bf16.mxu0 0
  %8318 = vmatpush1.bf16.msra.mxu0 0
  %8319 = vmatprep.subr.bf16.mxu0 0
  %8320 = vmatpush1.bf16.msra.mxu0 0
  %8321 = vmatprep.subr.bf16.mxu0 0
  %8322 = vmatpush1.bf16.msra.mxu0 0
  %8323 = vmatprep.subr.bf16.mxu0 0
  %8324 = vmatpush1.bf16.msra.mxu0 0
  %8325 = vmatprep.subr.bf16.mxu0 0
  %8326 = vmatpush1.bf16.msra.mxu0 0
  %8327 = vmatprep.mubr.bf16.mxu0 0
  %8328 = vmatmul.mubr.bf16.gmra.mrb[0].mxu0 %v7317
  %v8329 = vpop.f32.mrb[0].mxu0
  %v8330 = vadd.f32 0.0, %v8329
  %v8331 = vpop.f32.mrb[0].mxu0
  %v8332 = vpop.f32.mrb[0].mxu0
  %v8333 = vadd.f32 0.0, %v8332
  %v8334 = vpop.f32.mrb[0].mxu0
  %8335 = vmatprep.mubr.bf16.mxu0 0
  %8336 = vmatmul.mubr.bf16.gmra.mrb[0].mxu0 %v7320
  %v8337 = vpop.f32.mrb[0].mxu0
  %v8338 = vadd.f32 0.0, %v8337
  %v8339 = vpop.f32.mrb[0].mxu0
  %v8340 = vpop.f32.mrb[0].mxu0
  %v8341 = vadd.f32 0.0, %v8340
  %v8342 = vpop.f32.mrb[0].mxu0
  %8343 = vmatprep.mubr.bf16.mxu0 0
  %8344 = vmatmul.mubr.bf16.gmra.mrb[0].mxu0 %v7323
  %v8345 = vpop.f32.mrb[0].mxu0
  %v8346 = vadd.f32 0.0, %v8345
  %v8347 = vpop.f32.mrb[0].mxu0
  %v8348 = vpop.f32.mrb[0].mxu0
  %v8349 = vadd.f32 0.0, %v8348
  %v8350 = vpop.f32.mrb[0].mxu0
  %8351 = vmatprep.mubr.bf16.mxu0 0
  %8352 = vmatmul.mubr.bf16.gmra.mrb[0].mxu0 %v7326
  %v8353 = vpop.f32.mrb[0].mxu0
  %v8354 = vadd.f32 0.0, %v8353
  %v8355 = vpop.f32.mrb[0].mxu0
  %v8356 = vpop.f32.mrb[0].mxu0
  %v8357 = vadd.f32 0.0, %v8356
  %v8358 = vpop.f32.mrb[0].mxu0
  %8359 = vmatprep.mubr.bf16.mxu0 0
  %8360 = vmatmul.mubr.bf16.gmra.mrb[0].mxu0 %v7329
  %v8361 = vpop.f32.mrb[0].mxu0
  %v8362 = vadd.f32 0.0, %v8361
  %v8363 = vpop.f32.mrb[0].mxu0
  %v8364 = vpop.f32.mrb[0].mxu0
  %v8365 = vadd.f32 0.0, %v8364
  %v8366 = vpop.f32.mrb[0].mxu0
  %8367 = vmatprep.mubr.bf16.mxu0 0
  %8368 = vmatmul.mubr.bf16.gmra.mrb[0].mxu0 %v7332
  %v8369 = vpop.f32.mrb[0].mxu0
  %v8370 = vadd.f32 0.0, %v8369
  %v8371 = vpop.f32.mrb[0].mxu0
  %v8372 = vpop.f32.mrb[0].mxu0
  %v8373 = vadd.f32 0.0, %v8372
  %v8374 = vpop.f32.mrb[0].mxu0
  %8375 = vmatprep.mubr.bf16.mxu0 0
  %8376 = vmatmul.mubr.bf16.gmra.mrb[0].mxu0 %v7335
  %v8377 = vpop.f32.mrb[0].mxu0
  %v8378 = vadd.f32 0.0, %v8377
  %v8379 = vpop.f32.mrb[0].mxu0
  %v8380 = vpop.f32.mrb[0].mxu0
  %v8381 = vadd.f32 0.0, %v8380
  %v8382 = vpop.f32.mrb[0].mxu0
  %8383 = vmatprep.mubr.bf16.mxu0 0
  %8384 = vmatmul.mubr.bf16.gmra.mrb[0].mxu0 %v7338
  %v8385 = vpop.f32.mrb[0].mxu0
  %v8386 = vadd.f32 0.0, %v8385
  %v8387 = vpop.f32.mrb[0].mxu0
  %v8388 = vpop.f32.mrb[0].mxu0
  %v8389 = vadd.f32 0.0, %v8388
  %v8390 = vpop.f32.mrb[0].mxu0
  %8391 = vdwg.mxu0
  %v8392 = vadd.f32 %v8233, %v8330
  %v8393 = vadd.f32 %v8236, %v8333
  %v8394 = vadd.f32 %v8241, %v8338
  %v8395 = vadd.f32 %v8244, %v8341
  %v8396 = vadd.f32 %v8249, %v8346
  %v8397 = vadd.f32 %v8252, %v8349
  %v8398 = vadd.f32 %v8257, %v8354
  %v8399 = vadd.f32 %v8260, %v8357
  %v8400 = vadd.f32 %v8265, %v8362
  %v8401 = vadd.f32 %v8268, %v8365
  %v8402 = vadd.f32 %v8273, %v8370
  %v8403 = vadd.f32 %v8276, %v8373
  %v8404 = vadd.f32 %v8281, %v8378
  %v8405 = vadd.f32 %v8284, %v8381
  %v8406 = vadd.f32 %v8289, %v8386
  %v8407 = vadd.f32 %v8292, %v8389
  %8408 = vmatprep.subr.bf16.mxu0 0
  %8409 = vmatpush1.bf16.msra.mxu0 %v784
  %8410 = vmatprep.subr.bf16.mxu0 0
  %8411 = vmatpush1.bf16.msra.mxu0 %v785
  %8412 = vmatprep.subr.bf16.mxu0 0
  %8413 = vmatpush1.bf16.msra.mxu0 %v786
  %8414 = vmatprep.subr.bf16.mxu0 0
  %8415 = vmatpush1.bf16.msra.mxu0 %v787
  %8416 = vmatprep.subr.bf16.mxu0 0
  %8417 = vmatpush1.bf16.msra.mxu0 0
  %8418 = vmatprep.subr.bf16.mxu0 0
  %8419 = vmatpush1.bf16.msra.mxu0 0
  %8420 = vmatprep.subr.bf16.mxu0 0
  %8421 = vmatpush1.bf16.msra.mxu0 0
  %8422 = vmatprep.subr.bf16.mxu0 0
  %8423 = vmatpush1.bf16.msra.mxu0 0
  %8424 = vmatprep.subr.bf16.mxu0 0
  %8425 = vmatpush1.bf16.msra.mxu0 0
  %8426 = vmatprep.subr.bf16.mxu0 0
  %8427 = vmatpush1.bf16.msra.mxu0 0
  %8428 = vmatprep.subr.bf16.mxu0 0
  %8429 = vmatpush1.bf16.msra.mxu0 0
  %8430 = vmatprep.subr.bf16.mxu0 0
  %8431 = vmatpush1.bf16.msra.mxu0 0
  %8432 = vmatprep.subr.bf16.mxu0 0
  %8433 = vmatpush1.bf16.msra.mxu0 0
  %8434 = vmatprep.subr.bf16.mxu0 0
  %8435 = vmatpush1.bf16.msra.mxu0 0
  %8436 = vmatprep.subr.bf16.mxu0 0
  %8437 = vmatpush1.bf16.msra.mxu0 0
  %8438 = vmatprep.subr.bf16.mxu0 0
  %8439 = vmatpush1.bf16.msra.mxu0 0
  %8440 = vmatprep.mubr.bf16.mxu0 0
  %8441 = vmatmul.mubr.bf16.gmra.mrb[0].mxu0 %v7949
  %v8442 = vpop.f32.mrb[0].mxu0
  %v8443 = vadd.f32 0.0, %v8442
  %v8444 = vpop.f32.mrb[0].mxu0
  %v8445 = vpop.f32.mrb[0].mxu0
  %v8446 = vadd.f32 0.0, %v8445
  %v8447 = vpop.f32.mrb[0].mxu0
  %8448 = vmatprep.mubr.bf16.mxu0 0
  %8449 = vmatmul.mubr.bf16.gmra.mrb[0].mxu0 %v7952
  %v8450 = vpop.f32.mrb[0].mxu0
  %v8451 = vadd.f32 0.0, %v8450
  %v8452 = vpop.f32.mrb[0].mxu0
  %v8453 = vpop.f32.mrb[0].mxu0
  %v8454 = vadd.f32 0.0, %v8453
  %v8455 = vpop.f32.mrb[0].mxu0
  %8456 = vmatprep.mubr.bf16.mxu0 0
  %8457 = vmatmul.mubr.bf16.gmra.mrb[0].mxu0 %v7955
  %v8458 = vpop.f32.mrb[0].mxu0
  %v8459 = vadd.f32 0.0, %v8458
  %v8460 = vpop.f32.mrb[0].mxu0
  %v8461 = vpop.f32.mrb[0].mxu0
  %v8462 = vadd.f32 0.0, %v8461
  %v8463 = vpop.f32.mrb[0].mxu0
  %8464 = vmatprep.mubr.bf16.mxu0 0
  %8465 = vmatmul.mubr.bf16.gmra.mrb[0].mxu0 %v7958
  %v8466 = vpop.f32.mrb[0].mxu0
  %v8467 = vadd.f32 0.0, %v8466
  %v8468 = vpop.f32.mrb[0].mxu0
  %v8469 = vpop.f32.mrb[0].mxu0
  %v8470 = vadd.f32 0.0, %v8469
  %v8471 = vpop.f32.mrb[0].mxu0
  %8472 = vmatprep.mubr.bf16.mxu0 0
  %8473 = vmatmul.mubr.bf16.gmra.mrb[0].mxu0 %v7961
  %v8474 = vpop.f32.mrb[0].mxu0
  %v8475 = vadd.f32 0.0, %v8474
  %v8476 = vpop.f32.mrb[0].mxu0
  %v8477 = vpop.f32.mrb[0].mxu0
  %v8478 = vadd.f32 0.0, %v8477
  %v8479 = vpop.f32.mrb[0].mxu0
  %8480 = vmatprep.mubr.bf16.mxu0 0
  %8481 = vmatmul.mubr.bf16.gmra.mrb[0].mxu0 %v7964
  %v8482 = vpop.f32.mrb[0].mxu0
  %v8483 = vadd.f32 0.0, %v8482
  %v8484 = vpop.f32.mrb[0].mxu0
  %v8485 = vpop.f32.mrb[0].mxu0
  %v8486 = vadd.f32 0.0, %v8485
  %v8487 = vpop.f32.mrb[0].mxu0
  %8488 = vmatprep.mubr.bf16.mxu0 0
  %8489 = vmatmul.mubr.bf16.gmra.mrb[0].mxu0 %v7967
  %v8490 = vpop.f32.mrb[0].mxu0
  %v8491 = vadd.f32 0.0, %v8490
  %v8492 = vpop.f32.mrb[0].mxu0
  %v8493 = vpop.f32.mrb[0].mxu0
  %v8494 = vadd.f32 0.0, %v8493
  %v8495 = vpop.f32.mrb[0].mxu0
  %8496 = vmatprep.mubr.bf16.mxu0 0
  %8497 = vmatmul.mubr.bf16.gmra.mrb[0].mxu0 %v7970
  %v8498 = vpop.f32.mrb[0].mxu0
  %v8499 = vadd.f32 0.0, %v8498
  %v8500 = vpop.f32.mrb[0].mxu0
  %v8501 = vpop.f32.mrb[0].mxu0
  %v8502 = vadd.f32 0.0, %v8501
  %v8503 = vpop.f32.mrb[0].mxu0
  %8504 = vdwg.mxu0
  %v8505 = vadd.f32 %v8392, %v8443
  %v8506 = vadd.f32 %v8393, %v8446
  %v8507 = vadd.f32 %v8394, %v8451
  %v8508 = vadd.f32 %v8395, %v8454
  %v8509 = vadd.f32 %v8396, %v8459
  %v8510 = vadd.f32 %v8397, %v8462
  %v8511 = vadd.f32 %v8398, %v8467
  %v8512 = vadd.f32 %v8399, %v8470
  %v8513 = vadd.f32 %v8400, %v8475
  %v8514 = vadd.f32 %v8401, %v8478
  %v8515 = vadd.f32 %v8402, %v8483
  %v8516 = vadd.f32 %v8403, %v8486
  %v8517 = vadd.f32 %v8404, %v8491
  %v8518 = vadd.f32 %v8405, %v8494
  %v8519 = vadd.f32 %v8406, %v8499
  %v8520 = vadd.f32 %v8407, %v8502
  %s8521 = sadd.s32 0, 256
  %s8522 = smul.addr %s8521, 4
  %s8523 = scalar_lea.vmem %s0, %s8522
  %v8524 = vld [vmem:[%s8523] sm:$0xf]
  %v8525 = vld [vmem:[%s8523 + $0x4] sm:$0xf]
  %v8526 = vld [vmem:[%s8523 + $0x8] sm:$0xf]
  %v8527 = vld [vmem:[%s8523 + $0xc] sm:$0xf]
  %v8528 = vld [vmem:[%s8523 + $0x10] sm:$0xf]
  %v8529 = vld [vmem:[%s8523 + $0x14] sm:$0xf]
  %v8530 = vld [vmem:[%s8523 + $0x18] sm:$0xf]
  %v8531 = vld [vmem:[%s8523 + $0x1c] sm:$0xf]
  %v8532 = vld [vmem:[%s8523 + $0x20] sm:$0xf]
  %v8533 = vld [vmem:[%s8523 + $0x24] sm:$0xf]
  %v8534 = vld [vmem:[%s8523 + $0x28] sm:$0xf]
  %v8535 = vld [vmem:[%s8523 + $0x2c] sm:$0xf]
  %v8536 = vld [vmem:[%s8523 + $0x30] sm:$0xf]
  %v8537 = vld [vmem:[%s8523 + $0x34] sm:$0xf]
  %v8538 = vld [vmem:[%s8523 + $0x38] sm:$0xf]
  %v8539 = vld [vmem:[%s8523 + $0x3c] sm:$0xf]
  %v8556 = vunpack.c.l.b16 %v8524
  %v8557 = vunpack.c.l.b16 %v8525
  %v8558 = vunpack.c.l.b16 %v8526
  %v8559 = vunpack.c.l.b16 %v8527
  %v8560 = vunpack.c.l.b16 %v8528
  %v8561 = vunpack.c.l.b16 %v8529
  %v8562 = vunpack.c.l.b16 %v8530
  %v8563 = vunpack.c.l.b16 %v8531
  %v8564 = vunpack.c.l.b16 %v8532
  %v8565 = vunpack.c.l.b16 %v8533
  %v8566 = vunpack.c.l.b16 %v8534
  %v8567 = vunpack.c.l.b16 %v8535
  %v8568 = vunpack.c.l.b16 %v8536
  %v8569 = vunpack.c.l.b16 %v8537
  %v8570 = vunpack.c.l.b16 %v8538
  %v8571 = vunpack.c.l.b16 %v8539
  %v8572 = vpack.c.b16 %v8557, %v8556
  %v8573 = vpack.c.b16 %v8559, %v8558
  %v8574 = vpack.c.b16 %v8561, %v8560
  %v8575 = vpack.c.b16 %v8563, %v8562
  %v8576 = vpack.c.b16 %v8565, %v8564
  %v8577 = vpack.c.b16 %v8567, %v8566
  %v8578 = vpack.c.b16 %v8569, %v8568
  %v8579 = vpack.c.b16 %v8571, %v8570
  %v8581 = vsel %vm182, %v8572, 0
  %v8584 = vsel %vm182, %v8573, 0
  %v8587 = vsel %vm182, %v8574, 0
  %v8590 = vsel %vm182, %v8575, 0
  %v8593 = vsel %vm182, %v8576, 0
  %v8596 = vsel %vm182, %v8577, 0
  %v8599 = vsel %vm182, %v8578, 0
  %v8602 = vsel %vm182, %v8579, 0
  %8604 = vmatprep.subr.bf16.mxu0 0
  %8605 = vmatpush1.bf16.msra.mxu0 %v1004
  %8606 = vmatprep.subr.bf16.mxu0 0
  %8607 = vmatpush1.bf16.msra.mxu0 %v1005
  %8608 = vmatprep.subr.bf16.mxu0 0
  %8609 = vmatpush1.bf16.msra.mxu0 %v1006
  %8610 = vmatprep.subr.bf16.mxu0 0
  %8611 = vmatpush1.bf16.msra.mxu0 %v1007
  %8612 = vmatprep.subr.bf16.mxu0 0
  %8613 = vmatpush1.bf16.msra.mxu0 0
  %8614 = vmatprep.subr.bf16.mxu0 0
  %8615 = vmatpush1.bf16.msra.mxu0 0
  %8616 = vmatprep.subr.bf16.mxu0 0
  %8617 = vmatpush1.bf16.msra.mxu0 0
  %8618 = vmatprep.subr.bf16.mxu0 0
  %8619 = vmatpush1.bf16.msra.mxu0 0
  %8620 = vmatprep.subr.bf16.mxu0 0
  %8621 = vmatpush1.bf16.msra.mxu0 0
  %8622 = vmatprep.subr.bf16.mxu0 0
  %8623 = vmatpush1.bf16.msra.mxu0 0
  %8624 = vmatprep.subr.bf16.mxu0 0
  %8625 = vmatpush1.bf16.msra.mxu0 0
  %8626 = vmatprep.subr.bf16.mxu0 0
  %8627 = vmatpush1.bf16.msra.mxu0 0
  %8628 = vmatprep.subr.bf16.mxu0 0
  %8629 = vmatpush1.bf16.msra.mxu0 0
  %8630 = vmatprep.subr.bf16.mxu0 0
  %8631 = vmatpush1.bf16.msra.mxu0 0
  %8632 = vmatprep.subr.bf16.mxu0 0
  %8633 = vmatpush1.bf16.msra.mxu0 0
  %8634 = vmatprep.subr.bf16.mxu0 0
  %8635 = vmatpush1.bf16.msra.mxu0 0
  %8636 = vmatprep.mubr.bf16.mxu0 0
  %8637 = vmatmul.mubr.bf16.gmra.mrb[0].mxu0 %v8581
  %v8638 = vpop.f32.mrb[0].mxu0
  %v8639 = vadd.f32 0.0, %v8638
  %v8640 = vpop.f32.mrb[0].mxu0
  %v8641 = vpop.f32.mrb[0].mxu0
  %v8642 = vadd.f32 0.0, %v8641
  %v8643 = vpop.f32.mrb[0].mxu0
  %8644 = vmatprep.mubr.bf16.mxu0 0
  %8645 = vmatmul.mubr.bf16.gmra.mrb[0].mxu0 %v8584
  %v8646 = vpop.f32.mrb[0].mxu0
  %v8647 = vadd.f32 0.0, %v8646
  %v8648 = vpop.f32.mrb[0].mxu0
  %v8649 = vpop.f32.mrb[0].mxu0
  %v8650 = vadd.f32 0.0, %v8649
  %v8651 = vpop.f32.mrb[0].mxu0
  %8652 = vmatprep.mubr.bf16.mxu0 0
  %8653 = vmatmul.mubr.bf16.gmra.mrb[0].mxu0 %v8587
  %v8654 = vpop.f32.mrb[0].mxu0
  %v8655 = vadd.f32 0.0, %v8654
  %v8656 = vpop.f32.mrb[0].mxu0
  %v8657 = vpop.f32.mrb[0].mxu0
  %v8658 = vadd.f32 0.0, %v8657
  %v8659 = vpop.f32.mrb[0].mxu0
  %8660 = vmatprep.mubr.bf16.mxu0 0
  %8661 = vmatmul.mubr.bf16.gmra.mrb[0].mxu0 %v8590
  %v8662 = vpop.f32.mrb[0].mxu0
  %v8663 = vadd.f32 0.0, %v8662
  %v8664 = vpop.f32.mrb[0].mxu0
  %v8665 = vpop.f32.mrb[0].mxu0
  %v8666 = vadd.f32 0.0, %v8665
  %v8667 = vpop.f32.mrb[0].mxu0
  %8668 = vmatprep.mubr.bf16.mxu0 0
  %8669 = vmatmul.mubr.bf16.gmra.mrb[0].mxu0 %v8593
  %v8670 = vpop.f32.mrb[0].mxu0
  %v8671 = vadd.f32 0.0, %v8670
  %v8672 = vpop.f32.mrb[0].mxu0
  %v8673 = vpop.f32.mrb[0].mxu0
  %v8674 = vadd.f32 0.0, %v8673
  %v8675 = vpop.f32.mrb[0].mxu0
  %8676 = vmatprep.mubr.bf16.mxu0 0
  %8677 = vmatmul.mubr.bf16.gmra.mrb[0].mxu0 %v8596
  %v8678 = vpop.f32.mrb[0].mxu0
  %v8679 = vadd.f32 0.0, %v8678
  %v8680 = vpop.f32.mrb[0].mxu0
  %v8681 = vpop.f32.mrb[0].mxu0
  %v8682 = vadd.f32 0.0, %v8681
  %v8683 = vpop.f32.mrb[0].mxu0
  %8684 = vmatprep.mubr.bf16.mxu0 0
  %8685 = vmatmul.mubr.bf16.gmra.mrb[0].mxu0 %v8599
  %v8686 = vpop.f32.mrb[0].mxu0
  %v8687 = vadd.f32 0.0, %v8686
  %v8688 = vpop.f32.mrb[0].mxu0
  %v8689 = vpop.f32.mrb[0].mxu0
  %v8690 = vadd.f32 0.0, %v8689
  %v8691 = vpop.f32.mrb[0].mxu0
  %8692 = vmatprep.mubr.bf16.mxu0 0
  %8693 = vmatmul.mubr.bf16.gmra.mrb[0].mxu0 %v8602
  %v8694 = vpop.f32.mrb[0].mxu0
  %v8695 = vadd.f32 0.0, %v8694
  %v8696 = vpop.f32.mrb[0].mxu0
  %v8697 = vpop.f32.mrb[0].mxu0
  %v8698 = vadd.f32 0.0, %v8697
  %v8699 = vpop.f32.mrb[0].mxu0
  %8700 = vdwg.mxu0
  %v8701 = vadd.f32 %v8505, %v8639
  %v8702 = vadd.f32 %v8506, %v8642
  %v8703 = vadd.f32 %v8507, %v8647
  %v8704 = vadd.f32 %v8508, %v8650
  %v8705 = vadd.f32 %v8509, %v8655
  %v8706 = vadd.f32 %v8510, %v8658
  %v8707 = vadd.f32 %v8511, %v8663
  %v8708 = vadd.f32 %v8512, %v8666
  %v8709 = vadd.f32 %v8513, %v8671
  %v8710 = vadd.f32 %v8514, %v8674
  %v8711 = vadd.f32 %v8515, %v8679
  %v8712 = vadd.f32 %v8516, %v8682
  %v8713 = vadd.f32 %v8517, %v8687
  %v8714 = vadd.f32 %v8518, %v8690
  %v8715 = vadd.f32 %v8519, %v8695
  %v8716 = vadd.f32 %v8520, %v8698
  %v8717 = vmax.f32 %v8085, %v8701
  %v8718 = vmax.f32 %v8086, %v8702
  %v8719 = vmax.f32 %v8087, %v8703
  %v8720 = vmax.f32 %v8088, %v8704
  %v8721 = vmax.f32 %v8089, %v8705
  %v8722 = vmax.f32 %v8090, %v8706
  %v8723 = vmax.f32 %v8091, %v8707
  %v8724 = vmax.f32 %v8092, %v8708
  %v8725 = vmax.f32 %v8093, %v8709
  %v8726 = vmax.f32 %v8094, %v8710
  %v8727 = vmax.f32 %v8095, %v8711
  %v8728 = vmax.f32 %v8096, %v8712
  %v8729 = vmax.f32 %v8097, %v8713
  %v8730 = vmax.f32 %v8098, %v8714
  %v8731 = vmax.f32 %v8099, %v8715
  %v8732 = vmax.f32 %v8100, %v8716
  %8733 = vmatprep.subr.bf16.mxu0 0
  %8734 = vmatpush1.bf16.msra.mxu0 %v174
  %8735 = vmatprep.subr.bf16.mxu0 0
  %8736 = vmatpush1.bf16.msra.mxu0 %v175
  %8737 = vmatprep.subr.bf16.mxu0 0
  %8738 = vmatpush1.bf16.msra.mxu0 %v176
  %8739 = vmatprep.subr.bf16.mxu0 0
  %8740 = vmatpush1.bf16.msra.mxu0 %v177
  %8741 = vmatprep.subr.bf16.mxu0 0
  %8742 = vmatpush1.bf16.msra.mxu0 0
  %8743 = vmatprep.subr.bf16.mxu0 0
  %8744 = vmatpush1.bf16.msra.mxu0 0
  %8745 = vmatprep.subr.bf16.mxu0 0
  %8746 = vmatpush1.bf16.msra.mxu0 0
  %8747 = vmatprep.subr.bf16.mxu0 0
  %8748 = vmatpush1.bf16.msra.mxu0 0
  %8749 = vmatprep.subr.bf16.mxu0 0
  %8750 = vmatpush1.bf16.msra.mxu0 0
  %8751 = vmatprep.subr.bf16.mxu0 0
  %8752 = vmatpush1.bf16.msra.mxu0 0
  %8753 = vmatprep.subr.bf16.mxu0 0
  %8754 = vmatpush1.bf16.msra.mxu0 0
  %8755 = vmatprep.subr.bf16.mxu0 0
  %8756 = vmatpush1.bf16.msra.mxu0 0
  %8757 = vmatprep.subr.bf16.mxu0 0
  %8758 = vmatpush1.bf16.msra.mxu0 0
  %8759 = vmatprep.subr.bf16.mxu0 0
  %8760 = vmatpush1.bf16.msra.mxu0 0
  %8761 = vmatprep.subr.bf16.mxu0 0
  %8762 = vmatpush1.bf16.msra.mxu0 0
  %8763 = vmatprep.subr.bf16.mxu0 0
  %8764 = vmatpush1.bf16.msra.mxu0 0
  %8765 = vmatprep.mubr.bf16.mxu0 0
  %8766 = vmatmul.mubr.bf16.gmra.mrb[0].mxu0 %v7317
  %v8767 = vpop.f32.mrb[0].mxu0
  %v8768 = vadd.f32 0.0, %v8767
  %v8769 = vpop.f32.mrb[0].mxu0
  %v8770 = vpop.f32.mrb[0].mxu0
  %v8771 = vadd.f32 0.0, %v8770
  %v8772 = vpop.f32.mrb[0].mxu0
  %8773 = vmatprep.mubr.bf16.mxu0 0
  %8774 = vmatmul.mubr.bf16.gmra.mrb[0].mxu0 %v7320
  %v8775 = vpop.f32.mrb[0].mxu0
  %v8776 = vadd.f32 0.0, %v8775
  %v8777 = vpop.f32.mrb[0].mxu0
  %v8778 = vpop.f32.mrb[0].mxu0
  %v8779 = vadd.f32 0.0, %v8778
  %v8780 = vpop.f32.mrb[0].mxu0
  %8781 = vmatprep.mubr.bf16.mxu0 0
  %8782 = vmatmul.mubr.bf16.gmra.mrb[0].mxu0 %v7323
  %v8783 = vpop.f32.mrb[0].mxu0
  %v8784 = vadd.f32 0.0, %v8783
  %v8785 = vpop.f32.mrb[0].mxu0
  %v8786 = vpop.f32.mrb[0].mxu0
  %v8787 = vadd.f32 0.0, %v8786
  %v8788 = vpop.f32.mrb[0].mxu0
  %8789 = vmatprep.mubr.bf16.mxu0 0
  %8790 = vmatmul.mubr.bf16.gmra.mrb[0].mxu0 %v7326
  %v8791 = vpop.f32.mrb[0].mxu0
  %v8792 = vadd.f32 0.0, %v8791
  %v8793 = vpop.f32.mrb[0].mxu0
  %v8794 = vpop.f32.mrb[0].mxu0
  %v8795 = vadd.f32 0.0, %v8794
  %v8796 = vpop.f32.mrb[0].mxu0
  %8797 = vmatprep.mubr.bf16.mxu0 0
  %8798 = vmatmul.mubr.bf16.gmra.mrb[0].mxu0 %v7329
  %v8799 = vpop.f32.mrb[0].mxu0
  %v8800 = vadd.f32 0.0, %v8799
  %v8801 = vpop.f32.mrb[0].mxu0
  %v8802 = vpop.f32.mrb[0].mxu0
  %v8803 = vadd.f32 0.0, %v8802
  %v8804 = vpop.f32.mrb[0].mxu0
  %8805 = vmatprep.mubr.bf16.mxu0 0
  %8806 = vmatmul.mubr.bf16.gmra.mrb[0].mxu0 %v7332
  %v8807 = vpop.f32.mrb[0].mxu0
  %v8808 = vadd.f32 0.0, %v8807
  %v8809 = vpop.f32.mrb[0].mxu0
  %v8810 = vpop.f32.mrb[0].mxu0
  %v8811 = vadd.f32 0.0, %v8810
  %v8812 = vpop.f32.mrb[0].mxu0
  %8813 = vmatprep.mubr.bf16.mxu0 0
  %8814 = vmatmul.mubr.bf16.gmra.mrb[0].mxu0 %v7335
  %v8815 = vpop.f32.mrb[0].mxu0
  %v8816 = vadd.f32 0.0, %v8815
  %v8817 = vpop.f32.mrb[0].mxu0
  %v8818 = vpop.f32.mrb[0].mxu0
  %v8819 = vadd.f32 0.0, %v8818
  %v8820 = vpop.f32.mrb[0].mxu0
  %8821 = vmatprep.mubr.bf16.mxu0 0
  %8822 = vmatmul.mubr.bf16.gmra.mrb[0].mxu0 %v7338
  %v8823 = vpop.f32.mrb[0].mxu0
  %v8824 = vadd.f32 0.0, %v8823
  %v8825 = vpop.f32.mrb[0].mxu0
  %v8826 = vpop.f32.mrb[0].mxu0
  %v8827 = vadd.f32 0.0, %v8826
  %v8828 = vpop.f32.mrb[0].mxu0
  %8829 = vdwg.mxu0
  %8830 = vmatprep.subr.bf16.mxu0 0
  %8831 = vmatpush1.bf16.msra.mxu0 %v360
  %8832 = vmatprep.subr.bf16.mxu0 0
  %8833 = vmatpush1.bf16.msra.mxu0 %v361
  %8834 = vmatprep.subr.bf16.mxu0 0
  %8835 = vmatpush1.bf16.msra.mxu0 %v362
  %8836 = vmatprep.subr.bf16.mxu0 0
  %8837 = vmatpush1.bf16.msra.mxu0 %v363
  %8838 = vmatprep.subr.bf16.mxu0 0
  %8839 = vmatpush1.bf16.msra.mxu0 0
  %8840 = vmatprep.subr.bf16.mxu0 0
  %8841 = vmatpush1.bf16.msra.mxu0 0
  %8842 = vmatprep.subr.bf16.mxu0 0
  %8843 = vmatpush1.bf16.msra.mxu0 0
  %8844 = vmatprep.subr.bf16.mxu0 0
  %8845 = vmatpush1.bf16.msra.mxu0 0
  %8846 = vmatprep.subr.bf16.mxu0 0
  %8847 = vmatpush1.bf16.msra.mxu0 0
  %8848 = vmatprep.subr.bf16.mxu0 0
  %8849 = vmatpush1.bf16.msra.mxu0 0
  %8850 = vmatprep.subr.bf16.mxu0 0
  %8851 = vmatpush1.bf16.msra.mxu0 0
  %8852 = vmatprep.subr.bf16.mxu0 0
  %8853 = vmatpush1.bf16.msra.mxu0 0
  %8854 = vmatprep.subr.bf16.mxu0 0
  %8855 = vmatpush1.bf16.msra.mxu0 0
  %8856 = vmatprep.subr.bf16.mxu0 0
  %8857 = vmatpush1.bf16.msra.mxu0 0
  %8858 = vmatprep.subr.bf16.mxu0 0
  %8859 = vmatpush1.bf16.msra.mxu0 0
  %8860 = vmatprep.subr.bf16.mxu0 0
  %8861 = vmatpush1.bf16.msra.mxu0 0
  %8862 = vmatprep.mubr.bf16.mxu0 0
  %8863 = vmatmul.mubr.bf16.gmra.mrb[0].mxu0 %v6685
  %v8864 = vpop.f32.mrb[0].mxu0
  %v8865 = vadd.f32 %v8768, %v8864
  %v8866 = vpop.f32.mrb[0].mxu0
  %v8867 = vpop.f32.mrb[0].mxu0
  %v8868 = vadd.f32 %v8771, %v8867
  %v8869 = vpop.f32.mrb[0].mxu0
  %8870 = vmatprep.mubr.bf16.mxu0 0
  %8871 = vmatmul.mubr.bf16.gmra.mrb[0].mxu0 %v6688
  %v8872 = vpop.f32.mrb[0].mxu0
  %v8873 = vadd.f32 %v8776, %v8872
  %v8874 = vpop.f32.mrb[0].mxu0
  %v8875 = vpop.f32.mrb[0].mxu0
  %v8876 = vadd.f32 %v8779, %v8875
  %v8877 = vpop.f32.mrb[0].mxu0
  %8878 = vmatprep.mubr.bf16.mxu0 0
  %8879 = vmatmul.mubr.bf16.gmra.mrb[0].mxu0 %v6691
  %v8880 = vpop.f32.mrb[0].mxu0
  %v8881 = vadd.f32 %v8784, %v8880
  %v8882 = vpop.f32.mrb[0].mxu0
  %v8883 = vpop.f32.mrb[0].mxu0
  %v8884 = vadd.f32 %v8787, %v8883
  %v8885 = vpop.f32.mrb[0].mxu0
  %8886 = vmatprep.mubr.bf16.mxu0 0
  %8887 = vmatmul.mubr.bf16.gmra.mrb[0].mxu0 %v6694
  %v8888 = vpop.f32.mrb[0].mxu0
  %v8889 = vadd.f32 %v8792, %v8888
  %v8890 = vpop.f32.mrb[0].mxu0
  %v8891 = vpop.f32.mrb[0].mxu0
  %v8892 = vadd.f32 %v8795, %v8891
  %v8893 = vpop.f32.mrb[0].mxu0
  %8894 = vmatprep.mubr.bf16.mxu0 0
  %8895 = vmatmul.mubr.bf16.gmra.mrb[0].mxu0 %v6697
  %v8896 = vpop.f32.mrb[0].mxu0
  %v8897 = vadd.f32 %v8800, %v8896
  %v8898 = vpop.f32.mrb[0].mxu0
  %v8899 = vpop.f32.mrb[0].mxu0
  %v8900 = vadd.f32 %v8803, %v8899
  %v8901 = vpop.f32.mrb[0].mxu0
  %8902 = vmatprep.mubr.bf16.mxu0 0
  %8903 = vmatmul.mubr.bf16.gmra.mrb[0].mxu0 %v6700
  %v8904 = vpop.f32.mrb[0].mxu0
  %v8905 = vadd.f32 %v8808, %v8904
  %v8906 = vpop.f32.mrb[0].mxu0
  %v8907 = vpop.f32.mrb[0].mxu0
  %v8908 = vadd.f32 %v8811, %v8907
  %v8909 = vpop.f32.mrb[0].mxu0
  %8910 = vmatprep.mubr.bf16.mxu0 0
  %8911 = vmatmul.mubr.bf16.gmra.mrb[0].mxu0 %v6703
  %v8912 = vpop.f32.mrb[0].mxu0
  %v8913 = vadd.f32 %v8816, %v8912
  %v8914 = vpop.f32.mrb[0].mxu0
  %v8915 = vpop.f32.mrb[0].mxu0
  %v8916 = vadd.f32 %v8819, %v8915
  %v8917 = vpop.f32.mrb[0].mxu0
  %8918 = vmatprep.mubr.bf16.mxu0 0
  %8919 = vmatmul.mubr.bf16.gmra.mrb[0].mxu0 %v6706
  %v8920 = vpop.f32.mrb[0].mxu0
  %v8921 = vadd.f32 %v8824, %v8920
  %v8922 = vpop.f32.mrb[0].mxu0
  %v8923 = vpop.f32.mrb[0].mxu0
  %v8924 = vadd.f32 %v8827, %v8923
  %v8925 = vpop.f32.mrb[0].mxu0
  %8926 = vdwg.mxu0
  %8927 = vmatprep.subr.bf16.mxu0 0
  %8928 = vmatpush1.bf16.msra.mxu0 %v564
  %8929 = vmatprep.subr.bf16.mxu0 0
  %8930 = vmatpush1.bf16.msra.mxu0 %v565
  %8931 = vmatprep.subr.bf16.mxu0 0
  %8932 = vmatpush1.bf16.msra.mxu0 %v566
  %8933 = vmatprep.subr.bf16.mxu0 0
  %8934 = vmatpush1.bf16.msra.mxu0 %v567
  %8935 = vmatprep.subr.bf16.mxu0 0
  %8936 = vmatpush1.bf16.msra.mxu0 0
  %8937 = vmatprep.subr.bf16.mxu0 0
  %8938 = vmatpush1.bf16.msra.mxu0 0
  %8939 = vmatprep.subr.bf16.mxu0 0
  %8940 = vmatpush1.bf16.msra.mxu0 0
  %8941 = vmatprep.subr.bf16.mxu0 0
  %8942 = vmatpush1.bf16.msra.mxu0 0
  %8943 = vmatprep.subr.bf16.mxu0 0
  %8944 = vmatpush1.bf16.msra.mxu0 0
  %8945 = vmatprep.subr.bf16.mxu0 0
  %8946 = vmatpush1.bf16.msra.mxu0 0
  %8947 = vmatprep.subr.bf16.mxu0 0
  %8948 = vmatpush1.bf16.msra.mxu0 0
  %8949 = vmatprep.subr.bf16.mxu0 0
  %8950 = vmatpush1.bf16.msra.mxu0 0
  %8951 = vmatprep.subr.bf16.mxu0 0
  %8952 = vmatpush1.bf16.msra.mxu0 0
  %8953 = vmatprep.subr.bf16.mxu0 0
  %8954 = vmatpush1.bf16.msra.mxu0 0
  %8955 = vmatprep.subr.bf16.mxu0 0
  %8956 = vmatpush1.bf16.msra.mxu0 0
  %8957 = vmatprep.subr.bf16.mxu0 0
  %8958 = vmatpush1.bf16.msra.mxu0 0
  %8959 = vmatprep.mubr.bf16.mxu0 0
  %8960 = vmatmul.mubr.bf16.gmra.mrb[0].mxu0 %v7949
  %v8961 = vpop.f32.mrb[0].mxu0
  %v8962 = vadd.f32 0.0, %v8961
  %v8963 = vpop.f32.mrb[0].mxu0
  %v8964 = vpop.f32.mrb[0].mxu0
  %v8965 = vadd.f32 0.0, %v8964
  %v8966 = vpop.f32.mrb[0].mxu0
  %8967 = vmatprep.mubr.bf16.mxu0 0
  %8968 = vmatmul.mubr.bf16.gmra.mrb[0].mxu0 %v7952
  %v8969 = vpop.f32.mrb[0].mxu0
  %v8970 = vadd.f32 0.0, %v8969
  %v8971 = vpop.f32.mrb[0].mxu0
  %v8972 = vpop.f32.mrb[0].mxu0
  %v8973 = vadd.f32 0.0, %v8972
  %v8974 = vpop.f32.mrb[0].mxu0
  %8975 = vmatprep.mubr.bf16.mxu0 0
  %8976 = vmatmul.mubr.bf16.gmra.mrb[0].mxu0 %v7955
  %v8977 = vpop.f32.mrb[0].mxu0
  %v8978 = vadd.f32 0.0, %v8977
  %v8979 = vpop.f32.mrb[0].mxu0
  %v8980 = vpop.f32.mrb[0].mxu0
  %v8981 = vadd.f32 0.0, %v8980
  %v8982 = vpop.f32.mrb[0].mxu0
  %8983 = vmatprep.mubr.bf16.mxu0 0
  %8984 = vmatmul.mubr.bf16.gmra.mrb[0].mxu0 %v7958
  %v8985 = vpop.f32.mrb[0].mxu0
  %v8986 = vadd.f32 0.0, %v8985
  %v8987 = vpop.f32.mrb[0].mxu0
  %v8988 = vpop.f32.mrb[0].mxu0
  %v8989 = vadd.f32 0.0, %v8988
  %v8990 = vpop.f32.mrb[0].mxu0
  %8991 = vmatprep.mubr.bf16.mxu0 0
  %8992 = vmatmul.mubr.bf16.gmra.mrb[0].mxu0 %v7961
  %v8993 = vpop.f32.mrb[0].mxu0
  %v8994 = vadd.f32 0.0, %v8993
  %v8995 = vpop.f32.mrb[0].mxu0
  %v8996 = vpop.f32.mrb[0].mxu0
  %v8997 = vadd.f32 0.0, %v8996
  %v8998 = vpop.f32.mrb[0].mxu0
  %8999 = vmatprep.mubr.bf16.mxu0 0
  %9000 = vmatmul.mubr.bf16.gmra.mrb[0].mxu0 %v7964
  %v9001 = vpop.f32.mrb[0].mxu0
  %v9002 = vadd.f32 0.0, %v9001
  %v9003 = vpop.f32.mrb[0].mxu0
  %v9004 = vpop.f32.mrb[0].mxu0
  %v9005 = vadd.f32 0.0, %v9004
  %v9006 = vpop.f32.mrb[0].mxu0
  %9007 = vmatprep.mubr.bf16.mxu0 0
  %9008 = vmatmul.mubr.bf16.gmra.mrb[0].mxu0 %v7967
  %v9009 = vpop.f32.mrb[0].mxu0
  %v9010 = vadd.f32 0.0, %v9009
  %v9011 = vpop.f32.mrb[0].mxu0
  %v9012 = vpop.f32.mrb[0].mxu0
  %v9013 = vadd.f32 0.0, %v9012
  %v9014 = vpop.f32.mrb[0].mxu0
  %9015 = vmatprep.mubr.bf16.mxu0 0
  %9016 = vmatmul.mubr.bf16.gmra.mrb[0].mxu0 %v7970
  %v9017 = vpop.f32.mrb[0].mxu0
  %v9018 = vadd.f32 0.0, %v9017
  %v9019 = vpop.f32.mrb[0].mxu0
  %v9020 = vpop.f32.mrb[0].mxu0
  %v9021 = vadd.f32 0.0, %v9020
  %v9022 = vpop.f32.mrb[0].mxu0
  %9023 = vdwg.mxu0
  %v9024 = vadd.f32 %v8865, %v8962
  %v9025 = vadd.f32 %v8868, %v8965
  %v9026 = vadd.f32 %v8873, %v8970
  %v9027 = vadd.f32 %v8876, %v8973
  %v9028 = vadd.f32 %v8881, %v8978
  %v9029 = vadd.f32 %v8884, %v8981
  %v9030 = vadd.f32 %v8889, %v8986
  %v9031 = vadd.f32 %v8892, %v8989
  %v9032 = vadd.f32 %v8897, %v8994
  %v9033 = vadd.f32 %v8900, %v8997
  %v9034 = vadd.f32 %v8905, %v9002
  %v9035 = vadd.f32 %v8908, %v9005
  %v9036 = vadd.f32 %v8913, %v9010
  %v9037 = vadd.f32 %v8916, %v9013
  %v9038 = vadd.f32 %v8921, %v9018
  %v9039 = vadd.f32 %v8924, %v9021
  %9040 = vmatprep.subr.bf16.mxu0 0
  %9041 = vmatpush1.bf16.msra.mxu0 %v784
  %9042 = vmatprep.subr.bf16.mxu0 0
  %9043 = vmatpush1.bf16.msra.mxu0 %v785
  %9044 = vmatprep.subr.bf16.mxu0 0
  %9045 = vmatpush1.bf16.msra.mxu0 %v786
  %9046 = vmatprep.subr.bf16.mxu0 0
  %9047 = vmatpush1.bf16.msra.mxu0 %v787
  %9048 = vmatprep.subr.bf16.mxu0 0
  %9049 = vmatpush1.bf16.msra.mxu0 0
  %9050 = vmatprep.subr.bf16.mxu0 0
  %9051 = vmatpush1.bf16.msra.mxu0 0
  %9052 = vmatprep.subr.bf16.mxu0 0
  %9053 = vmatpush1.bf16.msra.mxu0 0
  %9054 = vmatprep.subr.bf16.mxu0 0
  %9055 = vmatpush1.bf16.msra.mxu0 0
  %9056 = vmatprep.subr.bf16.mxu0 0
  %9057 = vmatpush1.bf16.msra.mxu0 0
  %9058 = vmatprep.subr.bf16.mxu0 0
  %9059 = vmatpush1.bf16.msra.mxu0 0
  %9060 = vmatprep.subr.bf16.mxu0 0
  %9061 = vmatpush1.bf16.msra.mxu0 0
  %9062 = vmatprep.subr.bf16.mxu0 0
  %9063 = vmatpush1.bf16.msra.mxu0 0
  %9064 = vmatprep.subr.bf16.mxu0 0
  %9065 = vmatpush1.bf16.msra.mxu0 0
  %9066 = vmatprep.subr.bf16.mxu0 0
  %9067 = vmatpush1.bf16.msra.mxu0 0
  %9068 = vmatprep.subr.bf16.mxu0 0
  %9069 = vmatpush1.bf16.msra.mxu0 0
  %9070 = vmatprep.subr.bf16.mxu0 0
  %9071 = vmatpush1.bf16.msra.mxu0 0
  %9072 = vmatprep.mubr.bf16.mxu0 0
  %9073 = vmatmul.mubr.bf16.gmra.mrb[0].mxu0 %v8581
  %v9074 = vpop.f32.mrb[0].mxu0
  %v9075 = vadd.f32 0.0, %v9074
  %v9076 = vpop.f32.mrb[0].mxu0
  %v9077 = vpop.f32.mrb[0].mxu0
  %v9078 = vadd.f32 0.0, %v9077
  %v9079 = vpop.f32.mrb[0].mxu0
  %9080 = vmatprep.mubr.bf16.mxu0 0
  %9081 = vmatmul.mubr.bf16.gmra.mrb[0].mxu0 %v8584
  %v9082 = vpop.f32.mrb[0].mxu0
  %v9083 = vadd.f32 0.0, %v9082
  %v9084 = vpop.f32.mrb[0].mxu0
  %v9085 = vpop.f32.mrb[0].mxu0
  %v9086 = vadd.f32 0.0, %v9085
  %v9087 = vpop.f32.mrb[0].mxu0
  %9088 = vmatprep.mubr.bf16.mxu0 0
  %9089 = vmatmul.mubr.bf16.gmra.mrb[0].mxu0 %v8587
  %v9090 = vpop.f32.mrb[0].mxu0
  %v9091 = vadd.f32 0.0, %v9090
  %v9092 = vpop.f32.mrb[0].mxu0
  %v9093 = vpop.f32.mrb[0].mxu0
  %v9094 = vadd.f32 0.0, %v9093
  %v9095 = vpop.f32.mrb[0].mxu0
  %9096 = vmatprep.mubr.bf16.mxu0 0
  %9097 = vmatmul.mubr.bf16.gmra.mrb[0].mxu0 %v8590
  %v9098 = vpop.f32.mrb[0].mxu0
  %v9099 = vadd.f32 0.0, %v9098
  %v9100 = vpop.f32.mrb[0].mxu0
  %v9101 = vpop.f32.mrb[0].mxu0
  %v9102 = vadd.f32 0.0, %v9101
  %v9103 = vpop.f32.mrb[0].mxu0
  %9104 = vmatprep.mubr.bf16.mxu0 0
  %9105 = vmatmul.mubr.bf16.gmra.mrb[0].mxu0 %v8593
  %v9106 = vpop.f32.mrb[0].mxu0
  %v9107 = vadd.f32 0.0, %v9106
  %v9108 = vpop.f32.mrb[0].mxu0
  %v9109 = vpop.f32.mrb[0].mxu0
  %v9110 = vadd.f32 0.0, %v9109
  %v9111 = vpop.f32.mrb[0].mxu0
  %9112 = vmatprep.mubr.bf16.mxu0 0
  %9113 = vmatmul.mubr.bf16.gmra.mrb[0].mxu0 %v8596
  %v9114 = vpop.f32.mrb[0].mxu0
  %v9115 = vadd.f32 0.0, %v9114
  %v9116 = vpop.f32.mrb[0].mxu0
  %v9117 = vpop.f32.mrb[0].mxu0
  %v9118 = vadd.f32 0.0, %v9117
  %v9119 = vpop.f32.mrb[0].mxu0
  %9120 = vmatprep.mubr.bf16.mxu0 0
  %9121 = vmatmul.mubr.bf16.gmra.mrb[0].mxu0 %v8599
  %v9122 = vpop.f32.mrb[0].mxu0
  %v9123 = vadd.f32 0.0, %v9122
  %v9124 = vpop.f32.mrb[0].mxu0
  %v9125 = vpop.f32.mrb[0].mxu0
  %v9126 = vadd.f32 0.0, %v9125
  %v9127 = vpop.f32.mrb[0].mxu0
  %9128 = vmatprep.mubr.bf16.mxu0 0
  %9129 = vmatmul.mubr.bf16.gmra.mrb[0].mxu0 %v8602
  %v9130 = vpop.f32.mrb[0].mxu0
  %v9131 = vadd.f32 0.0, %v9130
  %v9132 = vpop.f32.mrb[0].mxu0
  %v9133 = vpop.f32.mrb[0].mxu0
  %v9134 = vadd.f32 0.0, %v9133
  %v9135 = vpop.f32.mrb[0].mxu0
  %9136 = vdwg.mxu0
  %v9137 = vadd.f32 %v9024, %v9075
  %v9138 = vadd.f32 %v9025, %v9078
  %v9139 = vadd.f32 %v9026, %v9083
  %v9140 = vadd.f32 %v9027, %v9086
  %v9141 = vadd.f32 %v9028, %v9091
  %v9142 = vadd.f32 %v9029, %v9094
  %v9143 = vadd.f32 %v9030, %v9099
  %v9144 = vadd.f32 %v9031, %v9102
  %v9145 = vadd.f32 %v9032, %v9107
  %v9146 = vadd.f32 %v9033, %v9110
  %v9147 = vadd.f32 %v9034, %v9115
  %v9148 = vadd.f32 %v9035, %v9118
  %v9149 = vadd.f32 %v9036, %v9123
  %v9150 = vadd.f32 %v9037, %v9126
  %v9151 = vadd.f32 %v9038, %v9131
  %v9152 = vadd.f32 %v9039, %v9134
  %s9153 = sadd.s32 0, 272
  %s9154 = smul.addr %s9153, 4
  %s9155 = scalar_lea.vmem %s0, %s9154
  %v9156 = vld [vmem:[%s9155] sm:$0xf]
  %v9157 = vld [vmem:[%s9155 + $0x4] sm:$0xf]
  %v9158 = vld [vmem:[%s9155 + $0x8] sm:$0xf]
  %v9159 = vld [vmem:[%s9155 + $0xc] sm:$0xf]
  %v9160 = vld [vmem:[%s9155 + $0x10] sm:$0xf]
  %v9161 = vld [vmem:[%s9155 + $0x14] sm:$0xf]
  %v9162 = vld [vmem:[%s9155 + $0x18] sm:$0xf]
  %v9163 = vld [vmem:[%s9155 + $0x1c] sm:$0xf]
  %v9164 = vld [vmem:[%s9155 + $0x20] sm:$0xf]
  %v9165 = vld [vmem:[%s9155 + $0x24] sm:$0xf]
  %v9166 = vld [vmem:[%s9155 + $0x28] sm:$0xf]
  %v9167 = vld [vmem:[%s9155 + $0x2c] sm:$0xf]
  %v9168 = vld [vmem:[%s9155 + $0x30] sm:$0xf]
  %v9169 = vld [vmem:[%s9155 + $0x34] sm:$0xf]
  %v9170 = vld [vmem:[%s9155 + $0x38] sm:$0xf]
  %v9171 = vld [vmem:[%s9155 + $0x3c] sm:$0xf]
  %v9188 = vunpack.c.l.b16 %v9156
  %v9189 = vunpack.c.l.b16 %v9157
  %v9190 = vunpack.c.l.b16 %v9158
  %v9191 = vunpack.c.l.b16 %v9159
  %v9192 = vunpack.c.l.b16 %v9160
  %v9193 = vunpack.c.l.b16 %v9161
  %v9194 = vunpack.c.l.b16 %v9162
  %v9195 = vunpack.c.l.b16 %v9163
  %v9196 = vunpack.c.l.b16 %v9164
  %v9197 = vunpack.c.l.b16 %v9165
  %v9198 = vunpack.c.l.b16 %v9166
  %v9199 = vunpack.c.l.b16 %v9167
  %v9200 = vunpack.c.l.b16 %v9168
  %v9201 = vunpack.c.l.b16 %v9169
  %v9202 = vunpack.c.l.b16 %v9170
  %v9203 = vunpack.c.l.b16 %v9171
  %v9204 = vpack.c.b16 %v9189, %v9188
  %v9205 = vpack.c.b16 %v9191, %v9190
  %v9206 = vpack.c.b16 %v9193, %v9192
  %v9207 = vpack.c.b16 %v9195, %v9194
  %v9208 = vpack.c.b16 %v9197, %v9196
  %v9209 = vpack.c.b16 %v9199, %v9198
  %v9210 = vpack.c.b16 %v9201, %v9200
  %v9211 = vpack.c.b16 %v9203, %v9202
  %v9213 = vsel %vm182, %v9204, 0
  %v9216 = vsel %vm182, %v9205, 0
  %v9219 = vsel %vm182, %v9206, 0
  %v9222 = vsel %vm182, %v9207, 0
  %v9225 = vsel %vm182, %v9208, 0
  %v9228 = vsel %vm182, %v9209, 0
  %v9231 = vsel %vm182, %v9210, 0
  %v9234 = vsel %vm182, %v9211, 0
  %9236 = vmatprep.subr.bf16.mxu0 0
  %9237 = vmatpush1.bf16.msra.mxu0 %v1004
  %9238 = vmatprep.subr.bf16.mxu0 0
  %9239 = vmatpush1.bf16.msra.mxu0 %v1005
  %9240 = vmatprep.subr.bf16.mxu0 0
  %9241 = vmatpush1.bf16.msra.mxu0 %v1006
  %9242 = vmatprep.subr.bf16.mxu0 0
  %9243 = vmatpush1.bf16.msra.mxu0 %v1007
  %9244 = vmatprep.subr.bf16.mxu0 0
  %9245 = vmatpush1.bf16.msra.mxu0 0
  %9246 = vmatprep.subr.bf16.mxu0 0
  %9247 = vmatpush1.bf16.msra.mxu0 0
  %9248 = vmatprep.subr.bf16.mxu0 0
  %9249 = vmatpush1.bf16.msra.mxu0 0
  %9250 = vmatprep.subr.bf16.mxu0 0
  %9251 = vmatpush1.bf16.msra.mxu0 0
  %9252 = vmatprep.subr.bf16.mxu0 0
  %9253 = vmatpush1.bf16.msra.mxu0 0
  %9254 = vmatprep.subr.bf16.mxu0 0
  %9255 = vmatpush1.bf16.msra.mxu0 0
  %9256 = vmatprep.subr.bf16.mxu0 0
  %9257 = vmatpush1.bf16.msra.mxu0 0
  %9258 = vmatprep.subr.bf16.mxu0 0
  %9259 = vmatpush1.bf16.msra.mxu0 0
  %9260 = vmatprep.subr.bf16.mxu0 0
  %9261 = vmatpush1.bf16.msra.mxu0 0
  %9262 = vmatprep.subr.bf16.mxu0 0
  %9263 = vmatpush1.bf16.msra.mxu0 0
  %9264 = vmatprep.subr.bf16.mxu0 0
  %9265 = vmatpush1.bf16.msra.mxu0 0
  %9266 = vmatprep.subr.bf16.mxu0 0
  %9267 = vmatpush1.bf16.msra.mxu0 0
  %9268 = vmatprep.mubr.bf16.mxu0 0
  %9269 = vmatmul.mubr.bf16.gmra.mrb[0].mxu0 %v9213
  %v9270 = vpop.f32.mrb[0].mxu0
  %v9271 = vadd.f32 0.0, %v9270
  %v9272 = vpop.f32.mrb[0].mxu0
  %v9273 = vpop.f32.mrb[0].mxu0
  %v9274 = vadd.f32 0.0, %v9273
  %v9275 = vpop.f32.mrb[0].mxu0
  %9276 = vmatprep.mubr.bf16.mxu0 0
  %9277 = vmatmul.mubr.bf16.gmra.mrb[0].mxu0 %v9216
  %v9278 = vpop.f32.mrb[0].mxu0
  %v9279 = vadd.f32 0.0, %v9278
  %v9280 = vpop.f32.mrb[0].mxu0
  %v9281 = vpop.f32.mrb[0].mxu0
  %v9282 = vadd.f32 0.0, %v9281
  %v9283 = vpop.f32.mrb[0].mxu0
  %9284 = vmatprep.mubr.bf16.mxu0 0
  %9285 = vmatmul.mubr.bf16.gmra.mrb[0].mxu0 %v9219
  %v9286 = vpop.f32.mrb[0].mxu0
  %v9287 = vadd.f32 0.0, %v9286
  %v9288 = vpop.f32.mrb[0].mxu0
  %v9289 = vpop.f32.mrb[0].mxu0
  %v9290 = vadd.f32 0.0, %v9289
  %v9291 = vpop.f32.mrb[0].mxu0
  %9292 = vmatprep.mubr.bf16.mxu0 0
  %9293 = vmatmul.mubr.bf16.gmra.mrb[0].mxu0 %v9222
  %v9294 = vpop.f32.mrb[0].mxu0
  %v9295 = vadd.f32 0.0, %v9294
  %v9296 = vpop.f32.mrb[0].mxu0
  %v9297 = vpop.f32.mrb[0].mxu0
  %v9298 = vadd.f32 0.0, %v9297
  %v9299 = vpop.f32.mrb[0].mxu0
  %9300 = vmatprep.mubr.bf16.mxu0 0
  %9301 = vmatmul.mubr.bf16.gmra.mrb[0].mxu0 %v9225
  %v9302 = vpop.f32.mrb[0].mxu0
  %v9303 = vadd.f32 0.0, %v9302
  %v9304 = vpop.f32.mrb[0].mxu0
  %v9305 = vpop.f32.mrb[0].mxu0
  %v9306 = vadd.f32 0.0, %v9305
  %v9307 = vpop.f32.mrb[0].mxu0
  %9308 = vmatprep.mubr.bf16.mxu0 0
  %9309 = vmatmul.mubr.bf16.gmra.mrb[0].mxu0 %v9228
  %v9310 = vpop.f32.mrb[0].mxu0
  %v9311 = vadd.f32 0.0, %v9310
  %v9312 = vpop.f32.mrb[0].mxu0
  %v9313 = vpop.f32.mrb[0].mxu0
  %v9314 = vadd.f32 0.0, %v9313
  %v9315 = vpop.f32.mrb[0].mxu0
  %9316 = vmatprep.mubr.bf16.mxu0 0
  %9317 = vmatmul.mubr.bf16.gmra.mrb[0].mxu0 %v9231
  %v9318 = vpop.f32.mrb[0].mxu0
  %v9319 = vadd.f32 0.0, %v9318
  %v9320 = vpop.f32.mrb[0].mxu0
  %v9321 = vpop.f32.mrb[0].mxu0
  %v9322 = vadd.f32 0.0, %v9321
  %v9323 = vpop.f32.mrb[0].mxu0
  %9324 = vmatprep.mubr.bf16.mxu0 0
  %9325 = vmatmul.mubr.bf16.gmra.mrb[0].mxu0 %v9234
  %v9326 = vpop.f32.mrb[0].mxu0
  %v9327 = vadd.f32 0.0, %v9326
  %v9328 = vpop.f32.mrb[0].mxu0
  %v9329 = vpop.f32.mrb[0].mxu0
  %v9330 = vadd.f32 0.0, %v9329
  %v9331 = vpop.f32.mrb[0].mxu0
  %9332 = vdwg.mxu0
  %v9333 = vadd.f32 %v9137, %v9271
  %v9334 = vadd.f32 %v9138, %v9274
  %v9335 = vadd.f32 %v9139, %v9279
  %v9336 = vadd.f32 %v9140, %v9282
  %v9337 = vadd.f32 %v9141, %v9287
  %v9338 = vadd.f32 %v9142, %v9290
  %v9339 = vadd.f32 %v9143, %v9295
  %v9340 = vadd.f32 %v9144, %v9298
  %v9341 = vadd.f32 %v9145, %v9303
  %v9342 = vadd.f32 %v9146, %v9306
  %v9343 = vadd.f32 %v9147, %v9311
  %v9344 = vadd.f32 %v9148, %v9314
  %v9345 = vadd.f32 %v9149, %v9319
  %v9346 = vadd.f32 %v9150, %v9322
  %v9347 = vadd.f32 %v9151, %v9327
  %v9348 = vadd.f32 %v9152, %v9330
  %v9349 = vmax.f32 %v8717, %v9333
  %v9350 = vmax.f32 %v8718, %v9334
  %v9351 = vmax.f32 %v8719, %v9335
  %v9352 = vmax.f32 %v8720, %v9336
  %v9353 = vmax.f32 %v8721, %v9337
  %v9354 = vmax.f32 %v8722, %v9338
  %v9355 = vmax.f32 %v8723, %v9339
  %v9356 = vmax.f32 %v8724, %v9340
  %v9357 = vmax.f32 %v8725, %v9341
  %v9358 = vmax.f32 %v8726, %v9342
  %v9359 = vmax.f32 %v8727, %v9343
  %v9360 = vmax.f32 %v8728, %v9344
  %v9361 = vmax.f32 %v8729, %v9345
  %v9362 = vmax.f32 %v8730, %v9346
  %v9363 = vmax.f32 %v8731, %v9347
  %v9364 = vmax.f32 %v8732, %v9348
  %9365 = vmatprep.subr.bf16.mxu0 0
  %9366 = vmatpush1.bf16.msra.mxu0 %v174
  %9367 = vmatprep.subr.bf16.mxu0 0
  %9368 = vmatpush1.bf16.msra.mxu0 %v175
  %9369 = vmatprep.subr.bf16.mxu0 0
  %9370 = vmatpush1.bf16.msra.mxu0 %v176
  %9371 = vmatprep.subr.bf16.mxu0 0
  %9372 = vmatpush1.bf16.msra.mxu0 %v177
  %9373 = vmatprep.subr.bf16.mxu0 0
  %9374 = vmatpush1.bf16.msra.mxu0 0
  %9375 = vmatprep.subr.bf16.mxu0 0
  %9376 = vmatpush1.bf16.msra.mxu0 0
  %9377 = vmatprep.subr.bf16.mxu0 0
  %9378 = vmatpush1.bf16.msra.mxu0 0
  %9379 = vmatprep.subr.bf16.mxu0 0
  %9380 = vmatpush1.bf16.msra.mxu0 0
  %9381 = vmatprep.subr.bf16.mxu0 0
  %9382 = vmatpush1.bf16.msra.mxu0 0
  %9383 = vmatprep.subr.bf16.mxu0 0
  %9384 = vmatpush1.bf16.msra.mxu0 0
  %9385 = vmatprep.subr.bf16.mxu0 0
  %9386 = vmatpush1.bf16.msra.mxu0 0
  %9387 = vmatprep.subr.bf16.mxu0 0
  %9388 = vmatpush1.bf16.msra.mxu0 0
  %9389 = vmatprep.subr.bf16.mxu0 0
  %9390 = vmatpush1.bf16.msra.mxu0 0
  %9391 = vmatprep.subr.bf16.mxu0 0
  %9392 = vmatpush1.bf16.msra.mxu0 0
  %9393 = vmatprep.subr.bf16.mxu0 0
  %9394 = vmatpush1.bf16.msra.mxu0 0
  %9395 = vmatprep.subr.bf16.mxu0 0
  %9396 = vmatpush1.bf16.msra.mxu0 0
  %9397 = vmatprep.mubr.bf16.mxu0 0
  %9398 = vmatmul.mubr.bf16.gmra.mrb[0].mxu0 %v7949
  %v9399 = vpop.f32.mrb[0].mxu0
  %v9400 = vadd.f32 0.0, %v9399
  %v9401 = vpop.f32.mrb[0].mxu0
  %v9402 = vpop.f32.mrb[0].mxu0
  %v9403 = vadd.f32 0.0, %v9402
  %v9404 = vpop.f32.mrb[0].mxu0
  %9405 = vmatprep.mubr.bf16.mxu0 0
  %9406 = vmatmul.mubr.bf16.gmra.mrb[0].mxu0 %v7952
  %v9407 = vpop.f32.mrb[0].mxu0
  %v9408 = vadd.f32 0.0, %v9407
  %v9409 = vpop.f32.mrb[0].mxu0
  %v9410 = vpop.f32.mrb[0].mxu0
  %v9411 = vadd.f32 0.0, %v9410
  %v9412 = vpop.f32.mrb[0].mxu0
  %9413 = vmatprep.mubr.bf16.mxu0 0
  %9414 = vmatmul.mubr.bf16.gmra.mrb[0].mxu0 %v7955
  %v9415 = vpop.f32.mrb[0].mxu0
  %v9416 = vadd.f32 0.0, %v9415
  %v9417 = vpop.f32.mrb[0].mxu0
  %v9418 = vpop.f32.mrb[0].mxu0
  %v9419 = vadd.f32 0.0, %v9418
  %v9420 = vpop.f32.mrb[0].mxu0
  %9421 = vmatprep.mubr.bf16.mxu0 0
  %9422 = vmatmul.mubr.bf16.gmra.mrb[0].mxu0 %v7958
  %v9423 = vpop.f32.mrb[0].mxu0
  %v9424 = vadd.f32 0.0, %v9423
  %v9425 = vpop.f32.mrb[0].mxu0
  %v9426 = vpop.f32.mrb[0].mxu0
  %v9427 = vadd.f32 0.0, %v9426
  %v9428 = vpop.f32.mrb[0].mxu0
  %9429 = vmatprep.mubr.bf16.mxu0 0
  %9430 = vmatmul.mubr.bf16.gmra.mrb[0].mxu0 %v7961
  %v9431 = vpop.f32.mrb[0].mxu0
  %v9432 = vadd.f32 0.0, %v9431
  %v9433 = vpop.f32.mrb[0].mxu0
  %v9434 = vpop.f32.mrb[0].mxu0
  %v9435 = vadd.f32 0.0, %v9434
  %v9436 = vpop.f32.mrb[0].mxu0
  %9437 = vmatprep.mubr.bf16.mxu0 0
  %9438 = vmatmul.mubr.bf16.gmra.mrb[0].mxu0 %v7964
  %v9439 = vpop.f32.mrb[0].mxu0
  %v9440 = vadd.f32 0.0, %v9439
  %v9441 = vpop.f32.mrb[0].mxu0
  %v9442 = vpop.f32.mrb[0].mxu0
  %v9443 = vadd.f32 0.0, %v9442
  %v9444 = vpop.f32.mrb[0].mxu0
  %9445 = vmatprep.mubr.bf16.mxu0 0
  %9446 = vmatmul.mubr.bf16.gmra.mrb[0].mxu0 %v7967
  %v9447 = vpop.f32.mrb[0].mxu0
  %v9448 = vadd.f32 0.0, %v9447
  %v9449 = vpop.f32.mrb[0].mxu0
  %v9450 = vpop.f32.mrb[0].mxu0
  %v9451 = vadd.f32 0.0, %v9450
  %v9452 = vpop.f32.mrb[0].mxu0
  %9453 = vmatprep.mubr.bf16.mxu0 0
  %9454 = vmatmul.mubr.bf16.gmra.mrb[0].mxu0 %v7970
  %v9455 = vpop.f32.mrb[0].mxu0
  %v9456 = vadd.f32 0.0, %v9455
  %v9457 = vpop.f32.mrb[0].mxu0
  %v9458 = vpop.f32.mrb[0].mxu0
  %v9459 = vadd.f32 0.0, %v9458
  %v9460 = vpop.f32.mrb[0].mxu0
  %9461 = vdwg.mxu0
  %9462 = vmatprep.subr.bf16.mxu0 0
  %9463 = vmatpush1.bf16.msra.mxu0 %v360
  %9464 = vmatprep.subr.bf16.mxu0 0
  %9465 = vmatpush1.bf16.msra.mxu0 %v361
  %9466 = vmatprep.subr.bf16.mxu0 0
  %9467 = vmatpush1.bf16.msra.mxu0 %v362
  %9468 = vmatprep.subr.bf16.mxu0 0
  %9469 = vmatpush1.bf16.msra.mxu0 %v363
  %9470 = vmatprep.subr.bf16.mxu0 0
  %9471 = vmatpush1.bf16.msra.mxu0 0
  %9472 = vmatprep.subr.bf16.mxu0 0
  %9473 = vmatpush1.bf16.msra.mxu0 0
  %9474 = vmatprep.subr.bf16.mxu0 0
  %9475 = vmatpush1.bf16.msra.mxu0 0
  %9476 = vmatprep.subr.bf16.mxu0 0
  %9477 = vmatpush1.bf16.msra.mxu0 0
  %9478 = vmatprep.subr.bf16.mxu0 0
  %9479 = vmatpush1.bf16.msra.mxu0 0
  %9480 = vmatprep.subr.bf16.mxu0 0
  %9481 = vmatpush1.bf16.msra.mxu0 0
  %9482 = vmatprep.subr.bf16.mxu0 0
  %9483 = vmatpush1.bf16.msra.mxu0 0
  %9484 = vmatprep.subr.bf16.mxu0 0
  %9485 = vmatpush1.bf16.msra.mxu0 0
  %9486 = vmatprep.subr.bf16.mxu0 0
  %9487 = vmatpush1.bf16.msra.mxu0 0
  %9488 = vmatprep.subr.bf16.mxu0 0
  %9489 = vmatpush1.bf16.msra.mxu0 0
  %9490 = vmatprep.subr.bf16.mxu0 0
  %9491 = vmatpush1.bf16.msra.mxu0 0
  %9492 = vmatprep.subr.bf16.mxu0 0
  %9493 = vmatpush1.bf16.msra.mxu0 0
  %9494 = vmatprep.mubr.bf16.mxu0 0
  %9495 = vmatmul.mubr.bf16.gmra.mrb[0].mxu0 %v7317
  %v9496 = vpop.f32.mrb[0].mxu0
  %v9497 = vadd.f32 %v9400, %v9496
  %v9498 = vpop.f32.mrb[0].mxu0
  %v9499 = vpop.f32.mrb[0].mxu0
  %v9500 = vadd.f32 %v9403, %v9499
  %v9501 = vpop.f32.mrb[0].mxu0
  %9502 = vmatprep.mubr.bf16.mxu0 0
  %9503 = vmatmul.mubr.bf16.gmra.mrb[0].mxu0 %v7320
  %v9504 = vpop.f32.mrb[0].mxu0
  %v9505 = vadd.f32 %v9408, %v9504
  %v9506 = vpop.f32.mrb[0].mxu0
  %v9507 = vpop.f32.mrb[0].mxu0
  %v9508 = vadd.f32 %v9411, %v9507
  %v9509 = vpop.f32.mrb[0].mxu0
  %9510 = vmatprep.mubr.bf16.mxu0 0
  %9511 = vmatmul.mubr.bf16.gmra.mrb[0].mxu0 %v7323
  %v9512 = vpop.f32.mrb[0].mxu0
  %v9513 = vadd.f32 %v9416, %v9512
  %v9514 = vpop.f32.mrb[0].mxu0
  %v9515 = vpop.f32.mrb[0].mxu0
  %v9516 = vadd.f32 %v9419, %v9515
  %v9517 = vpop.f32.mrb[0].mxu0
  %9518 = vmatprep.mubr.bf16.mxu0 0
  %9519 = vmatmul.mubr.bf16.gmra.mrb[0].mxu0 %v7326
  %v9520 = vpop.f32.mrb[0].mxu0
  %v9521 = vadd.f32 %v9424, %v9520
  %v9522 = vpop.f32.mrb[0].mxu0
  %v9523 = vpop.f32.mrb[0].mxu0
  %v9524 = vadd.f32 %v9427, %v9523
  %v9525 = vpop.f32.mrb[0].mxu0
  %9526 = vmatprep.mubr.bf16.mxu0 0
  %9527 = vmatmul.mubr.bf16.gmra.mrb[0].mxu0 %v7329
  %v9528 = vpop.f32.mrb[0].mxu0
  %v9529 = vadd.f32 %v9432, %v9528
  %v9530 = vpop.f32.mrb[0].mxu0
  %v9531 = vpop.f32.mrb[0].mxu0
  %v9532 = vadd.f32 %v9435, %v9531
  %v9533 = vpop.f32.mrb[0].mxu0
  %9534 = vmatprep.mubr.bf16.mxu0 0
  %9535 = vmatmul.mubr.bf16.gmra.mrb[0].mxu0 %v7332
  %v9536 = vpop.f32.mrb[0].mxu0
  %v9537 = vadd.f32 %v9440, %v9536
  %v9538 = vpop.f32.mrb[0].mxu0
  %v9539 = vpop.f32.mrb[0].mxu0
  %v9540 = vadd.f32 %v9443, %v9539
  %v9541 = vpop.f32.mrb[0].mxu0
  %9542 = vmatprep.mubr.bf16.mxu0 0
  %9543 = vmatmul.mubr.bf16.gmra.mrb[0].mxu0 %v7335
  %v9544 = vpop.f32.mrb[0].mxu0
  %v9545 = vadd.f32 %v9448, %v9544
  %v9546 = vpop.f32.mrb[0].mxu0
  %v9547 = vpop.f32.mrb[0].mxu0
  %v9548 = vadd.f32 %v9451, %v9547
  %v9549 = vpop.f32.mrb[0].mxu0
  %9550 = vmatprep.mubr.bf16.mxu0 0
  %9551 = vmatmul.mubr.bf16.gmra.mrb[0].mxu0 %v7338
  %v9552 = vpop.f32.mrb[0].mxu0
  %v9553 = vadd.f32 %v9456, %v9552
  %v9554 = vpop.f32.mrb[0].mxu0
  %v9555 = vpop.f32.mrb[0].mxu0
  %v9556 = vadd.f32 %v9459, %v9555
  %v9557 = vpop.f32.mrb[0].mxu0
  %9558 = vdwg.mxu0
  %9559 = vmatprep.subr.bf16.mxu0 0
  %9560 = vmatpush1.bf16.msra.mxu0 %v564
  %9561 = vmatprep.subr.bf16.mxu0 0
  %9562 = vmatpush1.bf16.msra.mxu0 %v565
  %9563 = vmatprep.subr.bf16.mxu0 0
  %9564 = vmatpush1.bf16.msra.mxu0 %v566
  %9565 = vmatprep.subr.bf16.mxu0 0
  %9566 = vmatpush1.bf16.msra.mxu0 %v567
  %9567 = vmatprep.subr.bf16.mxu0 0
  %9568 = vmatpush1.bf16.msra.mxu0 0
  %9569 = vmatprep.subr.bf16.mxu0 0
  %9570 = vmatpush1.bf16.msra.mxu0 0
  %9571 = vmatprep.subr.bf16.mxu0 0
  %9572 = vmatpush1.bf16.msra.mxu0 0
  %9573 = vmatprep.subr.bf16.mxu0 0
  %9574 = vmatpush1.bf16.msra.mxu0 0
  %9575 = vmatprep.subr.bf16.mxu0 0
  %9576 = vmatpush1.bf16.msra.mxu0 0
  %9577 = vmatprep.subr.bf16.mxu0 0
  %9578 = vmatpush1.bf16.msra.mxu0 0
  %9579 = vmatprep.subr.bf16.mxu0 0
  %9580 = vmatpush1.bf16.msra.mxu0 0
  %9581 = vmatprep.subr.bf16.mxu0 0
  %9582 = vmatpush1.bf16.msra.mxu0 0
  %9583 = vmatprep.subr.bf16.mxu0 0
  %9584 = vmatpush1.bf16.msra.mxu0 0
  %9585 = vmatprep.subr.bf16.mxu0 0
  %9586 = vmatpush1.bf16.msra.mxu0 0
  %9587 = vmatprep.subr.bf16.mxu0 0
  %9588 = vmatpush1.bf16.msra.mxu0 0
  %9589 = vmatprep.subr.bf16.mxu0 0
  %9590 = vmatpush1.bf16.msra.mxu0 0
  %9591 = vmatprep.mubr.bf16.mxu0 0
  %9592 = vmatmul.mubr.bf16.gmra.mrb[0].mxu0 %v8581
  %v9593 = vpop.f32.mrb[0].mxu0
  %v9594 = vadd.f32 0.0, %v9593
  %v9595 = vpop.f32.mrb[0].mxu0
  %v9596 = vpop.f32.mrb[0].mxu0
  %v9597 = vadd.f32 0.0, %v9596
  %v9598 = vpop.f32.mrb[0].mxu0
  %9599 = vmatprep.mubr.bf16.mxu0 0
  %9600 = vmatmul.mubr.bf16.gmra.mrb[0].mxu0 %v8584
  %v9601 = vpop.f32.mrb[0].mxu0
  %v9602 = vadd.f32 0.0, %v9601
  %v9603 = vpop.f32.mrb[0].mxu0
  %v9604 = vpop.f32.mrb[0].mxu0
  %v9605 = vadd.f32 0.0, %v9604
  %v9606 = vpop.f32.mrb[0].mxu0
  %9607 = vmatprep.mubr.bf16.mxu0 0
  %9608 = vmatmul.mubr.bf16.gmra.mrb[0].mxu0 %v8587
  %v9609 = vpop.f32.mrb[0].mxu0
  %v9610 = vadd.f32 0.0, %v9609
  %v9611 = vpop.f32.mrb[0].mxu0
  %v9612 = vpop.f32.mrb[0].mxu0
  %v9613 = vadd.f32 0.0, %v9612
  %v9614 = vpop.f32.mrb[0].mxu0
  %9615 = vmatprep.mubr.bf16.mxu0 0
  %9616 = vmatmul.mubr.bf16.gmra.mrb[0].mxu0 %v8590
  %v9617 = vpop.f32.mrb[0].mxu0
  %v9618 = vadd.f32 0.0, %v9617
  %v9619 = vpop.f32.mrb[0].mxu0
  %v9620 = vpop.f32.mrb[0].mxu0
  %v9621 = vadd.f32 0.0, %v9620
  %v9622 = vpop.f32.mrb[0].mxu0
  %9623 = vmatprep.mubr.bf16.mxu0 0
  %9624 = vmatmul.mubr.bf16.gmra.mrb[0].mxu0 %v8593
  %v9625 = vpop.f32.mrb[0].mxu0
  %v9626 = vadd.f32 0.0, %v9625
  %v9627 = vpop.f32.mrb[0].mxu0
  %v9628 = vpop.f32.mrb[0].mxu0
  %v9629 = vadd.f32 0.0, %v9628
  %v9630 = vpop.f32.mrb[0].mxu0
  %9631 = vmatprep.mubr.bf16.mxu0 0
  %9632 = vmatmul.mubr.bf16.gmra.mrb[0].mxu0 %v8596
  %v9633 = vpop.f32.mrb[0].mxu0
  %v9634 = vadd.f32 0.0, %v9633
  %v9635 = vpop.f32.mrb[0].mxu0
  %v9636 = vpop.f32.mrb[0].mxu0
  %v9637 = vadd.f32 0.0, %v9636
  %v9638 = vpop.f32.mrb[0].mxu0
  %9639 = vmatprep.mubr.bf16.mxu0 0
  %9640 = vmatmul.mubr.bf16.gmra.mrb[0].mxu0 %v8599
  %v9641 = vpop.f32.mrb[0].mxu0
  %v9642 = vadd.f32 0.0, %v9641
  %v9643 = vpop.f32.mrb[0].mxu0
  %v9644 = vpop.f32.mrb[0].mxu0
  %v9645 = vadd.f32 0.0, %v9644
  %v9646 = vpop.f32.mrb[0].mxu0
  %9647 = vmatprep.mubr.bf16.mxu0 0
  %9648 = vmatmul.mubr.bf16.gmra.mrb[0].mxu0 %v8602
  %v9649 = vpop.f32.mrb[0].mxu0
  %v9650 = vadd.f32 0.0, %v9649
  %v9651 = vpop.f32.mrb[0].mxu0
  %v9652 = vpop.f32.mrb[0].mxu0
  %v9653 = vadd.f32 0.0, %v9652
  %v9654 = vpop.f32.mrb[0].mxu0
  %9655 = vdwg.mxu0
  %v9656 = vadd.f32 %v9497, %v9594
  %v9657 = vadd.f32 %v9500, %v9597
  %v9658 = vadd.f32 %v9505, %v9602
  %v9659 = vadd.f32 %v9508, %v9605
  %v9660 = vadd.f32 %v9513, %v9610
  %v9661 = vadd.f32 %v9516, %v9613
  %v9662 = vadd.f32 %v9521, %v9618
  %v9663 = vadd.f32 %v9524, %v9621
  %v9664 = vadd.f32 %v9529, %v9626
  %v9665 = vadd.f32 %v9532, %v9629
  %v9666 = vadd.f32 %v9537, %v9634
  %v9667 = vadd.f32 %v9540, %v9637
  %v9668 = vadd.f32 %v9545, %v9642
  %v9669 = vadd.f32 %v9548, %v9645
  %v9670 = vadd.f32 %v9553, %v9650
  %v9671 = vadd.f32 %v9556, %v9653
  %9672 = vmatprep.subr.bf16.mxu0 0
  %9673 = vmatpush1.bf16.msra.mxu0 %v784
  %9674 = vmatprep.subr.bf16.mxu0 0
  %9675 = vmatpush1.bf16.msra.mxu0 %v785
  %9676 = vmatprep.subr.bf16.mxu0 0
  %9677 = vmatpush1.bf16.msra.mxu0 %v786
  %9678 = vmatprep.subr.bf16.mxu0 0
  %9679 = vmatpush1.bf16.msra.mxu0 %v787
  %9680 = vmatprep.subr.bf16.mxu0 0
  %9681 = vmatpush1.bf16.msra.mxu0 0
  %9682 = vmatprep.subr.bf16.mxu0 0
  %9683 = vmatpush1.bf16.msra.mxu0 0
  %9684 = vmatprep.subr.bf16.mxu0 0
  %9685 = vmatpush1.bf16.msra.mxu0 0
  %9686 = vmatprep.subr.bf16.mxu0 0
  %9687 = vmatpush1.bf16.msra.mxu0 0
  %9688 = vmatprep.subr.bf16.mxu0 0
  %9689 = vmatpush1.bf16.msra.mxu0 0
  %9690 = vmatprep.subr.bf16.mxu0 0
  %9691 = vmatpush1.bf16.msra.mxu0 0
  %9692 = vmatprep.subr.bf16.mxu0 0
  %9693 = vmatpush1.bf16.msra.mxu0 0
  %9694 = vmatprep.subr.bf16.mxu0 0
  %9695 = vmatpush1.bf16.msra.mxu0 0
  %9696 = vmatprep.subr.bf16.mxu0 0
  %9697 = vmatpush1.bf16.msra.mxu0 0
  %9698 = vmatprep.subr.bf16.mxu0 0
  %9699 = vmatpush1.bf16.msra.mxu0 0
  %9700 = vmatprep.subr.bf16.mxu0 0
  %9701 = vmatpush1.bf16.msra.mxu0 0
  %9702 = vmatprep.subr.bf16.mxu0 0
  %9703 = vmatpush1.bf16.msra.mxu0 0
  %9704 = vmatprep.mubr.bf16.mxu0 0
  %9705 = vmatmul.mubr.bf16.gmra.mrb[0].mxu0 %v9213
  %v9706 = vpop.f32.mrb[0].mxu0
  %v9707 = vadd.f32 0.0, %v9706
  %v9708 = vpop.f32.mrb[0].mxu0
  %v9709 = vpop.f32.mrb[0].mxu0
  %v9710 = vadd.f32 0.0, %v9709
  %v9711 = vpop.f32.mrb[0].mxu0
  %9712 = vmatprep.mubr.bf16.mxu0 0
  %9713 = vmatmul.mubr.bf16.gmra.mrb[0].mxu0 %v9216
  %v9714 = vpop.f32.mrb[0].mxu0
  %v9715 = vadd.f32 0.0, %v9714
  %v9716 = vpop.f32.mrb[0].mxu0
  %v9717 = vpop.f32.mrb[0].mxu0
  %v9718 = vadd.f32 0.0, %v9717
  %v9719 = vpop.f32.mrb[0].mxu0
  %9720 = vmatprep.mubr.bf16.mxu0 0
  %9721 = vmatmul.mubr.bf16.gmra.mrb[0].mxu0 %v9219
  %v9722 = vpop.f32.mrb[0].mxu0
  %v9723 = vadd.f32 0.0, %v9722
  %v9724 = vpop.f32.mrb[0].mxu0
  %v9725 = vpop.f32.mrb[0].mxu0
  %v9726 = vadd.f32 0.0, %v9725
  %v9727 = vpop.f32.mrb[0].mxu0
  %9728 = vmatprep.mubr.bf16.mxu0 0
  %9729 = vmatmul.mubr.bf16.gmra.mrb[0].mxu0 %v9222
  %v9730 = vpop.f32.mrb[0].mxu0
  %v9731 = vadd.f32 0.0, %v9730
  %v9732 = vpop.f32.mrb[0].mxu0
  %v9733 = vpop.f32.mrb[0].mxu0
  %v9734 = vadd.f32 0.0, %v9733
  %v9735 = vpop.f32.mrb[0].mxu0
  %9736 = vmatprep.mubr.bf16.mxu0 0
  %9737 = vmatmul.mubr.bf16.gmra.mrb[0].mxu0 %v9225
  %v9738 = vpop.f32.mrb[0].mxu0
  %v9739 = vadd.f32 0.0, %v9738
  %v9740 = vpop.f32.mrb[0].mxu0
  %v9741 = vpop.f32.mrb[0].mxu0
  %v9742 = vadd.f32 0.0, %v9741
  %v9743 = vpop.f32.mrb[0].mxu0
  %9744 = vmatprep.mubr.bf16.mxu0 0
  %9745 = vmatmul.mubr.bf16.gmra.mrb[0].mxu0 %v9228
  %v9746 = vpop.f32.mrb[0].mxu0
  %v9747 = vadd.f32 0.0, %v9746
  %v9748 = vpop.f32.mrb[0].mxu0
  %v9749 = vpop.f32.mrb[0].mxu0
  %v9750 = vadd.f32 0.0, %v9749
  %v9751 = vpop.f32.mrb[0].mxu0
  %9752 = vmatprep.mubr.bf16.mxu0 0
  %9753 = vmatmul.mubr.bf16.gmra.mrb[0].mxu0 %v9231
  %v9754 = vpop.f32.mrb[0].mxu0
  %v9755 = vadd.f32 0.0, %v9754
  %v9756 = vpop.f32.mrb[0].mxu0
  %v9757 = vpop.f32.mrb[0].mxu0
  %v9758 = vadd.f32 0.0, %v9757
  %v9759 = vpop.f32.mrb[0].mxu0
  %9760 = vmatprep.mubr.bf16.mxu0 0
  %9761 = vmatmul.mubr.bf16.gmra.mrb[0].mxu0 %v9234
  %v9762 = vpop.f32.mrb[0].mxu0
  %v9763 = vadd.f32 0.0, %v9762
  %v9764 = vpop.f32.mrb[0].mxu0
  %v9765 = vpop.f32.mrb[0].mxu0
  %v9766 = vadd.f32 0.0, %v9765
  %v9767 = vpop.f32.mrb[0].mxu0
  %9768 = vdwg.mxu0
  %v9769 = vadd.f32 %v9656, %v9707
  %v9770 = vadd.f32 %v9657, %v9710
  %v9771 = vadd.f32 %v9658, %v9715
  %v9772 = vadd.f32 %v9659, %v9718
  %v9773 = vadd.f32 %v9660, %v9723
  %v9774 = vadd.f32 %v9661, %v9726
  %v9775 = vadd.f32 %v9662, %v9731
  %v9776 = vadd.f32 %v9663, %v9734
  %v9777 = vadd.f32 %v9664, %v9739
  %v9778 = vadd.f32 %v9665, %v9742
  %v9779 = vadd.f32 %v9666, %v9747
  %v9780 = vadd.f32 %v9667, %v9750
  %v9781 = vadd.f32 %v9668, %v9755
  %v9782 = vadd.f32 %v9669, %v9758
  %v9783 = vadd.f32 %v9670, %v9763
  %v9784 = vadd.f32 %v9671, %v9766
  %s9785 = sadd.s32 0, 288
  %s9786 = smul.addr %s9785, 4
  %s9787 = scalar_lea.vmem %s0, %s9786
  %v9788 = vld [vmem:[%s9787] sm:$0xf]
  %v9789 = vld [vmem:[%s9787 + $0x4] sm:$0xf]
  %v9790 = vld [vmem:[%s9787 + $0x8] sm:$0xf]
  %v9791 = vld [vmem:[%s9787 + $0xc] sm:$0xf]
  %v9792 = vld [vmem:[%s9787 + $0x10] sm:$0xf]
  %v9793 = vld [vmem:[%s9787 + $0x14] sm:$0xf]
  %v9794 = vld [vmem:[%s9787 + $0x18] sm:$0xf]
  %v9795 = vld [vmem:[%s9787 + $0x1c] sm:$0xf]
  %v9796 = vld [vmem:[%s9787 + $0x20] sm:$0xf]
  %v9797 = vld [vmem:[%s9787 + $0x24] sm:$0xf]
  %v9798 = vld [vmem:[%s9787 + $0x28] sm:$0xf]
  %v9799 = vld [vmem:[%s9787 + $0x2c] sm:$0xf]
  %v9800 = vld [vmem:[%s9787 + $0x30] sm:$0xf]
  %v9801 = vld [vmem:[%s9787 + $0x34] sm:$0xf]
  %v9802 = vld [vmem:[%s9787 + $0x38] sm:$0xf]
  %v9803 = vld [vmem:[%s9787 + $0x3c] sm:$0xf]
  %v9820 = vunpack.c.l.b16 %v9788
  %v9821 = vunpack.c.l.b16 %v9789
  %v9822 = vunpack.c.l.b16 %v9790
  %v9823 = vunpack.c.l.b16 %v9791
  %v9824 = vunpack.c.l.b16 %v9792
  %v9825 = vunpack.c.l.b16 %v9793
  %v9826 = vunpack.c.l.b16 %v9794
  %v9827 = vunpack.c.l.b16 %v9795
  %v9828 = vunpack.c.l.b16 %v9796
  %v9829 = vunpack.c.l.b16 %v9797
  %v9830 = vunpack.c.l.b16 %v9798
  %v9831 = vunpack.c.l.b16 %v9799
  %v9832 = vunpack.c.l.b16 %v9800
  %v9833 = vunpack.c.l.b16 %v9801
  %v9834 = vunpack.c.l.b16 %v9802
  %v9835 = vunpack.c.l.b16 %v9803
  %v9836 = vpack.c.b16 %v9821, %v9820
  %v9837 = vpack.c.b16 %v9823, %v9822
  %v9838 = vpack.c.b16 %v9825, %v9824
  %v9839 = vpack.c.b16 %v9827, %v9826
  %v9840 = vpack.c.b16 %v9829, %v9828
  %v9841 = vpack.c.b16 %v9831, %v9830
  %v9842 = vpack.c.b16 %v9833, %v9832
  %v9843 = vpack.c.b16 %v9835, %v9834
  %v9845 = vsel %vm182, %v9836, 0
  %v9848 = vsel %vm182, %v9837, 0
  %v9851 = vsel %vm182, %v9838, 0
  %v9854 = vsel %vm182, %v9839, 0
  %v9857 = vsel %vm182, %v9840, 0
  %v9860 = vsel %vm182, %v9841, 0
  %v9863 = vsel %vm182, %v9842, 0
  %v9866 = vsel %vm182, %v9843, 0
  %9868 = vmatprep.subr.bf16.mxu0 0
  %9869 = vmatpush1.bf16.msra.mxu0 %v1004
  %9870 = vmatprep.subr.bf16.mxu0 0
  %9871 = vmatpush1.bf16.msra.mxu0 %v1005
  %9872 = vmatprep.subr.bf16.mxu0 0
  %9873 = vmatpush1.bf16.msra.mxu0 %v1006
  %9874 = vmatprep.subr.bf16.mxu0 0
  %9875 = vmatpush1.bf16.msra.mxu0 %v1007
  %9876 = vmatprep.subr.bf16.mxu0 0
  %9877 = vmatpush1.bf16.msra.mxu0 0
  %9878 = vmatprep.subr.bf16.mxu0 0
  %9879 = vmatpush1.bf16.msra.mxu0 0
  %9880 = vmatprep.subr.bf16.mxu0 0
  %9881 = vmatpush1.bf16.msra.mxu0 0
  %9882 = vmatprep.subr.bf16.mxu0 0
  %9883 = vmatpush1.bf16.msra.mxu0 0
  %9884 = vmatprep.subr.bf16.mxu0 0
  %9885 = vmatpush1.bf16.msra.mxu0 0
  %9886 = vmatprep.subr.bf16.mxu0 0
  %9887 = vmatpush1.bf16.msra.mxu0 0
  %9888 = vmatprep.subr.bf16.mxu0 0
  %9889 = vmatpush1.bf16.msra.mxu0 0
  %9890 = vmatprep.subr.bf16.mxu0 0
  %9891 = vmatpush1.bf16.msra.mxu0 0
  %9892 = vmatprep.subr.bf16.mxu0 0
  %9893 = vmatpush1.bf16.msra.mxu0 0
  %9894 = vmatprep.subr.bf16.mxu0 0
  %9895 = vmatpush1.bf16.msra.mxu0 0
  %9896 = vmatprep.subr.bf16.mxu0 0
  %9897 = vmatpush1.bf16.msra.mxu0 0
  %9898 = vmatprep.subr.bf16.mxu0 0
  %9899 = vmatpush1.bf16.msra.mxu0 0
  %9900 = vmatprep.mubr.bf16.mxu0 0
  %9901 = vmatmul.mubr.bf16.gmra.mrb[0].mxu0 %v9845
  %v9902 = vpop.f32.mrb[0].mxu0
  %v9903 = vadd.f32 0.0, %v9902
  %v9904 = vpop.f32.mrb[0].mxu0
  %v9905 = vpop.f32.mrb[0].mxu0
  %v9906 = vadd.f32 0.0, %v9905
  %v9907 = vpop.f32.mrb[0].mxu0
  %9908 = vmatprep.mubr.bf16.mxu0 0
  %9909 = vmatmul.mubr.bf16.gmra.mrb[0].mxu0 %v9848
  %v9910 = vpop.f32.mrb[0].mxu0
  %v9911 = vadd.f32 0.0, %v9910
  %v9912 = vpop.f32.mrb[0].mxu0
  %v9913 = vpop.f32.mrb[0].mxu0
  %v9914 = vadd.f32 0.0, %v9913
  %v9915 = vpop.f32.mrb[0].mxu0
  %9916 = vmatprep.mubr.bf16.mxu0 0
  %9917 = vmatmul.mubr.bf16.gmra.mrb[0].mxu0 %v9851
  %v9918 = vpop.f32.mrb[0].mxu0
  %v9919 = vadd.f32 0.0, %v9918
  %v9920 = vpop.f32.mrb[0].mxu0
  %v9921 = vpop.f32.mrb[0].mxu0
  %v9922 = vadd.f32 0.0, %v9921
  %v9923 = vpop.f32.mrb[0].mxu0
  %9924 = vmatprep.mubr.bf16.mxu0 0
  %9925 = vmatmul.mubr.bf16.gmra.mrb[0].mxu0 %v9854
  %v9926 = vpop.f32.mrb[0].mxu0
  %v9927 = vadd.f32 0.0, %v9926
  %v9928 = vpop.f32.mrb[0].mxu0
  %v9929 = vpop.f32.mrb[0].mxu0
  %v9930 = vadd.f32 0.0, %v9929
  %v9931 = vpop.f32.mrb[0].mxu0
  %9932 = vmatprep.mubr.bf16.mxu0 0
  %9933 = vmatmul.mubr.bf16.gmra.mrb[0].mxu0 %v9857
  %v9934 = vpop.f32.mrb[0].mxu0
  %v9935 = vadd.f32 0.0, %v9934
  %v9936 = vpop.f32.mrb[0].mxu0
  %v9937 = vpop.f32.mrb[0].mxu0
  %v9938 = vadd.f32 0.0, %v9937
  %v9939 = vpop.f32.mrb[0].mxu0
  %9940 = vmatprep.mubr.bf16.mxu0 0
  %9941 = vmatmul.mubr.bf16.gmra.mrb[0].mxu0 %v9860
  %v9942 = vpop.f32.mrb[0].mxu0
  %v9943 = vadd.f32 0.0, %v9942
  %v9944 = vpop.f32.mrb[0].mxu0
  %v9945 = vpop.f32.mrb[0].mxu0
  %v9946 = vadd.f32 0.0, %v9945
  %v9947 = vpop.f32.mrb[0].mxu0
  %9948 = vmatprep.mubr.bf16.mxu0 0
  %9949 = vmatmul.mubr.bf16.gmra.mrb[0].mxu0 %v9863
  %v9950 = vpop.f32.mrb[0].mxu0
  %v9951 = vadd.f32 0.0, %v9950
  %v9952 = vpop.f32.mrb[0].mxu0
  %v9953 = vpop.f32.mrb[0].mxu0
  %v9954 = vadd.f32 0.0, %v9953
  %v9955 = vpop.f32.mrb[0].mxu0
  %9956 = vmatprep.mubr.bf16.mxu0 0
  %9957 = vmatmul.mubr.bf16.gmra.mrb[0].mxu0 %v9866
  %v9958 = vpop.f32.mrb[0].mxu0
  %v9959 = vadd.f32 0.0, %v9958
  %v9960 = vpop.f32.mrb[0].mxu0
  %v9961 = vpop.f32.mrb[0].mxu0
  %v9962 = vadd.f32 0.0, %v9961
  %v9963 = vpop.f32.mrb[0].mxu0
  %9964 = vdwg.mxu0
  %v9965 = vadd.f32 %v9769, %v9903
  %v9966 = vadd.f32 %v9770, %v9906
  %v9967 = vadd.f32 %v9771, %v9911
  %v9968 = vadd.f32 %v9772, %v9914
  %v9969 = vadd.f32 %v9773, %v9919
  %v9970 = vadd.f32 %v9774, %v9922
  %v9971 = vadd.f32 %v9775, %v9927
  %v9972 = vadd.f32 %v9776, %v9930
  %v9973 = vadd.f32 %v9777, %v9935
  %v9974 = vadd.f32 %v9778, %v9938
  %v9975 = vadd.f32 %v9779, %v9943
  %v9976 = vadd.f32 %v9780, %v9946
  %v9977 = vadd.f32 %v9781, %v9951
  %v9978 = vadd.f32 %v9782, %v9954
  %v9979 = vadd.f32 %v9783, %v9959
  %v9980 = vadd.f32 %v9784, %v9962
  %v9981 = vmax.f32 %v9349, %v9965
  %v9982 = vmax.f32 %v9350, %v9966
  %v9983 = vmax.f32 %v9351, %v9967
  %v9984 = vmax.f32 %v9352, %v9968
  %v9985 = vmax.f32 %v9353, %v9969
  %v9986 = vmax.f32 %v9354, %v9970
  %v9987 = vmax.f32 %v9355, %v9971
  %v9988 = vmax.f32 %v9356, %v9972
  %v9989 = vmax.f32 %v9357, %v9973
  %v9990 = vmax.f32 %v9358, %v9974
  %v9991 = vmax.f32 %v9359, %v9975
  %v9992 = vmax.f32 %v9360, %v9976
  %v9993 = vmax.f32 %v9361, %v9977
  %v9994 = vmax.f32 %v9362, %v9978
  %v9995 = vmax.f32 %v9363, %v9979
  %v9996 = vmax.f32 %v9364, %v9980
  %9997 = vmatprep.subr.bf16.mxu0 0
  %9998 = vmatpush1.bf16.msra.mxu0 %v174
  %9999 = vmatprep.subr.bf16.mxu0 0
  %10000 = vmatpush1.bf16.msra.mxu0 %v175
  %10001 = vmatprep.subr.bf16.mxu0 0
  %10002 = vmatpush1.bf16.msra.mxu0 %v176
  %10003 = vmatprep.subr.bf16.mxu0 0
  %10004 = vmatpush1.bf16.msra.mxu0 %v177
  %10005 = vmatprep.subr.bf16.mxu0 0
  %10006 = vmatpush1.bf16.msra.mxu0 0
  %10007 = vmatprep.subr.bf16.mxu0 0
  %10008 = vmatpush1.bf16.msra.mxu0 0
  %10009 = vmatprep.subr.bf16.mxu0 0
  %10010 = vmatpush1.bf16.msra.mxu0 0
  %10011 = vmatprep.subr.bf16.mxu0 0
  %10012 = vmatpush1.bf16.msra.mxu0 0
  %10013 = vmatprep.subr.bf16.mxu0 0
  %10014 = vmatpush1.bf16.msra.mxu0 0
  %10015 = vmatprep.subr.bf16.mxu0 0
  %10016 = vmatpush1.bf16.msra.mxu0 0
  %10017 = vmatprep.subr.bf16.mxu0 0
  %10018 = vmatpush1.bf16.msra.mxu0 0
  %10019 = vmatprep.subr.bf16.mxu0 0
  %10020 = vmatpush1.bf16.msra.mxu0 0
  %10021 = vmatprep.subr.bf16.mxu0 0
  %10022 = vmatpush1.bf16.msra.mxu0 0
  %10023 = vmatprep.subr.bf16.mxu0 0
  %10024 = vmatpush1.bf16.msra.mxu0 0
  %10025 = vmatprep.subr.bf16.mxu0 0
  %10026 = vmatpush1.bf16.msra.mxu0 0
  %10027 = vmatprep.subr.bf16.mxu0 0
  %10028 = vmatpush1.bf16.msra.mxu0 0
  %10029 = vmatprep.mubr.bf16.mxu0 0
  %10030 = vmatmul.mubr.bf16.gmra.mrb[0].mxu0 %v8581
  %v10031 = vpop.f32.mrb[0].mxu0
  %v10032 = vadd.f32 0.0, %v10031
  %v10033 = vpop.f32.mrb[0].mxu0
  %v10034 = vpop.f32.mrb[0].mxu0
  %v10035 = vadd.f32 0.0, %v10034
  %v10036 = vpop.f32.mrb[0].mxu0
  %10037 = vmatprep.mubr.bf16.mxu0 0
  %10038 = vmatmul.mubr.bf16.gmra.mrb[0].mxu0 %v8584
  %v10039 = vpop.f32.mrb[0].mxu0
  %v10040 = vadd.f32 0.0, %v10039
  %v10041 = vpop.f32.mrb[0].mxu0
  %v10042 = vpop.f32.mrb[0].mxu0
  %v10043 = vadd.f32 0.0, %v10042
  %v10044 = vpop.f32.mrb[0].mxu0
  %10045 = vmatprep.mubr.bf16.mxu0 0
  %10046 = vmatmul.mubr.bf16.gmra.mrb[0].mxu0 %v8587
  %v10047 = vpop.f32.mrb[0].mxu0
  %v10048 = vadd.f32 0.0, %v10047
  %v10049 = vpop.f32.mrb[0].mxu0
  %v10050 = vpop.f32.mrb[0].mxu0
  %v10051 = vadd.f32 0.0, %v10050
  %v10052 = vpop.f32.mrb[0].mxu0
  %10053 = vmatprep.mubr.bf16.mxu0 0
  %10054 = vmatmul.mubr.bf16.gmra.mrb[0].mxu0 %v8590
  %v10055 = vpop.f32.mrb[0].mxu0
  %v10056 = vadd.f32 0.0, %v10055
  %v10057 = vpop.f32.mrb[0].mxu0
  %v10058 = vpop.f32.mrb[0].mxu0
  %v10059 = vadd.f32 0.0, %v10058
  %v10060 = vpop.f32.mrb[0].mxu0
  %10061 = vmatprep.mubr.bf16.mxu0 0
  %10062 = vmatmul.mubr.bf16.gmra.mrb[0].mxu0 %v8593
  %v10063 = vpop.f32.mrb[0].mxu0
  %v10064 = vadd.f32 0.0, %v10063
  %v10065 = vpop.f32.mrb[0].mxu0
  %v10066 = vpop.f32.mrb[0].mxu0
  %v10067 = vadd.f32 0.0, %v10066
  %v10068 = vpop.f32.mrb[0].mxu0
  %10069 = vmatprep.mubr.bf16.mxu0 0
  %10070 = vmatmul.mubr.bf16.gmra.mrb[0].mxu0 %v8596
  %v10071 = vpop.f32.mrb[0].mxu0
  %v10072 = vadd.f32 0.0, %v10071
  %v10073 = vpop.f32.mrb[0].mxu0
  %v10074 = vpop.f32.mrb[0].mxu0
  %v10075 = vadd.f32 0.0, %v10074
  %v10076 = vpop.f32.mrb[0].mxu0
  %10077 = vmatprep.mubr.bf16.mxu0 0
  %10078 = vmatmul.mubr.bf16.gmra.mrb[0].mxu0 %v8599
  %v10079 = vpop.f32.mrb[0].mxu0
  %v10080 = vadd.f32 0.0, %v10079
  %v10081 = vpop.f32.mrb[0].mxu0
  %v10082 = vpop.f32.mrb[0].mxu0
  %v10083 = vadd.f32 0.0, %v10082
  %v10084 = vpop.f32.mrb[0].mxu0
  %10085 = vmatprep.mubr.bf16.mxu0 0
  %10086 = vmatmul.mubr.bf16.gmra.mrb[0].mxu0 %v8602
  %v10087 = vpop.f32.mrb[0].mxu0
  %v10088 = vadd.f32 0.0, %v10087
  %v10089 = vpop.f32.mrb[0].mxu0
  %v10090 = vpop.f32.mrb[0].mxu0
  %v10091 = vadd.f32 0.0, %v10090
  %v10092 = vpop.f32.mrb[0].mxu0
  %10093 = vdwg.mxu0
  %10094 = vmatprep.subr.bf16.mxu0 0
  %10095 = vmatpush1.bf16.msra.mxu0 %v360
  %10096 = vmatprep.subr.bf16.mxu0 0
  %10097 = vmatpush1.bf16.msra.mxu0 %v361
  %10098 = vmatprep.subr.bf16.mxu0 0
  %10099 = vmatpush1.bf16.msra.mxu0 %v362
  %10100 = vmatprep.subr.bf16.mxu0 0
  %10101 = vmatpush1.bf16.msra.mxu0 %v363
  %10102 = vmatprep.subr.bf16.mxu0 0
  %10103 = vmatpush1.bf16.msra.mxu0 0
  %10104 = vmatprep.subr.bf16.mxu0 0
  %10105 = vmatpush1.bf16.msra.mxu0 0
  %10106 = vmatprep.subr.bf16.mxu0 0
  %10107 = vmatpush1.bf16.msra.mxu0 0
  %10108 = vmatprep.subr.bf16.mxu0 0
  %10109 = vmatpush1.bf16.msra.mxu0 0
  %10110 = vmatprep.subr.bf16.mxu0 0
  %10111 = vmatpush1.bf16.msra.mxu0 0
  %10112 = vmatprep.subr.bf16.mxu0 0
  %10113 = vmatpush1.bf16.msra.mxu0 0
  %10114 = vmatprep.subr.bf16.mxu0 0
  %10115 = vmatpush1.bf16.msra.mxu0 0
  %10116 = vmatprep.subr.bf16.mxu0 0
  %10117 = vmatpush1.bf16.msra.mxu0 0
  %10118 = vmatprep.subr.bf16.mxu0 0
  %10119 = vmatpush1.bf16.msra.mxu0 0
  %10120 = vmatprep.subr.bf16.mxu0 0
  %10121 = vmatpush1.bf16.msra.mxu0 0
  %10122 = vmatprep.subr.bf16.mxu0 0
  %10123 = vmatpush1.bf16.msra.mxu0 0
  %10124 = vmatprep.subr.bf16.mxu0 0
  %10125 = vmatpush1.bf16.msra.mxu0 0
  %10126 = vmatprep.mubr.bf16.mxu0 0
  %10127 = vmatmul.mubr.bf16.gmra.mrb[0].mxu0 %v7949
  %v10128 = vpop.f32.mrb[0].mxu0
  %v10129 = vadd.f32 %v10032, %v10128
  %v10130 = vpop.f32.mrb[0].mxu0
  %v10131 = vpop.f32.mrb[0].mxu0
  %v10132 = vadd.f32 %v10035, %v10131
  %v10133 = vpop.f32.mrb[0].mxu0
  %10134 = vmatprep.mubr.bf16.mxu0 0
  %10135 = vmatmul.mubr.bf16.gmra.mrb[0].mxu0 %v7952
  %v10136 = vpop.f32.mrb[0].mxu0
  %v10137 = vadd.f32 %v10040, %v10136
  %v10138 = vpop.f32.mrb[0].mxu0
  %v10139 = vpop.f32.mrb[0].mxu0
  %v10140 = vadd.f32 %v10043, %v10139
  %v10141 = vpop.f32.mrb[0].mxu0
  %10142 = vmatprep.mubr.bf16.mxu0 0
  %10143 = vmatmul.mubr.bf16.gmra.mrb[0].mxu0 %v7955
  %v10144 = vpop.f32.mrb[0].mxu0
  %v10145 = vadd.f32 %v10048, %v10144
  %v10146 = vpop.f32.mrb[0].mxu0
  %v10147 = vpop.f32.mrb[0].mxu0
  %v10148 = vadd.f32 %v10051, %v10147
  %v10149 = vpop.f32.mrb[0].mxu0
  %10150 = vmatprep.mubr.bf16.mxu0 0
  %10151 = vmatmul.mubr.bf16.gmra.mrb[0].mxu0 %v7958
  %v10152 = vpop.f32.mrb[0].mxu0
  %v10153 = vadd.f32 %v10056, %v10152
  %v10154 = vpop.f32.mrb[0].mxu0
  %v10155 = vpop.f32.mrb[0].mxu0
  %v10156 = vadd.f32 %v10059, %v10155
  %v10157 = vpop.f32.mrb[0].mxu0
  %10158 = vmatprep.mubr.bf16.mxu0 0
  %10159 = vmatmul.mubr.bf16.gmra.mrb[0].mxu0 %v7961
  %v10160 = vpop.f32.mrb[0].mxu0
  %v10161 = vadd.f32 %v10064, %v10160
  %v10162 = vpop.f32.mrb[0].mxu0
  %v10163 = vpop.f32.mrb[0].mxu0
  %v10164 = vadd.f32 %v10067, %v10163
  %v10165 = vpop.f32.mrb[0].mxu0
  %10166 = vmatprep.mubr.bf16.mxu0 0
  %10167 = vmatmul.mubr.bf16.gmra.mrb[0].mxu0 %v7964
  %v10168 = vpop.f32.mrb[0].mxu0
  %v10169 = vadd.f32 %v10072, %v10168
  %v10170 = vpop.f32.mrb[0].mxu0
  %v10171 = vpop.f32.mrb[0].mxu0
  %v10172 = vadd.f32 %v10075, %v10171
  %v10173 = vpop.f32.mrb[0].mxu0
  %10174 = vmatprep.mubr.bf16.mxu0 0
  %10175 = vmatmul.mubr.bf16.gmra.mrb[0].mxu0 %v7967
  %v10176 = vpop.f32.mrb[0].mxu0
  %v10177 = vadd.f32 %v10080, %v10176
  %v10178 = vpop.f32.mrb[0].mxu0
  %v10179 = vpop.f32.mrb[0].mxu0
  %v10180 = vadd.f32 %v10083, %v10179
  %v10181 = vpop.f32.mrb[0].mxu0
  %10182 = vmatprep.mubr.bf16.mxu0 0
  %10183 = vmatmul.mubr.bf16.gmra.mrb[0].mxu0 %v7970
  %v10184 = vpop.f32.mrb[0].mxu0
  %v10185 = vadd.f32 %v10088, %v10184
  %v10186 = vpop.f32.mrb[0].mxu0
  %v10187 = vpop.f32.mrb[0].mxu0
  %v10188 = vadd.f32 %v10091, %v10187
  %v10189 = vpop.f32.mrb[0].mxu0
  %10190 = vdwg.mxu0
  %10191 = vmatprep.subr.bf16.mxu0 0
  %10192 = vmatpush1.bf16.msra.mxu0 %v564
  %10193 = vmatprep.subr.bf16.mxu0 0
  %10194 = vmatpush1.bf16.msra.mxu0 %v565
  %10195 = vmatprep.subr.bf16.mxu0 0
  %10196 = vmatpush1.bf16.msra.mxu0 %v566
  %10197 = vmatprep.subr.bf16.mxu0 0
  %10198 = vmatpush1.bf16.msra.mxu0 %v567
  %10199 = vmatprep.subr.bf16.mxu0 0
  %10200 = vmatpush1.bf16.msra.mxu0 0
  %10201 = vmatprep.subr.bf16.mxu0 0
  %10202 = vmatpush1.bf16.msra.mxu0 0
  %10203 = vmatprep.subr.bf16.mxu0 0
  %10204 = vmatpush1.bf16.msra.mxu0 0
  %10205 = vmatprep.subr.bf16.mxu0 0
  %10206 = vmatpush1.bf16.msra.mxu0 0
  %10207 = vmatprep.subr.bf16.mxu0 0
  %10208 = vmatpush1.bf16.msra.mxu0 0
  %10209 = vmatprep.subr.bf16.mxu0 0
  %10210 = vmatpush1.bf16.msra.mxu0 0
  %10211 = vmatprep.subr.bf16.mxu0 0
  %10212 = vmatpush1.bf16.msra.mxu0 0
  %10213 = vmatprep.subr.bf16.mxu0 0
  %10214 = vmatpush1.bf16.msra.mxu0 0
  %10215 = vmatprep.subr.bf16.mxu0 0
  %10216 = vmatpush1.bf16.msra.mxu0 0
  %10217 = vmatprep.subr.bf16.mxu0 0
  %10218 = vmatpush1.bf16.msra.mxu0 0
  %10219 = vmatprep.subr.bf16.mxu0 0
  %10220 = vmatpush1.bf16.msra.mxu0 0
  %10221 = vmatprep.subr.bf16.mxu0 0
  %10222 = vmatpush1.bf16.msra.mxu0 0
  %10223 = vmatprep.mubr.bf16.mxu0 0
  %10224 = vmatmul.mubr.bf16.gmra.mrb[0].mxu0 %v9213
  %v10225 = vpop.f32.mrb[0].mxu0
  %v10226 = vadd.f32 0.0, %v10225
  %v10227 = vpop.f32.mrb[0].mxu0
  %v10228 = vpop.f32.mrb[0].mxu0
  %v10229 = vadd.f32 0.0, %v10228
  %v10230 = vpop.f32.mrb[0].mxu0
  %10231 = vmatprep.mubr.bf16.mxu0 0
  %10232 = vmatmul.mubr.bf16.gmra.mrb[0].mxu0 %v9216
  %v10233 = vpop.f32.mrb[0].mxu0
  %v10234 = vadd.f32 0.0, %v10233
  %v10235 = vpop.f32.mrb[0].mxu0
  %v10236 = vpop.f32.mrb[0].mxu0
  %v10237 = vadd.f32 0.0, %v10236
  %v10238 = vpop.f32.mrb[0].mxu0
  %10239 = vmatprep.mubr.bf16.mxu0 0
  %10240 = vmatmul.mubr.bf16.gmra.mrb[0].mxu0 %v9219
  %v10241 = vpop.f32.mrb[0].mxu0
  %v10242 = vadd.f32 0.0, %v10241
  %v10243 = vpop.f32.mrb[0].mxu0
  %v10244 = vpop.f32.mrb[0].mxu0
  %v10245 = vadd.f32 0.0, %v10244
  %v10246 = vpop.f32.mrb[0].mxu0
  %10247 = vmatprep.mubr.bf16.mxu0 0
  %10248 = vmatmul.mubr.bf16.gmra.mrb[0].mxu0 %v9222
  %v10249 = vpop.f32.mrb[0].mxu0
  %v10250 = vadd.f32 0.0, %v10249
  %v10251 = vpop.f32.mrb[0].mxu0
  %v10252 = vpop.f32.mrb[0].mxu0
  %v10253 = vadd.f32 0.0, %v10252
  %v10254 = vpop.f32.mrb[0].mxu0
  %10255 = vmatprep.mubr.bf16.mxu0 0
  %10256 = vmatmul.mubr.bf16.gmra.mrb[0].mxu0 %v9225
  %v10257 = vpop.f32.mrb[0].mxu0
  %v10258 = vadd.f32 0.0, %v10257
  %v10259 = vpop.f32.mrb[0].mxu0
  %v10260 = vpop.f32.mrb[0].mxu0
  %v10261 = vadd.f32 0.0, %v10260
  %v10262 = vpop.f32.mrb[0].mxu0
  %10263 = vmatprep.mubr.bf16.mxu0 0
  %10264 = vmatmul.mubr.bf16.gmra.mrb[0].mxu0 %v9228
  %v10265 = vpop.f32.mrb[0].mxu0
  %v10266 = vadd.f32 0.0, %v10265
  %v10267 = vpop.f32.mrb[0].mxu0
  %v10268 = vpop.f32.mrb[0].mxu0
  %v10269 = vadd.f32 0.0, %v10268
  %v10270 = vpop.f32.mrb[0].mxu0
  %10271 = vmatprep.mubr.bf16.mxu0 0
  %10272 = vmatmul.mubr.bf16.gmra.mrb[0].mxu0 %v9231
  %v10273 = vpop.f32.mrb[0].mxu0
  %v10274 = vadd.f32 0.0, %v10273
  %v10275 = vpop.f32.mrb[0].mxu0
  %v10276 = vpop.f32.mrb[0].mxu0
  %v10277 = vadd.f32 0.0, %v10276
  %v10278 = vpop.f32.mrb[0].mxu0
  %10279 = vmatprep.mubr.bf16.mxu0 0
  %10280 = vmatmul.mubr.bf16.gmra.mrb[0].mxu0 %v9234
  %v10281 = vpop.f32.mrb[0].mxu0
  %v10282 = vadd.f32 0.0, %v10281
  %v10283 = vpop.f32.mrb[0].mxu0
  %v10284 = vpop.f32.mrb[0].mxu0
  %v10285 = vadd.f32 0.0, %v10284
  %v10286 = vpop.f32.mrb[0].mxu0
  %10287 = vdwg.mxu0
  %v10288 = vadd.f32 %v10129, %v10226
  %v10289 = vadd.f32 %v10132, %v10229
  %v10290 = vadd.f32 %v10137, %v10234
  %v10291 = vadd.f32 %v10140, %v10237
  %v10292 = vadd.f32 %v10145, %v10242
  %v10293 = vadd.f32 %v10148, %v10245
  %v10294 = vadd.f32 %v10153, %v10250
  %v10295 = vadd.f32 %v10156, %v10253
  %v10296 = vadd.f32 %v10161, %v10258
  %v10297 = vadd.f32 %v10164, %v10261
  %v10298 = vadd.f32 %v10169, %v10266
  %v10299 = vadd.f32 %v10172, %v10269
  %v10300 = vadd.f32 %v10177, %v10274
  %v10301 = vadd.f32 %v10180, %v10277
  %v10302 = vadd.f32 %v10185, %v10282
  %v10303 = vadd.f32 %v10188, %v10285
  %10304 = vmatprep.subr.bf16.mxu0 0
  %10305 = vmatpush1.bf16.msra.mxu0 %v784
  %10306 = vmatprep.subr.bf16.mxu0 0
  %10307 = vmatpush1.bf16.msra.mxu0 %v785
  %10308 = vmatprep.subr.bf16.mxu0 0
  %10309 = vmatpush1.bf16.msra.mxu0 %v786
  %10310 = vmatprep.subr.bf16.mxu0 0
  %10311 = vmatpush1.bf16.msra.mxu0 %v787
  %10312 = vmatprep.subr.bf16.mxu0 0
  %10313 = vmatpush1.bf16.msra.mxu0 0
  %10314 = vmatprep.subr.bf16.mxu0 0
  %10315 = vmatpush1.bf16.msra.mxu0 0
  %10316 = vmatprep.subr.bf16.mxu0 0
  %10317 = vmatpush1.bf16.msra.mxu0 0
  %10318 = vmatprep.subr.bf16.mxu0 0
  %10319 = vmatpush1.bf16.msra.mxu0 0
  %10320 = vmatprep.subr.bf16.mxu0 0
  %10321 = vmatpush1.bf16.msra.mxu0 0
  %10322 = vmatprep.subr.bf16.mxu0 0
  %10323 = vmatpush1.bf16.msra.mxu0 0
  %10324 = vmatprep.subr.bf16.mxu0 0
  %10325 = vmatpush1.bf16.msra.mxu0 0
  %10326 = vmatprep.subr.bf16.mxu0 0
  %10327 = vmatpush1.bf16.msra.mxu0 0
  %10328 = vmatprep.subr.bf16.mxu0 0
  %10329 = vmatpush1.bf16.msra.mxu0 0
  %10330 = vmatprep.subr.bf16.mxu0 0
  %10331 = vmatpush1.bf16.msra.mxu0 0
  %10332 = vmatprep.subr.bf16.mxu0 0
  %10333 = vmatpush1.bf16.msra.mxu0 0
  %10334 = vmatprep.subr.bf16.mxu0 0
  %10335 = vmatpush1.bf16.msra.mxu0 0
  %10336 = vmatprep.mubr.bf16.mxu0 0
  %10337 = vmatmul.mubr.bf16.gmra.mrb[0].mxu0 %v9845
  %v10338 = vpop.f32.mrb[0].mxu0
  %v10339 = vadd.f32 0.0, %v10338
  %v10340 = vpop.f32.mrb[0].mxu0
  %v10341 = vpop.f32.mrb[0].mxu0
  %v10342 = vadd.f32 0.0, %v10341
  %v10343 = vpop.f32.mrb[0].mxu0
  %10344 = vmatprep.mubr.bf16.mxu0 0
  %10345 = vmatmul.mubr.bf16.gmra.mrb[0].mxu0 %v9848
  %v10346 = vpop.f32.mrb[0].mxu0
  %v10347 = vadd.f32 0.0, %v10346
  %v10348 = vpop.f32.mrb[0].mxu0
  %v10349 = vpop.f32.mrb[0].mxu0
  %v10350 = vadd.f32 0.0, %v10349
  %v10351 = vpop.f32.mrb[0].mxu0
  %10352 = vmatprep.mubr.bf16.mxu0 0
  %10353 = vmatmul.mubr.bf16.gmra.mrb[0].mxu0 %v9851
  %v10354 = vpop.f32.mrb[0].mxu0
  %v10355 = vadd.f32 0.0, %v10354
  %v10356 = vpop.f32.mrb[0].mxu0
  %v10357 = vpop.f32.mrb[0].mxu0
  %v10358 = vadd.f32 0.0, %v10357
  %v10359 = vpop.f32.mrb[0].mxu0
  %10360 = vmatprep.mubr.bf16.mxu0 0
  %10361 = vmatmul.mubr.bf16.gmra.mrb[0].mxu0 %v9854
  %v10362 = vpop.f32.mrb[0].mxu0
  %v10363 = vadd.f32 0.0, %v10362
  %v10364 = vpop.f32.mrb[0].mxu0
  %v10365 = vpop.f32.mrb[0].mxu0
  %v10366 = vadd.f32 0.0, %v10365
  %v10367 = vpop.f32.mrb[0].mxu0
  %10368 = vmatprep.mubr.bf16.mxu0 0
  %10369 = vmatmul.mubr.bf16.gmra.mrb[0].mxu0 %v9857
  %v10370 = vpop.f32.mrb[0].mxu0
  %v10371 = vadd.f32 0.0, %v10370
  %v10372 = vpop.f32.mrb[0].mxu0
  %v10373 = vpop.f32.mrb[0].mxu0
  %v10374 = vadd.f32 0.0, %v10373
  %v10375 = vpop.f32.mrb[0].mxu0
  %10376 = vmatprep.mubr.bf16.mxu0 0
  %10377 = vmatmul.mubr.bf16.gmra.mrb[0].mxu0 %v9860
  %v10378 = vpop.f32.mrb[0].mxu0
  %v10379 = vadd.f32 0.0, %v10378
  %v10380 = vpop.f32.mrb[0].mxu0
  %v10381 = vpop.f32.mrb[0].mxu0
  %v10382 = vadd.f32 0.0, %v10381
  %v10383 = vpop.f32.mrb[0].mxu0
  %10384 = vmatprep.mubr.bf16.mxu0 0
  %10385 = vmatmul.mubr.bf16.gmra.mrb[0].mxu0 %v9863
  %v10386 = vpop.f32.mrb[0].mxu0
  %v10387 = vadd.f32 0.0, %v10386
  %v10388 = vpop.f32.mrb[0].mxu0
  %v10389 = vpop.f32.mrb[0].mxu0
  %v10390 = vadd.f32 0.0, %v10389
  %v10391 = vpop.f32.mrb[0].mxu0
  %10392 = vmatprep.mubr.bf16.mxu0 0
  %10393 = vmatmul.mubr.bf16.gmra.mrb[0].mxu0 %v9866
  %v10394 = vpop.f32.mrb[0].mxu0
  %v10395 = vadd.f32 0.0, %v10394
  %v10396 = vpop.f32.mrb[0].mxu0
  %v10397 = vpop.f32.mrb[0].mxu0
  %v10398 = vadd.f32 0.0, %v10397
  %v10399 = vpop.f32.mrb[0].mxu0
  %10400 = vdwg.mxu0
  %v10401 = vadd.f32 %v10288, %v10339
  %v10402 = vadd.f32 %v10289, %v10342
  %v10403 = vadd.f32 %v10290, %v10347
  %v10404 = vadd.f32 %v10291, %v10350
  %v10405 = vadd.f32 %v10292, %v10355
  %v10406 = vadd.f32 %v10293, %v10358
  %v10407 = vadd.f32 %v10294, %v10363
  %v10408 = vadd.f32 %v10295, %v10366
  %v10409 = vadd.f32 %v10296, %v10371
  %v10410 = vadd.f32 %v10297, %v10374
  %v10411 = vadd.f32 %v10298, %v10379
  %v10412 = vadd.f32 %v10299, %v10382
  %v10413 = vadd.f32 %v10300, %v10387
  %v10414 = vadd.f32 %v10301, %v10390
  %v10415 = vadd.f32 %v10302, %v10395
  %v10416 = vadd.f32 %v10303, %v10398
  %s10417 = sadd.s32 0, 304
  %s10418 = smul.addr %s10417, 4
  %s10419 = scalar_lea.vmem %s0, %s10418
  %v10420 = vld [vmem:[%s10419] sm:$0xf]
  %v10421 = vld [vmem:[%s10419 + $0x4] sm:$0xf]
  %v10422 = vld [vmem:[%s10419 + $0x8] sm:$0xf]
  %v10423 = vld [vmem:[%s10419 + $0xc] sm:$0xf]
  %v10424 = vld [vmem:[%s10419 + $0x10] sm:$0xf]
  %v10425 = vld [vmem:[%s10419 + $0x14] sm:$0xf]
  %v10426 = vld [vmem:[%s10419 + $0x18] sm:$0xf]
  %v10427 = vld [vmem:[%s10419 + $0x1c] sm:$0xf]
  %v10428 = vld [vmem:[%s10419 + $0x20] sm:$0xf]
  %v10429 = vld [vmem:[%s10419 + $0x24] sm:$0xf]
  %v10430 = vld [vmem:[%s10419 + $0x28] sm:$0xf]
  %v10431 = vld [vmem:[%s10419 + $0x2c] sm:$0xf]
  %v10432 = vld [vmem:[%s10419 + $0x30] sm:$0xf]
  %v10433 = vld [vmem:[%s10419 + $0x34] sm:$0xf]
  %v10434 = vld [vmem:[%s10419 + $0x38] sm:$0xf]
  %v10435 = vld [vmem:[%s10419 + $0x3c] sm:$0xf]
  %v10452 = vunpack.c.l.b16 %v10420
  %v10453 = vunpack.c.l.b16 %v10421
  %v10454 = vunpack.c.l.b16 %v10422
  %v10455 = vunpack.c.l.b16 %v10423
  %v10456 = vunpack.c.l.b16 %v10424
  %v10457 = vunpack.c.l.b16 %v10425
  %v10458 = vunpack.c.l.b16 %v10426
  %v10459 = vunpack.c.l.b16 %v10427
  %v10460 = vunpack.c.l.b16 %v10428
  %v10461 = vunpack.c.l.b16 %v10429
  %v10462 = vunpack.c.l.b16 %v10430
  %v10463 = vunpack.c.l.b16 %v10431
  %v10464 = vunpack.c.l.b16 %v10432
  %v10465 = vunpack.c.l.b16 %v10433
  %v10466 = vunpack.c.l.b16 %v10434
  %v10467 = vunpack.c.l.b16 %v10435
  %v10468 = vpack.c.b16 %v10453, %v10452
  %v10469 = vpack.c.b16 %v10455, %v10454
  %v10470 = vpack.c.b16 %v10457, %v10456
  %v10471 = vpack.c.b16 %v10459, %v10458
  %v10472 = vpack.c.b16 %v10461, %v10460
  %v10473 = vpack.c.b16 %v10463, %v10462
  %v10474 = vpack.c.b16 %v10465, %v10464
  %v10475 = vpack.c.b16 %v10467, %v10466
  %v10477 = vsel %vm182, %v10468, 0
  %v10480 = vsel %vm182, %v10469, 0
  %v10483 = vsel %vm182, %v10470, 0
  %v10486 = vsel %vm182, %v10471, 0
  %v10489 = vsel %vm182, %v10472, 0
  %v10492 = vsel %vm182, %v10473, 0
  %v10495 = vsel %vm182, %v10474, 0
  %v10498 = vsel %vm182, %v10475, 0
  %10500 = vmatprep.subr.bf16.mxu0 0
  %10501 = vmatpush1.bf16.msra.mxu0 %v1004
  %10502 = vmatprep.subr.bf16.mxu0 0
  %10503 = vmatpush1.bf16.msra.mxu0 %v1005
  %10504 = vmatprep.subr.bf16.mxu0 0
  %10505 = vmatpush1.bf16.msra.mxu0 %v1006
  %10506 = vmatprep.subr.bf16.mxu0 0
  %10507 = vmatpush1.bf16.msra.mxu0 %v1007
  %10508 = vmatprep.subr.bf16.mxu0 0
  %10509 = vmatpush1.bf16.msra.mxu0 0
  %10510 = vmatprep.subr.bf16.mxu0 0
  %10511 = vmatpush1.bf16.msra.mxu0 0
  %10512 = vmatprep.subr.bf16.mxu0 0
  %10513 = vmatpush1.bf16.msra.mxu0 0
  %10514 = vmatprep.subr.bf16.mxu0 0
  %10515 = vmatpush1.bf16.msra.mxu0 0
  %10516 = vmatprep.subr.bf16.mxu0 0
  %10517 = vmatpush1.bf16.msra.mxu0 0
  %10518 = vmatprep.subr.bf16.mxu0 0
  %10519 = vmatpush1.bf16.msra.mxu0 0
  %10520 = vmatprep.subr.bf16.mxu0 0
  %10521 = vmatpush1.bf16.msra.mxu0 0
  %10522 = vmatprep.subr.bf16.mxu0 0
  %10523 = vmatpush1.bf16.msra.mxu0 0
  %10524 = vmatprep.subr.bf16.mxu0 0
  %10525 = vmatpush1.bf16.msra.mxu0 0
  %10526 = vmatprep.subr.bf16.mxu0 0
  %10527 = vmatpush1.bf16.msra.mxu0 0
  %10528 = vmatprep.subr.bf16.mxu0 0
  %10529 = vmatpush1.bf16.msra.mxu0 0
  %10530 = vmatprep.subr.bf16.mxu0 0
  %10531 = vmatpush1.bf16.msra.mxu0 0
  %10532 = vmatprep.mubr.bf16.mxu0 0
  %10533 = vmatmul.mubr.bf16.gmra.mrb[0].mxu0 %v10477
  %v10534 = vpop.f32.mrb[0].mxu0
  %v10535 = vadd.f32 0.0, %v10534
  %v10536 = vpop.f32.mrb[0].mxu0
  %v10537 = vpop.f32.mrb[0].mxu0
  %v10538 = vadd.f32 0.0, %v10537
  %v10539 = vpop.f32.mrb[0].mxu0
  %10540 = vmatprep.mubr.bf16.mxu0 0
  %10541 = vmatmul.mubr.bf16.gmra.mrb[0].mxu0 %v10480
  %v10542 = vpop.f32.mrb[0].mxu0
  %v10543 = vadd.f32 0.0, %v10542
  %v10544 = vpop.f32.mrb[0].mxu0
  %v10545 = vpop.f32.mrb[0].mxu0
  %v10546 = vadd.f32 0.0, %v10545
  %v10547 = vpop.f32.mrb[0].mxu0
  %10548 = vmatprep.mubr.bf16.mxu0 0
  %10549 = vmatmul.mubr.bf16.gmra.mrb[0].mxu0 %v10483
  %v10550 = vpop.f32.mrb[0].mxu0
  %v10551 = vadd.f32 0.0, %v10550
  %v10552 = vpop.f32.mrb[0].mxu0
  %v10553 = vpop.f32.mrb[0].mxu0
  %v10554 = vadd.f32 0.0, %v10553
  %v10555 = vpop.f32.mrb[0].mxu0
  %10556 = vmatprep.mubr.bf16.mxu0 0
  %10557 = vmatmul.mubr.bf16.gmra.mrb[0].mxu0 %v10486
  %v10558 = vpop.f32.mrb[0].mxu0
  %v10559 = vadd.f32 0.0, %v10558
  %v10560 = vpop.f32.mrb[0].mxu0
  %v10561 = vpop.f32.mrb[0].mxu0
  %v10562 = vadd.f32 0.0, %v10561
  %v10563 = vpop.f32.mrb[0].mxu0
  %10564 = vmatprep.mubr.bf16.mxu0 0
  %10565 = vmatmul.mubr.bf16.gmra.mrb[0].mxu0 %v10489
  %v10566 = vpop.f32.mrb[0].mxu0
  %v10567 = vadd.f32 0.0, %v10566
  %v10568 = vpop.f32.mrb[0].mxu0
  %v10569 = vpop.f32.mrb[0].mxu0
  %v10570 = vadd.f32 0.0, %v10569
  %v10571 = vpop.f32.mrb[0].mxu0
  %10572 = vmatprep.mubr.bf16.mxu0 0
  %10573 = vmatmul.mubr.bf16.gmra.mrb[0].mxu0 %v10492
  %v10574 = vpop.f32.mrb[0].mxu0
  %v10575 = vadd.f32 0.0, %v10574
  %v10576 = vpop.f32.mrb[0].mxu0
  %v10577 = vpop.f32.mrb[0].mxu0
  %v10578 = vadd.f32 0.0, %v10577
  %v10579 = vpop.f32.mrb[0].mxu0
  %10580 = vmatprep.mubr.bf16.mxu0 0
  %10581 = vmatmul.mubr.bf16.gmra.mrb[0].mxu0 %v10495
  %v10582 = vpop.f32.mrb[0].mxu0
  %v10583 = vadd.f32 0.0, %v10582
  %v10584 = vpop.f32.mrb[0].mxu0
  %v10585 = vpop.f32.mrb[0].mxu0
  %v10586 = vadd.f32 0.0, %v10585
  %v10587 = vpop.f32.mrb[0].mxu0
  %10588 = vmatprep.mubr.bf16.mxu0 0
  %10589 = vmatmul.mubr.bf16.gmra.mrb[0].mxu0 %v10498
  %v10590 = vpop.f32.mrb[0].mxu0
  %v10591 = vadd.f32 0.0, %v10590
  %v10592 = vpop.f32.mrb[0].mxu0
  %v10593 = vpop.f32.mrb[0].mxu0
  %v10594 = vadd.f32 0.0, %v10593
  %v10595 = vpop.f32.mrb[0].mxu0
  %10596 = vdwg.mxu0
  %v10597 = vadd.f32 %v10401, %v10535
  %v10598 = vadd.f32 %v10402, %v10538
  %v10599 = vadd.f32 %v10403, %v10543
  %v10600 = vadd.f32 %v10404, %v10546
  %v10601 = vadd.f32 %v10405, %v10551
  %v10602 = vadd.f32 %v10406, %v10554
  %v10603 = vadd.f32 %v10407, %v10559
  %v10604 = vadd.f32 %v10408, %v10562
  %v10605 = vadd.f32 %v10409, %v10567
  %v10606 = vadd.f32 %v10410, %v10570
  %v10607 = vadd.f32 %v10411, %v10575
  %v10608 = vadd.f32 %v10412, %v10578
  %v10609 = vadd.f32 %v10413, %v10583
  %v10610 = vadd.f32 %v10414, %v10586
  %v10611 = vadd.f32 %v10415, %v10591
  %v10612 = vadd.f32 %v10416, %v10594
  %v10613 = vmax.f32 %v9981, %v10597
  %v10614 = vmax.f32 %v9982, %v10598
  %v10615 = vmax.f32 %v9983, %v10599
  %v10616 = vmax.f32 %v9984, %v10600
  %v10617 = vmax.f32 %v9985, %v10601
  %v10618 = vmax.f32 %v9986, %v10602
  %v10619 = vmax.f32 %v9987, %v10603
  %v10620 = vmax.f32 %v9988, %v10604
  %v10621 = vmax.f32 %v9989, %v10605
  %v10622 = vmax.f32 %v9990, %v10606
  %v10623 = vmax.f32 %v9991, %v10607
  %v10624 = vmax.f32 %v9992, %v10608
  %v10625 = vmax.f32 %v9993, %v10609
  %v10626 = vmax.f32 %v9994, %v10610
  %v10627 = vmax.f32 %v9995, %v10611
  %v10628 = vmax.f32 %v9996, %v10612
  %10629 = vmatprep.subr.bf16.mxu0 0
  %10630 = vmatpush1.bf16.msra.mxu0 %v174
  %10631 = vmatprep.subr.bf16.mxu0 0
  %10632 = vmatpush1.bf16.msra.mxu0 %v175
  %10633 = vmatprep.subr.bf16.mxu0 0
  %10634 = vmatpush1.bf16.msra.mxu0 %v176
  %10635 = vmatprep.subr.bf16.mxu0 0
  %10636 = vmatpush1.bf16.msra.mxu0 %v177
  %10637 = vmatprep.subr.bf16.mxu0 0
  %10638 = vmatpush1.bf16.msra.mxu0 0
  %10639 = vmatprep.subr.bf16.mxu0 0
  %10640 = vmatpush1.bf16.msra.mxu0 0
  %10641 = vmatprep.subr.bf16.mxu0 0
  %10642 = vmatpush1.bf16.msra.mxu0 0
  %10643 = vmatprep.subr.bf16.mxu0 0
  %10644 = vmatpush1.bf16.msra.mxu0 0
  %10645 = vmatprep.subr.bf16.mxu0 0
  %10646 = vmatpush1.bf16.msra.mxu0 0
  %10647 = vmatprep.subr.bf16.mxu0 0
  %10648 = vmatpush1.bf16.msra.mxu0 0
  %10649 = vmatprep.subr.bf16.mxu0 0
  %10650 = vmatpush1.bf16.msra.mxu0 0
  %10651 = vmatprep.subr.bf16.mxu0 0
  %10652 = vmatpush1.bf16.msra.mxu0 0
  %10653 = vmatprep.subr.bf16.mxu0 0
  %10654 = vmatpush1.bf16.msra.mxu0 0
  %10655 = vmatprep.subr.bf16.mxu0 0
  %10656 = vmatpush1.bf16.msra.mxu0 0
  %10657 = vmatprep.subr.bf16.mxu0 0
  %10658 = vmatpush1.bf16.msra.mxu0 0
  %10659 = vmatprep.subr.bf16.mxu0 0
  %10660 = vmatpush1.bf16.msra.mxu0 0
  %10661 = vmatprep.mubr.bf16.mxu0 0
  %10662 = vmatmul.mubr.bf16.gmra.mrb[0].mxu0 %v9213
  %v10663 = vpop.f32.mrb[0].mxu0
  %v10664 = vadd.f32 0.0, %v10663
  %v10665 = vpop.f32.mrb[0].mxu0
  %v10666 = vpop.f32.mrb[0].mxu0
  %v10667 = vadd.f32 0.0, %v10666
  %v10668 = vpop.f32.mrb[0].mxu0
  %10669 = vmatprep.mubr.bf16.mxu0 0
  %10670 = vmatmul.mubr.bf16.gmra.mrb[0].mxu0 %v9216
  %v10671 = vpop.f32.mrb[0].mxu0
  %v10672 = vadd.f32 0.0, %v10671
  %v10673 = vpop.f32.mrb[0].mxu0
  %v10674 = vpop.f32.mrb[0].mxu0
  %v10675 = vadd.f32 0.0, %v10674
  %v10676 = vpop.f32.mrb[0].mxu0
  %10677 = vmatprep.mubr.bf16.mxu0 0
  %10678 = vmatmul.mubr.bf16.gmra.mrb[0].mxu0 %v9219
  %v10679 = vpop.f32.mrb[0].mxu0
  %v10680 = vadd.f32 0.0, %v10679
  %v10681 = vpop.f32.mrb[0].mxu0
  %v10682 = vpop.f32.mrb[0].mxu0
  %v10683 = vadd.f32 0.0, %v10682
  %v10684 = vpop.f32.mrb[0].mxu0
  %10685 = vmatprep.mubr.bf16.mxu0 0
  %10686 = vmatmul.mubr.bf16.gmra.mrb[0].mxu0 %v9222
  %v10687 = vpop.f32.mrb[0].mxu0
  %v10688 = vadd.f32 0.0, %v10687
  %v10689 = vpop.f32.mrb[0].mxu0
  %v10690 = vpop.f32.mrb[0].mxu0
  %v10691 = vadd.f32 0.0, %v10690
  %v10692 = vpop.f32.mrb[0].mxu0
  %10693 = vmatprep.mubr.bf16.mxu0 0
  %10694 = vmatmul.mubr.bf16.gmra.mrb[0].mxu0 %v9225
  %v10695 = vpop.f32.mrb[0].mxu0
  %v10696 = vadd.f32 0.0, %v10695
  %v10697 = vpop.f32.mrb[0].mxu0
  %v10698 = vpop.f32.mrb[0].mxu0
  %v10699 = vadd.f32 0.0, %v10698
  %v10700 = vpop.f32.mrb[0].mxu0
  %10701 = vmatprep.mubr.bf16.mxu0 0
  %10702 = vmatmul.mubr.bf16.gmra.mrb[0].mxu0 %v9228
  %v10703 = vpop.f32.mrb[0].mxu0
  %v10704 = vadd.f32 0.0, %v10703
  %v10705 = vpop.f32.mrb[0].mxu0
  %v10706 = vpop.f32.mrb[0].mxu0
  %v10707 = vadd.f32 0.0, %v10706
  %v10708 = vpop.f32.mrb[0].mxu0
  %10709 = vmatprep.mubr.bf16.mxu0 0
  %10710 = vmatmul.mubr.bf16.gmra.mrb[0].mxu0 %v9231
  %v10711 = vpop.f32.mrb[0].mxu0
  %v10712 = vadd.f32 0.0, %v10711
  %v10713 = vpop.f32.mrb[0].mxu0
  %v10714 = vpop.f32.mrb[0].mxu0
  %v10715 = vadd.f32 0.0, %v10714
  %v10716 = vpop.f32.mrb[0].mxu0
  %10717 = vmatprep.mubr.bf16.mxu0 0
  %10718 = vmatmul.mubr.bf16.gmra.mrb[0].mxu0 %v9234
  %v10719 = vpop.f32.mrb[0].mxu0
  %v10720 = vadd.f32 0.0, %v10719
  %v10721 = vpop.f32.mrb[0].mxu0
  %v10722 = vpop.f32.mrb[0].mxu0
  %v10723 = vadd.f32 0.0, %v10722
  %v10724 = vpop.f32.mrb[0].mxu0
  %10725 = vdwg.mxu0
  %10726 = vmatprep.subr.bf16.mxu0 0
  %10727 = vmatpush1.bf16.msra.mxu0 %v360
  %10728 = vmatprep.subr.bf16.mxu0 0
  %10729 = vmatpush1.bf16.msra.mxu0 %v361
  %10730 = vmatprep.subr.bf16.mxu0 0
  %10731 = vmatpush1.bf16.msra.mxu0 %v362
  %10732 = vmatprep.subr.bf16.mxu0 0
  %10733 = vmatpush1.bf16.msra.mxu0 %v363
  %10734 = vmatprep.subr.bf16.mxu0 0
  %10735 = vmatpush1.bf16.msra.mxu0 0
  %10736 = vmatprep.subr.bf16.mxu0 0
  %10737 = vmatpush1.bf16.msra.mxu0 0
  %10738 = vmatprep.subr.bf16.mxu0 0
  %10739 = vmatpush1.bf16.msra.mxu0 0
  %10740 = vmatprep.subr.bf16.mxu0 0
  %10741 = vmatpush1.bf16.msra.mxu0 0
  %10742 = vmatprep.subr.bf16.mxu0 0
  %10743 = vmatpush1.bf16.msra.mxu0 0
  %10744 = vmatprep.subr.bf16.mxu0 0
  %10745 = vmatpush1.bf16.msra.mxu0 0
  %10746 = vmatprep.subr.bf16.mxu0 0
  %10747 = vmatpush1.bf16.msra.mxu0 0
  %10748 = vmatprep.subr.bf16.mxu0 0
  %10749 = vmatpush1.bf16.msra.mxu0 0
  %10750 = vmatprep.subr.bf16.mxu0 0
  %10751 = vmatpush1.bf16.msra.mxu0 0
  %10752 = vmatprep.subr.bf16.mxu0 0
  %10753 = vmatpush1.bf16.msra.mxu0 0
  %10754 = vmatprep.subr.bf16.mxu0 0
  %10755 = vmatpush1.bf16.msra.mxu0 0
  %10756 = vmatprep.subr.bf16.mxu0 0
  %10757 = vmatpush1.bf16.msra.mxu0 0
  %10758 = vmatprep.mubr.bf16.mxu0 0
  %10759 = vmatmul.mubr.bf16.gmra.mrb[0].mxu0 %v8581
  %v10760 = vpop.f32.mrb[0].mxu0
  %v10761 = vadd.f32 %v10664, %v10760
  %v10762 = vpop.f32.mrb[0].mxu0
  %v10763 = vpop.f32.mrb[0].mxu0
  %v10764 = vadd.f32 %v10667, %v10763
  %v10765 = vpop.f32.mrb[0].mxu0
  %10766 = vmatprep.mubr.bf16.mxu0 0
  %10767 = vmatmul.mubr.bf16.gmra.mrb[0].mxu0 %v8584
  %v10768 = vpop.f32.mrb[0].mxu0
  %v10769 = vadd.f32 %v10672, %v10768
  %v10770 = vpop.f32.mrb[0].mxu0
  %v10771 = vpop.f32.mrb[0].mxu0
  %v10772 = vadd.f32 %v10675, %v10771
  %v10773 = vpop.f32.mrb[0].mxu0
  %10774 = vmatprep.mubr.bf16.mxu0 0
  %10775 = vmatmul.mubr.bf16.gmra.mrb[0].mxu0 %v8587
  %v10776 = vpop.f32.mrb[0].mxu0
  %v10777 = vadd.f32 %v10680, %v10776
  %v10778 = vpop.f32.mrb[0].mxu0
  %v10779 = vpop.f32.mrb[0].mxu0
  %v10780 = vadd.f32 %v10683, %v10779
  %v10781 = vpop.f32.mrb[0].mxu0
  %10782 = vmatprep.mubr.bf16.mxu0 0
  %10783 = vmatmul.mubr.bf16.gmra.mrb[0].mxu0 %v8590
  %v10784 = vpop.f32.mrb[0].mxu0
  %v10785 = vadd.f32 %v10688, %v10784
  %v10786 = vpop.f32.mrb[0].mxu0
  %v10787 = vpop.f32.mrb[0].mxu0
  %v10788 = vadd.f32 %v10691, %v10787
  %v10789 = vpop.f32.mrb[0].mxu0
  %10790 = vmatprep.mubr.bf16.mxu0 0
  %10791 = vmatmul.mubr.bf16.gmra.mrb[0].mxu0 %v8593
  %v10792 = vpop.f32.mrb[0].mxu0
  %v10793 = vadd.f32 %v10696, %v10792
  %v10794 = vpop.f32.mrb[0].mxu0
  %v10795 = vpop.f32.mrb[0].mxu0
  %v10796 = vadd.f32 %v10699, %v10795
  %v10797 = vpop.f32.mrb[0].mxu0
  %10798 = vmatprep.mubr.bf16.mxu0 0
  %10799 = vmatmul.mubr.bf16.gmra.mrb[0].mxu0 %v8596
  %v10800 = vpop.f32.mrb[0].mxu0
  %v10801 = vadd.f32 %v10704, %v10800
  %v10802 = vpop.f32.mrb[0].mxu0
  %v10803 = vpop.f32.mrb[0].mxu0
  %v10804 = vadd.f32 %v10707, %v10803
  %v10805 = vpop.f32.mrb[0].mxu0
  %10806 = vmatprep.mubr.bf16.mxu0 0
  %10807 = vmatmul.mubr.bf16.gmra.mrb[0].mxu0 %v8599
  %v10808 = vpop.f32.mrb[0].mxu0
  %v10809 = vadd.f32 %v10712, %v10808
  %v10810 = vpop.f32.mrb[0].mxu0
  %v10811 = vpop.f32.mrb[0].mxu0
  %v10812 = vadd.f32 %v10715, %v10811
  %v10813 = vpop.f32.mrb[0].mxu0
  %10814 = vmatprep.mubr.bf16.mxu0 0
  %10815 = vmatmul.mubr.bf16.gmra.mrb[0].mxu0 %v8602
  %v10816 = vpop.f32.mrb[0].mxu0
  %v10817 = vadd.f32 %v10720, %v10816
  %v10818 = vpop.f32.mrb[0].mxu0
  %v10819 = vpop.f32.mrb[0].mxu0
  %v10820 = vadd.f32 %v10723, %v10819
  %v10821 = vpop.f32.mrb[0].mxu0
  %10822 = vdwg.mxu0
  %10823 = vmatprep.subr.bf16.mxu0 0
  %10824 = vmatpush1.bf16.msra.mxu0 %v564
  %10825 = vmatprep.subr.bf16.mxu0 0
  %10826 = vmatpush1.bf16.msra.mxu0 %v565
  %10827 = vmatprep.subr.bf16.mxu0 0
  %10828 = vmatpush1.bf16.msra.mxu0 %v566
  %10829 = vmatprep.subr.bf16.mxu0 0
  %10830 = vmatpush1.bf16.msra.mxu0 %v567
  %10831 = vmatprep.subr.bf16.mxu0 0
  %10832 = vmatpush1.bf16.msra.mxu0 0
  %10833 = vmatprep.subr.bf16.mxu0 0
  %10834 = vmatpush1.bf16.msra.mxu0 0
  %10835 = vmatprep.subr.bf16.mxu0 0
  %10836 = vmatpush1.bf16.msra.mxu0 0
  %10837 = vmatprep.subr.bf16.mxu0 0
  %10838 = vmatpush1.bf16.msra.mxu0 0
  %10839 = vmatprep.subr.bf16.mxu0 0
  %10840 = vmatpush1.bf16.msra.mxu0 0
  %10841 = vmatprep.subr.bf16.mxu0 0
  %10842 = vmatpush1.bf16.msra.mxu0 0
  %10843 = vmatprep.subr.bf16.mxu0 0
  %10844 = vmatpush1.bf16.msra.mxu0 0
  %10845 = vmatprep.subr.bf16.mxu0 0
  %10846 = vmatpush1.bf16.msra.mxu0 0
  %10847 = vmatprep.subr.bf16.mxu0 0
  %10848 = vmatpush1.bf16.msra.mxu0 0
  %10849 = vmatprep.subr.bf16.mxu0 0
  %10850 = vmatpush1.bf16.msra.mxu0 0
  %10851 = vmatprep.subr.bf16.mxu0 0
  %10852 = vmatpush1.bf16.msra.mxu0 0
  %10853 = vmatprep.subr.bf16.mxu0 0
  %10854 = vmatpush1.bf16.msra.mxu0 0
  %10855 = vmatprep.mubr.bf16.mxu0 0
  %10856 = vmatmul.mubr.bf16.gmra.mrb[0].mxu0 %v9845
  %v10857 = vpop.f32.mrb[0].mxu0
  %v10858 = vadd.f32 0.0, %v10857
  %v10859 = vpop.f32.mrb[0].mxu0
  %v10860 = vpop.f32.mrb[0].mxu0
  %v10861 = vadd.f32 0.0, %v10860
  %v10862 = vpop.f32.mrb[0].mxu0
  %10863 = vmatprep.mubr.bf16.mxu0 0
  %10864 = vmatmul.mubr.bf16.gmra.mrb[0].mxu0 %v9848
  %v10865 = vpop.f32.mrb[0].mxu0
  %v10866 = vadd.f32 0.0, %v10865
  %v10867 = vpop.f32.mrb[0].mxu0
  %v10868 = vpop.f32.mrb[0].mxu0
  %v10869 = vadd.f32 0.0, %v10868
  %v10870 = vpop.f32.mrb[0].mxu0
  %10871 = vmatprep.mubr.bf16.mxu0 0
  %10872 = vmatmul.mubr.bf16.gmra.mrb[0].mxu0 %v9851
  %v10873 = vpop.f32.mrb[0].mxu0
  %v10874 = vadd.f32 0.0, %v10873
  %v10875 = vpop.f32.mrb[0].mxu0
  %v10876 = vpop.f32.mrb[0].mxu0
  %v10877 = vadd.f32 0.0, %v10876
  %v10878 = vpop.f32.mrb[0].mxu0
  %10879 = vmatprep.mubr.bf16.mxu0 0
  %10880 = vmatmul.mubr.bf16.gmra.mrb[0].mxu0 %v9854
  %v10881 = vpop.f32.mrb[0].mxu0
  %v10882 = vadd.f32 0.0, %v10881
  %v10883 = vpop.f32.mrb[0].mxu0
  %v10884 = vpop.f32.mrb[0].mxu0
  %v10885 = vadd.f32 0.0, %v10884
  %v10886 = vpop.f32.mrb[0].mxu0
  %10887 = vmatprep.mubr.bf16.mxu0 0
  %10888 = vmatmul.mubr.bf16.gmra.mrb[0].mxu0 %v9857
  %v10889 = vpop.f32.mrb[0].mxu0
  %v10890 = vadd.f32 0.0, %v10889
  %v10891 = vpop.f32.mrb[0].mxu0
  %v10892 = vpop.f32.mrb[0].mxu0
  %v10893 = vadd.f32 0.0, %v10892
  %v10894 = vpop.f32.mrb[0].mxu0
  %10895 = vmatprep.mubr.bf16.mxu0 0
  %10896 = vmatmul.mubr.bf16.gmra.mrb[0].mxu0 %v9860
  %v10897 = vpop.f32.mrb[0].mxu0
  %v10898 = vadd.f32 0.0, %v10897
  %v10899 = vpop.f32.mrb[0].mxu0
  %v10900 = vpop.f32.mrb[0].mxu0
  %v10901 = vadd.f32 0.0, %v10900
  %v10902 = vpop.f32.mrb[0].mxu0
  %10903 = vmatprep.mubr.bf16.mxu0 0
  %10904 = vmatmul.mubr.bf16.gmra.mrb[0].mxu0 %v9863
  %v10905 = vpop.f32.mrb[0].mxu0
  %v10906 = vadd.f32 0.0, %v10905
  %v10907 = vpop.f32.mrb[0].mxu0
  %v10908 = vpop.f32.mrb[0].mxu0
  %v10909 = vadd.f32 0.0, %v10908
  %v10910 = vpop.f32.mrb[0].mxu0
  %10911 = vmatprep.mubr.bf16.mxu0 0
  %10912 = vmatmul.mubr.bf16.gmra.mrb[0].mxu0 %v9866
  %v10913 = vpop.f32.mrb[0].mxu0
  %v10914 = vadd.f32 0.0, %v10913
  %v10915 = vpop.f32.mrb[0].mxu0
  %v10916 = vpop.f32.mrb[0].mxu0
  %v10917 = vadd.f32 0.0, %v10916
  %v10918 = vpop.f32.mrb[0].mxu0
  %10919 = vdwg.mxu0
  %v10920 = vadd.f32 %v10761, %v10858
  %v10921 = vadd.f32 %v10764, %v10861
  %v10922 = vadd.f32 %v10769, %v10866
  %v10923 = vadd.f32 %v10772, %v10869
  %v10924 = vadd.f32 %v10777, %v10874
  %v10925 = vadd.f32 %v10780, %v10877
  %v10926 = vadd.f32 %v10785, %v10882
  %v10927 = vadd.f32 %v10788, %v10885
  %v10928 = vadd.f32 %v10793, %v10890
  %v10929 = vadd.f32 %v10796, %v10893
  %v10930 = vadd.f32 %v10801, %v10898
  %v10931 = vadd.f32 %v10804, %v10901
  %v10932 = vadd.f32 %v10809, %v10906
  %v10933 = vadd.f32 %v10812, %v10909
  %v10934 = vadd.f32 %v10817, %v10914
  %v10935 = vadd.f32 %v10820, %v10917
  %10936 = vmatprep.subr.bf16.mxu0 0
  %10937 = vmatpush1.bf16.msra.mxu0 %v784
  %10938 = vmatprep.subr.bf16.mxu0 0
  %10939 = vmatpush1.bf16.msra.mxu0 %v785
  %10940 = vmatprep.subr.bf16.mxu0 0
  %10941 = vmatpush1.bf16.msra.mxu0 %v786
  %10942 = vmatprep.subr.bf16.mxu0 0
  %10943 = vmatpush1.bf16.msra.mxu0 %v787
  %10944 = vmatprep.subr.bf16.mxu0 0
  %10945 = vmatpush1.bf16.msra.mxu0 0
  %10946 = vmatprep.subr.bf16.mxu0 0
  %10947 = vmatpush1.bf16.msra.mxu0 0
  %10948 = vmatprep.subr.bf16.mxu0 0
  %10949 = vmatpush1.bf16.msra.mxu0 0
  %10950 = vmatprep.subr.bf16.mxu0 0
  %10951 = vmatpush1.bf16.msra.mxu0 0
  %10952 = vmatprep.subr.bf16.mxu0 0
  %10953 = vmatpush1.bf16.msra.mxu0 0
  %10954 = vmatprep.subr.bf16.mxu0 0
  %10955 = vmatpush1.bf16.msra.mxu0 0
  %10956 = vmatprep.subr.bf16.mxu0 0
  %10957 = vmatpush1.bf16.msra.mxu0 0
  %10958 = vmatprep.subr.bf16.mxu0 0
  %10959 = vmatpush1.bf16.msra.mxu0 0
  %10960 = vmatprep.subr.bf16.mxu0 0
  %10961 = vmatpush1.bf16.msra.mxu0 0
  %10962 = vmatprep.subr.bf16.mxu0 0
  %10963 = vmatpush1.bf16.msra.mxu0 0
  %10964 = vmatprep.subr.bf16.mxu0 0
  %10965 = vmatpush1.bf16.msra.mxu0 0
  %10966 = vmatprep.subr.bf16.mxu0 0
  %10967 = vmatpush1.bf16.msra.mxu0 0
  %10968 = vmatprep.mubr.bf16.mxu0 0
  %10969 = vmatmul.mubr.bf16.gmra.mrb[0].mxu0 %v10477
  %v10970 = vpop.f32.mrb[0].mxu0
  %v10971 = vadd.f32 0.0, %v10970
  %v10972 = vpop.f32.mrb[0].mxu0
  %v10973 = vpop.f32.mrb[0].mxu0
  %v10974 = vadd.f32 0.0, %v10973
  %v10975 = vpop.f32.mrb[0].mxu0
  %10976 = vmatprep.mubr.bf16.mxu0 0
  %10977 = vmatmul.mubr.bf16.gmra.mrb[0].mxu0 %v10480
  %v10978 = vpop.f32.mrb[0].mxu0
  %v10979 = vadd.f32 0.0, %v10978
  %v10980 = vpop.f32.mrb[0].mxu0
  %v10981 = vpop.f32.mrb[0].mxu0
  %v10982 = vadd.f32 0.0, %v10981
  %v10983 = vpop.f32.mrb[0].mxu0
  %10984 = vmatprep.mubr.bf16.mxu0 0
  %10985 = vmatmul.mubr.bf16.gmra.mrb[0].mxu0 %v10483
  %v10986 = vpop.f32.mrb[0].mxu0
  %v10987 = vadd.f32 0.0, %v10986
  %v10988 = vpop.f32.mrb[0].mxu0
  %v10989 = vpop.f32.mrb[0].mxu0
  %v10990 = vadd.f32 0.0, %v10989
  %v10991 = vpop.f32.mrb[0].mxu0
  %10992 = vmatprep.mubr.bf16.mxu0 0
  %10993 = vmatmul.mubr.bf16.gmra.mrb[0].mxu0 %v10486
  %v10994 = vpop.f32.mrb[0].mxu0
  %v10995 = vadd.f32 0.0, %v10994
  %v10996 = vpop.f32.mrb[0].mxu0
  %v10997 = vpop.f32.mrb[0].mxu0
  %v10998 = vadd.f32 0.0, %v10997
  %v10999 = vpop.f32.mrb[0].mxu0
  %11000 = vmatprep.mubr.bf16.mxu0 0
  %11001 = vmatmul.mubr.bf16.gmra.mrb[0].mxu0 %v10489
  %v11002 = vpop.f32.mrb[0].mxu0
  %v11003 = vadd.f32 0.0, %v11002
  %v11004 = vpop.f32.mrb[0].mxu0
  %v11005 = vpop.f32.mrb[0].mxu0
  %v11006 = vadd.f32 0.0, %v11005
  %v11007 = vpop.f32.mrb[0].mxu0
  %11008 = vmatprep.mubr.bf16.mxu0 0
  %11009 = vmatmul.mubr.bf16.gmra.mrb[0].mxu0 %v10492
  %v11010 = vpop.f32.mrb[0].mxu0
  %v11011 = vadd.f32 0.0, %v11010
  %v11012 = vpop.f32.mrb[0].mxu0
  %v11013 = vpop.f32.mrb[0].mxu0
  %v11014 = vadd.f32 0.0, %v11013
  %v11015 = vpop.f32.mrb[0].mxu0
  %11016 = vmatprep.mubr.bf16.mxu0 0
  %11017 = vmatmul.mubr.bf16.gmra.mrb[0].mxu0 %v10495
  %v11018 = vpop.f32.mrb[0].mxu0
  %v11019 = vadd.f32 0.0, %v11018
  %v11020 = vpop.f32.mrb[0].mxu0
  %v11021 = vpop.f32.mrb[0].mxu0
  %v11022 = vadd.f32 0.0, %v11021
  %v11023 = vpop.f32.mrb[0].mxu0
  %11024 = vmatprep.mubr.bf16.mxu0 0
  %11025 = vmatmul.mubr.bf16.gmra.mrb[0].mxu0 %v10498
  %v11026 = vpop.f32.mrb[0].mxu0
  %v11027 = vadd.f32 0.0, %v11026
  %v11028 = vpop.f32.mrb[0].mxu0
  %v11029 = vpop.f32.mrb[0].mxu0
  %v11030 = vadd.f32 0.0, %v11029
  %v11031 = vpop.f32.mrb[0].mxu0
  %11032 = vdwg.mxu0
  %v11033 = vadd.f32 %v10920, %v10971
  %v11034 = vadd.f32 %v10921, %v10974
  %v11035 = vadd.f32 %v10922, %v10979
  %v11036 = vadd.f32 %v10923, %v10982
  %v11037 = vadd.f32 %v10924, %v10987
  %v11038 = vadd.f32 %v10925, %v10990
  %v11039 = vadd.f32 %v10926, %v10995
  %v11040 = vadd.f32 %v10927, %v10998
  %v11041 = vadd.f32 %v10928, %v11003
  %v11042 = vadd.f32 %v10929, %v11006
  %v11043 = vadd.f32 %v10930, %v11011
  %v11044 = vadd.f32 %v10931, %v11014
  %v11045 = vadd.f32 %v10932, %v11019
  %v11046 = vadd.f32 %v10933, %v11022
  %v11047 = vadd.f32 %v10934, %v11027
  %v11048 = vadd.f32 %v10935, %v11030
  %s11049 = sadd.s32 0, 320
  %s11050 = smul.addr %s11049, 4
  %s11051 = scalar_lea.vmem %s0, %s11050
  %v11052 = vld [vmem:[%s11051] sm:$0xf]
  %v11053 = vld [vmem:[%s11051 + $0x4] sm:$0xf]
  %v11054 = vld [vmem:[%s11051 + $0x8] sm:$0xf]
  %v11055 = vld [vmem:[%s11051 + $0xc] sm:$0xf]
  %v11056 = vld [vmem:[%s11051 + $0x10] sm:$0xf]
  %v11057 = vld [vmem:[%s11051 + $0x14] sm:$0xf]
  %v11058 = vld [vmem:[%s11051 + $0x18] sm:$0xf]
  %v11059 = vld [vmem:[%s11051 + $0x1c] sm:$0xf]
  %v11060 = vld [vmem:[%s11051 + $0x20] sm:$0xf]
  %v11061 = vld [vmem:[%s11051 + $0x24] sm:$0xf]
  %v11062 = vld [vmem:[%s11051 + $0x28] sm:$0xf]
  %v11063 = vld [vmem:[%s11051 + $0x2c] sm:$0xf]
  %v11064 = vld [vmem:[%s11051 + $0x30] sm:$0xf]
  %v11065 = vld [vmem:[%s11051 + $0x34] sm:$0xf]
  %v11066 = vld [vmem:[%s11051 + $0x38] sm:$0xf]
  %v11067 = vld [vmem:[%s11051 + $0x3c] sm:$0xf]
  %v11084 = vunpack.c.l.b16 %v11052
  %v11085 = vunpack.c.l.b16 %v11053
  %v11086 = vunpack.c.l.b16 %v11054
  %v11087 = vunpack.c.l.b16 %v11055
  %v11088 = vunpack.c.l.b16 %v11056
  %v11089 = vunpack.c.l.b16 %v11057
  %v11090 = vunpack.c.l.b16 %v11058
  %v11091 = vunpack.c.l.b16 %v11059
  %v11092 = vunpack.c.l.b16 %v11060
  %v11093 = vunpack.c.l.b16 %v11061
  %v11094 = vunpack.c.l.b16 %v11062
  %v11095 = vunpack.c.l.b16 %v11063
  %v11096 = vunpack.c.l.b16 %v11064
  %v11097 = vunpack.c.l.b16 %v11065
  %v11098 = vunpack.c.l.b16 %v11066
  %v11099 = vunpack.c.l.b16 %v11067
  %v11100 = vpack.c.b16 %v11085, %v11084
  %v11101 = vpack.c.b16 %v11087, %v11086
  %v11102 = vpack.c.b16 %v11089, %v11088
  %v11103 = vpack.c.b16 %v11091, %v11090
  %v11104 = vpack.c.b16 %v11093, %v11092
  %v11105 = vpack.c.b16 %v11095, %v11094
  %v11106 = vpack.c.b16 %v11097, %v11096
  %v11107 = vpack.c.b16 %v11099, %v11098
  %v11109 = vsel %vm182, %v11100, 0
  %v11112 = vsel %vm182, %v11101, 0
  %v11115 = vsel %vm182, %v11102, 0
  %v11118 = vsel %vm182, %v11103, 0
  %v11121 = vsel %vm182, %v11104, 0
  %v11124 = vsel %vm182, %v11105, 0
  %v11127 = vsel %vm182, %v11106, 0
  %v11130 = vsel %vm182, %v11107, 0
  %11132 = vmatprep.subr.bf16.mxu0 0
  %11133 = vmatpush1.bf16.msra.mxu0 %v1004
  %11134 = vmatprep.subr.bf16.mxu0 0
  %11135 = vmatpush1.bf16.msra.mxu0 %v1005
  %11136 = vmatprep.subr.bf16.mxu0 0
  %11137 = vmatpush1.bf16.msra.mxu0 %v1006
  %11138 = vmatprep.subr.bf16.mxu0 0
  %11139 = vmatpush1.bf16.msra.mxu0 %v1007
  %11140 = vmatprep.subr.bf16.mxu0 0
  %11141 = vmatpush1.bf16.msra.mxu0 0
  %11142 = vmatprep.subr.bf16.mxu0 0
  %11143 = vmatpush1.bf16.msra.mxu0 0
  %11144 = vmatprep.subr.bf16.mxu0 0
  %11145 = vmatpush1.bf16.msra.mxu0 0
  %11146 = vmatprep.subr.bf16.mxu0 0
  %11147 = vmatpush1.bf16.msra.mxu0 0
  %11148 = vmatprep.subr.bf16.mxu0 0
  %11149 = vmatpush1.bf16.msra.mxu0 0
  %11150 = vmatprep.subr.bf16.mxu0 0
  %11151 = vmatpush1.bf16.msra.mxu0 0
  %11152 = vmatprep.subr.bf16.mxu0 0
  %11153 = vmatpush1.bf16.msra.mxu0 0
  %11154 = vmatprep.subr.bf16.mxu0 0
  %11155 = vmatpush1.bf16.msra.mxu0 0
  %11156 = vmatprep.subr.bf16.mxu0 0
  %11157 = vmatpush1.bf16.msra.mxu0 0
  %11158 = vmatprep.subr.bf16.mxu0 0
  %11159 = vmatpush1.bf16.msra.mxu0 0
  %11160 = vmatprep.subr.bf16.mxu0 0
  %11161 = vmatpush1.bf16.msra.mxu0 0
  %11162 = vmatprep.subr.bf16.mxu0 0
  %11163 = vmatpush1.bf16.msra.mxu0 0
  %11164 = vmatprep.mubr.bf16.mxu0 0
  %11165 = vmatmul.mubr.bf16.gmra.mrb[0].mxu0 %v11109
  %v11166 = vpop.f32.mrb[0].mxu0
  %v11167 = vadd.f32 0.0, %v11166
  %v11168 = vpop.f32.mrb[0].mxu0
  %v11169 = vpop.f32.mrb[0].mxu0
  %v11170 = vadd.f32 0.0, %v11169
  %v11171 = vpop.f32.mrb[0].mxu0
  %11172 = vmatprep.mubr.bf16.mxu0 0
  %11173 = vmatmul.mubr.bf16.gmra.mrb[0].mxu0 %v11112
  %v11174 = vpop.f32.mrb[0].mxu0
  %v11175 = vadd.f32 0.0, %v11174
  %v11176 = vpop.f32.mrb[0].mxu0
  %v11177 = vpop.f32.mrb[0].mxu0
  %v11178 = vadd.f32 0.0, %v11177
  %v11179 = vpop.f32.mrb[0].mxu0
  %11180 = vmatprep.mubr.bf16.mxu0 0
  %11181 = vmatmul.mubr.bf16.gmra.mrb[0].mxu0 %v11115
  %v11182 = vpop.f32.mrb[0].mxu0
  %v11183 = vadd.f32 0.0, %v11182
  %v11184 = vpop.f32.mrb[0].mxu0
  %v11185 = vpop.f32.mrb[0].mxu0
  %v11186 = vadd.f32 0.0, %v11185
  %v11187 = vpop.f32.mrb[0].mxu0
  %11188 = vmatprep.mubr.bf16.mxu0 0
  %11189 = vmatmul.mubr.bf16.gmra.mrb[0].mxu0 %v11118
  %v11190 = vpop.f32.mrb[0].mxu0
  %v11191 = vadd.f32 0.0, %v11190
  %v11192 = vpop.f32.mrb[0].mxu0
  %v11193 = vpop.f32.mrb[0].mxu0
  %v11194 = vadd.f32 0.0, %v11193
  %v11195 = vpop.f32.mrb[0].mxu0
  %11196 = vmatprep.mubr.bf16.mxu0 0
  %11197 = vmatmul.mubr.bf16.gmra.mrb[0].mxu0 %v11121
  %v11198 = vpop.f32.mrb[0].mxu0
  %v11199 = vadd.f32 0.0, %v11198
  %v11200 = vpop.f32.mrb[0].mxu0
  %v11201 = vpop.f32.mrb[0].mxu0
  %v11202 = vadd.f32 0.0, %v11201
  %v11203 = vpop.f32.mrb[0].mxu0
  %11204 = vmatprep.mubr.bf16.mxu0 0
  %11205 = vmatmul.mubr.bf16.gmra.mrb[0].mxu0 %v11124
  %v11206 = vpop.f32.mrb[0].mxu0
  %v11207 = vadd.f32 0.0, %v11206
  %v11208 = vpop.f32.mrb[0].mxu0
  %v11209 = vpop.f32.mrb[0].mxu0
  %v11210 = vadd.f32 0.0, %v11209
  %v11211 = vpop.f32.mrb[0].mxu0
  %11212 = vmatprep.mubr.bf16.mxu0 0
  %11213 = vmatmul.mubr.bf16.gmra.mrb[0].mxu0 %v11127
  %v11214 = vpop.f32.mrb[0].mxu0
  %v11215 = vadd.f32 0.0, %v11214
  %v11216 = vpop.f32.mrb[0].mxu0
  %v11217 = vpop.f32.mrb[0].mxu0
  %v11218 = vadd.f32 0.0, %v11217
  %v11219 = vpop.f32.mrb[0].mxu0
  %11220 = vmatprep.mubr.bf16.mxu0 0
  %11221 = vmatmul.mubr.bf16.gmra.mrb[0].mxu0 %v11130
  %v11222 = vpop.f32.mrb[0].mxu0
  %v11223 = vadd.f32 0.0, %v11222
  %v11224 = vpop.f32.mrb[0].mxu0
  %v11225 = vpop.f32.mrb[0].mxu0
  %v11226 = vadd.f32 0.0, %v11225
  %v11227 = vpop.f32.mrb[0].mxu0
  %11228 = vdwg.mxu0
  %v11229 = vadd.f32 %v11033, %v11167
  %v11230 = vadd.f32 %v11034, %v11170
  %v11231 = vadd.f32 %v11035, %v11175
  %v11232 = vadd.f32 %v11036, %v11178
  %v11233 = vadd.f32 %v11037, %v11183
  %v11234 = vadd.f32 %v11038, %v11186
  %v11235 = vadd.f32 %v11039, %v11191
  %v11236 = vadd.f32 %v11040, %v11194
  %v11237 = vadd.f32 %v11041, %v11199
  %v11238 = vadd.f32 %v11042, %v11202
  %v11239 = vadd.f32 %v11043, %v11207
  %v11240 = vadd.f32 %v11044, %v11210
  %v11241 = vadd.f32 %v11045, %v11215
  %v11242 = vadd.f32 %v11046, %v11218
  %v11243 = vadd.f32 %v11047, %v11223
  %v11244 = vadd.f32 %v11048, %v11226
  %v11245 = vmax.f32 %v10613, %v11229
  %v11246 = vmax.f32 %v10614, %v11230
  %v11247 = vmax.f32 %v10615, %v11231
  %v11248 = vmax.f32 %v10616, %v11232
  %v11249 = vmax.f32 %v10617, %v11233
  %v11250 = vmax.f32 %v10618, %v11234
  %v11251 = vmax.f32 %v10619, %v11235
  %v11252 = vmax.f32 %v10620, %v11236
  %v11253 = vmax.f32 %v10621, %v11237
  %v11254 = vmax.f32 %v10622, %v11238
  %v11255 = vmax.f32 %v10623, %v11239
  %v11256 = vmax.f32 %v10624, %v11240
  %v11257 = vmax.f32 %v10625, %v11241
  %v11258 = vmax.f32 %v10626, %v11242
  %v11259 = vmax.f32 %v10627, %v11243
  %v11260 = vmax.f32 %v10628, %v11244
  %v11262 = vlaneseq
  %v11263 = vshrl.u32 %v11262, 7
  %v11264 = vsub.s32 0, %v11263
  %v11265 = vrot.slane %v81, %v11264
  %v11267 = vadd.f32 %v11245, %v11265
  %v11268 = vadd.f32 %v11246, %v11265
  %v11269 = vadd.f32 %v11247, %v11265
  %v11270 = vadd.f32 %v11248, %v11265
  %v11271 = vadd.f32 %v11249, %v11265
  %v11272 = vadd.f32 %v11250, %v11265
  %v11273 = vadd.f32 %v11251, %v11265
  %v11274 = vadd.f32 %v11252, %v11265
  %v11275 = vadd.f32 %v11253, %v11265
  %v11276 = vadd.f32 %v11254, %v11265
  %v11277 = vadd.f32 %v11255, %v11265
  %v11278 = vadd.f32 %v11256, %v11265
  %v11279 = vadd.f32 %v11257, %v11265
  %v11280 = vadd.f32 %v11258, %v11265
  %v11281 = vadd.f32 %v11259, %v11265
  %v11282 = vadd.f32 %v11260, %v11265
  %v11283 = vmax.f32 %v11267, 0.0
  %v11284 = vmax.f32 %v11268, 0.0
  %v11285 = vmax.f32 %v11269, 0.0
  %v11286 = vmax.f32 %v11270, 0.0
  %v11287 = vmax.f32 %v11271, 0.0
  %v11288 = vmax.f32 %v11272, 0.0
  %v11289 = vmax.f32 %v11273, 0.0
  %v11290 = vmax.f32 %v11274, 0.0
  %v11291 = vmax.f32 %v11275, 0.0
  %v11292 = vmax.f32 %v11276, 0.0
  %v11293 = vmax.f32 %v11277, 0.0
  %v11294 = vmax.f32 %v11278, 0.0
  %v11295 = vmax.f32 %v11279, 0.0
  %v11296 = vmax.f32 %v11280, 0.0
  %v11297 = vmax.f32 %v11281, 0.0
  %v11298 = vmax.f32 %v11282, 0.0
  %v11299 = vpack.c.bf16 %v11284, %v11283
  %v11300 = vpack.c.bf16 %v11286, %v11285
  %v11301 = vpack.c.bf16 %v11288, %v11287
  %v11302 = vpack.c.bf16 %v11290, %v11289
  %v11303 = vpack.c.bf16 %v11292, %v11291
  %v11304 = vpack.c.bf16 %v11294, %v11293
  %v11305 = vpack.c.bf16 %v11296, %v11295
  %v11306 = vpack.c.bf16 %v11298, %v11297
  %v11308 = vlaneseq
  %v11309 = vshrl.u32 %v11308, 7
  %v11310 = vsub.s32 0, %v11309
  %v11311 = vrot.slane %v82, %v11310
  %v11312 = vlaneseq
  %v11313 = vshrl.u32 %v11312, 7
  %v11314 = vsub.s32 1, %v11313
  %v11315 = vrot.slane %v82, %v11314
  %v11334 = vunpack.c.l.b16 %v65
  %v11335 = vunpack.c.h.b16 %v65
  %v11336 = vunpack.c.l.b16 %v66
  %v11337 = vunpack.c.h.b16 %v66
  %v11338 = vunpack.c.l.b16 %v67
  %v11339 = vunpack.c.h.b16 %v67
  %v11340 = vunpack.c.l.b16 %v68
  %v11341 = vunpack.c.h.b16 %v68
  %v11342 = vunpack.c.l.b16 %v69
  %v11343 = vunpack.c.h.b16 %v69
  %v11344 = vunpack.c.l.b16 %v70
  %v11345 = vunpack.c.h.b16 %v70
  %v11346 = vunpack.c.l.b16 %v71
  %v11347 = vunpack.c.h.b16 %v71
  %v11348 = vunpack.c.l.b16 %v72
  %v11349 = vunpack.c.h.b16 %v72
  %v11350 = vunpack.c.l.b16 %v73
  %v11351 = vunpack.c.h.b16 %v73
  %v11352 = vunpack.c.l.b16 %v74
  %v11353 = vunpack.c.h.b16 %v74
  %v11354 = vunpack.c.l.b16 %v75
  %v11355 = vunpack.c.h.b16 %v75
  %v11356 = vunpack.c.l.b16 %v76
  %v11357 = vunpack.c.h.b16 %v76
  %v11358 = vunpack.c.l.b16 %v77
  %v11359 = vunpack.c.h.b16 %v77
  %v11360 = vunpack.c.l.b16 %v78
  %v11361 = vunpack.c.h.b16 %v78
  %v11362 = vunpack.c.l.b16 %v79
  %v11363 = vunpack.c.h.b16 %v79
  %v11364 = vunpack.c.l.b16 %v80
  %v11365 = vunpack.c.h.b16 %v80
  %v11366 = vpack.c.b16 %v11336, %v11334
  %v11367 = vpack.c.b16 %v11337, %v11335
  %v11368 = vpack.c.b16 %v11340, %v11338
  %v11369 = vpack.c.b16 %v11341, %v11339
  %v11370 = vpack.c.b16 %v11344, %v11342
  %v11371 = vpack.c.b16 %v11345, %v11343
  %v11372 = vpack.c.b16 %v11348, %v11346
  %v11373 = vpack.c.b16 %v11349, %v11347
  %v11374 = vpack.c.b16 %v11352, %v11350
  %v11375 = vpack.c.b16 %v11353, %v11351
  %v11376 = vpack.c.b16 %v11356, %v11354
  %v11377 = vpack.c.b16 %v11357, %v11355
  %v11378 = vpack.c.b16 %v11360, %v11358
  %v11379 = vpack.c.b16 %v11361, %v11359
  %v11380 = vpack.c.b16 %v11364, %v11362
  %v11381 = vpack.c.b16 %v11365, %v11363
  %11398 = vmatprep.subr.bf16.mxu0 %v11367
  %11399 = vmatpush1.bf16.msra.mxu0 %v11366
  %11400 = vmatprep.subr.bf16.mxu0 %v11369
  %11401 = vmatpush1.bf16.msra.mxu0 %v11368
  %11402 = vmatprep.subr.bf16.mxu0 %v11371
  %11403 = vmatpush1.bf16.msra.mxu0 %v11370
  %11404 = vmatprep.subr.bf16.mxu0 %v11373
  %11405 = vmatpush1.bf16.msra.mxu0 %v11372
  %11406 = vmatprep.subr.bf16.mxu0 %v11375
  %11407 = vmatpush1.bf16.msra.mxu0 %v11374
  %11408 = vmatprep.subr.bf16.mxu0 %v11377
  %11409 = vmatpush1.bf16.msra.mxu0 %v11376
  %11410 = vmatprep.subr.bf16.mxu0 %v11379
  %11411 = vmatpush1.bf16.msra.mxu0 %v11378
  %11412 = vmatprep.subr.bf16.mxu0 %v11381
  %11413 = vmatpush1.bf16.msra.mxu0 %v11380
  %11414 = vmatprep.subr.bf16.mxu0 0
  %11415 = vmatpush1.bf16.msra.mxu0 0
  %11416 = vmatprep.subr.bf16.mxu0 0
  %11417 = vmatpush1.bf16.msra.mxu0 0
  %11418 = vmatprep.subr.bf16.mxu0 0
  %11419 = vmatpush1.bf16.msra.mxu0 0
  %11420 = vmatprep.subr.bf16.mxu0 0
  %11421 = vmatpush1.bf16.msra.mxu0 0
  %11422 = vmatprep.subr.bf16.mxu0 0
  %11423 = vmatpush1.bf16.msra.mxu0 0
  %11424 = vmatprep.subr.bf16.mxu0 0
  %11425 = vmatpush1.bf16.msra.mxu0 0
  %11426 = vmatprep.subr.bf16.mxu0 0
  %11427 = vmatpush1.bf16.msra.mxu0 0
  %11428 = vmatprep.subr.bf16.mxu0 0
  %11429 = vmatpush1.bf16.msra.mxu0 0
  %11430 = vmatprep.mubr.bf16.mxu0 0
  %11431 = vmatmul.mubr.bf16.gmra.mrb[0].mxu0 %v11299
  %v11432 = vpop.f32.mrb[0].mxu0
  %v11433 = vadd.f32 %v11311, %v11432
  %v11434 = vpop.f32.mrb[0].mxu0
  %v11435 = vadd.f32 %v11315, %v11434
  %v11436 = vpop.f32.mrb[0].mxu0
  %v11437 = vadd.f32 %v11311, %v11436
  %v11438 = vpop.f32.mrb[0].mxu0
  %v11439 = vadd.f32 %v11315, %v11438
  %11440 = vmatprep.mubr.bf16.mxu0 0
  %11441 = vmatmul.mubr.bf16.gmra.mrb[0].mxu0 %v11300
  %v11442 = vpop.f32.mrb[0].mxu0
  %v11443 = vadd.f32 %v11311, %v11442
  %v11444 = vpop.f32.mrb[0].mxu0
  %v11445 = vadd.f32 %v11315, %v11444
  %v11446 = vpop.f32.mrb[0].mxu0
  %v11447 = vadd.f32 %v11311, %v11446
  %v11448 = vpop.f32.mrb[0].mxu0
  %v11449 = vadd.f32 %v11315, %v11448
  %11450 = vmatprep.mubr.bf16.mxu0 0
  %11451 = vmatmul.mubr.bf16.gmra.mrb[0].mxu0 %v11301
  %v11452 = vpop.f32.mrb[0].mxu0
  %v11453 = vadd.f32 %v11311, %v11452
  %v11454 = vpop.f32.mrb[0].mxu0
  %v11455 = vadd.f32 %v11315, %v11454
  %v11456 = vpop.f32.mrb[0].mxu0
  %v11457 = vadd.f32 %v11311, %v11456
  %v11458 = vpop.f32.mrb[0].mxu0
  %v11459 = vadd.f32 %v11315, %v11458
  %11460 = vmatprep.mubr.bf16.mxu0 0
  %11461 = vmatmul.mubr.bf16.gmra.mrb[0].mxu0 %v11302
  %v11462 = vpop.f32.mrb[0].mxu0
  %v11463 = vadd.f32 %v11311, %v11462
  %v11464 = vpop.f32.mrb[0].mxu0
  %v11465 = vadd.f32 %v11315, %v11464
  %v11466 = vpop.f32.mrb[0].mxu0
  %v11467 = vadd.f32 %v11311, %v11466
  %v11468 = vpop.f32.mrb[0].mxu0
  %v11469 = vadd.f32 %v11315, %v11468
  %11470 = vmatprep.mubr.bf16.mxu0 0
  %11471 = vmatmul.mubr.bf16.gmra.mrb[0].mxu0 %v11303
  %v11472 = vpop.f32.mrb[0].mxu0
  %v11473 = vadd.f32 %v11311, %v11472
  %v11474 = vpop.f32.mrb[0].mxu0
  %v11475 = vadd.f32 %v11315, %v11474
  %v11476 = vpop.f32.mrb[0].mxu0
  %v11477 = vadd.f32 %v11311, %v11476
  %v11478 = vpop.f32.mrb[0].mxu0
  %v11479 = vadd.f32 %v11315, %v11478
  %11480 = vmatprep.mubr.bf16.mxu0 0
  %11481 = vmatmul.mubr.bf16.gmra.mrb[0].mxu0 %v11304
  %v11482 = vpop.f32.mrb[0].mxu0
  %v11483 = vadd.f32 %v11311, %v11482
  %v11484 = vpop.f32.mrb[0].mxu0
  %v11485 = vadd.f32 %v11315, %v11484
  %v11486 = vpop.f32.mrb[0].mxu0
  %v11487 = vadd.f32 %v11311, %v11486
  %v11488 = vpop.f32.mrb[0].mxu0
  %v11489 = vadd.f32 %v11315, %v11488
  %11490 = vmatprep.mubr.bf16.mxu0 0
  %11491 = vmatmul.mubr.bf16.gmra.mrb[0].mxu0 %v11305
  %v11492 = vpop.f32.mrb[0].mxu0
  %v11493 = vadd.f32 %v11311, %v11492
  %v11494 = vpop.f32.mrb[0].mxu0
  %v11495 = vadd.f32 %v11315, %v11494
  %v11496 = vpop.f32.mrb[0].mxu0
  %v11497 = vadd.f32 %v11311, %v11496
  %v11498 = vpop.f32.mrb[0].mxu0
  %v11499 = vadd.f32 %v11315, %v11498
  %11500 = vmatprep.mubr.bf16.mxu0 0
  %11501 = vmatmul.mubr.bf16.gmra.mrb[0].mxu0 %v11306
  %v11502 = vpop.f32.mrb[0].mxu0
  %v11503 = vadd.f32 %v11311, %v11502
  %v11504 = vpop.f32.mrb[0].mxu0
  %v11505 = vadd.f32 %v11315, %v11504
  %v11506 = vpop.f32.mrb[0].mxu0
  %v11507 = vadd.f32 %v11311, %v11506
  %v11508 = vpop.f32.mrb[0].mxu0
  %v11509 = vadd.f32 %v11315, %v11508
  %11510 = vdwg.mxu0
  %v11511 = vmax.f32 %v11433, 0.0
  %v11512 = vmax.f32 %v11437, 0.0
  %v11513 = vmax.f32 %v11443, 0.0
  %v11514 = vmax.f32 %v11447, 0.0
  %v11515 = vmax.f32 %v11453, 0.0
  %v11516 = vmax.f32 %v11457, 0.0
  %v11517 = vmax.f32 %v11463, 0.0
  %v11518 = vmax.f32 %v11467, 0.0
  %v11519 = vmax.f32 %v11473, 0.0
  %v11520 = vmax.f32 %v11477, 0.0
  %v11521 = vmax.f32 %v11483, 0.0
  %v11522 = vmax.f32 %v11487, 0.0
  %v11523 = vmax.f32 %v11493, 0.0
  %v11524 = vmax.f32 %v11497, 0.0
  %v11525 = vmax.f32 %v11503, 0.0
  %v11526 = vmax.f32 %v11507, 0.0
  %v11527 = vxor.u32 %v11435, 2147483648
  %v11528 = vxor.u32 %v11439, 2147483648
  %v11529 = vxor.u32 %v11445, 2147483648
  %v11530 = vxor.u32 %v11449, 2147483648
  %v11531 = vxor.u32 %v11455, 2147483648
  %v11532 = vxor.u32 %v11459, 2147483648
  %v11533 = vxor.u32 %v11465, 2147483648
  %v11534 = vxor.u32 %v11469, 2147483648
  %v11535 = vxor.u32 %v11475, 2147483648
  %v11536 = vxor.u32 %v11479, 2147483648
  %v11537 = vxor.u32 %v11485, 2147483648
  %v11538 = vxor.u32 %v11489, 2147483648
  %v11539 = vxor.u32 %v11495, 2147483648
  %v11540 = vxor.u32 %v11499, 2147483648
  %v11541 = vxor.u32 %v11505, 2147483648
  %v11542 = vxor.u32 %v11509, 2147483648
  %v11543 = vmul.f32 %v11527, 1.442695
  %v11544 = vpow.pop %v11543
  %v11545 = vmul.f32 %v11528, 1.442695
  %v11546 = vpow.pop %v11545
  %v11547 = vmul.f32 %v11529, 1.442695
  %v11548 = vpow.pop %v11547
  %v11549 = vmul.f32 %v11530, 1.442695
  %v11550 = vpow.pop %v11549
  %v11551 = vmul.f32 %v11531, 1.442695
  %v11552 = vpow.pop %v11551
  %v11553 = vmul.f32 %v11532, 1.442695
  %v11554 = vpow.pop %v11553
  %v11555 = vmul.f32 %v11533, 1.442695
  %v11556 = vpow.pop %v11555
  %v11557 = vmul.f32 %v11534, 1.442695
  %v11558 = vpow.pop %v11557
  %v11559 = vmul.f32 %v11535, 1.442695
  %v11560 = vpow.pop %v11559
  %v11561 = vmul.f32 %v11536, 1.442695
  %v11562 = vpow.pop %v11561
  %v11563 = vmul.f32 %v11537, 1.442695
  %v11564 = vpow.pop %v11563
  %v11565 = vmul.f32 %v11538, 1.442695
  %v11566 = vpow.pop %v11565
  %v11567 = vmul.f32 %v11539, 1.442695
  %v11568 = vpow.pop %v11567
  %v11569 = vmul.f32 %v11540, 1.442695
  %v11570 = vpow.pop %v11569
  %v11571 = vmul.f32 %v11541, 1.442695
  %v11572 = vpow.pop %v11571
  %v11573 = vmul.f32 %v11542, 1.442695
  %v11574 = vpow.pop %v11573
  %v11575 = vadd.f32 %v11544, 1.0
  %v11576 = vadd.f32 %v11546, 1.0
  %v11577 = vadd.f32 %v11548, 1.0
  %v11578 = vadd.f32 %v11550, 1.0
  %v11579 = vadd.f32 %v11552, 1.0
  %v11580 = vadd.f32 %v11554, 1.0
  %v11581 = vadd.f32 %v11556, 1.0
  %v11582 = vadd.f32 %v11558, 1.0
  %v11583 = vadd.f32 %v11560, 1.0
  %v11584 = vadd.f32 %v11562, 1.0
  %v11585 = vadd.f32 %v11564, 1.0
  %v11586 = vadd.f32 %v11566, 1.0
  %v11587 = vadd.f32 %v11568, 1.0
  %v11588 = vadd.f32 %v11570, 1.0
  %v11589 = vadd.f32 %v11572, 1.0
  %v11590 = vadd.f32 %v11574, 1.0
  %v11591 = vrcp.pop %v11575
  %v11592 = vmul.f32 1.0, %v11591
  %v11593 = vrcp.pop %v11576
  %v11594 = vmul.f32 1.0, %v11593
  %v11595 = vrcp.pop %v11577
  %v11596 = vmul.f32 1.0, %v11595
  %v11597 = vrcp.pop %v11578
  %v11598 = vmul.f32 1.0, %v11597
  %v11599 = vrcp.pop %v11579
  %v11600 = vmul.f32 1.0, %v11599
  %v11601 = vrcp.pop %v11580
  %v11602 = vmul.f32 1.0, %v11601
  %v11603 = vrcp.pop %v11581
  %v11604 = vmul.f32 1.0, %v11603
  %v11605 = vrcp.pop %v11582
  %v11606 = vmul.f32 1.0, %v11605
  %v11607 = vrcp.pop %v11583
  %v11608 = vmul.f32 1.0, %v11607
  %v11609 = vrcp.pop %v11584
  %v11610 = vmul.f32 1.0, %v11609
  %v11611 = vrcp.pop %v11585
  %v11612 = vmul.f32 1.0, %v11611
  %v11613 = vrcp.pop %v11586
  %v11614 = vmul.f32 1.0, %v11613
  %v11615 = vrcp.pop %v11587
  %v11616 = vmul.f32 1.0, %v11615
  %v11617 = vrcp.pop %v11588
  %v11618 = vmul.f32 1.0, %v11617
  %v11619 = vrcp.pop %v11589
  %v11620 = vmul.f32 1.0, %v11619
  %v11621 = vrcp.pop %v11590
  %v11622 = vmul.f32 1.0, %v11621
  %v11623 = vmul.f32 %v11592, %v11511
  %v11624 = vmul.f32 %v11594, %v11512
  %v11625 = vmul.f32 %v11596, %v11513
  %v11626 = vmul.f32 %v11598, %v11514
  %v11627 = vmul.f32 %v11600, %v11515
  %v11628 = vmul.f32 %v11602, %v11516
  %v11629 = vmul.f32 %v11604, %v11517
  %v11630 = vmul.f32 %v11606, %v11518
  %v11631 = vmul.f32 %v11608, %v11519
  %v11632 = vmul.f32 %v11610, %v11520
  %v11633 = vmul.f32 %v11612, %v11521
  %v11634 = vmul.f32 %v11614, %v11522
  %v11635 = vmul.f32 %v11616, %v11523
  %v11636 = vmul.f32 %v11618, %v11524
  %v11637 = vmul.f32 %v11620, %v11525
  %v11638 = vmul.f32 %v11622, %v11526
  %v11639 = vsub.f32 1.0, %v11592
  %v11640 = vsub.f32 1.0, %v11594
  %v11641 = vsub.f32 1.0, %v11596
  %v11642 = vsub.f32 1.0, %v11598
  %v11643 = vsub.f32 1.0, %v11600
  %v11644 = vsub.f32 1.0, %v11602
  %v11645 = vsub.f32 1.0, %v11604
  %v11646 = vsub.f32 1.0, %v11606
  %v11647 = vsub.f32 1.0, %v11608
  %v11648 = vsub.f32 1.0, %v11610
  %v11649 = vsub.f32 1.0, %v11612
  %v11650 = vsub.f32 1.0, %v11614
  %v11651 = vsub.f32 1.0, %v11616
  %v11652 = vsub.f32 1.0, %v11618
  %v11653 = vsub.f32 1.0, %v11620
  %v11654 = vsub.f32 1.0, %v11622
  %v11655 = vmul.f32 %v11639, %v11283
  %v11656 = vmul.f32 %v11640, %v11284
  %v11657 = vmul.f32 %v11641, %v11285
  %v11658 = vmul.f32 %v11642, %v11286
  %v11659 = vmul.f32 %v11643, %v11287
  %v11660 = vmul.f32 %v11644, %v11288
  %v11661 = vmul.f32 %v11645, %v11289
  %v11662 = vmul.f32 %v11646, %v11290
  %v11663 = vmul.f32 %v11647, %v11291
  %v11664 = vmul.f32 %v11648, %v11292
  %v11665 = vmul.f32 %v11649, %v11293
  %v11666 = vmul.f32 %v11650, %v11294
  %v11667 = vmul.f32 %v11651, %v11295
  %v11668 = vmul.f32 %v11652, %v11296
  %v11669 = vmul.f32 %v11653, %v11297
  %v11670 = vmul.f32 %v11654, %v11298
  %v11671 = vadd.f32 %v11623, %v11655
  %v11672 = vadd.f32 %v11624, %v11656
  %v11673 = vadd.f32 %v11625, %v11657
  %v11674 = vadd.f32 %v11626, %v11658
  %v11675 = vadd.f32 %v11627, %v11659
  %v11676 = vadd.f32 %v11628, %v11660
  %v11677 = vadd.f32 %v11629, %v11661
  %v11678 = vadd.f32 %v11630, %v11662
  %v11679 = vadd.f32 %v11631, %v11663
  %v11680 = vadd.f32 %v11632, %v11664
  %v11681 = vadd.f32 %v11633, %v11665
  %v11682 = vadd.f32 %v11634, %v11666
  %v11683 = vadd.f32 %v11635, %v11667
  %v11684 = vadd.f32 %v11636, %v11668
  %v11685 = vadd.f32 %v11637, %v11669
  %v11686 = vadd.f32 %v11638, %v11670
  %11687 = vst [vmem:[%s5] sm:$0xff] %v11671
  %11688 = vst [vmem:[%s5 + $0x8] sm:$0xff] %v11672
  %11689 = vst [vmem:[%s5 + $0x10] sm:$0xff] %v11673
  %11690 = vst [vmem:[%s5 + $0x18] sm:$0xff] %v11674
  %11691 = vst [vmem:[%s5 + $0x20] sm:$0xff] %v11675
  %11692 = vst [vmem:[%s5 + $0x28] sm:$0xff] %v11676
  %11693 = vst [vmem:[%s5 + $0x30] sm:$0xff] %v11677
  %11694 = vst [vmem:[%s5 + $0x38] sm:$0xff] %v11678
  %11695 = vst [vmem:[%s5 + $0x40] sm:$0xff] %v11679
  %11696 = vst [vmem:[%s5 + $0x48] sm:$0xff] %v11680
  %11697 = vst [vmem:[%s5 + $0x50] sm:$0xff] %v11681
  %11698 = vst [vmem:[%s5 + $0x58] sm:$0xff] %v11682
  %11699 = vst [vmem:[%s5 + $0x60] sm:$0xff] %v11683
  %11700 = vst [vmem:[%s5 + $0x68] sm:$0xff] %v11684
  %11701 = vst [vmem:[%s5 + $0x70] sm:$0xff] %v11685
  %11702 = vst [vmem:[%s5 + $0x78] sm:$0xff] %v11686
  // Predicated region
  $region22: #{model_embeddings_forward.1} parent=0 // pred_check
    _
  $region23: #{model_embeddings_forward.1} parent=0 // pred_check_branch
    %11704 = sbr.rel (0) target = $region25
  $region24: #{model_embeddings_forward.1} parent=0 // pred_region
    _
  $region25: #{model_embeddings_forward.1} parent=0 // pred_fallthru
    _
  // Predicated region
  $region26: #{model_embeddings_forward.1} parent=0 // pred_check
    _
  $region27: #{model_embeddings_forward.1} parent=0 // pred_check_branch
    %11706 = sbr.rel (0) target = $region29
  $region28: #{model_embeddings_forward.1} parent=0 // pred_region
    _
  $region29: #{model_embeddings_forward.1} parent=0 // pred_fallthru
    _

</llo_original>
